<compile_context>
chip_gen: v6e
topology: v6e:2x2x1
jax: 0.10.0
libtpu: 0.0.40
codegen_flags: <defaults>
</compile_context>

<pallas_src>
import jax
import jax.numpy as jnp
from jax.experimental import pallas as pl
from jax.experimental.pallas import tpu as pltpu

EMBEDDING_DIM = 8
INPUT_SIZE = 11
HIDDEN = 1000                            # nn.Linear hidden width in the module
HIDDEN_PAD = 1024                        # padded to a multiple of 128 lanes
FEAT = INPUT_SIZE * EMBEDDING_DIM        # 88
FEAT_PAD = 128                           # padded K for layer 1
OUT_PAD = 128                            # lane-dense output slab; col 0 is real
BN_EPS = 1e-5

# Cardinality of each categorical feature (opt.*_range), payed_time fixed at 24.
VOCAB_SIZES = [24, 4, 5, 50, 10, 20, 30, 40, 40, 34, 100]


# ----------------------------- Pallas kernel -------------------------------
def fused_heads_kernel(x_ref, w1, b1, w2, b2, w3, b3, w4, b4, o_ref):
    """One grid step == one MLP head (BN already folded, dropout = identity)."""
    h = jnp.dot(x_ref[...], w1[...], preferred_element_type=jnp.float32) + b1[...]
    h = jnp.maximum(h, 0.0)
    h = jnp.dot(h, w2[...], preferred_element_type=jnp.float32) + b2[...]
    h = jnp.maximum(h, 0.0)
    h = jnp.dot(h, w3[...], preferred_element_type=jnp.float32) + b3[...]
    h = jnp.maximum(h, 0.0)
    o_ref[...] = jnp.dot(h, w4[...], preferred_element_type=jnp.float32) + b4[...]


def run_heads(feat, stacked):
    """feat: (B, FEAT) f32.  stacked: dict of 2-stacked folded/padded params.
    Returns (out1, out2), each (B, 1) f32."""
    B = feat.shape[0]
    Bp = max(8, ((B + 7) // 8) * 8)                       # sublane-align batch
    x = jnp.zeros((Bp, FEAT_PAD), jnp.float32).at[:B, :FEAT].set(feat)

    head_map = lambda h: (h, 0, 0)

    def stacked_spec(rows, cols):
        # Leading head dim is size-1 and squeezed out of the kernel view.
        return pl.BlockSpec((None, rows, cols), head_map)

    in_specs = [
        pl.BlockSpec((Bp, FEAT_PAD), lambda h: (0, 0)),   # shared features
        stacked_spec(FEAT_PAD, HIDDEN_PAD),               # w1
        stacked_spec(1, HIDDEN_PAD),                      # b1
        stacked_spec(HIDDEN_PAD, HIDDEN_PAD),             # w2
        stacked_spec(1, HIDDEN_PAD),                      # b2
        stacked_spec(HIDDEN_PAD, HIDDEN_PAD),             # w3
        stacked_spec(1, HIDDEN_PAD),                      # b3
        stacked_spec(HIDDEN_PAD, OUT_PAD),                # w4
        stacked_spec(1, OUT_PAD),                         # b4
    ]
    out_spec = pl.BlockSpec((None, Bp, OUT_PAD), head_map)

    out = pl.pallas_call(
        fused_heads_kernel,
        out_shape=jax.ShapeDtypeStruct((2, Bp, OUT_PAD), jnp.float32),
        grid=(2,),
        in_specs=in_specs,
        out_specs=out_spec,
        compiler_params=pltpu.CompilerParams(
            dimension_semantics=("parallel",),
            # ~9 MiB resident per head, ~18 MiB with double-buffering; 32 MiB
            # is within scoped VMEM on v5e/v6e (128 MiB) and v7x (64 MiB).
            vmem_limit_bytes=32 << 20,
        ),
    )(x, stacked["w1"], stacked["b1"], stacked["w2"], stacked["b2"],
      stacked["w3"], stacked["b3"], stacked["w4"], stacked["b4"])
    return out[0, :B, :1], out[1, :B, :1]


# ----------------------------- parameter setup ------------------------------
def make_head_params(key, in_dim, hidden=HIDDEN):
    """Synthetic raw (unfolded, unpadded) weights for one FC head."""
    ks = jax.random.split(key, 20)

    def bn(kg, kb, km, kv, n):
        gamma = 1.0 + 0.1 * jax.random.normal(kg, (1, n), jnp.float32)
        beta = 0.1 * jax.random.normal(kb, (1, n), jnp.float32)
        mean = 0.1 * jax.random.normal(km, (1, n), jnp.float32)
        var = jax.random.uniform(kv, (1, n), jnp.float32, 0.5, 1.5)
        return gamma, beta, mean, var

    p = []
    p += [0.05 * jax.random.normal(ks[0], (in_dim, hidden), jnp.float32),
          0.05 * jax.random.normal(ks[1], (1, hidden), jnp.float32),
          *bn(ks[2], ks[3], ks[4], ks[5], hidden)]
    p += [0.05 * jax.random.normal(ks[6], (hidden, hidden), jnp.float32),
          0.05 * jax.random.normal(ks[7], (1, hidden), jnp.float32),
          *bn(ks[8], ks[9], ks[10], ks[11], hidden)]
    p += [0.05 * jax.random.normal(ks[12], (hidden, hidden), jnp.float32),
          0.05 * jax.random.normal(ks[13], (1, hidden), jnp.float32),
          *bn(ks[14], ks[15], ks[16], ks[17], hidden)]
    p += [0.05 * jax.random.normal(ks[18], (hidden, 1), jnp.float32),
          0.05 * jax.random.normal(ks[19], (1, 1), jnp.float32)]
    return p


def fold_and_pad_head(p):
    """Fold eval-mode BatchNorm into the preceding Linear, zero-pad to
    lane-aligned TPU shapes.  Padded rows/cols are exact zeros so the math is
    unchanged (relu(0)=0 and zero rows contribute nothing downstream)."""
    (w1, b1, g1, be1, m1, v1,
     w2, b2, g2, be2, m2, v2,
     w3, b3, g3, be3, m3, v3,
     w4, b4) = p

    def fold(w, b, g, be, m, v):
        s = g / jnp.sqrt(v + BN_EPS)                      # (1, n)
        return w * s, (b - m) * s + be

    def pad(a, rows, cols):
        return jnp.zeros((rows, cols), jnp.float32).at[:a.shape[0], :a.shape[1]].set(a)

    w1f, b1f = fold(w1, b1, g1, be1, m1, v1)
    w2f, b2f = fold(w2, b2, g2, be2, m2, v2)
    w3f, b3f = fold(w3, b3, g3, be3, m3, v3)
    return (pad(w1f, FEAT_PAD, HIDDEN_PAD), pad(b1f, 1, HIDDEN_PAD),
            pad(w2f, HIDDEN_PAD, HIDDEN_PAD), pad(b2f, 1, HIDDEN_PAD),
            pad(w3f, HIDDEN_PAD, HIDDEN_PAD), pad(b3f, 1, HIDDEN_PAD),
            pad(w4, HIDDEN_PAD, OUT_PAD), pad(b4, 1, OUT_PAD))


def stack_heads(p1_folded, p2_folded):
    names = ("w1", "b1", "w2", "b2", "w3", "b3", "w4", "b4")
    return {n: jnp.stack([a, b]) for n, a, b in zip(names, p1_folded, p2_folded)}


def make_embeddings(key):
    keys = jax.random.split(key, len(VOCAB_SIZES))
    return [jax.random.normal(k, (vs, EMBEDDING_DIM), jnp.float32)
            for k, vs in zip(keys, VOCAB_SIZES)]


# ----------------------------- full forward ---------------------------------
def network_forward(x_idx, emb_tables, stacked_heads):
    # Embedding lookup + concat (plain-JAX gather glue around the Pallas MLPs).
    embs = [jnp.take(tbl, x_idx[:, i], axis=0) for i, tbl in enumerate(emb_tables)]
    feat = jnp.concatenate(embs, axis=1)      # (B, INPUT_SIZE * EMBEDDING_DIM)
    return run_heads(feat, stacked_heads)


# ----------------------------- pure-JAX references ---------------------------
def head_reference_raw(feat, p):
    """Reference of the ORIGINAL module math (Linear + eval-mode BN + ReLU)."""
    (w1, b1, g1, be1, m1, v1,
     w2, b2, g2, be2, m2, v2,
     w3, b3, g3, be3, m3, v3,
     w4, b4) = p

    def lbr(h, w, b, g, be, m, v):
        y = h @ w + b
        y = (y - m) / jnp.sqrt(v + BN_EPS) * g + be
        return jnp.maximum(y, 0.0)

    h = lbr(feat, w1, b1, g1, be1, m1, v1)
    h = lbr(h, w2, b2, g2, be2, m2, v2)
    h = lbr(h, w3, b3, g3, be3, m3, v3)
    return h @ w4 + b4


def head_reference_folded(feat, pf):
    """Reference on the folded/padded params (same operands the kernel sees)."""
    w1, b1, w2, b2, w3, b3, w4, b4 = pf
    x = jnp.zeros((feat.shape[0], FEAT_PAD), jnp.float32).at[:, :FEAT].set(feat)
    h = jnp.maximum(x @ w1 + b1, 0.0)
    h = jnp.maximum(h @ w2 + b2, 0.0)
    h = jnp.maximum(h @ w3 + b3, 0.0)
    return (h @ w4 + b4)[:, :1]


if __name__ == "__main__":
    key = jax.random.PRNGKey(0)
    k_emb, k_h1, k_h2, k_x = jax.random.split(key, 4)

    emb_tables = make_embeddings(k_emb)
    head1_raw = make_head_params(k_h1, FEAT)
    head2_raw = make_head_params(k_h2, FEAT)
    head1_f = fold_and_pad_head(head1_raw)
    head2_f = fold_and_pad_head(head2_raw)
    stacked = stack_heads(head1_f, head2_f)
    # TODO(synk): optionally cast the stacked weights to bfloat16 for ~2x on the
    # HBM roofline; kept f32 here to preserve the module's f32 numerics.

    # Small deterministic input: batch=8 rows of 11 categorical indices.
    B = 8
    maxvals = jnp.array(VOCAB_SIZES, dtype=jnp.int32)
    x_idx = (jax.random.randint(k_x, (B, INPUT_SIZE), 0, 1 << 30, jnp.int32)
             % maxvals[None, :]).astype(jnp.int32)

    out1, out2 = network_forward(x_idx, emb_tables, stacked)
    out1, out2 = jax.block_until_ready(out1), jax.block_until_ready(out2)
    assert out1.shape == (B, 1) and out2.shape == (B, 1)

    # Cross-checks against pure-JAX references of the same math.
    embs = [jnp.take(t, x_idx[:, i], axis=0) for i, t in enumerate(emb_tables)]
    feat = jnp.concatenate(embs, axis=1)

    # (a) tight check: kernel vs identical folded/padded operands.
    ref1_f = head_reference_folded(feat, head1_f)
    ref2_f = head_reference_folded(feat, head2_f)
    assert jnp.allclose(out1, ref1_f, rtol=1e-4, atol=1e-4)
    assert jnp.allclose(out2, ref2_f, rtol=1e-4, atol=1e-4)

    # (b) semantic check: BN folding is equivalent to the original Linear+BN+ReLU.
    ref1 = head_reference_raw(feat, head1_raw)
    ref2 = head_reference_raw(feat, head2_raw)
    assert jnp.allclose(out1, ref1, rtol=2e-2, atol=2e-2)
    assert jnp.allclose(out2, ref2, rtol=2e-2, atol=2e-2)

    print("KERNEL_OK")
</pallas_src>

<mosaic_0001>
module attributes {stable_mosaic.version = 11 : i64} {
  func.func @fused_heads_kernel(%arg0: i32, %arg1: memref<8x128xf32, #tpu.memory_space<vmem>>, %arg2: memref<1x128x1024xf32, #tpu.memory_space<vmem>>, %arg3: memref<1x1x1024xf32, #tpu.memory_space<vmem>>, %arg4: memref<1x1024x1024xf32, #tpu.memory_space<vmem>>, %arg5: memref<1x1x1024xf32, #tpu.memory_space<vmem>>, %arg6: memref<1x1024x1024xf32, #tpu.memory_space<vmem>>, %arg7: memref<1x1x1024xf32, #tpu.memory_space<vmem>>, %arg8: memref<1x1024x128xf32, #tpu.memory_space<vmem>>, %arg9: memref<1x1x128xf32, #tpu.memory_space<vmem>>, %arg10: memref<1x8x128xf32, #tpu.memory_space<vmem>>) attributes {dimension_semantics = [#tpu.dimension_semantics<parallel>], iteration_bounds = array<i64: 2>, scalar_prefetch = 0 : i64, scratch_operands = 0 : i64, tpu.core_type = #tpu.core_type<tc>, window_params = [{pipeline_mode = #tpu.pipeline_mode<synchronous>, transform_indices = @transform_0, window_bounds = array<i64: 8, 128>}, {transform_indices = @transform_1, window_bounds = array<i64: 1, 128, 1024>}, {transform_indices = @transform_2, window_bounds = array<i64: 1, 1, 1024>}, {transform_indices = @transform_3, window_bounds = array<i64: 1, 1024, 1024>}, {transform_indices = @transform_4, window_bounds = array<i64: 1, 1, 1024>}, {transform_indices = @transform_5, window_bounds = array<i64: 1, 1024, 1024>}, {transform_indices = @transform_6, window_bounds = array<i64: 1, 1, 1024>}, {transform_indices = @transform_7, window_bounds = array<i64: 1, 1024, 128>}, {transform_indices = @transform_8, window_bounds = array<i64: 1, 1, 128>}, {transform_indices = @transform_9, window_bounds = array<i64: 1, 8, 128>}]} {
    %c0 = arith.constant 0 : index
    %c0_0 = arith.constant 0 : index
    %0 = vector.load %arg1[%c0, %c0_0] : memref<8x128xf32, #tpu.memory_space<vmem>>, vector<8x128xf32>
    %c0_1 = arith.constant 0 : index
    %c0_2 = arith.constant 0 : index
    %c0_3 = arith.constant 0 : index
    %1 = vector.load %arg2[%c0_1, %c0_2, %c0_3] : memref<1x128x1024xf32, #tpu.memory_space<vmem>>, vector<1x128x1024xf32>
    %2 = vector.shape_cast %1 : vector<1x128x1024xf32> to vector<128x1024xf32>
    %cst = arith.constant dense<0.000000e+00> : vector<8x1024xf32>
    %3 = tpu.matmul %0, %2, %cst {dimension_numbers = #tpu.dot_dimension_numbers<[1], [0], [0], [1], [0, 0, 1, 1], [], []>} : vector<8x128xf32>, vector<128x1024xf32>, vector<8x1024xf32> -> vector<8x1024xf32>
    %c0_4 = arith.constant 0 : index
    %c0_5 = arith.constant 0 : index
    %c0_6 = arith.constant 0 : index
    %4 = vector.load %arg3[%c0_4, %c0_5, %c0_6] : memref<1x1x1024xf32, #tpu.memory_space<vmem>>, vector<1x1x1024xf32>
    %5 = vector.shape_cast %4 : vector<1x1x1024xf32> to vector<1x1024xf32>
    %6 = vector.broadcast %5 : vector<1x1024xf32> to vector<8x1024xf32>
    %7 = arith.addf %3, %6 : vector<8x1024xf32>
    %cst_7 = arith.constant 0.000000e+00 : f32
    %8 = vector.broadcast %cst_7 : f32 to vector<8x1024xf32>
    %9 = arith.maximumf %7, %8 : vector<8x1024xf32>
    %c0_8 = arith.constant 0 : index
    %c0_9 = arith.constant 0 : index
    %c0_10 = arith.constant 0 : index
    %10 = vector.load %arg4[%c0_8, %c0_9, %c0_10] : memref<1x1024x1024xf32, #tpu.memory_space<vmem>>, vector<1x1024x1024xf32>
    %11 = vector.shape_cast %10 : vector<1x1024x1024xf32> to vector<1024x1024xf32>
    %cst_11 = arith.constant dense<0.000000e+00> : vector<8x1024xf32>
    %12 = tpu.matmul %9, %11, %cst_11 {dimension_numbers = #tpu.dot_dimension_numbers<[1], [0], [0], [1], [0, 0, 1, 1], [], []>} : vector<8x1024xf32>, vector<1024x1024xf32>, vector<8x1024xf32> -> vector<8x1024xf32>
    %c0_12 = arith.constant 0 : index
    %c0_13 = arith.constant 0 : index
    %c0_14 = arith.constant 0 : index
    %13 = vector.load %arg5[%c0_12, %c0_13, %c0_14] : memref<1x1x1024xf32, #tpu.memory_space<vmem>>, vector<1x1x1024xf32>
    %14 = vector.shape_cast %13 : vector<1x1x1024xf32> to vector<1x1024xf32>
    %15 = vector.broadcast %14 : vector<1x1024xf32> to vector<8x1024xf32>
    %16 = arith.addf %12, %15 : vector<8x1024xf32>
    %cst_15 = arith.constant 0.000000e+00 : f32
    %17 = vector.broadcast %cst_15 : f32 to vector<8x1024xf32>
    %18 = arith.maximumf %16, %17 : vector<8x1024xf32>
    %c0_16 = arith.constant 0 : index
    %c0_17 = arith.constant 0 : index
    %c0_18 = arith.constant 0 : index
    %19 = vector.load %arg6[%c0_16, %c0_17, %c0_18] : memref<1x1024x1024xf32, #tpu.memory_space<vmem>>, vector<1x1024x1024xf32>
    %20 = vector.shape_cast %19 : vector<1x1024x1024xf32> to vector<1024x1024xf32>
    %cst_19 = arith.constant dense<0.000000e+00> : vector<8x1024xf32>
    %21 = tpu.matmul %18, %20, %cst_19 {dimension_numbers = #tpu.dot_dimension_numbers<[1], [0], [0], [1], [0, 0, 1, 1], [], []>} : vector<8x1024xf32>, vector<1024x1024xf32>, vector<8x1024xf32> -> vector<8x1024xf32>
    %c0_20 = arith.constant 0 : index
    %c0_21 = arith.constant 0 : index
    %c0_22 = arith.constant 0 : index
    %22 = vector.load %arg7[%c0_20, %c0_21, %c0_22] : memref<1x1x1024xf32, #tpu.memory_space<vmem>>, vector<1x1x1024xf32>
    %23 = vector.shape_cast %22 : vector<1x1x1024xf32> to vector<1x1024xf32>
    %24 = vector.broadcast %23 : vector<1x1024xf32> to vector<8x1024xf32>
    %25 = arith.addf %21, %24 : vector<8x1024xf32>
    %cst_23 = arith.constant 0.000000e+00 : f32
    %26 = vector.broadcast %cst_23 : f32 to vector<8x1024xf32>
    %27 = arith.maximumf %25, %26 : vector<8x1024xf32>
    %c0_24 = arith.constant 0 : index
    %c0_25 = arith.constant 0 : index
    %c0_26 = arith.constant 0 : index
    %28 = vector.load %arg8[%c0_24, %c0_25, %c0_26] : memref<1x1024x128xf32, #tpu.memory_space<vmem>>, vector<1x1024x128xf32>
    %29 = vector.shape_cast %28 : vector<1x1024x128xf32> to vector<1024x128xf32>
    %cst_27 = arith.constant dense<0.000000e+00> : vector<8x128xf32>
    %30 = tpu.matmul %27, %29, %cst_27 {dimension_numbers = #tpu.dot_dimension_numbers<[1], [0], [0], [1], [0, 0, 1, 1], [], []>} : vector<8x1024xf32>, vector<1024x128xf32>, vector<8x128xf32> -> vector<8x128xf32>
    %c0_28 = arith.constant 0 : index
    %c0_29 = arith.constant 0 : index
    %c0_30 = arith.constant 0 : index
    %31 = vector.load %arg9[%c0_28, %c0_29, %c0_30] : memref<1x1x128xf32, #tpu.memory_space<vmem>>, vector<1x1x128xf32>
    %32 = vector.shape_cast %31 : vector<1x1x128xf32> to vector<1x128xf32>
    %33 = vector.broadcast %32 : vector<1x128xf32> to vector<8x128xf32>
    %34 = arith.addf %30, %33 : vector<8x128xf32>
    %c0_31 = arith.constant 0 : index
    %c0_32 = arith.constant 0 : index
    %c0_33 = arith.constant 0 : index
    %35 = vector.load %arg10[%c0_31, %c0_32, %c0_33] : memref<1x8x128xf32, #tpu.memory_space<vmem>>, vector<1x8x128xf32>
    %36 = vector.shape_cast %35 : vector<1x8x128xf32> to vector<8x128xf32>
    %37 = vector.shape_cast %34 : vector<8x128xf32> to vector<1x8x128xf32>
    tpu.vector_store %arg10[%c0_31, %c0_32, %c0_33], %37 {strides = array<i32>} : memref<1x8x128xf32, #tpu.memory_space<vmem>>, vector<1x8x128xf32>,
    return
  }
  func.func @transform_0(%arg0: i32) -> (i32, i32) {
    %c0_i32 = arith.constant 0 : i32
    %c0_i32_0 = arith.constant 0 : i32
    %c0_i32_1 = arith.constant 0 : i32
    return %c0_i32, %c0_i32_0 : i32, i32
  }
  func.func @transform_1(%arg0: i32) -> (i32, i32, i32) {
    %c0_i32 = arith.constant 0 : i32
    %c0_i32_0 = arith.constant 0 : i32
    %c0_i32_1 = arith.constant 0 : i32
    return %arg0, %c0_i32, %c0_i32_0 : i32, i32, i32
  }
  func.func @transform_2(%arg0: i32) -> (i32, i32, i32) {
    %c0_i32 = arith.constant 0 : i32
    %c0_i32_0 = arith.constant 0 : i32
    %c0_i32_1 = arith.constant 0 : i32
    return %arg0, %c0_i32, %c0_i32_0 : i32, i32, i32
  }
  func.func @transform_3(%arg0: i32) -> (i32, i32, i32) {
    %c0_i32 = arith.constant 0 : i32
    %c0_i32_0 = arith.constant 0 : i32
    %c0_i32_1 = arith.constant 0 : i32
    return %arg0, %c0_i32, %c0_i32_0 : i32, i32, i32
  }
  func.func @transform_4(%arg0: i32) -> (i32, i32, i32) {
    %c0_i32 = arith.constant 0 : i32
    %c0_i32_0 = arith.constant 0 : i32
    %c0_i32_1 = arith.constant 0 : i32
    return %arg0, %c0_i32, %c0_i32_0 : i32, i32, i32
  }
  func.func @transform_5(%arg0: i32) -> (i32, i32, i32) {
    %c0_i32 = arith.constant 0 : i32
    %c0_i32_0 = arith.constant 0 : i32
    %c0_i32_1 = arith.constant 0 : i32
    return %arg0, %c0_i32, %c0_i32_0 : i32, i32, i32
  }
  func.func @transform_6(%arg0: i32) -> (i32, i32, i32) {
    %c0_i32 = arith.constant 0 : i32
    %c0_i32_0 = arith.constant 0 : i32
    %c0_i32_1 = arith.constant 0 : i32
    return %arg0, %c0_i32, %c0_i32_0 : i32, i32, i32
  }
  func.func @transform_7(%arg0: i32) -> (i32, i32, i32) {
    %c0_i32 = arith.constant 0 : i32
    %c0_i32_0 = arith.constant 0 : i32
    %c0_i32_1 = arith.constant 0 : i32
    return %arg0, %c0_i32, %c0_i32_0 : i32, i32, i32
  }
  func.func @transform_8(%arg0: i32) -> (i32, i32, i32) {
    %c0_i32 = arith.constant 0 : i32
    %c0_i32_0 = arith.constant 0 : i32
    %c0_i32_1 = arith.constant 0 : i32
    return %arg0, %c0_i32, %c0_i32_0 : i32, i32, i32
  }
  func.func @transform_9(%arg0: i32) -> (i32, i32, i32) {
    %c0_i32 = arith.constant 0 : i32
    %c0_i32_0 = arith.constant 0 : i32
    %c0_i32_1 = arith.constant 0 : i32
    return %arg0, %c0_i32, %c0_i32_0 : i32, i32, i32
  }
}

</mosaic_0001>

<llo_original>
// kernel: tpu_custom_call.1
$region0: #{tpu_custom_call.1}
  #allocation0 [shape = 'u32[]', space=smem, size = 0x4, offset = 0x4, fixed_abs, tag = 'smem constant byte address 0x4 - core index']
  #allocation1 [shape = 'u32[144,128]{1,0:T(1,128)}', space=vmem, size = 0x12000, scoped, tag = 'internal scratch']
  %s0 = inlined_call_operand.hbm [shape: f32[8,128], index: 0, kind: input, shape index: {}]
  %s1 = inlined_call_operand.hbm [shape: f32[2,128,1024], index: 1, kind: input, shape index: {}]
  %s2 = inlined_call_operand.hbm [shape: f32[2,1,1024], index: 2, kind: input, shape index: {}]
  %s3 = inlined_call_operand.hbm [shape: f32[2,1024,1024], index: 3, kind: input, shape index: {}]
  %s4 = inlined_call_operand.hbm [shape: f32[2,1,1024], index: 4, kind: input, shape index: {}]
  %s5 = inlined_call_operand.hbm [shape: f32[2,1024,1024], index: 5, kind: input, shape index: {}]
  %s6 = inlined_call_operand.hbm [shape: f32[2,1,1024], index: 6, kind: input, shape index: {}]
  %s7 = inlined_call_operand.hbm [shape: f32[2,1024,128], index: 7, kind: input, shape index: {}]
  %s8 = inlined_call_operand.hbm [shape: f32[2,1,128], index: 8, kind: input, shape index: {}]
  %s9 = inlined_call_operand.hbm [shape: f32[2,8,128], index: 9, kind: output, shape index: {}]
  %s10 = sld [smem:[#allocation0]]
  $region105: #{tpu_custom_call.1} parent=0
    _
  %s12 = ssub.s32 1, %s10
  %s13 = scalar_select 0, %s12, %s10
  $region1: #{tpu_custom_call.1} parent=0
    #allocation2 [shape = 'u8[4096]{0}', space=vmem, size = 0x1000, scoped, tag = 'input window, operand 0, single buffered']
    #allocation3 [shape = 's32[2]{0}', space=sflag, size = 0x8, scoped, tag = 'scoped memory for tpu_custom_call.1']
    #allocation4 [shape = 's32[2]{0}', space=sflag, size = 0x8, scoped, tag = 'scoped memory for tpu_custom_call.1']
    #allocation5 [shape = 'u8[1048576]{0}', space=vmem, size = 0x100000, scoped, tag = 'input window, operand 1']
    #allocation6 [shape = 's32[2]{0}', space=sflag, size = 0x8, scoped, tag = 'scoped memory for tpu_custom_call.1']
    #allocation7 [shape = 'u8[8192]{0}', space=vmem, size = 0x2000, scoped, tag = 'input window, operand 2']
    #allocation8 [shape = 'u8[8388608]{0}', space=vmem, size = 0x800000, scoped, tag = 'input window, operand 3']
    #allocation9 [shape = 's32[2]{0}', space=sflag, size = 0x8, scoped, tag = 'scoped memory for tpu_custom_call.1']
    #allocation10 [shape = 'u8[8192]{0}', space=vmem, size = 0x2000, scoped, tag = 'input window, operand 4']
    #allocation11 [shape = 'u8[8388608]{0}', space=vmem, size = 0x800000, scoped, tag = 'input window, operand 5']
    #allocation12 [shape = 's32[2]{0}', space=sflag, size = 0x8, scoped, tag = 'scoped memory for tpu_custom_call.1']
    #allocation13 [shape = 'u8[8192]{0}', space=vmem, size = 0x2000, scoped, tag = 'input window, operand 6']
    #allocation14 [shape = 'u8[1048576]{0}', space=vmem, size = 0x100000, scoped, tag = 'input window, operand 7']
    #allocation15 [shape = 's32[2]{0}', space=sflag, size = 0x8, scoped, tag = 'scoped memory for tpu_custom_call.1']
    #allocation16 [shape = 'u8[1024]{0}', space=vmem, size = 0x400, scoped, tag = 'input window, operand 8']
    #allocation17 [shape = 'u8[8192]{0}', space=vmem, size = 0x2000, scoped, tag = 'output window, operand 0']
    %14 = vsyncpa [#allocation3], 0
    %15 = vsyncpa [#allocation6], 0
    %s16 = scalar_lea.sflag [#allocation6], 1
    %17 = vsyncpa %s16, 0
    %18 = vsyncpa [#allocation9], 0
    %s19 = scalar_lea.sflag [#allocation9], 1
    %20 = vsyncpa %s19, 0
    %21 = vsyncpa [#allocation12], 0
    %s22 = scalar_lea.sflag [#allocation12], 1
    %23 = vsyncpa %s22, 0
    %24 = vsyncpa [#allocation15], 0
    %s25 = scalar_lea.sflag [#allocation15], 1
    %26 = vsyncpa %s25, 0
    %27 = vsyncpa [#allocation4], 0
    %s28 = scalar_lea.sflag [#allocation4], 1
    %29 = vsyncpa %s28, 0
    loop: start=0, step=1, limit=4
    $region2: #{tpu_custom_call.1} parent=1 // loop_pre_header
      _
    $region3: #{tpu_custom_call.1} parent=1 // loop_header
      %s31 = sphi 0, %s35
      %p32 = scmp.ge.s32.totalorder %s31, 4
      %s39 = sphi 0, %s39
      %s41 = sphi 0, %s39
      %s42 = sphi 0, %s41
      %s56 = sphi 0, %s42
      %s62 = sphi 0, %s64
      %s65 = sphi 0, %s62
      %s66 = sphi 0, %s65
      %s82 = sphi 0, %s66
      %s88 = sphi 0, %s90
      %s91 = sphi 0, %s88
      %s92 = sphi 0, %s91
      %s108 = sphi 0, %s92
      %s114 = sphi 0, %s116
      %s117 = sphi 0, %s114
      %s118 = sphi 0, %s117
      %s134 = sphi 0, %s118
      %s140 = sphi 0, %s142
      %s143 = sphi 0, %s140
      %s144 = sphi 0, %s143
      %s160 = sphi 0, %s144
      %s166 = sphi 0, %s168
      %s169 = sphi 0, %s166
      %s170 = sphi 0, %s169
      %s186 = sphi 0, %s170
      %s192 = sphi 0, %s194
      %s195 = sphi 0, %s192
      %s196 = sphi 0, %s195
      %s212 = sphi 0, %s196
      %s218 = sphi 0, %s220
      %s221 = sphi 0, %s218
      %s222 = sphi 0, %s221
      %s238 = sphi 0, %s222
      %s244 = sphi 0, %s246
      %s247 = sphi 0, %s244
      %s248 = sphi 0, %s247
      %s264 = sphi 0, %s248
      %s270 = sphi 0, %s272
      %s273 = sphi 0, %s270
      %s274 = sphi 0, %s273
      %s290 = sphi 0, %s274
    $region4: #{tpu_custom_call.1} parent=1 // loop_header_branch
      %34 = sbr.rel (%p32) target = $region8
    $region5: #{tpu_custom_call.1} parent=1 // loop_body
      %s36 = ssub.s32 %s31, 1
      %s37 = ssub.s32 %s31, 2
      %s38 = sadd.s32 %s31, 1
      %s40 = sadd.s32 %s39, 1
      %p43 = scmp.eq.s32.totalorder %s31, 1
      %p44 = scmp.ne.s32.totalorder %s39, %s41
      %p45 = scmp.eq.s32.totalorder %s31, 0
      %p46 = por %p44, %p45
      %p47 = scmp.ne.s32.totalorder %s39, %s41
      %p48 = scmp.eq.s32.totalorder %s36, 1
      %p49 = por %p47, %p48
      %p50 = scmp.ne.s32.totalorder %s41, %s42
      %p51 = scmp.eq.s32.totalorder %s36, 0
      %p52 = por %p50, %p51
      %p53 = scmp.ne.s32.totalorder %s41, %s42
      %p54 = scmp.eq.s32.totalorder %s37, 1
      %p55 = por %p53, %p54
      %p57 = scmp.ne.s32.totalorder %s42, %s56
      %p58 = scmp.eq.s32.totalorder %s37, 0
      %p59 = por %p57, %p58
      %s60 = ssub.s32 %s31, %s38
      %p61 = scmp.eq.s32.totalorder %s60, 0
      %s63 = sadd.s32 %s62, 1
      %s64 = scalar_select %p61, %s62, %s63
      %p67 = pneg %p61
      %p68 = scmp.eq.s32.totalorder %s31, 1
      %p69 = por %p67, %p68
      %p70 = scmp.ne.s32.totalorder %s62, %s65
      %p71 = scmp.eq.s32.totalorder %s31, 0
      %p72 = por %p70, %p71
      %p73 = scmp.ne.s32.totalorder %s62, %s65
      %p74 = scmp.eq.s32.totalorder %s36, 1
      %p75 = por %p73, %p74
      %p76 = scmp.ne.s32.totalorder %s65, %s66
      %p77 = scmp.eq.s32.totalorder %s36, 0
      %p78 = por %p76, %p77
      %p79 = scmp.ne.s32.totalorder %s65, %s66
      %p80 = scmp.eq.s32.totalorder %s37, 1
      %p81 = por %p79, %p80
      %p83 = scmp.ne.s32.totalorder %s66, %s82
      %p84 = scmp.eq.s32.totalorder %s37, 0
      %p85 = por %p83, %p84
      %s86 = ssub.s32 %s31, %s38
      %p87 = scmp.eq.s32.totalorder %s86, 0
      %s89 = sadd.s32 %s88, 1
      %s90 = scalar_select %p87, %s88, %s89
      %p93 = pneg %p87
      %p94 = scmp.eq.s32.totalorder %s31, 1
      %p95 = por %p93, %p94
      %p96 = scmp.ne.s32.totalorder %s88, %s91
      %p97 = scmp.eq.s32.totalorder %s31, 0
      %p98 = por %p96, %p97
      %p99 = scmp.ne.s32.totalorder %s88, %s91
      %p100 = scmp.eq.s32.totalorder %s36, 1
      %p101 = por %p99, %p100
      %p102 = scmp.ne.s32.totalorder %s91, %s92
      %p103 = scmp.eq.s32.totalorder %s36, 0
      %p104 = por %p102, %p103
      %p105 = scmp.ne.s32.totalorder %s91, %s92
      %p106 = scmp.eq.s32.totalorder %s37, 1
      %p107 = por %p105, %p106
      %p109 = scmp.ne.s32.totalorder %s92, %s108
      %p110 = scmp.eq.s32.totalorder %s37, 0
      %p111 = por %p109, %p110
      %s112 = ssub.s32 %s31, %s38
      %p113 = scmp.eq.s32.totalorder %s112, 0
      %s115 = sadd.s32 %s114, 1
      %s116 = scalar_select %p113, %s114, %s115
      %p119 = pneg %p113
      %p120 = scmp.eq.s32.totalorder %s31, 1
      %p121 = por %p119, %p120
      %p122 = scmp.ne.s32.totalorder %s114, %s117
      %p123 = scmp.eq.s32.totalorder %s31, 0
      %p124 = por %p122, %p123
      %p125 = scmp.ne.s32.totalorder %s114, %s117
      %p126 = scmp.eq.s32.totalorder %s36, 1
      %p127 = por %p125, %p126
      %p128 = scmp.ne.s32.totalorder %s117, %s118
      %p129 = scmp.eq.s32.totalorder %s36, 0
      %p130 = por %p128, %p129
      %p131 = scmp.ne.s32.totalorder %s117, %s118
      %p132 = scmp.eq.s32.totalorder %s37, 1
      %p133 = por %p131, %p132
      %p135 = scmp.ne.s32.totalorder %s118, %s134
      %p136 = scmp.eq.s32.totalorder %s37, 0
      %p137 = por %p135, %p136
      %s138 = ssub.s32 %s31, %s38
      %p139 = scmp.eq.s32.totalorder %s138, 0
      %s141 = sadd.s32 %s140, 1
      %s142 = scalar_select %p139, %s140, %s141
      %p145 = pneg %p139
      %p146 = scmp.eq.s32.totalorder %s31, 1
      %p147 = por %p145, %p146
      %p148 = scmp.ne.s32.totalorder %s140, %s143
      %p149 = scmp.eq.s32.totalorder %s31, 0
      %p150 = por %p148, %p149
      %p151 = scmp.ne.s32.totalorder %s140, %s143
      %p152 = scmp.eq.s32.totalorder %s36, 1
      %p153 = por %p151, %p152
      %p154 = scmp.ne.s32.totalorder %s143, %s144
      %p155 = scmp.eq.s32.totalorder %s36, 0
      %p156 = por %p154, %p155
      %p157 = scmp.ne.s32.totalorder %s143, %s144
      %p158 = scmp.eq.s32.totalorder %s37, 1
      %p159 = por %p157, %p158
      %p161 = scmp.ne.s32.totalorder %s144, %s160
      %p162 = scmp.eq.s32.totalorder %s37, 0
      %p163 = por %p161, %p162
      %s164 = ssub.s32 %s31, %s38
      %p165 = scmp.eq.s32.totalorder %s164, 0
      %s167 = sadd.s32 %s166, 1
      %s168 = scalar_select %p165, %s166, %s167
      %p171 = pneg %p165
      %p172 = scmp.eq.s32.totalorder %s31, 1
      %p173 = por %p171, %p172
      %p174 = scmp.ne.s32.totalorder %s166, %s169
      %p175 = scmp.eq.s32.totalorder %s31, 0
      %p176 = por %p174, %p175
      %p177 = scmp.ne.s32.totalorder %s166, %s169
      %p178 = scmp.eq.s32.totalorder %s36, 1
      %p179 = por %p177, %p178
      %p180 = scmp.ne.s32.totalorder %s169, %s170
      %p181 = scmp.eq.s32.totalorder %s36, 0
      %p182 = por %p180, %p181
      %p183 = scmp.ne.s32.totalorder %s169, %s170
      %p184 = scmp.eq.s32.totalorder %s37, 1
      %p185 = por %p183, %p184
      %p187 = scmp.ne.s32.totalorder %s170, %s186
      %p188 = scmp.eq.s32.totalorder %s37, 0
      %p189 = por %p187, %p188
      %s190 = ssub.s32 %s31, %s38
      %p191 = scmp.eq.s32.totalorder %s190, 0
      %s193 = sadd.s32 %s192, 1
      %s194 = scalar_select %p191, %s192, %s193
      %p197 = pneg %p191
      %p198 = scmp.eq.s32.totalorder %s31, 1
      %p199 = por %p197, %p198
      %p200 = scmp.ne.s32.totalorder %s192, %s195
      %p201 = scmp.eq.s32.totalorder %s31, 0
      %p202 = por %p200, %p201
      %p203 = scmp.ne.s32.totalorder %s192, %s195
      %p204 = scmp.eq.s32.totalorder %s36, 1
      %p205 = por %p203, %p204
      %p206 = scmp.ne.s32.totalorder %s195, %s196
      %p207 = scmp.eq.s32.totalorder %s36, 0
      %p208 = por %p206, %p207
      %p209 = scmp.ne.s32.totalorder %s195, %s196
      %p210 = scmp.eq.s32.totalorder %s37, 1
      %p211 = por %p209, %p210
      %p213 = scmp.ne.s32.totalorder %s196, %s212
      %p214 = scmp.eq.s32.totalorder %s37, 0
      %p215 = por %p213, %p214
      %s216 = ssub.s32 %s31, %s38
      %p217 = scmp.eq.s32.totalorder %s216, 0
      %s219 = sadd.s32 %s218, 1
      %s220 = scalar_select %p217, %s218, %s219
      %p223 = pneg %p217
      %p224 = scmp.eq.s32.totalorder %s31, 1
      %p225 = por %p223, %p224
      %p226 = scmp.ne.s32.totalorder %s218, %s221
      %p227 = scmp.eq.s32.totalorder %s31, 0
      %p228 = por %p226, %p227
      %p229 = scmp.ne.s32.totalorder %s218, %s221
      %p230 = scmp.eq.s32.totalorder %s36, 1
      %p231 = por %p229, %p230
      %p232 = scmp.ne.s32.totalorder %s221, %s222
      %p233 = scmp.eq.s32.totalorder %s36, 0
      %p234 = por %p232, %p233
      %p235 = scmp.ne.s32.totalorder %s221, %s222
      %p236 = scmp.eq.s32.totalorder %s37, 1
      %p237 = por %p235, %p236
      %p239 = scmp.ne.s32.totalorder %s222, %s238
      %p240 = scmp.eq.s32.totalorder %s37, 0
      %p241 = por %p239, %p240
      %s242 = ssub.s32 %s31, %s38
      %p243 = scmp.eq.s32.totalorder %s242, 0
      %s245 = sadd.s32 %s244, 1
      %s246 = scalar_select %p243, %s244, %s245
      %p249 = pneg %p243
      %p250 = scmp.eq.s32.totalorder %s31, 1
      %p251 = por %p249, %p250
      %p252 = scmp.ne.s32.totalorder %s244, %s247
      %p253 = scmp.eq.s32.totalorder %s31, 0
      %p254 = por %p252, %p253
      %p255 = scmp.ne.s32.totalorder %s244, %s247
      %p256 = scmp.eq.s32.totalorder %s36, 1
      %p257 = por %p255, %p256
      %p258 = scmp.ne.s32.totalorder %s247, %s248
      %p259 = scmp.eq.s32.totalorder %s36, 0
      %p260 = por %p258, %p259
      %p261 = scmp.ne.s32.totalorder %s247, %s248
      %p262 = scmp.eq.s32.totalorder %s37, 1
      %p263 = por %p261, %p262
      %p265 = scmp.ne.s32.totalorder %s248, %s264
      %p266 = scmp.eq.s32.totalorder %s37, 0
      %p267 = por %p265, %p266
      %s268 = ssub.s32 %s31, %s38
      %p269 = scmp.eq.s32.totalorder %s268, 0
      %s271 = sadd.s32 %s270, 1
      %s272 = scalar_select %p269, %s270, %s271
      %p275 = pneg %p269
      %p276 = scmp.eq.s32.totalorder %s31, 1
      %p277 = por %p275, %p276
      %p278 = scmp.ne.s32.totalorder %s270, %s273
      %p279 = scmp.eq.s32.totalorder %s31, 0
      %p280 = por %p278, %p279
      %p281 = scmp.ne.s32.totalorder %s270, %s273
      %p282 = scmp.eq.s32.totalorder %s36, 1
      %p283 = por %p281, %p282
      %p284 = scmp.ne.s32.totalorder %s273, %s274
      %p285 = scmp.eq.s32.totalorder %s36, 0
      %p286 = por %p284, %p285
      %p287 = scmp.ne.s32.totalorder %s273, %s274
      %p288 = scmp.eq.s32.totalorder %s37, 1
      %p289 = por %p287, %p288
      %p291 = scmp.ne.s32.totalorder %s274, %s290
      %p292 = scmp.eq.s32.totalorder %s37, 0
      %p293 = por %p291, %p292
      %p294 = scmp.le.s32.totalorder 1, %s31
      %p295 = scmp.lt.s32.totalorder %s31, 3
      %p296 = pnand %p294, %p295
      %p297 = pneg %p296
      // Predicated region
      $region9: #{tpu_custom_call.1} parent=5 // pred_check
        _
      $region10: #{tpu_custom_call.1} parent=5 // pred_check_branch
        %299 = sbr.rel (%p296) target = $region12
      $region11: #{tpu_custom_call.1} parent=5 // pred_region
        %s300 = ssub.s32 %s31, 1
        // Predicated region
        $region13: #{tpu_custom_call.1} parent=11 // pred_check
          %p301 = pneg %p52
        $region14: #{tpu_custom_call.1} parent=11 // pred_check_branch
          %303 = sbr.rel (%p301) target = $region16
        $region15: #{tpu_custom_call.1} parent=11 // pred_region
          %s305 = ssub.s32 128, 128
          %306 = vsyncadd [#allocation3], %s305
          %s308 = sshll.u32 [#allocation2], 4
          %s309 = int_to_ptr.vmem [resolvable:$true] %s308
          %311 = dma.hbm_to_vmem [thread:$0]  %s0, 128, %s309, [#allocation3]
        $region16: #{tpu_custom_call.1} parent=11 // pred_fallthru
          _
      $region12: #{tpu_custom_call.1} parent=5 // pred_fallthru
        _
      %p312 = scmp.lt.s32.totalorder %s31, 2
      // Predicated region
      $region17: #{tpu_custom_call.1} parent=5 // pred_check
        %p313 = pneg %p312
      $region18: #{tpu_custom_call.1} parent=5 // pred_check_branch
        %315 = sbr.rel (%p313) target = $region20
      $region19: #{tpu_custom_call.1} parent=5 // pred_region
        // Predicated region
        $region21: #{tpu_custom_call.1} parent=19 // pred_check
          %p316 = pneg %p72
        $region22: #{tpu_custom_call.1} parent=19 // pred_check_branch
          %318 = sbr.rel (%p316) target = $region24
        $region23: #{tpu_custom_call.1} parent=19 // pred_region
          %s319 = sand.u32 %s31, 1
          %s320 = scalar_lea.sflag [#allocation6], %s319
          %s321 = sand.u32 %s62, 1
          %s322 = smul.addr %s321, 1024
          %s323 = scalar_lea.vmem [#allocation5], %s322
          %s325 = ssub.s32 16384, 16384
          %326 = vsyncadd %s320, %s325
          %s327 = smul.addr %s31, 128
          %s328 = smul.addr %s327, 128
          %s329 = scalar_lea.hbm %s1, %s328
          %s330 = sshll.u32 %s323, 4
          %s331 = int_to_ptr.vmem [resolvable:$true] %s330
          %336 = dma.hbm_to_vmem [thread:$0]  %s329, 16384, %s331, %s320, 1024, 1024, 64
        $region24: #{tpu_custom_call.1} parent=19 // pred_fallthru
          _
        // Predicated region
        $region25: #{tpu_custom_call.1} parent=19 // pred_check
          %p337 = pneg %p98
        $region26: #{tpu_custom_call.1} parent=19 // pred_check_branch
          %339 = sbr.rel (%p337) target = $region28
        $region27: #{tpu_custom_call.1} parent=19 // pred_region
          %s340 = sand.u32 %s31, 1
          %s341 = scalar_lea.sflag [#allocation6], %s340
          %s342 = sand.u32 %s88, 1
          %s343 = smul.addr %s342, 8
          %s344 = scalar_lea.vmem [#allocation7], %s343
          %s346 = ssub.s32 128, 128
          %347 = vsyncadd %s341, %s346
          %s348 = smul.addr %s31, 8
          %s349 = smul.addr %s348, 16
          %s350 = scalar_lea.hbm %s2, %s349
          %s352 = sshll.u32 %s344, 4
          %s353 = int_to_ptr.vmem [resolvable:$true] %s352
          %355 = dma.hbm_to_vmem [thread:$0]  %s350, 128, %s353, %s341
        $region28: #{tpu_custom_call.1} parent=19 // pred_fallthru
          _
        // Predicated region
        $region29: #{tpu_custom_call.1} parent=19 // pred_check
          %p356 = pneg %p124
        $region30: #{tpu_custom_call.1} parent=19 // pred_check_branch
          %358 = sbr.rel (%p356) target = $region32
        $region31: #{tpu_custom_call.1} parent=19 // pred_region
          %s359 = sand.u32 %s31, 1
          %s360 = scalar_lea.sflag [#allocation9], %s359
          %s361 = sand.u32 %s114, 1
          %s362 = smul.addr %s361, 8192
          %s363 = scalar_lea.vmem [#allocation8], %s362
          %s365 = ssub.s32 131072, 131072
          %366 = vsyncadd %s360, %s365
          %s367 = smul.addr %s31, 1024
          %s368 = smul.addr %s367, 128
          %s369 = scalar_lea.hbm %s3, %s368
          %s370 = sshll.u32 %s363, 4
          %s371 = int_to_ptr.vmem [resolvable:$true] %s370
          %376 = dma.hbm_to_vmem [thread:$0]  %s369, 131072, %s371, %s360, 1024, 1024, 64
        $region32: #{tpu_custom_call.1} parent=19 // pred_fallthru
          _
        // Predicated region
        $region33: #{tpu_custom_call.1} parent=19 // pred_check
          %p377 = pneg %p150
        $region34: #{tpu_custom_call.1} parent=19 // pred_check_branch
          %379 = sbr.rel (%p377) target = $region36
        $region35: #{tpu_custom_call.1} parent=19 // pred_region
          %s380 = sand.u32 %s31, 1
          %s381 = scalar_lea.sflag [#allocation9], %s380
          %s382 = sand.u32 %s140, 1
          %s383 = smul.addr %s382, 8
          %s384 = scalar_lea.vmem [#allocation10], %s383
          %s386 = ssub.s32 128, 128
          %387 = vsyncadd %s381, %s386
          %s388 = smul.addr %s31, 8
          %s389 = smul.addr %s388, 16
          %s390 = scalar_lea.hbm %s4, %s389
          %s392 = sshll.u32 %s384, 4
          %s393 = int_to_ptr.vmem [resolvable:$true] %s392
          %395 = dma.hbm_to_vmem [thread:$0]  %s390, 128, %s393, %s381
        $region36: #{tpu_custom_call.1} parent=19 // pred_fallthru
          _
        // Predicated region
        $region37: #{tpu_custom_call.1} parent=19 // pred_check
          %p396 = pneg %p176
        $region38: #{tpu_custom_call.1} parent=19 // pred_check_branch
          %398 = sbr.rel (%p396) target = $region40
        $region39: #{tpu_custom_call.1} parent=19 // pred_region
          %s399 = sand.u32 %s31, 1
          %s400 = scalar_lea.sflag [#allocation12], %s399
          %s401 = sand.u32 %s166, 1
          %s402 = smul.addr %s401, 8192
          %s403 = scalar_lea.vmem [#allocation11], %s402
          %s405 = ssub.s32 131072, 131072
          %406 = vsyncadd %s400, %s405
          %s407 = smul.addr %s31, 1024
          %s408 = smul.addr %s407, 128
          %s409 = scalar_lea.hbm %s5, %s408
          %s410 = sshll.u32 %s403, 4
          %s411 = int_to_ptr.vmem [resolvable:$true] %s410
          %416 = dma.hbm_to_vmem [thread:$0]  %s409, 131072, %s411, %s400, 1024, 1024, 64
        $region40: #{tpu_custom_call.1} parent=19 // pred_fallthru
          _
        // Predicated region
        $region41: #{tpu_custom_call.1} parent=19 // pred_check
          %p417 = pneg %p202
        $region42: #{tpu_custom_call.1} parent=19 // pred_check_branch
          %419 = sbr.rel (%p417) target = $region44
        $region43: #{tpu_custom_call.1} parent=19 // pred_region
          %s420 = sand.u32 %s31, 1
          %s421 = scalar_lea.sflag [#allocation12], %s420
          %s422 = sand.u32 %s192, 1
          %s423 = smul.addr %s422, 8
          %s424 = scalar_lea.vmem [#allocation13], %s423
          %s426 = ssub.s32 128, 128
          %427 = vsyncadd %s421, %s426
          %s428 = smul.addr %s31, 8
          %s429 = smul.addr %s428, 16
          %s430 = scalar_lea.hbm %s6, %s429
          %s432 = sshll.u32 %s424, 4
          %s433 = int_to_ptr.vmem [resolvable:$true] %s432
          %435 = dma.hbm_to_vmem [thread:$0]  %s430, 128, %s433, %s421
        $region44: #{tpu_custom_call.1} parent=19 // pred_fallthru
          _
        // Predicated region
        $region45: #{tpu_custom_call.1} parent=19 // pred_check
          %p436 = pneg %p228
        $region46: #{tpu_custom_call.1} parent=19 // pred_check_branch
          %438 = sbr.rel (%p436) target = $region48
        $region47: #{tpu_custom_call.1} parent=19 // pred_region
          %s439 = sand.u32 %s31, 1
          %s440 = scalar_lea.sflag [#allocation15], %s439
          %s441 = sand.u32 %s218, 1
          %s442 = smul.addr %s441, 1024
          %s443 = scalar_lea.vmem [#allocation14], %s442
          %s445 = ssub.s32 16384, 16384
          %446 = vsyncadd %s440, %s445
          %s447 = smul.addr %s31, 128
          %s448 = smul.addr %s447, 128
          %s449 = scalar_lea.hbm %s7, %s448
          %s450 = sshll.u32 %s443, 4
          %s451 = int_to_ptr.vmem [resolvable:$true] %s450
          %456 = dma.hbm_to_vmem [thread:$0]  %s449, 16384, %s451, %s440, 128, 128, 8
        $region48: #{tpu_custom_call.1} parent=19 // pred_fallthru
          _
        // Predicated region
        $region49: #{tpu_custom_call.1} parent=19 // pred_check
          %p457 = pneg %p254
        $region50: #{tpu_custom_call.1} parent=19 // pred_check_branch
          %459 = sbr.rel (%p457) target = $region52
        $region51: #{tpu_custom_call.1} parent=19 // pred_region
          %s460 = sand.u32 %s31, 1
          %s461 = scalar_lea.sflag [#allocation15], %s460
          %s462 = sand.u32 %s244, 1
          %s463 = scalar_lea.vmem [#allocation16], %s462
          %s465 = ssub.s32 16, 16
          %466 = vsyncadd %s461, %s465
          %s467 = smul.addr %s31, 16
          %s468 = scalar_lea.hbm %s8, %s467
          %s470 = sshll.u32 %s463, 4
          %s471 = int_to_ptr.vmem [resolvable:$true] %s470
          %473 = dma.hbm_to_vmem [thread:$0]  %s468, 16, %s471, %s461
        $region52: #{tpu_custom_call.1} parent=19 // pred_fallthru
          _
      $region20: #{tpu_custom_call.1} parent=5 // pred_fallthru
        _
      %p474 = scmp.le.s32.totalorder 1, %s31
      %p475 = scmp.lt.s32.totalorder %s31, 3
      %p476 = pnand %p474, %p475
      %p477 = pneg %p476
      // Predicated region
      $region53: #{tpu_custom_call.1} parent=5 // pred_check
        _
      $region54: #{tpu_custom_call.1} parent=5 // pred_check_branch
        %479 = sbr.rel (%p476) target = $region56
      $region55: #{tpu_custom_call.1} parent=5 // pred_region
        %s480 = ssub.s32 %s31, 1
        // Predicated region
        $region57: #{tpu_custom_call.1} parent=55 // pred_check
          %p481 = pneg %p52
        $region58: #{tpu_custom_call.1} parent=55 // pred_check_branch
          %483 = sbr.rel (%p481) target = $region60
        $region59: #{tpu_custom_call.1} parent=55 // pred_region
          %484 = dma.done [#allocation3], 128
        $region60: #{tpu_custom_call.1} parent=55 // pred_fallthru
          _
        %s485 = sand.u32 %s36, 1
        %s486 = scalar_lea.sflag [#allocation6], %s485
        %s487 = sand.u32 %s65, 1
        %s488 = smul.addr %s487, 1024
        %s489 = scalar_lea.vmem [#allocation5], %s488
        // Predicated region
        $region61: #{tpu_custom_call.1} parent=55 // pred_check
          %p490 = pneg %p78
        $region62: #{tpu_custom_call.1} parent=55 // pred_check_branch
          %492 = sbr.rel (%p490) target = $region64
        $region63: #{tpu_custom_call.1} parent=55 // pred_region
          %493 = dma.done %s486, 16384
        $region64: #{tpu_custom_call.1} parent=55 // pred_fallthru
          _
        %s494 = sand.u32 %s36, 1
        %s495 = scalar_lea.sflag [#allocation6], %s494
        %s496 = sand.u32 %s91, 1
        %s497 = smul.addr %s496, 8
        %s498 = scalar_lea.vmem [#allocation7], %s497
        // Predicated region
        $region65: #{tpu_custom_call.1} parent=55 // pred_check
          %p499 = pneg %p104
        $region66: #{tpu_custom_call.1} parent=55 // pred_check_branch
          %501 = sbr.rel (%p499) target = $region68
        $region67: #{tpu_custom_call.1} parent=55 // pred_region
          %502 = dma.done %s495, 128
        $region68: #{tpu_custom_call.1} parent=55 // pred_fallthru
          _
        %s503 = sand.u32 %s36, 1
        %s504 = scalar_lea.sflag [#allocation9], %s503
        %s505 = sand.u32 %s117, 1
        %s506 = smul.addr %s505, 8192
        %s507 = scalar_lea.vmem [#allocation8], %s506
        // Predicated region
        $region69: #{tpu_custom_call.1} parent=55 // pred_check
          %p508 = pneg %p130
        $region70: #{tpu_custom_call.1} parent=55 // pred_check_branch
          %510 = sbr.rel (%p508) target = $region72
        $region71: #{tpu_custom_call.1} parent=55 // pred_region
          %511 = dma.done %s504, 131072
        $region72: #{tpu_custom_call.1} parent=55 // pred_fallthru
          _
        %s512 = sand.u32 %s36, 1
        %s513 = scalar_lea.sflag [#allocation9], %s512
        %s514 = sand.u32 %s143, 1
        %s515 = smul.addr %s514, 8
        %s516 = scalar_lea.vmem [#allocation10], %s515
        // Predicated region
        $region73: #{tpu_custom_call.1} parent=55 // pred_check
          %p517 = pneg %p156
        $region74: #{tpu_custom_call.1} parent=55 // pred_check_branch
          %519 = sbr.rel (%p517) target = $region76
        $region75: #{tpu_custom_call.1} parent=55 // pred_region
          %520 = dma.done %s513, 128
        $region76: #{tpu_custom_call.1} parent=55 // pred_fallthru
          _
        %s521 = sand.u32 %s36, 1
        %s522 = scalar_lea.sflag [#allocation12], %s521
        %s523 = sand.u32 %s169, 1
        %s524 = smul.addr %s523, 8192
        %s525 = scalar_lea.vmem [#allocation11], %s524
        // Predicated region
        $region77: #{tpu_custom_call.1} parent=55 // pred_check
          %p526 = pneg %p182
        $region78: #{tpu_custom_call.1} parent=55 // pred_check_branch
          %528 = sbr.rel (%p526) target = $region80
        $region79: #{tpu_custom_call.1} parent=55 // pred_region
          %529 = dma.done %s522, 131072
        $region80: #{tpu_custom_call.1} parent=55 // pred_fallthru
          _
        %s530 = sand.u32 %s36, 1
        %s531 = scalar_lea.sflag [#allocation12], %s530
        %s532 = sand.u32 %s195, 1
        %s533 = smul.addr %s532, 8
        %s534 = scalar_lea.vmem [#allocation13], %s533
        // Predicated region
        $region81: #{tpu_custom_call.1} parent=55 // pred_check
          %p535 = pneg %p208
        $region82: #{tpu_custom_call.1} parent=55 // pred_check_branch
          %537 = sbr.rel (%p535) target = $region84
        $region83: #{tpu_custom_call.1} parent=55 // pred_region
          %538 = dma.done %s531, 128
        $region84: #{tpu_custom_call.1} parent=55 // pred_fallthru
          _
        %s539 = sand.u32 %s36, 1
        %s540 = scalar_lea.sflag [#allocation15], %s539
        %s541 = sand.u32 %s221, 1
        %s542 = smul.addr %s541, 1024
        %s543 = scalar_lea.vmem [#allocation14], %s542
        // Predicated region
        $region85: #{tpu_custom_call.1} parent=55 // pred_check
          %p544 = pneg %p234
        $region86: #{tpu_custom_call.1} parent=55 // pred_check_branch
          %546 = sbr.rel (%p544) target = $region88
        $region87: #{tpu_custom_call.1} parent=55 // pred_region
          %547 = dma.done %s540, 16384
        $region88: #{tpu_custom_call.1} parent=55 // pred_fallthru
          _
        %s548 = sand.u32 %s36, 1
        %s549 = scalar_lea.sflag [#allocation15], %s548
        %s550 = sand.u32 %s247, 1
        %s551 = scalar_lea.vmem [#allocation16], %s550
        // Predicated region
        $region89: #{tpu_custom_call.1} parent=55 // pred_check
          %p552 = pneg %p260
        $region90: #{tpu_custom_call.1} parent=55 // pred_check_branch
          %554 = sbr.rel (%p552) target = $region92
        $region91: #{tpu_custom_call.1} parent=55 // pred_region
          %555 = dma.done %s549, 16
        $region92: #{tpu_custom_call.1} parent=55 // pred_fallthru
          _
        %p556 = pneg %p52
        %p557 = pneg %p49
        %s558 = sand.u32 %s36, 1
        %s559 = scalar_lea.sflag [#allocation6], %s558
        %s560 = sand.u32 %s65, 1
        %s561 = smul.addr %s560, 1024
        %s562 = scalar_lea.vmem [#allocation5], %s561
        %p563 = pneg %p78
        %p564 = pneg %p75
        %s565 = sand.u32 %s36, 1
        %s566 = scalar_lea.sflag [#allocation6], %s565
        %s567 = sand.u32 %s91, 1
        %s568 = smul.addr %s567, 8
        %s569 = scalar_lea.vmem [#allocation7], %s568
        %p570 = pneg %p104
        %p571 = pneg %p101
        %s572 = sand.u32 %s36, 1
        %s573 = scalar_lea.sflag [#allocation9], %s572
        %s574 = sand.u32 %s117, 1
        %s575 = smul.addr %s574, 8192
        %s576 = scalar_lea.vmem [#allocation8], %s575
        %p577 = pneg %p130
        %p578 = pneg %p127
        %s579 = sand.u32 %s36, 1
        %s580 = scalar_lea.sflag [#allocation9], %s579
        %s581 = sand.u32 %s143, 1
        %s582 = smul.addr %s581, 8
        %s583 = scalar_lea.vmem [#allocation10], %s582
        %p584 = pneg %p156
        %p585 = pneg %p153
        %s586 = sand.u32 %s36, 1
        %s587 = scalar_lea.sflag [#allocation12], %s586
        %s588 = sand.u32 %s169, 1
        %s589 = smul.addr %s588, 8192
        %s590 = scalar_lea.vmem [#allocation11], %s589
        %p591 = pneg %p182
        %p592 = pneg %p179
        %s593 = sand.u32 %s36, 1
        %s594 = scalar_lea.sflag [#allocation12], %s593
        %s595 = sand.u32 %s195, 1
        %s596 = smul.addr %s595, 8
        %s597 = scalar_lea.vmem [#allocation13], %s596
        %p598 = pneg %p208
        %p599 = pneg %p205
        %s600 = sand.u32 %s36, 1
        %s601 = scalar_lea.sflag [#allocation15], %s600
        %s602 = sand.u32 %s221, 1
        %s603 = smul.addr %s602, 1024
        %s604 = scalar_lea.vmem [#allocation14], %s603
        %p605 = pneg %p234
        %p606 = pneg %p231
        %s607 = sand.u32 %s36, 1
        %s608 = scalar_lea.sflag [#allocation15], %s607
        %s609 = sand.u32 %s247, 1
        %s610 = scalar_lea.vmem [#allocation16], %s609
        %p611 = pneg %p260
        %p612 = pneg %p257
        %p613 = pneg %p286
        %p614 = pneg %p283
        %s615 = sand.u32 %s273, 1
        %s616 = scalar_lea.sflag [#allocation4], %s615
        %s617 = sand.u32 %s273, 1
        %s618 = smul.addr %s617, 8
        %s619 = scalar_lea.vmem [#allocation17], %s618
        %v620 = vld [vmem:[#allocation2] sm:$0xff]
        %v621 = vld [vmem:[%s489] sm:$0xff]
        %v622 = vld [vmem:[%s489 + $0x8] sm:$0xff]
        %v623 = vld [vmem:[%s489 + $0x10] sm:$0xff]
        %v624 = vld [vmem:[%s489 + $0x18] sm:$0xff]
        %v625 = vld [vmem:[%s489 + $0x20] sm:$0xff]
        %v626 = vld [vmem:[%s489 + $0x28] sm:$0xff]
        %v627 = vld [vmem:[%s489 + $0x30] sm:$0xff]
        %v628 = vld [vmem:[%s489 + $0x38] sm:$0xff]
        %v629 = vld [vmem:[%s489 + $0x40] sm:$0xff]
        %v630 = vld [vmem:[%s489 + $0x48] sm:$0xff]
        %v631 = vld [vmem:[%s489 + $0x50] sm:$0xff]
        %v632 = vld [vmem:[%s489 + $0x58] sm:$0xff]
        %v633 = vld [vmem:[%s489 + $0x60] sm:$0xff]
        %v634 = vld [vmem:[%s489 + $0x68] sm:$0xff]
        %v635 = vld [vmem:[%s489 + $0x70] sm:$0xff]
        %v636 = vld [vmem:[%s489 + $0x78] sm:$0xff]
        %v637 = vld [vmem:[%s489 + $0x80] sm:$0xff]
        %v638 = vld [vmem:[%s489 + $0x88] sm:$0xff]
        %v639 = vld [vmem:[%s489 + $0x90] sm:$0xff]
        %v640 = vld [vmem:[%s489 + $0x98] sm:$0xff]
        %v641 = vld [vmem:[%s489 + $0xa0] sm:$0xff]
        %v642 = vld [vmem:[%s489 + $0xa8] sm:$0xff]
        %v643 = vld [vmem:[%s489 + $0xb0] sm:$0xff]
        %v644 = vld [vmem:[%s489 + $0xb8] sm:$0xff]
        %v645 = vld [vmem:[%s489 + $0xc0] sm:$0xff]
        %v646 = vld [vmem:[%s489 + $0xc8] sm:$0xff]
        %v647 = vld [vmem:[%s489 + $0xd0] sm:$0xff]
        %v648 = vld [vmem:[%s489 + $0xd8] sm:$0xff]
        %v649 = vld [vmem:[%s489 + $0xe0] sm:$0xff]
        %v650 = vld [vmem:[%s489 + $0xe8] sm:$0xff]
        %v651 = vld [vmem:[%s489 + $0xf0] sm:$0xff]
        %v652 = vld [vmem:[%s489 + $0xf8] sm:$0xff]
        %v653 = vld [vmem:[%s489 + $0x100] sm:$0xff]
        %v654 = vld [vmem:[%s489 + $0x108] sm:$0xff]
        %v655 = vld [vmem:[%s489 + $0x110] sm:$0xff]
        %v656 = vld [vmem:[%s489 + $0x118] sm:$0xff]
        %v657 = vld [vmem:[%s489 + $0x120] sm:$0xff]
        %v658 = vld [vmem:[%s489 + $0x128] sm:$0xff]
        %v659 = vld [vmem:[%s489 + $0x130] sm:$0xff]
        %v660 = vld [vmem:[%s489 + $0x138] sm:$0xff]
        %v661 = vld [vmem:[%s489 + $0x140] sm:$0xff]
        %v662 = vld [vmem:[%s489 + $0x148] sm:$0xff]
        %v663 = vld [vmem:[%s489 + $0x150] sm:$0xff]
        %v664 = vld [vmem:[%s489 + $0x158] sm:$0xff]
        %v665 = vld [vmem:[%s489 + $0x160] sm:$0xff]
        %v666 = vld [vmem:[%s489 + $0x168] sm:$0xff]
        %v667 = vld [vmem:[%s489 + $0x170] sm:$0xff]
        %v668 = vld [vmem:[%s489 + $0x178] sm:$0xff]
        %v669 = vld [vmem:[%s489 + $0x180] sm:$0xff]
        %v670 = vld [vmem:[%s489 + $0x188] sm:$0xff]
        %v671 = vld [vmem:[%s489 + $0x190] sm:$0xff]
        %v672 = vld [vmem:[%s489 + $0x198] sm:$0xff]
        %v673 = vld [vmem:[%s489 + $0x1a0] sm:$0xff]
        %v674 = vld [vmem:[%s489 + $0x1a8] sm:$0xff]
        %v675 = vld [vmem:[%s489 + $0x1b0] sm:$0xff]
        %v676 = vld [vmem:[%s489 + $0x1b8] sm:$0xff]
        %v677 = vld [vmem:[%s489 + $0x1c0] sm:$0xff]
        %v678 = vld [vmem:[%s489 + $0x1c8] sm:$0xff]
        %v679 = vld [vmem:[%s489 + $0x1d0] sm:$0xff]
        %v680 = vld [vmem:[%s489 + $0x1d8] sm:$0xff]
        %v681 = vld [vmem:[%s489 + $0x1e0] sm:$0xff]
        %v682 = vld [vmem:[%s489 + $0x1e8] sm:$0xff]
        %v683 = vld [vmem:[%s489 + $0x1f0] sm:$0xff]
        %v684 = vld [vmem:[%s489 + $0x1f8] sm:$0xff]
        %v685 = vld [vmem:[%s489 + $0x200] sm:$0xff]
        %v686 = vld [vmem:[%s489 + $0x208] sm:$0xff]
        %v687 = vld [vmem:[%s489 + $0x210] sm:$0xff]
        %v688 = vld [vmem:[%s489 + $0x218] sm:$0xff]
        %v689 = vld [vmem:[%s489 + $0x220] sm:$0xff]
        %v690 = vld [vmem:[%s489 + $0x228] sm:$0xff]
        %v691 = vld [vmem:[%s489 + $0x230] sm:$0xff]
        %v692 = vld [vmem:[%s489 + $0x238] sm:$0xff]
        %v693 = vld [vmem:[%s489 + $0x240] sm:$0xff]
        %v694 = vld [vmem:[%s489 + $0x248] sm:$0xff]
        %v695 = vld [vmem:[%s489 + $0x250] sm:$0xff]
        %v696 = vld [vmem:[%s489 + $0x258] sm:$0xff]
        %v697 = vld [vmem:[%s489 + $0x260] sm:$0xff]
        %v698 = vld [vmem:[%s489 + $0x268] sm:$0xff]
        %v699 = vld [vmem:[%s489 + $0x270] sm:$0xff]
        %v700 = vld [vmem:[%s489 + $0x278] sm:$0xff]
        %v701 = vld [vmem:[%s489 + $0x280] sm:$0xff]
        %v702 = vld [vmem:[%s489 + $0x288] sm:$0xff]
        %v703 = vld [vmem:[%s489 + $0x290] sm:$0xff]
        %v704 = vld [vmem:[%s489 + $0x298] sm:$0xff]
        %v705 = vld [vmem:[%s489 + $0x2a0] sm:$0xff]
        %v706 = vld [vmem:[%s489 + $0x2a8] sm:$0xff]
        %v707 = vld [vmem:[%s489 + $0x2b0] sm:$0xff]
        %v708 = vld [vmem:[%s489 + $0x2b8] sm:$0xff]
        %v709 = vld [vmem:[%s489 + $0x2c0] sm:$0xff]
        %v710 = vld [vmem:[%s489 + $0x2c8] sm:$0xff]
        %v711 = vld [vmem:[%s489 + $0x2d0] sm:$0xff]
        %v712 = vld [vmem:[%s489 + $0x2d8] sm:$0xff]
        %v713 = vld [vmem:[%s489 + $0x2e0] sm:$0xff]
        %v714 = vld [vmem:[%s489 + $0x2e8] sm:$0xff]
        %v715 = vld [vmem:[%s489 + $0x2f0] sm:$0xff]
        %v716 = vld [vmem:[%s489 + $0x2f8] sm:$0xff]
        %v717 = vld [vmem:[%s489 + $0x300] sm:$0xff]
        %v718 = vld [vmem:[%s489 + $0x308] sm:$0xff]
        %v719 = vld [vmem:[%s489 + $0x310] sm:$0xff]
        %v720 = vld [vmem:[%s489 + $0x318] sm:$0xff]
        %v721 = vld [vmem:[%s489 + $0x320] sm:$0xff]
        %v722 = vld [vmem:[%s489 + $0x328] sm:$0xff]
        %v723 = vld [vmem:[%s489 + $0x330] sm:$0xff]
        %v724 = vld [vmem:[%s489 + $0x338] sm:$0xff]
        %v725 = vld [vmem:[%s489 + $0x340] sm:$0xff]
        %v726 = vld [vmem:[%s489 + $0x348] sm:$0xff]
        %v727 = vld [vmem:[%s489 + $0x350] sm:$0xff]
        %v728 = vld [vmem:[%s489 + $0x358] sm:$0xff]
        %v729 = vld [vmem:[%s489 + $0x360] sm:$0xff]
        %v730 = vld [vmem:[%s489 + $0x368] sm:$0xff]
        %v731 = vld [vmem:[%s489 + $0x370] sm:$0xff]
        %v732 = vld [vmem:[%s489 + $0x378] sm:$0xff]
        %v733 = vld [vmem:[%s489 + $0x380] sm:$0xff]
        %v734 = vld [vmem:[%s489 + $0x388] sm:$0xff]
        %v735 = vld [vmem:[%s489 + $0x390] sm:$0xff]
        %v736 = vld [vmem:[%s489 + $0x398] sm:$0xff]
        %v737 = vld [vmem:[%s489 + $0x3a0] sm:$0xff]
        %v738 = vld [vmem:[%s489 + $0x3a8] sm:$0xff]
        %v739 = vld [vmem:[%s489 + $0x3b0] sm:$0xff]
        %v740 = vld [vmem:[%s489 + $0x3b8] sm:$0xff]
        %v741 = vld [vmem:[%s489 + $0x3c0] sm:$0xff]
        %v742 = vld [vmem:[%s489 + $0x3c8] sm:$0xff]
        %v743 = vld [vmem:[%s489 + $0x3d0] sm:$0xff]
        %v744 = vld [vmem:[%s489 + $0x3d8] sm:$0xff]
        %v745 = vld [vmem:[%s489 + $0x3e0] sm:$0xff]
        %v746 = vld [vmem:[%s489 + $0x3e8] sm:$0xff]
        %v747 = vld [vmem:[%s489 + $0x3f0] sm:$0xff]
        %v748 = vld [vmem:[%s489 + $0x3f8] sm:$0xff]
        %v749 = vld [vmem:[%s498] sm:$0xff]
        %v751 = vlaneseq
        %v752 = vshrl.u32 %v751, 7
        %v753 = vsub.s32 0, %v752
        %v754 = vrot.slane %v749, %v753
        %v755 = vlaneseq
        %v756 = vshrl.u32 %v755, 7
        %v757 = vsub.s32 1, %v756
        %v758 = vrot.slane %v749, %v757
        %v759 = vlaneseq
        %v760 = vshrl.u32 %v759, 7
        %v761 = vsub.s32 2, %v760
        %v762 = vrot.slane %v749, %v761
        %v763 = vlaneseq
        %v764 = vshrl.u32 %v763, 7
        %v765 = vsub.s32 3, %v764
        %v766 = vrot.slane %v749, %v765
        %v767 = vlaneseq
        %v768 = vshrl.u32 %v767, 7
        %v769 = vsub.s32 4, %v768
        %v770 = vrot.slane %v749, %v769
        %v771 = vlaneseq
        %v772 = vshrl.u32 %v771, 7
        %v773 = vsub.s32 5, %v772
        %v774 = vrot.slane %v749, %v773
        %v775 = vlaneseq
        %v776 = vshrl.u32 %v775, 7
        %v777 = vsub.s32 6, %v776
        %v778 = vrot.slane %v749, %v777
        %v779 = vlaneseq
        %v780 = vshrl.u32 %v779, 7
        %v781 = vsub.s32 7, %v780
        %v782 = vrot.slane %v749, %v781
        %791 = vmatprep.subr.mxu0 %v742
        %792 = vmatpush1.msra.mxu0 %v741
        %793 = vmatprep.subr.mxu0 %v734
        %794 = vmatpush1.msra.mxu0 %v733
        %795 = vmatprep.subr.mxu0 %v726
        %796 = vmatpush1.msra.mxu0 %v725
        %797 = vmatprep.subr.mxu0 %v718
        %798 = vmatpush1.msra.mxu0 %v717
        %799 = vmatprep.subr.mxu0 %v710
        %800 = vmatpush1.msra.mxu0 %v709
        %801 = vmatprep.subr.mxu0 %v702
        %802 = vmatpush1.msra.mxu0 %v701
        %803 = vmatprep.subr.mxu0 %v694
        %804 = vmatpush1.msra.mxu0 %v693
        %805 = vmatprep.subr.mxu0 %v686
        %806 = vmatpush1.msra.mxu0 %v685
        %807 = vmatprep.subr.mxu0 %v678
        %808 = vmatpush1.msra.mxu0 %v677
        %809 = vmatprep.subr.mxu0 %v670
        %810 = vmatpush1.msra.mxu0 %v669
        %811 = vmatprep.subr.mxu0 %v662
        %812 = vmatpush1.msra.mxu0 %v661
        %813 = vmatprep.subr.mxu0 %v654
        %814 = vmatpush1.msra.mxu0 %v653
        %815 = vmatprep.subr.mxu0 %v646
        %816 = vmatpush1.msra.mxu0 %v645
        %817 = vmatprep.subr.mxu0 %v638
        %818 = vmatpush1.msra.mxu0 %v637
        %819 = vmatprep.subr.mxu0 %v630
        %820 = vmatpush1.msra.mxu0 %v629
        %821 = vmatprep.subr.mxu0 %v622
        %822 = vmatpush1.msra.mxu0 %v621
        %823 = vmatprep.subr.mxu0 0.0
        %824 = vmatpush2.msra.mxu0 0.0
        %825 = vmatprep.subr.mxu0 0.0
        %826 = vmatpush2.msra.mxu0 0.0
        %827 = vmatprep.subr.mxu0 0.0
        %828 = vmatpush2.msra.mxu0 0.0
        %829 = vmatprep.subr.mxu0 0.0
        %830 = vmatpush2.msra.mxu0 0.0
        %831 = vmatprep.subr.mxu0 0.0
        %832 = vmatpush2.msra.mxu0 0.0
        %833 = vmatprep.subr.mxu0 0.0
        %834 = vmatpush2.msra.mxu0 0.0
        %835 = vmatprep.subr.mxu0 0.0
        %836 = vmatpush2.msra.mxu0 0.0
        %837 = vmatprep.subr.mxu0 0.0
        %838 = vmatpush2.msra.mxu0 0.0
        %839 = vmatprep.subr.mxu0 0.0
        %840 = vmatpush2.msra.mxu0 0.0
        %841 = vmatprep.subr.mxu0 0.0
        %842 = vmatpush2.msra.mxu0 0.0
        %843 = vmatprep.subr.mxu0 0.0
        %844 = vmatpush2.msra.mxu0 0.0
        %845 = vmatprep.subr.mxu0 0.0
        %846 = vmatpush2.msra.mxu0 0.0
        %847 = vmatprep.subr.mxu0 0.0
        %848 = vmatpush2.msra.mxu0 0.0
        %849 = vmatprep.subr.mxu0 0.0
        %850 = vmatpush2.msra.mxu0 0.0
        %851 = vmatprep.subr.mxu0 0.0
        %852 = vmatpush2.msra.mxu0 0.0
        %853 = vmatprep.subr.mxu0 0.0
        %854 = vmatpush2.msra.mxu0 0.0
        %855 = vmatprep.mubr.f32.mxu0 0.0
        %856 = vmatmul.mubr.f32.gmra.mxu0 %v620
        %v857 = vpop.f32.mrf.mxu0
        %v858 = vadd.f32 %v754, %v857
        %v859 = vpop.f32.mrf.mxu0
        %v860 = vadd.f32 %v758, %v859
        %861 = vdwg.mxu0
        %862 = vmatprep.subr.mxu0 %v744
        %863 = vmatpush1.msra.mxu0 %v743
        %864 = vmatprep.subr.mxu0 %v736
        %865 = vmatpush1.msra.mxu0 %v735
        %866 = vmatprep.subr.mxu0 %v728
        %867 = vmatpush1.msra.mxu0 %v727
        %868 = vmatprep.subr.mxu0 %v720
        %869 = vmatpush1.msra.mxu0 %v719
        %870 = vmatprep.subr.mxu0 %v712
        %871 = vmatpush1.msra.mxu0 %v711
        %872 = vmatprep.subr.mxu0 %v704
        %873 = vmatpush1.msra.mxu0 %v703
        %874 = vmatprep.subr.mxu0 %v696
        %875 = vmatpush1.msra.mxu0 %v695
        %876 = vmatprep.subr.mxu0 %v688
        %877 = vmatpush1.msra.mxu0 %v687
        %878 = vmatprep.subr.mxu0 %v680
        %879 = vmatpush1.msra.mxu0 %v679
        %880 = vmatprep.subr.mxu0 %v672
        %881 = vmatpush1.msra.mxu0 %v671
        %882 = vmatprep.subr.mxu0 %v664
        %883 = vmatpush1.msra.mxu0 %v663
        %884 = vmatprep.subr.mxu0 %v656
        %885 = vmatpush1.msra.mxu0 %v655
        %886 = vmatprep.subr.mxu0 %v648
        %887 = vmatpush1.msra.mxu0 %v647
        %888 = vmatprep.subr.mxu0 %v640
        %889 = vmatpush1.msra.mxu0 %v639
        %890 = vmatprep.subr.mxu0 %v632
        %891 = vmatpush1.msra.mxu0 %v631
        %892 = vmatprep.subr.mxu0 %v624
        %893 = vmatpush1.msra.mxu0 %v623
        %894 = vmatprep.subr.mxu0 0.0
        %895 = vmatpush2.msra.mxu0 0.0
        %896 = vmatprep.subr.mxu0 0.0
        %897 = vmatpush2.msra.mxu0 0.0
        %898 = vmatprep.subr.mxu0 0.0
        %899 = vmatpush2.msra.mxu0 0.0
        %900 = vmatprep.subr.mxu0 0.0
        %901 = vmatpush2.msra.mxu0 0.0
        %902 = vmatprep.subr.mxu0 0.0
        %903 = vmatpush2.msra.mxu0 0.0
        %904 = vmatprep.subr.mxu0 0.0
        %905 = vmatpush2.msra.mxu0 0.0
        %906 = vmatprep.subr.mxu0 0.0
        %907 = vmatpush2.msra.mxu0 0.0
        %908 = vmatprep.subr.mxu0 0.0
        %909 = vmatpush2.msra.mxu0 0.0
        %910 = vmatprep.subr.mxu0 0.0
        %911 = vmatpush2.msra.mxu0 0.0
        %912 = vmatprep.subr.mxu0 0.0
        %913 = vmatpush2.msra.mxu0 0.0
        %914 = vmatprep.subr.mxu0 0.0
        %915 = vmatpush2.msra.mxu0 0.0
        %916 = vmatprep.subr.mxu0 0.0
        %917 = vmatpush2.msra.mxu0 0.0
        %918 = vmatprep.subr.mxu0 0.0
        %919 = vmatpush2.msra.mxu0 0.0
        %920 = vmatprep.subr.mxu0 0.0
        %921 = vmatpush2.msra.mxu0 0.0
        %922 = vmatprep.subr.mxu0 0.0
        %923 = vmatpush2.msra.mxu0 0.0
        %924 = vmatprep.subr.mxu0 0.0
        %925 = vmatpush2.msra.mxu0 0.0
        %926 = vmatprep.mubr.f32.mxu0 0.0
        %927 = vmatmul.mubr.f32.gmra.mxu0 %v620
        %v928 = vpop.f32.mrf.mxu0
        %v929 = vadd.f32 %v762, %v928
        %v930 = vpop.f32.mrf.mxu0
        %v931 = vadd.f32 %v766, %v930
        %932 = vdwg.mxu0
        %933 = vmatprep.subr.mxu0 %v746
        %934 = vmatpush1.msra.mxu0 %v745
        %935 = vmatprep.subr.mxu0 %v738
        %936 = vmatpush1.msra.mxu0 %v737
        %937 = vmatprep.subr.mxu0 %v730
        %938 = vmatpush1.msra.mxu0 %v729
        %939 = vmatprep.subr.mxu0 %v722
        %940 = vmatpush1.msra.mxu0 %v721
        %941 = vmatprep.subr.mxu0 %v714
        %942 = vmatpush1.msra.mxu0 %v713
        %943 = vmatprep.subr.mxu0 %v706
        %944 = vmatpush1.msra.mxu0 %v705
        %945 = vmatprep.subr.mxu0 %v698
        %946 = vmatpush1.msra.mxu0 %v697
        %947 = vmatprep.subr.mxu0 %v690
        %948 = vmatpush1.msra.mxu0 %v689
        %949 = vmatprep.subr.mxu0 %v682
        %950 = vmatpush1.msra.mxu0 %v681
        %951 = vmatprep.subr.mxu0 %v674
        %952 = vmatpush1.msra.mxu0 %v673
        %953 = vmatprep.subr.mxu0 %v666
        %954 = vmatpush1.msra.mxu0 %v665
        %955 = vmatprep.subr.mxu0 %v658
        %956 = vmatpush1.msra.mxu0 %v657
        %957 = vmatprep.subr.mxu0 %v650
        %958 = vmatpush1.msra.mxu0 %v649
        %959 = vmatprep.subr.mxu0 %v642
        %960 = vmatpush1.msra.mxu0 %v641
        %961 = vmatprep.subr.mxu0 %v634
        %962 = vmatpush1.msra.mxu0 %v633
        %963 = vmatprep.subr.mxu0 %v626
        %964 = vmatpush1.msra.mxu0 %v625
        %965 = vmatprep.subr.mxu0 0.0
        %966 = vmatpush2.msra.mxu0 0.0
        %967 = vmatprep.subr.mxu0 0.0
        %968 = vmatpush2.msra.mxu0 0.0
        %969 = vmatprep.subr.mxu0 0.0
        %970 = vmatpush2.msra.mxu0 0.0
        %971 = vmatprep.subr.mxu0 0.0
        %972 = vmatpush2.msra.mxu0 0.0
        %973 = vmatprep.subr.mxu0 0.0
        %974 = vmatpush2.msra.mxu0 0.0
        %975 = vmatprep.subr.mxu0 0.0
        %976 = vmatpush2.msra.mxu0 0.0
        %977 = vmatprep.subr.mxu0 0.0
        %978 = vmatpush2.msra.mxu0 0.0
        %979 = vmatprep.subr.mxu0 0.0
        %980 = vmatpush2.msra.mxu0 0.0
        %981 = vmatprep.subr.mxu0 0.0
        %982 = vmatpush2.msra.mxu0 0.0
        %983 = vmatprep.subr.mxu0 0.0
        %984 = vmatpush2.msra.mxu0 0.0
        %985 = vmatprep.subr.mxu0 0.0
        %986 = vmatpush2.msra.mxu0 0.0
        %987 = vmatprep.subr.mxu0 0.0
        %988 = vmatpush2.msra.mxu0 0.0
        %989 = vmatprep.subr.mxu0 0.0
        %990 = vmatpush2.msra.mxu0 0.0
        %991 = vmatprep.subr.mxu0 0.0
        %992 = vmatpush2.msra.mxu0 0.0
        %993 = vmatprep.subr.mxu0 0.0
        %994 = vmatpush2.msra.mxu0 0.0
        %995 = vmatprep.subr.mxu0 0.0
        %996 = vmatpush2.msra.mxu0 0.0
        %997 = vmatprep.mubr.f32.mxu0 0.0
        %998 = vmatmul.mubr.f32.gmra.mxu0 %v620
        %v999 = vpop.f32.mrf.mxu0
        %v1000 = vadd.f32 %v770, %v999
        %v1001 = vpop.f32.mrf.mxu0
        %v1002 = vadd.f32 %v774, %v1001
        %1003 = vdwg.mxu0
        %1004 = vmatprep.subr.mxu0 %v748
        %1005 = vmatpush1.msra.mxu0 %v747
        %1006 = vmatprep.subr.mxu0 %v740
        %1007 = vmatpush1.msra.mxu0 %v739
        %1008 = vmatprep.subr.mxu0 %v732
        %1009 = vmatpush1.msra.mxu0 %v731
        %1010 = vmatprep.subr.mxu0 %v724
        %1011 = vmatpush1.msra.mxu0 %v723
        %1012 = vmatprep.subr.mxu0 %v716
        %1013 = vmatpush1.msra.mxu0 %v715
        %1014 = vmatprep.subr.mxu0 %v708
        %1015 = vmatpush1.msra.mxu0 %v707
        %1016 = vmatprep.subr.mxu0 %v700
        %1017 = vmatpush1.msra.mxu0 %v699
        %1018 = vmatprep.subr.mxu0 %v692
        %1019 = vmatpush1.msra.mxu0 %v691
        %1020 = vmatprep.subr.mxu0 %v684
        %1021 = vmatpush1.msra.mxu0 %v683
        %1022 = vmatprep.subr.mxu0 %v676
        %1023 = vmatpush1.msra.mxu0 %v675
        %1024 = vmatprep.subr.mxu0 %v668
        %1025 = vmatpush1.msra.mxu0 %v667
        %1026 = vmatprep.subr.mxu0 %v660
        %1027 = vmatpush1.msra.mxu0 %v659
        %1028 = vmatprep.subr.mxu0 %v652
        %1029 = vmatpush1.msra.mxu0 %v651
        %1030 = vmatprep.subr.mxu0 %v644
        %1031 = vmatpush1.msra.mxu0 %v643
        %1032 = vmatprep.subr.mxu0 %v636
        %1033 = vmatpush1.msra.mxu0 %v635
        %1034 = vmatprep.subr.mxu0 %v628
        %1035 = vmatpush1.msra.mxu0 %v627
        %1036 = vmatprep.subr.mxu0 0.0
        %1037 = vmatpush2.msra.mxu0 0.0
        %1038 = vmatprep.subr.mxu0 0.0
        %1039 = vmatpush2.msra.mxu0 0.0
        %1040 = vmatprep.subr.mxu0 0.0
        %1041 = vmatpush2.msra.mxu0 0.0
        %1042 = vmatprep.subr.mxu0 0.0
        %1043 = vmatpush2.msra.mxu0 0.0
        %1044 = vmatprep.subr.mxu0 0.0
        %1045 = vmatpush2.msra.mxu0 0.0
        %1046 = vmatprep.subr.mxu0 0.0
        %1047 = vmatpush2.msra.mxu0 0.0
        %1048 = vmatprep.subr.mxu0 0.0
        %1049 = vmatpush2.msra.mxu0 0.0
        %1050 = vmatprep.subr.mxu0 0.0
        %1051 = vmatpush2.msra.mxu0 0.0
        %1052 = vmatprep.subr.mxu0 0.0
        %1053 = vmatpush2.msra.mxu0 0.0
        %1054 = vmatprep.subr.mxu0 0.0
        %1055 = vmatpush2.msra.mxu0 0.0
        %1056 = vmatprep.subr.mxu0 0.0
        %1057 = vmatpush2.msra.mxu0 0.0
        %1058 = vmatprep.subr.mxu0 0.0
        %1059 = vmatpush2.msra.mxu0 0.0
        %1060 = vmatprep.subr.mxu0 0.0
        %1061 = vmatpush2.msra.mxu0 0.0
        %1062 = vmatprep.subr.mxu0 0.0
        %1063 = vmatpush2.msra.mxu0 0.0
        %1064 = vmatprep.subr.mxu0 0.0
        %1065 = vmatpush2.msra.mxu0 0.0
        %1066 = vmatprep.subr.mxu0 0.0
        %1067 = vmatpush2.msra.mxu0 0.0
        %1068 = vmatprep.mubr.f32.mxu0 0.0
        %1069 = vmatmul.mubr.f32.gmra.mxu0 %v620
        %v1070 = vpop.f32.mrf.mxu0
        %v1071 = vadd.f32 %v778, %v1070
        %v1072 = vpop.f32.mrf.mxu0
        %v1073 = vadd.f32 %v782, %v1072
        %1074 = vdwg.mxu0
        %v1075 = vmax.f32 %v858, 0.0
        %v1076 = vmax.f32 %v860, 0.0
        %v1077 = vmax.f32 %v929, 0.0
        %v1078 = vmax.f32 %v931, 0.0
        %v1079 = vmax.f32 %v1000, 0.0
        %v1080 = vmax.f32 %v1002, 0.0
        %v1081 = vmax.f32 %v1071, 0.0
        %v1082 = vmax.f32 %v1073, 0.0
        %v1083 = vld [vmem:[%s507] sm:$0xff]
        %v1084 = vld [vmem:[%s507 + $0x8] sm:$0xff]
        %v1085 = vld [vmem:[%s507 + $0x10] sm:$0xff]
        %v1086 = vld [vmem:[%s507 + $0x18] sm:$0xff]
        %v1087 = vld [vmem:[%s507 + $0x20] sm:$0xff]
        %v1088 = vld [vmem:[%s507 + $0x28] sm:$0xff]
        %v1089 = vld [vmem:[%s507 + $0x30] sm:$0xff]
        %v1090 = vld [vmem:[%s507 + $0x38] sm:$0xff]
        %v1091 = vld [vmem:[%s507 + $0x40] sm:$0xff]
        %v1092 = vld [vmem:[%s507 + $0x48] sm:$0xff]
        %v1093 = vld [vmem:[%s507 + $0x50] sm:$0xff]
        %v1094 = vld [vmem:[%s507 + $0x58] sm:$0xff]
        %v1095 = vld [vmem:[%s507 + $0x60] sm:$0xff]
        %v1096 = vld [vmem:[%s507 + $0x68] sm:$0xff]
        %v1097 = vld [vmem:[%s507 + $0x70] sm:$0xff]
        %v1098 = vld [vmem:[%s507 + $0x78] sm:$0xff]
        %v1099 = vld [vmem:[%s507 + $0x80] sm:$0xff]
        %v1100 = vld [vmem:[%s507 + $0x88] sm:$0xff]
        %v1101 = vld [vmem:[%s507 + $0x90] sm:$0xff]
        %v1102 = vld [vmem:[%s507 + $0x98] sm:$0xff]
        %v1103 = vld [vmem:[%s507 + $0xa0] sm:$0xff]
        %v1104 = vld [vmem:[%s507 + $0xa8] sm:$0xff]
        %v1105 = vld [vmem:[%s507 + $0xb0] sm:$0xff]
        %v1106 = vld [vmem:[%s507 + $0xb8] sm:$0xff]
        %v1107 = vld [vmem:[%s507 + $0xc0] sm:$0xff]
        %v1108 = vld [vmem:[%s507 + $0xc8] sm:$0xff]
        %v1109 = vld [vmem:[%s507 + $0xd0] sm:$0xff]
        %v1110 = vld [vmem:[%s507 + $0xd8] sm:$0xff]
        %v1111 = vld [vmem:[%s507 + $0xe0] sm:$0xff]
        %v1112 = vld [vmem:[%s507 + $0xe8] sm:$0xff]
        %v1113 = vld [vmem:[%s507 + $0xf0] sm:$0xff]
        %v1114 = vld [vmem:[%s507 + $0xf8] sm:$0xff]
        %v1115 = vld [vmem:[%s507 + $0x100] sm:$0xff]
        %v1116 = vld [vmem:[%s507 + $0x108] sm:$0xff]
        %v1117 = vld [vmem:[%s507 + $0x110] sm:$0xff]
        %v1118 = vld [vmem:[%s507 + $0x118] sm:$0xff]
        %v1119 = vld [vmem:[%s507 + $0x120] sm:$0xff]
        %v1120 = vld [vmem:[%s507 + $0x128] sm:$0xff]
        %v1121 = vld [vmem:[%s507 + $0x130] sm:$0xff]
        %v1122 = vld [vmem:[%s507 + $0x138] sm:$0xff]
        %v1123 = vld [vmem:[%s507 + $0x140] sm:$0xff]
        %v1124 = vld [vmem:[%s507 + $0x148] sm:$0xff]
        %v1125 = vld [vmem:[%s507 + $0x150] sm:$0xff]
        %v1126 = vld [vmem:[%s507 + $0x158] sm:$0xff]
        %v1127 = vld [vmem:[%s507 + $0x160] sm:$0xff]
        %v1128 = vld [vmem:[%s507 + $0x168] sm:$0xff]
        %v1129 = vld [vmem:[%s507 + $0x170] sm:$0xff]
        %v1130 = vld [vmem:[%s507 + $0x178] sm:$0xff]
        %v1131 = vld [vmem:[%s507 + $0x180] sm:$0xff]
        %v1132 = vld [vmem:[%s507 + $0x188] sm:$0xff]
        %v1133 = vld [vmem:[%s507 + $0x190] sm:$0xff]
        %v1134 = vld [vmem:[%s507 + $0x198] sm:$0xff]
        %v1135 = vld [vmem:[%s507 + $0x1a0] sm:$0xff]
        %v1136 = vld [vmem:[%s507 + $0x1a8] sm:$0xff]
        %v1137 = vld [vmem:[%s507 + $0x1b0] sm:$0xff]
        %v1138 = vld [vmem:[%s507 + $0x1b8] sm:$0xff]
        %v1139 = vld [vmem:[%s507 + $0x1c0] sm:$0xff]
        %v1140 = vld [vmem:[%s507 + $0x1c8] sm:$0xff]
        %v1141 = vld [vmem:[%s507 + $0x1d0] sm:$0xff]
        %v1142 = vld [vmem:[%s507 + $0x1d8] sm:$0xff]
        %v1143 = vld [vmem:[%s507 + $0x1e0] sm:$0xff]
        %v1144 = vld [vmem:[%s507 + $0x1e8] sm:$0xff]
        %v1145 = vld [vmem:[%s507 + $0x1f0] sm:$0xff]
        %v1146 = vld [vmem:[%s507 + $0x1f8] sm:$0xff]
        %v1147 = vld [vmem:[%s507 + $0x200] sm:$0xff]
        %v1148 = vld [vmem:[%s507 + $0x208] sm:$0xff]
        %v1149 = vld [vmem:[%s507 + $0x210] sm:$0xff]
        %v1150 = vld [vmem:[%s507 + $0x218] sm:$0xff]
        %v1151 = vld [vmem:[%s507 + $0x220] sm:$0xff]
        %v1152 = vld [vmem:[%s507 + $0x228] sm:$0xff]
        %v1153 = vld [vmem:[%s507 + $0x230] sm:$0xff]
        %v1154 = vld [vmem:[%s507 + $0x238] sm:$0xff]
        %v1155 = vld [vmem:[%s507 + $0x240] sm:$0xff]
        %v1156 = vld [vmem:[%s507 + $0x248] sm:$0xff]
        %v1157 = vld [vmem:[%s507 + $0x250] sm:$0xff]
        %v1158 = vld [vmem:[%s507 + $0x258] sm:$0xff]
        %v1159 = vld [vmem:[%s507 + $0x260] sm:$0xff]
        %v1160 = vld [vmem:[%s507 + $0x268] sm:$0xff]
        %v1161 = vld [vmem:[%s507 + $0x270] sm:$0xff]
        %v1162 = vld [vmem:[%s507 + $0x278] sm:$0xff]
        %v1163 = vld [vmem:[%s507 + $0x280] sm:$0xff]
        %v1164 = vld [vmem:[%s507 + $0x288] sm:$0xff]
        %v1165 = vld [vmem:[%s507 + $0x290] sm:$0xff]
        %v1166 = vld [vmem:[%s507 + $0x298] sm:$0xff]
        %v1167 = vld [vmem:[%s507 + $0x2a0] sm:$0xff]
        %v1168 = vld [vmem:[%s507 + $0x2a8] sm:$0xff]
        %v1169 = vld [vmem:[%s507 + $0x2b0] sm:$0xff]
        %v1170 = vld [vmem:[%s507 + $0x2b8] sm:$0xff]
        %v1171 = vld [vmem:[%s507 + $0x2c0] sm:$0xff]
        %v1172 = vld [vmem:[%s507 + $0x2c8] sm:$0xff]
        %v1173 = vld [vmem:[%s507 + $0x2d0] sm:$0xff]
        %v1174 = vld [vmem:[%s507 + $0x2d8] sm:$0xff]
        %v1175 = vld [vmem:[%s507 + $0x2e0] sm:$0xff]
        %v1176 = vld [vmem:[%s507 + $0x2e8] sm:$0xff]
        %v1177 = vld [vmem:[%s507 + $0x2f0] sm:$0xff]
        %v1178 = vld [vmem:[%s507 + $0x2f8] sm:$0xff]
        %v1179 = vld [vmem:[%s507 + $0x300] sm:$0xff]
        %v1180 = vld [vmem:[%s507 + $0x308] sm:$0xff]
        %v1181 = vld [vmem:[%s507 + $0x310] sm:$0xff]
        %v1182 = vld [vmem:[%s507 + $0x318] sm:$0xff]
        %v1183 = vld [vmem:[%s507 + $0x320] sm:$0xff]
        %v1184 = vld [vmem:[%s507 + $0x328] sm:$0xff]
        %v1185 = vld [vmem:[%s507 + $0x330] sm:$0xff]
        %v1186 = vld [vmem:[%s507 + $0x338] sm:$0xff]
        %v1187 = vld [vmem:[%s507 + $0x340] sm:$0xff]
        %v1188 = vld [vmem:[%s507 + $0x348] sm:$0xff]
        %v1189 = vld [vmem:[%s507 + $0x350] sm:$0xff]
        %v1190 = vld [vmem:[%s507 + $0x358] sm:$0xff]
        %v1191 = vld [vmem:[%s507 + $0x360] sm:$0xff]
        %v1192 = vld [vmem:[%s507 + $0x368] sm:$0xff]
        %v1193 = vld [vmem:[%s507 + $0x370] sm:$0xff]
        %v1194 = vld [vmem:[%s507 + $0x378] sm:$0xff]
        %v1195 = vld [vmem:[%s507 + $0x380] sm:$0xff]
        %v1196 = vld [vmem:[%s507 + $0x388] sm:$0xff]
        %v1197 = vld [vmem:[%s507 + $0x390] sm:$0xff]
        %v1198 = vld [vmem:[%s507 + $0x398] sm:$0xff]
        %v1199 = vld [vmem:[%s507 + $0x3a0] sm:$0xff]
        %v1200 = vld [vmem:[%s507 + $0x3a8] sm:$0xff]
        %v1201 = vld [vmem:[%s507 + $0x3b0] sm:$0xff]
        %v1202 = vld [vmem:[%s507 + $0x3b8] sm:$0xff]
        %v1203 = vld [vmem:[%s507 + $0x3c0] sm:$0xff]
        %v1204 = vld [vmem:[%s507 + $0x3c8] sm:$0xff]
        %v1205 = vld [vmem:[%s507 + $0x3d0] sm:$0xff]
        %v1206 = vld [vmem:[%s507 + $0x3d8] sm:$0xff]
        %v1207 = vld [vmem:[%s507 + $0x3e0] sm:$0xff]
        %v1208 = vld [vmem:[%s507 + $0x3e8] sm:$0xff]
        %v1209 = vld [vmem:[%s507 + $0x3f0] sm:$0xff]
        %v1210 = vld [vmem:[%s507 + $0x3f8] sm:$0xff]
        %v1211 = vld [vmem:[%s507 + $0x400] sm:$0xff]
        %v1212 = vld [vmem:[%s507 + $0x408] sm:$0xff]
        %v1213 = vld [vmem:[%s507 + $0x410] sm:$0xff]
        %v1214 = vld [vmem:[%s507 + $0x418] sm:$0xff]
        %v1215 = vld [vmem:[%s507 + $0x420] sm:$0xff]
        %v1216 = vld [vmem:[%s507 + $0x428] sm:$0xff]
        %v1217 = vld [vmem:[%s507 + $0x430] sm:$0xff]
        %v1218 = vld [vmem:[%s507 + $0x438] sm:$0xff]
        %v1219 = vld [vmem:[%s507 + $0x440] sm:$0xff]
        %v1220 = vld [vmem:[%s507 + $0x448] sm:$0xff]
        %v1221 = vld [vmem:[%s507 + $0x450] sm:$0xff]
        %v1222 = vld [vmem:[%s507 + $0x458] sm:$0xff]
        %v1223 = vld [vmem:[%s507 + $0x460] sm:$0xff]
        %v1224 = vld [vmem:[%s507 + $0x468] sm:$0xff]
        %v1225 = vld [vmem:[%s507 + $0x470] sm:$0xff]
        %v1226 = vld [vmem:[%s507 + $0x478] sm:$0xff]
        %v1227 = vld [vmem:[%s507 + $0x480] sm:$0xff]
        %v1228 = vld [vmem:[%s507 + $0x488] sm:$0xff]
        %v1229 = vld [vmem:[%s507 + $0x490] sm:$0xff]
        %v1230 = vld [vmem:[%s507 + $0x498] sm:$0xff]
        %v1231 = vld [vmem:[%s507 + $0x4a0] sm:$0xff]
        %v1232 = vld [vmem:[%s507 + $0x4a8] sm:$0xff]
        %v1233 = vld [vmem:[%s507 + $0x4b0] sm:$0xff]
        %v1234 = vld [vmem:[%s507 + $0x4b8] sm:$0xff]
        %v1235 = vld [vmem:[%s507 + $0x4c0] sm:$0xff]
        %v1236 = vld [vmem:[%s507 + $0x4c8] sm:$0xff]
        %v1237 = vld [vmem:[%s507 + $0x4d0] sm:$0xff]
        %v1238 = vld [vmem:[%s507 + $0x4d8] sm:$0xff]
        %v1239 = vld [vmem:[%s507 + $0x4e0] sm:$0xff]
        %v1240 = vld [vmem:[%s507 + $0x4e8] sm:$0xff]
        %v1241 = vld [vmem:[%s507 + $0x4f0] sm:$0xff]
        %v1242 = vld [vmem:[%s507 + $0x4f8] sm:$0xff]
        %v1243 = vld [vmem:[%s507 + $0x500] sm:$0xff]
        %v1244 = vld [vmem:[%s507 + $0x508] sm:$0xff]
        %v1245 = vld [vmem:[%s507 + $0x510] sm:$0xff]
        %v1246 = vld [vmem:[%s507 + $0x518] sm:$0xff]
        %v1247 = vld [vmem:[%s507 + $0x520] sm:$0xff]
        %v1248 = vld [vmem:[%s507 + $0x528] sm:$0xff]
        %v1249 = vld [vmem:[%s507 + $0x530] sm:$0xff]
        %v1250 = vld [vmem:[%s507 + $0x538] sm:$0xff]
        %v1251 = vld [vmem:[%s507 + $0x540] sm:$0xff]
        %v1252 = vld [vmem:[%s507 + $0x548] sm:$0xff]
        %v1253 = vld [vmem:[%s507 + $0x550] sm:$0xff]
        %v1254 = vld [vmem:[%s507 + $0x558] sm:$0xff]
        %v1255 = vld [vmem:[%s507 + $0x560] sm:$0xff]
        %v1256 = vld [vmem:[%s507 + $0x568] sm:$0xff]
        %v1257 = vld [vmem:[%s507 + $0x570] sm:$0xff]
        %v1258 = vld [vmem:[%s507 + $0x578] sm:$0xff]
        %v1259 = vld [vmem:[%s507 + $0x580] sm:$0xff]
        %v1260 = vld [vmem:[%s507 + $0x588] sm:$0xff]
        %v1261 = vld [vmem:[%s507 + $0x590] sm:$0xff]
        %v1262 = vld [vmem:[%s507 + $0x598] sm:$0xff]
        %v1263 = vld [vmem:[%s507 + $0x5a0] sm:$0xff]
        %v1264 = vld [vmem:[%s507 + $0x5a8] sm:$0xff]
        %v1265 = vld [vmem:[%s507 + $0x5b0] sm:$0xff]
        %v1266 = vld [vmem:[%s507 + $0x5b8] sm:$0xff]
        %v1267 = vld [vmem:[%s507 + $0x5c0] sm:$0xff]
        %v1268 = vld [vmem:[%s507 + $0x5c8] sm:$0xff]
        %v1269 = vld [vmem:[%s507 + $0x5d0] sm:$0xff]
        %v1270 = vld [vmem:[%s507 + $0x5d8] sm:$0xff]
        %v1271 = vld [vmem:[%s507 + $0x5e0] sm:$0xff]
        %v1272 = vld [vmem:[%s507 + $0x5e8] sm:$0xff]
        %v1273 = vld [vmem:[%s507 + $0x5f0] sm:$0xff]
        %v1274 = vld [vmem:[%s507 + $0x5f8] sm:$0xff]
        %v1275 = vld [vmem:[%s507 + $0x600] sm:$0xff]
        %v1276 = vld [vmem:[%s507 + $0x608] sm:$0xff]
        %v1277 = vld [vmem:[%s507 + $0x610] sm:$0xff]
        %v1278 = vld [vmem:[%s507 + $0x618] sm:$0xff]
        %v1279 = vld [vmem:[%s507 + $0x620] sm:$0xff]
        %v1280 = vld [vmem:[%s507 + $0x628] sm:$0xff]
        %v1281 = vld [vmem:[%s507 + $0x630] sm:$0xff]
        %v1282 = vld [vmem:[%s507 + $0x638] sm:$0xff]
        %v1283 = vld [vmem:[%s507 + $0x640] sm:$0xff]
        %v1284 = vld [vmem:[%s507 + $0x648] sm:$0xff]
        %v1285 = vld [vmem:[%s507 + $0x650] sm:$0xff]
        %v1286 = vld [vmem:[%s507 + $0x658] sm:$0xff]
        %v1287 = vld [vmem:[%s507 + $0x660] sm:$0xff]
        %v1288 = vld [vmem:[%s507 + $0x668] sm:$0xff]
        %v1289 = vld [vmem:[%s507 + $0x670] sm:$0xff]
        %v1290 = vld [vmem:[%s507 + $0x678] sm:$0xff]
        %v1291 = vld [vmem:[%s507 + $0x680] sm:$0xff]
        %v1292 = vld [vmem:[%s507 + $0x688] sm:$0xff]
        %v1293 = vld [vmem:[%s507 + $0x690] sm:$0xff]
        %v1294 = vld [vmem:[%s507 + $0x698] sm:$0xff]
        %v1295 = vld [vmem:[%s507 + $0x6a0] sm:$0xff]
        %v1296 = vld [vmem:[%s507 + $0x6a8] sm:$0xff]
        %v1297 = vld [vmem:[%s507 + $0x6b0] sm:$0xff]
        %v1298 = vld [vmem:[%s507 + $0x6b8] sm:$0xff]
        %v1299 = vld [vmem:[%s507 + $0x6c0] sm:$0xff]
        %v1300 = vld [vmem:[%s507 + $0x6c8] sm:$0xff]
        %v1301 = vld [vmem:[%s507 + $0x6d0] sm:$0xff]
        %v1302 = vld [vmem:[%s507 + $0x6d8] sm:$0xff]
        %v1303 = vld [vmem:[%s507 + $0x6e0] sm:$0xff]
        %v1304 = vld [vmem:[%s507 + $0x6e8] sm:$0xff]
        %v1305 = vld [vmem:[%s507 + $0x6f0] sm:$0xff]
        %v1306 = vld [vmem:[%s507 + $0x6f8] sm:$0xff]
        %v1307 = vld [vmem:[%s507 + $0x700] sm:$0xff]
        %v1308 = vld [vmem:[%s507 + $0x708] sm:$0xff]
        %v1309 = vld [vmem:[%s507 + $0x710] sm:$0xff]
        %v1310 = vld [vmem:[%s507 + $0x718] sm:$0xff]
        %v1311 = vld [vmem:[%s507 + $0x720] sm:$0xff]
        %v1312 = vld [vmem:[%s507 + $0x728] sm:$0xff]
        %v1313 = vld [vmem:[%s507 + $0x730] sm:$0xff]
        %v1314 = vld [vmem:[%s507 + $0x738] sm:$0xff]
        %v1315 = vld [vmem:[%s507 + $0x740] sm:$0xff]
        %v1316 = vld [vmem:[%s507 + $0x748] sm:$0xff]
        %v1317 = vld [vmem:[%s507 + $0x750] sm:$0xff]
        %v1318 = vld [vmem:[%s507 + $0x758] sm:$0xff]
        %v1319 = vld [vmem:[%s507 + $0x760] sm:$0xff]
        %v1320 = vld [vmem:[%s507 + $0x768] sm:$0xff]
        %v1321 = vld [vmem:[%s507 + $0x770] sm:$0xff]
        %v1322 = vld [vmem:[%s507 + $0x778] sm:$0xff]
        %v1323 = vld [vmem:[%s507 + $0x780] sm:$0xff]
        %v1324 = vld [vmem:[%s507 + $0x788] sm:$0xff]
        %v1325 = vld [vmem:[%s507 + $0x790] sm:$0xff]
        %v1326 = vld [vmem:[%s507 + $0x798] sm:$0xff]
        %v1327 = vld [vmem:[%s507 + $0x7a0] sm:$0xff]
        %v1328 = vld [vmem:[%s507 + $0x7a8] sm:$0xff]
        %v1329 = vld [vmem:[%s507 + $0x7b0] sm:$0xff]
        %v1330 = vld [vmem:[%s507 + $0x7b8] sm:$0xff]
        %v1331 = vld [vmem:[%s507 + $0x7c0] sm:$0xff]
        %v1332 = vld [vmem:[%s507 + $0x7c8] sm:$0xff]
        %v1333 = vld [vmem:[%s507 + $0x7d0] sm:$0xff]
        %v1334 = vld [vmem:[%s507 + $0x7d8] sm:$0xff]
        %v1335 = vld [vmem:[%s507 + $0x7e0] sm:$0xff]
        %v1336 = vld [vmem:[%s507 + $0x7e8] sm:$0xff]
        %v1337 = vld [vmem:[%s507 + $0x7f0] sm:$0xff]
        %v1338 = vld [vmem:[%s507 + $0x7f8] sm:$0xff]
        %v1339 = vld [vmem:[%s507 + $0x800] sm:$0xff]
        %v1340 = vld [vmem:[%s507 + $0x808] sm:$0xff]
        %v1341 = vld [vmem:[%s507 + $0x810] sm:$0xff]
        %v1342 = vld [vmem:[%s507 + $0x818] sm:$0xff]
        %v1343 = vld [vmem:[%s507 + $0x820] sm:$0xff]
        %v1344 = vld [vmem:[%s507 + $0x828] sm:$0xff]
        %v1345 = vld [vmem:[%s507 + $0x830] sm:$0xff]
        %v1346 = vld [vmem:[%s507 + $0x838] sm:$0xff]
        %v1347 = vld [vmem:[%s507 + $0x840] sm:$0xff]
        %v1348 = vld [vmem:[%s507 + $0x848] sm:$0xff]
        %v1349 = vld [vmem:[%s507 + $0x850] sm:$0xff]
        %v1350 = vld [vmem:[%s507 + $0x858] sm:$0xff]
        %v1351 = vld [vmem:[%s507 + $0x860] sm:$0xff]
        %v1352 = vld [vmem:[%s507 + $0x868] sm:$0xff]
        %v1353 = vld [vmem:[%s507 + $0x870] sm:$0xff]
        %v1354 = vld [vmem:[%s507 + $0x878] sm:$0xff]
        %v1355 = vld [vmem:[%s507 + $0x880] sm:$0xff]
        %v1356 = vld [vmem:[%s507 + $0x888] sm:$0xff]
        %v1357 = vld [vmem:[%s507 + $0x890] sm:$0xff]
        %v1358 = vld [vmem:[%s507 + $0x898] sm:$0xff]
        %v1359 = vld [vmem:[%s507 + $0x8a0] sm:$0xff]
        %v1360 = vld [vmem:[%s507 + $0x8a8] sm:$0xff]
        %v1361 = vld [vmem:[%s507 + $0x8b0] sm:$0xff]
        %v1362 = vld [vmem:[%s507 + $0x8b8] sm:$0xff]
        %v1363 = vld [vmem:[%s507 + $0x8c0] sm:$0xff]
        %v1364 = vld [vmem:[%s507 + $0x8c8] sm:$0xff]
        %v1365 = vld [vmem:[%s507 + $0x8d0] sm:$0xff]
        %v1366 = vld [vmem:[%s507 + $0x8d8] sm:$0xff]
        %v1367 = vld [vmem:[%s507 + $0x8e0] sm:$0xff]
        %v1368 = vld [vmem:[%s507 + $0x8e8] sm:$0xff]
        %v1369 = vld [vmem:[%s507 + $0x8f0] sm:$0xff]
        %v1370 = vld [vmem:[%s507 + $0x8f8] sm:$0xff]
        %v1371 = vld [vmem:[%s507 + $0x900] sm:$0xff]
        %v1372 = vld [vmem:[%s507 + $0x908] sm:$0xff]
        %v1373 = vld [vmem:[%s507 + $0x910] sm:$0xff]
        %v1374 = vld [vmem:[%s507 + $0x918] sm:$0xff]
        %v1375 = vld [vmem:[%s507 + $0x920] sm:$0xff]
        %v1376 = vld [vmem:[%s507 + $0x928] sm:$0xff]
        %v1377 = vld [vmem:[%s507 + $0x930] sm:$0xff]
        %v1378 = vld [vmem:[%s507 + $0x938] sm:$0xff]
        %v1379 = vld [vmem:[%s507 + $0x940] sm:$0xff]
        %v1380 = vld [vmem:[%s507 + $0x948] sm:$0xff]
        %v1381 = vld [vmem:[%s507 + $0x950] sm:$0xff]
        %v1382 = vld [vmem:[%s507 + $0x958] sm:$0xff]
        %v1383 = vld [vmem:[%s507 + $0x960] sm:$0xff]
        %v1384 = vld [vmem:[%s507 + $0x968] sm:$0xff]
        %v1385 = vld [vmem:[%s507 + $0x970] sm:$0xff]
        %v1386 = vld [vmem:[%s507 + $0x978] sm:$0xff]
        %v1387 = vld [vmem:[%s507 + $0x980] sm:$0xff]
        %v1388 = vld [vmem:[%s507 + $0x988] sm:$0xff]
        %v1389 = vld [vmem:[%s507 + $0x990] sm:$0xff]
        %v1390 = vld [vmem:[%s507 + $0x998] sm:$0xff]
        %v1391 = vld [vmem:[%s507 + $0x9a0] sm:$0xff]
        %v1392 = vld [vmem:[%s507 + $0x9a8] sm:$0xff]
        %v1393 = vld [vmem:[%s507 + $0x9b0] sm:$0xff]
        %v1394 = vld [vmem:[%s507 + $0x9b8] sm:$0xff]
        %v1395 = vld [vmem:[%s507 + $0x9c0] sm:$0xff]
        %v1396 = vld [vmem:[%s507 + $0x9c8] sm:$0xff]
        %v1397 = vld [vmem:[%s507 + $0x9d0] sm:$0xff]
        %v1398 = vld [vmem:[%s507 + $0x9d8] sm:$0xff]
        %v1399 = vld [vmem:[%s507 + $0x9e0] sm:$0xff]
        %v1400 = vld [vmem:[%s507 + $0x9e8] sm:$0xff]
        %v1401 = vld [vmem:[%s507 + $0x9f0] sm:$0xff]
        %v1402 = vld [vmem:[%s507 + $0x9f8] sm:$0xff]
        %v1403 = vld [vmem:[%s507 + $0xa00] sm:$0xff]
        %v1404 = vld [vmem:[%s507 + $0xa08] sm:$0xff]
        %v1405 = vld [vmem:[%s507 + $0xa10] sm:$0xff]
        %v1406 = vld [vmem:[%s507 + $0xa18] sm:$0xff]
        %v1407 = vld [vmem:[%s507 + $0xa20] sm:$0xff]
        %v1408 = vld [vmem:[%s507 + $0xa28] sm:$0xff]
        %v1409 = vld [vmem:[%s507 + $0xa30] sm:$0xff]
        %v1410 = vld [vmem:[%s507 + $0xa38] sm:$0xff]
        %v1411 = vld [vmem:[%s507 + $0xa40] sm:$0xff]
        %v1412 = vld [vmem:[%s507 + $0xa48] sm:$0xff]
        %v1413 = vld [vmem:[%s507 + $0xa50] sm:$0xff]
        %v1414 = vld [vmem:[%s507 + $0xa58] sm:$0xff]
        %v1415 = vld [vmem:[%s507 + $0xa60] sm:$0xff]
        %v1416 = vld [vmem:[%s507 + $0xa68] sm:$0xff]
        %v1417 = vld [vmem:[%s507 + $0xa70] sm:$0xff]
        %v1418 = vld [vmem:[%s507 + $0xa78] sm:$0xff]
        %v1419 = vld [vmem:[%s507 + $0xa80] sm:$0xff]
        %v1420 = vld [vmem:[%s507 + $0xa88] sm:$0xff]
        %v1421 = vld [vmem:[%s507 + $0xa90] sm:$0xff]
        %v1422 = vld [vmem:[%s507 + $0xa98] sm:$0xff]
        %v1423 = vld [vmem:[%s507 + $0xaa0] sm:$0xff]
        %v1424 = vld [vmem:[%s507 + $0xaa8] sm:$0xff]
        %v1425 = vld [vmem:[%s507 + $0xab0] sm:$0xff]
        %v1426 = vld [vmem:[%s507 + $0xab8] sm:$0xff]
        %v1427 = vld [vmem:[%s507 + $0xac0] sm:$0xff]
        %v1428 = vld [vmem:[%s507 + $0xac8] sm:$0xff]
        %v1429 = vld [vmem:[%s507 + $0xad0] sm:$0xff]
        %v1430 = vld [vmem:[%s507 + $0xad8] sm:$0xff]
        %v1431 = vld [vmem:[%s507 + $0xae0] sm:$0xff]
        %v1432 = vld [vmem:[%s507 + $0xae8] sm:$0xff]
        %v1433 = vld [vmem:[%s507 + $0xaf0] sm:$0xff]
        %v1434 = vld [vmem:[%s507 + $0xaf8] sm:$0xff]
        %v1435 = vld [vmem:[%s507 + $0xb00] sm:$0xff]
        %v1436 = vld [vmem:[%s507 + $0xb08] sm:$0xff]
        %v1437 = vld [vmem:[%s507 + $0xb10] sm:$0xff]
        %v1438 = vld [vmem:[%s507 + $0xb18] sm:$0xff]
        %v1439 = vld [vmem:[%s507 + $0xb20] sm:$0xff]
        %v1440 = vld [vmem:[%s507 + $0xb28] sm:$0xff]
        %v1441 = vld [vmem:[%s507 + $0xb30] sm:$0xff]
        %v1442 = vld [vmem:[%s507 + $0xb38] sm:$0xff]
        %v1443 = vld [vmem:[%s507 + $0xb40] sm:$0xff]
        %v1444 = vld [vmem:[%s507 + $0xb48] sm:$0xff]
        %v1445 = vld [vmem:[%s507 + $0xb50] sm:$0xff]
        %v1446 = vld [vmem:[%s507 + $0xb58] sm:$0xff]
        %v1447 = vld [vmem:[%s507 + $0xb60] sm:$0xff]
        %v1448 = vld [vmem:[%s507 + $0xb68] sm:$0xff]
        %v1449 = vld [vmem:[%s507 + $0xb70] sm:$0xff]
        %v1450 = vld [vmem:[%s507 + $0xb78] sm:$0xff]
        %v1451 = vld [vmem:[%s507 + $0xb80] sm:$0xff]
        %v1452 = vld [vmem:[%s507 + $0xb88] sm:$0xff]
        %v1453 = vld [vmem:[%s507 + $0xb90] sm:$0xff]
        %v1454 = vld [vmem:[%s507 + $0xb98] sm:$0xff]
        %v1455 = vld [vmem:[%s507 + $0xba0] sm:$0xff]
        %v1456 = vld [vmem:[%s507 + $0xba8] sm:$0xff]
        %v1457 = vld [vmem:[%s507 + $0xbb0] sm:$0xff]
        %v1458 = vld [vmem:[%s507 + $0xbb8] sm:$0xff]
        %v1459 = vld [vmem:[%s507 + $0xbc0] sm:$0xff]
        %v1460 = vld [vmem:[%s507 + $0xbc8] sm:$0xff]
        %v1461 = vld [vmem:[%s507 + $0xbd0] sm:$0xff]
        %v1462 = vld [vmem:[%s507 + $0xbd8] sm:$0xff]
        %v1463 = vld [vmem:[%s507 + $0xbe0] sm:$0xff]
        %v1464 = vld [vmem:[%s507 + $0xbe8] sm:$0xff]
        %v1465 = vld [vmem:[%s507 + $0xbf0] sm:$0xff]
        %v1466 = vld [vmem:[%s507 + $0xbf8] sm:$0xff]
        %v1467 = vld [vmem:[%s507 + $0xc00] sm:$0xff]
        %v1468 = vld [vmem:[%s507 + $0xc08] sm:$0xff]
        %v1469 = vld [vmem:[%s507 + $0xc10] sm:$0xff]
        %v1470 = vld [vmem:[%s507 + $0xc18] sm:$0xff]
        %v1471 = vld [vmem:[%s507 + $0xc20] sm:$0xff]
        %v1472 = vld [vmem:[%s507 + $0xc28] sm:$0xff]
        %v1473 = vld [vmem:[%s507 + $0xc30] sm:$0xff]
        %v1474 = vld [vmem:[%s507 + $0xc38] sm:$0xff]
        %v1475 = vld [vmem:[%s507 + $0xc40] sm:$0xff]
        %v1476 = vld [vmem:[%s507 + $0xc48] sm:$0xff]
        %v1477 = vld [vmem:[%s507 + $0xc50] sm:$0xff]
        %v1478 = vld [vmem:[%s507 + $0xc58] sm:$0xff]
        %v1479 = vld [vmem:[%s507 + $0xc60] sm:$0xff]
        %v1480 = vld [vmem:[%s507 + $0xc68] sm:$0xff]
        %v1481 = vld [vmem:[%s507 + $0xc70] sm:$0xff]
        %v1482 = vld [vmem:[%s507 + $0xc78] sm:$0xff]
        %v1483 = vld [vmem:[%s507 + $0xc80] sm:$0xff]
        %v1484 = vld [vmem:[%s507 + $0xc88] sm:$0xff]
        %v1485 = vld [vmem:[%s507 + $0xc90] sm:$0xff]
        %v1486 = vld [vmem:[%s507 + $0xc98] sm:$0xff]
        %v1487 = vld [vmem:[%s507 + $0xca0] sm:$0xff]
        %v1488 = vld [vmem:[%s507 + $0xca8] sm:$0xff]
        %v1489 = vld [vmem:[%s507 + $0xcb0] sm:$0xff]
        %v1490 = vld [vmem:[%s507 + $0xcb8] sm:$0xff]
        %v1491 = vld [vmem:[%s507 + $0xcc0] sm:$0xff]
        %v1492 = vld [vmem:[%s507 + $0xcc8] sm:$0xff]
        %v1493 = vld [vmem:[%s507 + $0xcd0] sm:$0xff]
        %v1494 = vld [vmem:[%s507 + $0xcd8] sm:$0xff]
        %v1495 = vld [vmem:[%s507 + $0xce0] sm:$0xff]
        %v1496 = vld [vmem:[%s507 + $0xce8] sm:$0xff]
        %v1497 = vld [vmem:[%s507 + $0xcf0] sm:$0xff]
        %v1498 = vld [vmem:[%s507 + $0xcf8] sm:$0xff]
        %v1499 = vld [vmem:[%s507 + $0xd00] sm:$0xff]
        %v1500 = vld [vmem:[%s507 + $0xd08] sm:$0xff]
        %v1501 = vld [vmem:[%s507 + $0xd10] sm:$0xff]
        %v1502 = vld [vmem:[%s507 + $0xd18] sm:$0xff]
        %v1503 = vld [vmem:[%s507 + $0xd20] sm:$0xff]
        %v1504 = vld [vmem:[%s507 + $0xd28] sm:$0xff]
        %v1505 = vld [vmem:[%s507 + $0xd30] sm:$0xff]
        %v1506 = vld [vmem:[%s507 + $0xd38] sm:$0xff]
        %v1507 = vld [vmem:[%s507 + $0xd40] sm:$0xff]
        %v1508 = vld [vmem:[%s507 + $0xd48] sm:$0xff]
        %v1509 = vld [vmem:[%s507 + $0xd50] sm:$0xff]
        %v1510 = vld [vmem:[%s507 + $0xd58] sm:$0xff]
        %v1511 = vld [vmem:[%s507 + $0xd60] sm:$0xff]
        %v1512 = vld [vmem:[%s507 + $0xd68] sm:$0xff]
        %v1513 = vld [vmem:[%s507 + $0xd70] sm:$0xff]
        %v1514 = vld [vmem:[%s507 + $0xd78] sm:$0xff]
        %v1515 = vld [vmem:[%s507 + $0xd80] sm:$0xff]
        %v1516 = vld [vmem:[%s507 + $0xd88] sm:$0xff]
        %v1517 = vld [vmem:[%s507 + $0xd90] sm:$0xff]
        %v1518 = vld [vmem:[%s507 + $0xd98] sm:$0xff]
        %v1519 = vld [vmem:[%s507 + $0xda0] sm:$0xff]
        %v1520 = vld [vmem:[%s507 + $0xda8] sm:$0xff]
        %v1521 = vld [vmem:[%s507 + $0xdb0] sm:$0xff]
        %v1522 = vld [vmem:[%s507 + $0xdb8] sm:$0xff]
        %v1523 = vld [vmem:[%s507 + $0xdc0] sm:$0xff]
        %v1524 = vld [vmem:[%s507 + $0xdc8] sm:$0xff]
        %v1525 = vld [vmem:[%s507 + $0xdd0] sm:$0xff]
        %v1526 = vld [vmem:[%s507 + $0xdd8] sm:$0xff]
        %v1527 = vld [vmem:[%s507 + $0xde0] sm:$0xff]
        %v1528 = vld [vmem:[%s507 + $0xde8] sm:$0xff]
        %v1529 = vld [vmem:[%s507 + $0xdf0] sm:$0xff]
        %v1530 = vld [vmem:[%s507 + $0xdf8] sm:$0xff]
        %v1531 = vld [vmem:[%s507 + $0xe00] sm:$0xff]
        %v1532 = vld [vmem:[%s507 + $0xe08] sm:$0xff]
        %v1533 = vld [vmem:[%s507 + $0xe10] sm:$0xff]
        %v1534 = vld [vmem:[%s507 + $0xe18] sm:$0xff]
        %v1535 = vld [vmem:[%s507 + $0xe20] sm:$0xff]
        %v1536 = vld [vmem:[%s507 + $0xe28] sm:$0xff]
        %v1537 = vld [vmem:[%s507 + $0xe30] sm:$0xff]
        %v1538 = vld [vmem:[%s507 + $0xe38] sm:$0xff]
        %v1539 = vld [vmem:[%s507 + $0xe40] sm:$0xff]
        %v1540 = vld [vmem:[%s507 + $0xe48] sm:$0xff]
        %v1541 = vld [vmem:[%s507 + $0xe50] sm:$0xff]
        %v1542 = vld [vmem:[%s507 + $0xe58] sm:$0xff]
        %v1543 = vld [vmem:[%s507 + $0xe60] sm:$0xff]
        %v1544 = vld [vmem:[%s507 + $0xe68] sm:$0xff]
        %v1545 = vld [vmem:[%s507 + $0xe70] sm:$0xff]
        %v1546 = vld [vmem:[%s507 + $0xe78] sm:$0xff]
        %v1547 = vld [vmem:[%s507 + $0xe80] sm:$0xff]
        %v1548 = vld [vmem:[%s507 + $0xe88] sm:$0xff]
        %v1549 = vld [vmem:[%s507 + $0xe90] sm:$0xff]
        %v1550 = vld [vmem:[%s507 + $0xe98] sm:$0xff]
        %v1551 = vld [vmem:[%s507 + $0xea0] sm:$0xff]
        %v1552 = vld [vmem:[%s507 + $0xea8] sm:$0xff]
        %v1553 = vld [vmem:[%s507 + $0xeb0] sm:$0xff]
        %v1554 = vld [vmem:[%s507 + $0xeb8] sm:$0xff]
        %v1555 = vld [vmem:[%s507 + $0xec0] sm:$0xff]
        %v1556 = vld [vmem:[%s507 + $0xec8] sm:$0xff]
        %v1557 = vld [vmem:[%s507 + $0xed0] sm:$0xff]
        %v1558 = vld [vmem:[%s507 + $0xed8] sm:$0xff]
        %v1559 = vld [vmem:[%s507 + $0xee0] sm:$0xff]
        %v1560 = vld [vmem:[%s507 + $0xee8] sm:$0xff]
        %v1561 = vld [vmem:[%s507 + $0xef0] sm:$0xff]
        %v1562 = vld [vmem:[%s507 + $0xef8] sm:$0xff]
        %v1563 = vld [vmem:[%s507 + $0xf00] sm:$0xff]
        %v1564 = vld [vmem:[%s507 + $0xf08] sm:$0xff]
        %v1565 = vld [vmem:[%s507 + $0xf10] sm:$0xff]
        %v1566 = vld [vmem:[%s507 + $0xf18] sm:$0xff]
        %v1567 = vld [vmem:[%s507 + $0xf20] sm:$0xff]
        %v1568 = vld [vmem:[%s507 + $0xf28] sm:$0xff]
        %v1569 = vld [vmem:[%s507 + $0xf30] sm:$0xff]
        %v1570 = vld [vmem:[%s507 + $0xf38] sm:$0xff]
        %v1571 = vld [vmem:[%s507 + $0xf40] sm:$0xff]
        %v1572 = vld [vmem:[%s507 + $0xf48] sm:$0xff]
        %v1573 = vld [vmem:[%s507 + $0xf50] sm:$0xff]
        %v1574 = vld [vmem:[%s507 + $0xf58] sm:$0xff]
        %v1575 = vld [vmem:[%s507 + $0xf60] sm:$0xff]
        %v1576 = vld [vmem:[%s507 + $0xf68] sm:$0xff]
        %v1577 = vld [vmem:[%s507 + $0xf70] sm:$0xff]
        %v1578 = vld [vmem:[%s507 + $0xf78] sm:$0xff]
        %v1579 = vld [vmem:[%s507 + $0xf80] sm:$0xff]
        %v1580 = vld [vmem:[%s507 + $0xf88] sm:$0xff]
        %v1581 = vld [vmem:[%s507 + $0xf90] sm:$0xff]
        %v1582 = vld [vmem:[%s507 + $0xf98] sm:$0xff]
        %v1583 = vld [vmem:[%s507 + $0xfa0] sm:$0xff]
        %v1584 = vld [vmem:[%s507 + $0xfa8] sm:$0xff]
        %v1585 = vld [vmem:[%s507 + $0xfb0] sm:$0xff]
        %v1586 = vld [vmem:[%s507 + $0xfb8] sm:$0xff]
        %v1587 = vld [vmem:[%s507 + $0xfc0] sm:$0xff]
        %v1588 = vld [vmem:[%s507 + $0xfc8] sm:$0xff]
        %v1589 = vld [vmem:[%s507 + $0xfd0] sm:$0xff]
        %v1590 = vld [vmem:[%s507 + $0xfd8] sm:$0xff]
        %v1591 = vld [vmem:[%s507 + $0xfe0] sm:$0xff]
        %v1592 = vld [vmem:[%s507 + $0xfe8] sm:$0xff]
        %v1593 = vld [vmem:[%s507 + $0xff0] sm:$0xff]
        %v1594 = vld [vmem:[%s507 + $0xff8] sm:$0xff]
        %v1595 = vld [vmem:[%s507 + $0x1000] sm:$0xff]
        %v1596 = vld [vmem:[%s507 + $0x1008] sm:$0xff]
        %v1597 = vld [vmem:[%s507 + $0x1010] sm:$0xff]
        %v1598 = vld [vmem:[%s507 + $0x1018] sm:$0xff]
        %v1599 = vld [vmem:[%s507 + $0x1020] sm:$0xff]
        %v1600 = vld [vmem:[%s507 + $0x1028] sm:$0xff]
        %v1601 = vld [vmem:[%s507 + $0x1030] sm:$0xff]
        %v1602 = vld [vmem:[%s507 + $0x1038] sm:$0xff]
        %v1603 = vld [vmem:[%s507 + $0x1040] sm:$0xff]
        %v1604 = vld [vmem:[%s507 + $0x1048] sm:$0xff]
        %v1605 = vld [vmem:[%s507 + $0x1050] sm:$0xff]
        %v1606 = vld [vmem:[%s507 + $0x1058] sm:$0xff]
        %v1607 = vld [vmem:[%s507 + $0x1060] sm:$0xff]
        %v1608 = vld [vmem:[%s507 + $0x1068] sm:$0xff]
        %v1609 = vld [vmem:[%s507 + $0x1070] sm:$0xff]
        %v1610 = vld [vmem:[%s507 + $0x1078] sm:$0xff]
        %v1611 = vld [vmem:[%s507 + $0x1080] sm:$0xff]
        %v1612 = vld [vmem:[%s507 + $0x1088] sm:$0xff]
        %v1613 = vld [vmem:[%s507 + $0x1090] sm:$0xff]
        %v1614 = vld [vmem:[%s507 + $0x1098] sm:$0xff]
        %v1615 = vld [vmem:[%s507 + $0x10a0] sm:$0xff]
        %v1616 = vld [vmem:[%s507 + $0x10a8] sm:$0xff]
        %v1617 = vld [vmem:[%s507 + $0x10b0] sm:$0xff]
        %v1618 = vld [vmem:[%s507 + $0x10b8] sm:$0xff]
        %v1619 = vld [vmem:[%s507 + $0x10c0] sm:$0xff]
        %v1620 = vld [vmem:[%s507 + $0x10c8] sm:$0xff]
        %v1621 = vld [vmem:[%s507 + $0x10d0] sm:$0xff]
        %v1622 = vld [vmem:[%s507 + $0x10d8] sm:$0xff]
        %v1623 = vld [vmem:[%s507 + $0x10e0] sm:$0xff]
        %v1624 = vld [vmem:[%s507 + $0x10e8] sm:$0xff]
        %v1625 = vld [vmem:[%s507 + $0x10f0] sm:$0xff]
        %v1626 = vld [vmem:[%s507 + $0x10f8] sm:$0xff]
        %v1627 = vld [vmem:[%s507 + $0x1100] sm:$0xff]
        %v1628 = vld [vmem:[%s507 + $0x1108] sm:$0xff]
        %v1629 = vld [vmem:[%s507 + $0x1110] sm:$0xff]
        %v1630 = vld [vmem:[%s507 + $0x1118] sm:$0xff]
        %v1631 = vld [vmem:[%s507 + $0x1120] sm:$0xff]
        %v1632 = vld [vmem:[%s507 + $0x1128] sm:$0xff]
        %v1633 = vld [vmem:[%s507 + $0x1130] sm:$0xff]
        %v1634 = vld [vmem:[%s507 + $0x1138] sm:$0xff]
        %v1635 = vld [vmem:[%s507 + $0x1140] sm:$0xff]
        %v1636 = vld [vmem:[%s507 + $0x1148] sm:$0xff]
        %v1637 = vld [vmem:[%s507 + $0x1150] sm:$0xff]
        %v1638 = vld [vmem:[%s507 + $0x1158] sm:$0xff]
        %v1639 = vld [vmem:[%s507 + $0x1160] sm:$0xff]
        %v1640 = vld [vmem:[%s507 + $0x1168] sm:$0xff]
        %v1641 = vld [vmem:[%s507 + $0x1170] sm:$0xff]
        %v1642 = vld [vmem:[%s507 + $0x1178] sm:$0xff]
        %v1643 = vld [vmem:[%s507 + $0x1180] sm:$0xff]
        %v1644 = vld [vmem:[%s507 + $0x1188] sm:$0xff]
        %v1645 = vld [vmem:[%s507 + $0x1190] sm:$0xff]
        %v1646 = vld [vmem:[%s507 + $0x1198] sm:$0xff]
        %v1647 = vld [vmem:[%s507 + $0x11a0] sm:$0xff]
        %v1648 = vld [vmem:[%s507 + $0x11a8] sm:$0xff]
        %v1649 = vld [vmem:[%s507 + $0x11b0] sm:$0xff]
        %v1650 = vld [vmem:[%s507 + $0x11b8] sm:$0xff]
        %v1651 = vld [vmem:[%s507 + $0x11c0] sm:$0xff]
        %v1652 = vld [vmem:[%s507 + $0x11c8] sm:$0xff]
        %v1653 = vld [vmem:[%s507 + $0x11d0] sm:$0xff]
        %v1654 = vld [vmem:[%s507 + $0x11d8] sm:$0xff]
        %v1655 = vld [vmem:[%s507 + $0x11e0] sm:$0xff]
        %v1656 = vld [vmem:[%s507 + $0x11e8] sm:$0xff]
        %v1657 = vld [vmem:[%s507 + $0x11f0] sm:$0xff]
        %v1658 = vld [vmem:[%s507 + $0x11f8] sm:$0xff]
        %v1659 = vld [vmem:[%s507 + $0x1200] sm:$0xff]
        %v1660 = vld [vmem:[%s507 + $0x1208] sm:$0xff]
        %v1661 = vld [vmem:[%s507 + $0x1210] sm:$0xff]
        %v1662 = vld [vmem:[%s507 + $0x1218] sm:$0xff]
        %v1663 = vld [vmem:[%s507 + $0x1220] sm:$0xff]
        %v1664 = vld [vmem:[%s507 + $0x1228] sm:$0xff]
        %v1665 = vld [vmem:[%s507 + $0x1230] sm:$0xff]
        %v1666 = vld [vmem:[%s507 + $0x1238] sm:$0xff]
        %v1667 = vld [vmem:[%s507 + $0x1240] sm:$0xff]
        %v1668 = vld [vmem:[%s507 + $0x1248] sm:$0xff]
        %v1669 = vld [vmem:[%s507 + $0x1250] sm:$0xff]
        %v1670 = vld [vmem:[%s507 + $0x1258] sm:$0xff]
        %v1671 = vld [vmem:[%s507 + $0x1260] sm:$0xff]
        %v1672 = vld [vmem:[%s507 + $0x1268] sm:$0xff]
        %v1673 = vld [vmem:[%s507 + $0x1270] sm:$0xff]
        %v1674 = vld [vmem:[%s507 + $0x1278] sm:$0xff]
        %v1675 = vld [vmem:[%s507 + $0x1280] sm:$0xff]
        %v1676 = vld [vmem:[%s507 + $0x1288] sm:$0xff]
        %v1677 = vld [vmem:[%s507 + $0x1290] sm:$0xff]
        %v1678 = vld [vmem:[%s507 + $0x1298] sm:$0xff]
        %v1679 = vld [vmem:[%s507 + $0x12a0] sm:$0xff]
        %v1680 = vld [vmem:[%s507 + $0x12a8] sm:$0xff]
        %v1681 = vld [vmem:[%s507 + $0x12b0] sm:$0xff]
        %v1682 = vld [vmem:[%s507 + $0x12b8] sm:$0xff]
        %v1683 = vld [vmem:[%s507 + $0x12c0] sm:$0xff]
        %v1684 = vld [vmem:[%s507 + $0x12c8] sm:$0xff]
        %v1685 = vld [vmem:[%s507 + $0x12d0] sm:$0xff]
        %v1686 = vld [vmem:[%s507 + $0x12d8] sm:$0xff]
        %v1687 = vld [vmem:[%s507 + $0x12e0] sm:$0xff]
        %v1688 = vld [vmem:[%s507 + $0x12e8] sm:$0xff]
        %v1689 = vld [vmem:[%s507 + $0x12f0] sm:$0xff]
        %v1690 = vld [vmem:[%s507 + $0x12f8] sm:$0xff]
        %v1691 = vld [vmem:[%s507 + $0x1300] sm:$0xff]
        %v1692 = vld [vmem:[%s507 + $0x1308] sm:$0xff]
        %v1693 = vld [vmem:[%s507 + $0x1310] sm:$0xff]
        %v1694 = vld [vmem:[%s507 + $0x1318] sm:$0xff]
        %v1695 = vld [vmem:[%s507 + $0x1320] sm:$0xff]
        %v1696 = vld [vmem:[%s507 + $0x1328] sm:$0xff]
        %v1697 = vld [vmem:[%s507 + $0x1330] sm:$0xff]
        %v1698 = vld [vmem:[%s507 + $0x1338] sm:$0xff]
        %v1699 = vld [vmem:[%s507 + $0x1340] sm:$0xff]
        %v1700 = vld [vmem:[%s507 + $0x1348] sm:$0xff]
        %v1701 = vld [vmem:[%s507 + $0x1350] sm:$0xff]
        %v1702 = vld [vmem:[%s507 + $0x1358] sm:$0xff]
        %v1703 = vld [vmem:[%s507 + $0x1360] sm:$0xff]
        %v1704 = vld [vmem:[%s507 + $0x1368] sm:$0xff]
        %v1705 = vld [vmem:[%s507 + $0x1370] sm:$0xff]
        %v1706 = vld [vmem:[%s507 + $0x1378] sm:$0xff]
        %v1707 = vld [vmem:[%s507 + $0x1380] sm:$0xff]
        %v1708 = vld [vmem:[%s507 + $0x1388] sm:$0xff]
        %v1709 = vld [vmem:[%s507 + $0x1390] sm:$0xff]
        %v1710 = vld [vmem:[%s507 + $0x1398] sm:$0xff]
        %v1711 = vld [vmem:[%s507 + $0x13a0] sm:$0xff]
        %v1712 = vld [vmem:[%s507 + $0x13a8] sm:$0xff]
        %v1713 = vld [vmem:[%s507 + $0x13b0] sm:$0xff]
        %v1714 = vld [vmem:[%s507 + $0x13b8] sm:$0xff]
        %v1715 = vld [vmem:[%s507 + $0x13c0] sm:$0xff]
        %v1716 = vld [vmem:[%s507 + $0x13c8] sm:$0xff]
        %v1717 = vld [vmem:[%s507 + $0x13d0] sm:$0xff]
        %v1718 = vld [vmem:[%s507 + $0x13d8] sm:$0xff]
        %v1719 = vld [vmem:[%s507 + $0x13e0] sm:$0xff]
        %v1720 = vld [vmem:[%s507 + $0x13e8] sm:$0xff]
        %v1721 = vld [vmem:[%s507 + $0x13f0] sm:$0xff]
        %v1722 = vld [vmem:[%s507 + $0x13f8] sm:$0xff]
        %v1723 = vld [vmem:[%s507 + $0x1400] sm:$0xff]
        %v1724 = vld [vmem:[%s507 + $0x1408] sm:$0xff]
        %v1725 = vld [vmem:[%s507 + $0x1410] sm:$0xff]
        %v1726 = vld [vmem:[%s507 + $0x1418] sm:$0xff]
        %v1727 = vld [vmem:[%s507 + $0x1420] sm:$0xff]
        %v1728 = vld [vmem:[%s507 + $0x1428] sm:$0xff]
        %v1729 = vld [vmem:[%s507 + $0x1430] sm:$0xff]
        %v1730 = vld [vmem:[%s507 + $0x1438] sm:$0xff]
        %v1731 = vld [vmem:[%s507 + $0x1440] sm:$0xff]
        %v1732 = vld [vmem:[%s507 + $0x1448] sm:$0xff]
        %v1733 = vld [vmem:[%s507 + $0x1450] sm:$0xff]
        %v1734 = vld [vmem:[%s507 + $0x1458] sm:$0xff]
        %v1735 = vld [vmem:[%s507 + $0x1460] sm:$0xff]
        %v1736 = vld [vmem:[%s507 + $0x1468] sm:$0xff]
        %v1737 = vld [vmem:[%s507 + $0x1470] sm:$0xff]
        %v1738 = vld [vmem:[%s507 + $0x1478] sm:$0xff]
        %v1739 = vld [vmem:[%s507 + $0x1480] sm:$0xff]
        %v1740 = vld [vmem:[%s507 + $0x1488] sm:$0xff]
        %v1741 = vld [vmem:[%s507 + $0x1490] sm:$0xff]
        %v1742 = vld [vmem:[%s507 + $0x1498] sm:$0xff]
        %v1743 = vld [vmem:[%s507 + $0x14a0] sm:$0xff]
        %v1744 = vld [vmem:[%s507 + $0x14a8] sm:$0xff]
        %v1745 = vld [vmem:[%s507 + $0x14b0] sm:$0xff]
        %v1746 = vld [vmem:[%s507 + $0x14b8] sm:$0xff]
        %v1747 = vld [vmem:[%s507 + $0x14c0] sm:$0xff]
        %v1748 = vld [vmem:[%s507 + $0x14c8] sm:$0xff]
        %v1749 = vld [vmem:[%s507 + $0x14d0] sm:$0xff]
        %v1750 = vld [vmem:[%s507 + $0x14d8] sm:$0xff]
        %v1751 = vld [vmem:[%s507 + $0x14e0] sm:$0xff]
        %v1752 = vld [vmem:[%s507 + $0x14e8] sm:$0xff]
        %v1753 = vld [vmem:[%s507 + $0x14f0] sm:$0xff]
        %v1754 = vld [vmem:[%s507 + $0x14f8] sm:$0xff]
        %v1755 = vld [vmem:[%s507 + $0x1500] sm:$0xff]
        %v1756 = vld [vmem:[%s507 + $0x1508] sm:$0xff]
        %v1757 = vld [vmem:[%s507 + $0x1510] sm:$0xff]
        %v1758 = vld [vmem:[%s507 + $0x1518] sm:$0xff]
        %v1759 = vld [vmem:[%s507 + $0x1520] sm:$0xff]
        %v1760 = vld [vmem:[%s507 + $0x1528] sm:$0xff]
        %v1761 = vld [vmem:[%s507 + $0x1530] sm:$0xff]
        %v1762 = vld [vmem:[%s507 + $0x1538] sm:$0xff]
        %v1763 = vld [vmem:[%s507 + $0x1540] sm:$0xff]
        %v1764 = vld [vmem:[%s507 + $0x1548] sm:$0xff]
        %v1765 = vld [vmem:[%s507 + $0x1550] sm:$0xff]
        %v1766 = vld [vmem:[%s507 + $0x1558] sm:$0xff]
        %v1767 = vld [vmem:[%s507 + $0x1560] sm:$0xff]
        %v1768 = vld [vmem:[%s507 + $0x1568] sm:$0xff]
        %v1769 = vld [vmem:[%s507 + $0x1570] sm:$0xff]
        %v1770 = vld [vmem:[%s507 + $0x1578] sm:$0xff]
        %v1771 = vld [vmem:[%s507 + $0x1580] sm:$0xff]
        %v1772 = vld [vmem:[%s507 + $0x1588] sm:$0xff]
        %v1773 = vld [vmem:[%s507 + $0x1590] sm:$0xff]
        %v1774 = vld [vmem:[%s507 + $0x1598] sm:$0xff]
        %v1775 = vld [vmem:[%s507 + $0x15a0] sm:$0xff]
        %v1776 = vld [vmem:[%s507 + $0x15a8] sm:$0xff]
        %v1777 = vld [vmem:[%s507 + $0x15b0] sm:$0xff]
        %v1778 = vld [vmem:[%s507 + $0x15b8] sm:$0xff]
        %v1779 = vld [vmem:[%s507 + $0x15c0] sm:$0xff]
        %v1780 = vld [vmem:[%s507 + $0x15c8] sm:$0xff]
        %v1781 = vld [vmem:[%s507 + $0x15d0] sm:$0xff]
        %v1782 = vld [vmem:[%s507 + $0x15d8] sm:$0xff]
        %v1783 = vld [vmem:[%s507 + $0x15e0] sm:$0xff]
        %v1784 = vld [vmem:[%s507 + $0x15e8] sm:$0xff]
        %v1785 = vld [vmem:[%s507 + $0x15f0] sm:$0xff]
        %v1786 = vld [vmem:[%s507 + $0x15f8] sm:$0xff]
        %v1787 = vld [vmem:[%s507 + $0x1600] sm:$0xff]
        %v1788 = vld [vmem:[%s507 + $0x1608] sm:$0xff]
        %v1789 = vld [vmem:[%s507 + $0x1610] sm:$0xff]
        %v1790 = vld [vmem:[%s507 + $0x1618] sm:$0xff]
        %v1791 = vld [vmem:[%s507 + $0x1620] sm:$0xff]
        %v1792 = vld [vmem:[%s507 + $0x1628] sm:$0xff]
        %v1793 = vld [vmem:[%s507 + $0x1630] sm:$0xff]
        %v1794 = vld [vmem:[%s507 + $0x1638] sm:$0xff]
        %v1795 = vld [vmem:[%s507 + $0x1640] sm:$0xff]
        %v1796 = vld [vmem:[%s507 + $0x1648] sm:$0xff]
        %v1797 = vld [vmem:[%s507 + $0x1650] sm:$0xff]
        %v1798 = vld [vmem:[%s507 + $0x1658] sm:$0xff]
        %v1799 = vld [vmem:[%s507 + $0x1660] sm:$0xff]
        %v1800 = vld [vmem:[%s507 + $0x1668] sm:$0xff]
        %v1801 = vld [vmem:[%s507 + $0x1670] sm:$0xff]
        %v1802 = vld [vmem:[%s507 + $0x1678] sm:$0xff]
        %v1803 = vld [vmem:[%s507 + $0x1680] sm:$0xff]
        %v1804 = vld [vmem:[%s507 + $0x1688] sm:$0xff]
        %v1805 = vld [vmem:[%s507 + $0x1690] sm:$0xff]
        %v1806 = vld [vmem:[%s507 + $0x1698] sm:$0xff]
        %v1807 = vld [vmem:[%s507 + $0x16a0] sm:$0xff]
        %v1808 = vld [vmem:[%s507 + $0x16a8] sm:$0xff]
        %v1809 = vld [vmem:[%s507 + $0x16b0] sm:$0xff]
        %v1810 = vld [vmem:[%s507 + $0x16b8] sm:$0xff]
        %v1811 = vld [vmem:[%s507 + $0x16c0] sm:$0xff]
        %v1812 = vld [vmem:[%s507 + $0x16c8] sm:$0xff]
        %v1813 = vld [vmem:[%s507 + $0x16d0] sm:$0xff]
        %v1814 = vld [vmem:[%s507 + $0x16d8] sm:$0xff]
        %v1815 = vld [vmem:[%s507 + $0x16e0] sm:$0xff]
        %v1816 = vld [vmem:[%s507 + $0x16e8] sm:$0xff]
        %v1817 = vld [vmem:[%s507 + $0x16f0] sm:$0xff]
        %v1818 = vld [vmem:[%s507 + $0x16f8] sm:$0xff]
        %v1819 = vld [vmem:[%s507 + $0x1700] sm:$0xff]
        %v1820 = vld [vmem:[%s507 + $0x1708] sm:$0xff]
        %v1821 = vld [vmem:[%s507 + $0x1710] sm:$0xff]
        %v1822 = vld [vmem:[%s507 + $0x1718] sm:$0xff]
        %v1823 = vld [vmem:[%s507 + $0x1720] sm:$0xff]
        %v1824 = vld [vmem:[%s507 + $0x1728] sm:$0xff]
        %v1825 = vld [vmem:[%s507 + $0x1730] sm:$0xff]
        %v1826 = vld [vmem:[%s507 + $0x1738] sm:$0xff]
        %v1827 = vld [vmem:[%s507 + $0x1740] sm:$0xff]
        %v1828 = vld [vmem:[%s507 + $0x1748] sm:$0xff]
        %v1829 = vld [vmem:[%s507 + $0x1750] sm:$0xff]
        %v1830 = vld [vmem:[%s507 + $0x1758] sm:$0xff]
        %v1831 = vld [vmem:[%s507 + $0x1760] sm:$0xff]
        %v1832 = vld [vmem:[%s507 + $0x1768] sm:$0xff]
        %v1833 = vld [vmem:[%s507 + $0x1770] sm:$0xff]
        %v1834 = vld [vmem:[%s507 + $0x1778] sm:$0xff]
        %v1835 = vld [vmem:[%s507 + $0x1780] sm:$0xff]
        %v1836 = vld [vmem:[%s507 + $0x1788] sm:$0xff]
        %v1837 = vld [vmem:[%s507 + $0x1790] sm:$0xff]
        %v1838 = vld [vmem:[%s507 + $0x1798] sm:$0xff]
        %v1839 = vld [vmem:[%s507 + $0x17a0] sm:$0xff]
        %v1840 = vld [vmem:[%s507 + $0x17a8] sm:$0xff]
        %v1841 = vld [vmem:[%s507 + $0x17b0] sm:$0xff]
        %v1842 = vld [vmem:[%s507 + $0x17b8] sm:$0xff]
        %v1843 = vld [vmem:[%s507 + $0x17c0] sm:$0xff]
        %v1844 = vld [vmem:[%s507 + $0x17c8] sm:$0xff]
        %v1845 = vld [vmem:[%s507 + $0x17d0] sm:$0xff]
        %v1846 = vld [vmem:[%s507 + $0x17d8] sm:$0xff]
        %v1847 = vld [vmem:[%s507 + $0x17e0] sm:$0xff]
        %v1848 = vld [vmem:[%s507 + $0x17e8] sm:$0xff]
        %v1849 = vld [vmem:[%s507 + $0x17f0] sm:$0xff]
        %v1850 = vld [vmem:[%s507 + $0x17f8] sm:$0xff]
        %v1851 = vld [vmem:[%s507 + $0x1800] sm:$0xff]
        %v1852 = vld [vmem:[%s507 + $0x1808] sm:$0xff]
        %v1853 = vld [vmem:[%s507 + $0x1810] sm:$0xff]
        %v1854 = vld [vmem:[%s507 + $0x1818] sm:$0xff]
        %v1855 = vld [vmem:[%s507 + $0x1820] sm:$0xff]
        %v1856 = vld [vmem:[%s507 + $0x1828] sm:$0xff]
        %v1857 = vld [vmem:[%s507 + $0x1830] sm:$0xff]
        %v1858 = vld [vmem:[%s507 + $0x1838] sm:$0xff]
        %v1859 = vld [vmem:[%s507 + $0x1840] sm:$0xff]
        %v1860 = vld [vmem:[%s507 + $0x1848] sm:$0xff]
        %v1861 = vld [vmem:[%s507 + $0x1850] sm:$0xff]
        %v1862 = vld [vmem:[%s507 + $0x1858] sm:$0xff]
        %v1863 = vld [vmem:[%s507 + $0x1860] sm:$0xff]
        %v1864 = vld [vmem:[%s507 + $0x1868] sm:$0xff]
        %v1865 = vld [vmem:[%s507 + $0x1870] sm:$0xff]
        %v1866 = vld [vmem:[%s507 + $0x1878] sm:$0xff]
        %v1867 = vld [vmem:[%s507 + $0x1880] sm:$0xff]
        %v1868 = vld [vmem:[%s507 + $0x1888] sm:$0xff]
        %v1869 = vld [vmem:[%s507 + $0x1890] sm:$0xff]
        %v1870 = vld [vmem:[%s507 + $0x1898] sm:$0xff]
        %v1871 = vld [vmem:[%s507 + $0x18a0] sm:$0xff]
        %v1872 = vld [vmem:[%s507 + $0x18a8] sm:$0xff]
        %v1873 = vld [vmem:[%s507 + $0x18b0] sm:$0xff]
        %v1874 = vld [vmem:[%s507 + $0x18b8] sm:$0xff]
        %v1875 = vld [vmem:[%s507 + $0x18c0] sm:$0xff]
        %v1876 = vld [vmem:[%s507 + $0x18c8] sm:$0xff]
        %v1877 = vld [vmem:[%s507 + $0x18d0] sm:$0xff]
        %v1878 = vld [vmem:[%s507 + $0x18d8] sm:$0xff]
        %v1879 = vld [vmem:[%s507 + $0x18e0] sm:$0xff]
        %v1880 = vld [vmem:[%s507 + $0x18e8] sm:$0xff]
        %v1881 = vld [vmem:[%s507 + $0x18f0] sm:$0xff]
        %v1882 = vld [vmem:[%s507 + $0x18f8] sm:$0xff]
        %v1883 = vld [vmem:[%s507 + $0x1900] sm:$0xff]
        %v1884 = vld [vmem:[%s507 + $0x1908] sm:$0xff]
        %v1885 = vld [vmem:[%s507 + $0x1910] sm:$0xff]
        %v1886 = vld [vmem:[%s507 + $0x1918] sm:$0xff]
        %v1887 = vld [vmem:[%s507 + $0x1920] sm:$0xff]
        %v1888 = vld [vmem:[%s507 + $0x1928] sm:$0xff]
        %v1889 = vld [vmem:[%s507 + $0x1930] sm:$0xff]
        %v1890 = vld [vmem:[%s507 + $0x1938] sm:$0xff]
        %v1891 = vld [vmem:[%s507 + $0x1940] sm:$0xff]
        %v1892 = vld [vmem:[%s507 + $0x1948] sm:$0xff]
        %v1893 = vld [vmem:[%s507 + $0x1950] sm:$0xff]
        %v1894 = vld [vmem:[%s507 + $0x1958] sm:$0xff]
        %v1895 = vld [vmem:[%s507 + $0x1960] sm:$0xff]
        %v1896 = vld [vmem:[%s507 + $0x1968] sm:$0xff]
        %v1897 = vld [vmem:[%s507 + $0x1970] sm:$0xff]
        %v1898 = vld [vmem:[%s507 + $0x1978] sm:$0xff]
        %v1899 = vld [vmem:[%s507 + $0x1980] sm:$0xff]
        %v1900 = vld [vmem:[%s507 + $0x1988] sm:$0xff]
        %v1901 = vld [vmem:[%s507 + $0x1990] sm:$0xff]
        %v1902 = vld [vmem:[%s507 + $0x1998] sm:$0xff]
        %v1903 = vld [vmem:[%s507 + $0x19a0] sm:$0xff]
        %v1904 = vld [vmem:[%s507 + $0x19a8] sm:$0xff]
        %v1905 = vld [vmem:[%s507 + $0x19b0] sm:$0xff]
        %v1906 = vld [vmem:[%s507 + $0x19b8] sm:$0xff]
        %v1907 = vld [vmem:[%s507 + $0x19c0] sm:$0xff]
        %v1908 = vld [vmem:[%s507 + $0x19c8] sm:$0xff]
        %v1909 = vld [vmem:[%s507 + $0x19d0] sm:$0xff]
        %v1910 = vld [vmem:[%s507 + $0x19d8] sm:$0xff]
        %v1911 = vld [vmem:[%s507 + $0x19e0] sm:$0xff]
        %v1912 = vld [vmem:[%s507 + $0x19e8] sm:$0xff]
        %v1913 = vld [vmem:[%s507 + $0x19f0] sm:$0xff]
        %v1914 = vld [vmem:[%s507 + $0x19f8] sm:$0xff]
        %v1915 = vld [vmem:[%s507 + $0x1a00] sm:$0xff]
        %v1916 = vld [vmem:[%s507 + $0x1a08] sm:$0xff]
        %v1917 = vld [vmem:[%s507 + $0x1a10] sm:$0xff]
        %v1918 = vld [vmem:[%s507 + $0x1a18] sm:$0xff]
        %v1919 = vld [vmem:[%s507 + $0x1a20] sm:$0xff]
        %v1920 = vld [vmem:[%s507 + $0x1a28] sm:$0xff]
        %v1921 = vld [vmem:[%s507 + $0x1a30] sm:$0xff]
        %v1922 = vld [vmem:[%s507 + $0x1a38] sm:$0xff]
        %v1923 = vld [vmem:[%s507 + $0x1a40] sm:$0xff]
        %v1924 = vld [vmem:[%s507 + $0x1a48] sm:$0xff]
        %v1925 = vld [vmem:[%s507 + $0x1a50] sm:$0xff]
        %v1926 = vld [vmem:[%s507 + $0x1a58] sm:$0xff]
        %v1927 = vld [vmem:[%s507 + $0x1a60] sm:$0xff]
        %v1928 = vld [vmem:[%s507 + $0x1a68] sm:$0xff]
        %v1929 = vld [vmem:[%s507 + $0x1a70] sm:$0xff]
        %v1930 = vld [vmem:[%s507 + $0x1a78] sm:$0xff]
        %v1931 = vld [vmem:[%s507 + $0x1a80] sm:$0xff]
        %v1932 = vld [vmem:[%s507 + $0x1a88] sm:$0xff]
        %v1933 = vld [vmem:[%s507 + $0x1a90] sm:$0xff]
        %v1934 = vld [vmem:[%s507 + $0x1a98] sm:$0xff]
        %v1935 = vld [vmem:[%s507 + $0x1aa0] sm:$0xff]
        %v1936 = vld [vmem:[%s507 + $0x1aa8] sm:$0xff]
        %v1937 = vld [vmem:[%s507 + $0x1ab0] sm:$0xff]
        %v1938 = vld [vmem:[%s507 + $0x1ab8] sm:$0xff]
        %v1939 = vld [vmem:[%s507 + $0x1ac0] sm:$0xff]
        %v1940 = vld [vmem:[%s507 + $0x1ac8] sm:$0xff]
        %v1941 = vld [vmem:[%s507 + $0x1ad0] sm:$0xff]
        %v1942 = vld [vmem:[%s507 + $0x1ad8] sm:$0xff]
        %v1943 = vld [vmem:[%s507 + $0x1ae0] sm:$0xff]
        %v1944 = vld [vmem:[%s507 + $0x1ae8] sm:$0xff]
        %v1945 = vld [vmem:[%s507 + $0x1af0] sm:$0xff]
        %v1946 = vld [vmem:[%s507 + $0x1af8] sm:$0xff]
        %v1947 = vld [vmem:[%s507 + $0x1b00] sm:$0xff]
        %v1948 = vld [vmem:[%s507 + $0x1b08] sm:$0xff]
        %v1949 = vld [vmem:[%s507 + $0x1b10] sm:$0xff]
        %v1950 = vld [vmem:[%s507 + $0x1b18] sm:$0xff]
        %v1951 = vld [vmem:[%s507 + $0x1b20] sm:$0xff]
        %v1952 = vld [vmem:[%s507 + $0x1b28] sm:$0xff]
        %v1953 = vld [vmem:[%s507 + $0x1b30] sm:$0xff]
        %v1954 = vld [vmem:[%s507 + $0x1b38] sm:$0xff]
        %v1955 = vld [vmem:[%s507 + $0x1b40] sm:$0xff]
        %v1956 = vld [vmem:[%s507 + $0x1b48] sm:$0xff]
        %v1957 = vld [vmem:[%s507 + $0x1b50] sm:$0xff]
        %v1958 = vld [vmem:[%s507 + $0x1b58] sm:$0xff]
        %v1959 = vld [vmem:[%s507 + $0x1b60] sm:$0xff]
        %v1960 = vld [vmem:[%s507 + $0x1b68] sm:$0xff]
        %v1961 = vld [vmem:[%s507 + $0x1b70] sm:$0xff]
        %v1962 = vld [vmem:[%s507 + $0x1b78] sm:$0xff]
        %v1963 = vld [vmem:[%s507 + $0x1b80] sm:$0xff]
        %v1964 = vld [vmem:[%s507 + $0x1b88] sm:$0xff]
        %v1965 = vld [vmem:[%s507 + $0x1b90] sm:$0xff]
        %v1966 = vld [vmem:[%s507 + $0x1b98] sm:$0xff]
        %v1967 = vld [vmem:[%s507 + $0x1ba0] sm:$0xff]
        %v1968 = vld [vmem:[%s507 + $0x1ba8] sm:$0xff]
        %v1969 = vld [vmem:[%s507 + $0x1bb0] sm:$0xff]
        %v1970 = vld [vmem:[%s507 + $0x1bb8] sm:$0xff]
        %v1971 = vld [vmem:[%s507 + $0x1bc0] sm:$0xff]
        %v1972 = vld [vmem:[%s507 + $0x1bc8] sm:$0xff]
        %v1973 = vld [vmem:[%s507 + $0x1bd0] sm:$0xff]
        %v1974 = vld [vmem:[%s507 + $0x1bd8] sm:$0xff]
        %v1975 = vld [vmem:[%s507 + $0x1be0] sm:$0xff]
        %v1976 = vld [vmem:[%s507 + $0x1be8] sm:$0xff]
        %v1977 = vld [vmem:[%s507 + $0x1bf0] sm:$0xff]
        %v1978 = vld [vmem:[%s507 + $0x1bf8] sm:$0xff]
        %v1979 = vld [vmem:[%s507 + $0x1c00] sm:$0xff]
        %v1980 = vld [vmem:[%s507 + $0x1c08] sm:$0xff]
        %v1981 = vld [vmem:[%s507 + $0x1c10] sm:$0xff]
        %v1982 = vld [vmem:[%s507 + $0x1c18] sm:$0xff]
        %v1983 = vld [vmem:[%s507 + $0x1c20] sm:$0xff]
        %v1984 = vld [vmem:[%s507 + $0x1c28] sm:$0xff]
        %v1985 = vld [vmem:[%s507 + $0x1c30] sm:$0xff]
        %v1986 = vld [vmem:[%s507 + $0x1c38] sm:$0xff]
        %v1987 = vld [vmem:[%s507 + $0x1c40] sm:$0xff]
        %v1988 = vld [vmem:[%s507 + $0x1c48] sm:$0xff]
        %v1989 = vld [vmem:[%s507 + $0x1c50] sm:$0xff]
        %v1990 = vld [vmem:[%s507 + $0x1c58] sm:$0xff]
        %v1991 = vld [vmem:[%s507 + $0x1c60] sm:$0xff]
        %v1992 = vld [vmem:[%s507 + $0x1c68] sm:$0xff]
        %v1993 = vld [vmem:[%s507 + $0x1c70] sm:$0xff]
        %v1994 = vld [vmem:[%s507 + $0x1c78] sm:$0xff]
        %v1995 = vld [vmem:[%s507 + $0x1c80] sm:$0xff]
        %v1996 = vld [vmem:[%s507 + $0x1c88] sm:$0xff]
        %v1997 = vld [vmem:[%s507 + $0x1c90] sm:$0xff]
        %v1998 = vld [vmem:[%s507 + $0x1c98] sm:$0xff]
        %v1999 = vld [vmem:[%s507 + $0x1ca0] sm:$0xff]
        %v2000 = vld [vmem:[%s507 + $0x1ca8] sm:$0xff]
        %v2001 = vld [vmem:[%s507 + $0x1cb0] sm:$0xff]
        %v2002 = vld [vmem:[%s507 + $0x1cb8] sm:$0xff]
        %v2003 = vld [vmem:[%s507 + $0x1cc0] sm:$0xff]
        %v2004 = vld [vmem:[%s507 + $0x1cc8] sm:$0xff]
        %v2005 = vld [vmem:[%s507 + $0x1cd0] sm:$0xff]
        %v2006 = vld [vmem:[%s507 + $0x1cd8] sm:$0xff]
        %v2007 = vld [vmem:[%s507 + $0x1ce0] sm:$0xff]
        %v2008 = vld [vmem:[%s507 + $0x1ce8] sm:$0xff]
        %v2009 = vld [vmem:[%s507 + $0x1cf0] sm:$0xff]
        %v2010 = vld [vmem:[%s507 + $0x1cf8] sm:$0xff]
        %v2011 = vld [vmem:[%s507 + $0x1d00] sm:$0xff]
        %v2012 = vld [vmem:[%s507 + $0x1d08] sm:$0xff]
        %v2013 = vld [vmem:[%s507 + $0x1d10] sm:$0xff]
        %v2014 = vld [vmem:[%s507 + $0x1d18] sm:$0xff]
        %v2015 = vld [vmem:[%s507 + $0x1d20] sm:$0xff]
        %v2016 = vld [vmem:[%s507 + $0x1d28] sm:$0xff]
        %v2017 = vld [vmem:[%s507 + $0x1d30] sm:$0xff]
        %v2018 = vld [vmem:[%s507 + $0x1d38] sm:$0xff]
        %v2019 = vld [vmem:[%s507 + $0x1d40] sm:$0xff]
        %v2020 = vld [vmem:[%s507 + $0x1d48] sm:$0xff]
        %v2021 = vld [vmem:[%s507 + $0x1d50] sm:$0xff]
        %v2022 = vld [vmem:[%s507 + $0x1d58] sm:$0xff]
        %v2023 = vld [vmem:[%s507 + $0x1d60] sm:$0xff]
        %v2024 = vld [vmem:[%s507 + $0x1d68] sm:$0xff]
        %v2025 = vld [vmem:[%s507 + $0x1d70] sm:$0xff]
        %v2026 = vld [vmem:[%s507 + $0x1d78] sm:$0xff]
        %v2027 = vld [vmem:[%s507 + $0x1d80] sm:$0xff]
        %v2028 = vld [vmem:[%s507 + $0x1d88] sm:$0xff]
        %v2029 = vld [vmem:[%s507 + $0x1d90] sm:$0xff]
        %v2030 = vld [vmem:[%s507 + $0x1d98] sm:$0xff]
        %v2031 = vld [vmem:[%s507 + $0x1da0] sm:$0xff]
        %v2032 = vld [vmem:[%s507 + $0x1da8] sm:$0xff]
        %v2033 = vld [vmem:[%s507 + $0x1db0] sm:$0xff]
        %v2034 = vld [vmem:[%s507 + $0x1db8] sm:$0xff]
        %v2035 = vld [vmem:[%s507 + $0x1dc0] sm:$0xff]
        %v2036 = vld [vmem:[%s507 + $0x1dc8] sm:$0xff]
        %v2037 = vld [vmem:[%s507 + $0x1dd0] sm:$0xff]
        %v2038 = vld [vmem:[%s507 + $0x1dd8] sm:$0xff]
        %v2039 = vld [vmem:[%s507 + $0x1de0] sm:$0xff]
        %v2040 = vld [vmem:[%s507 + $0x1de8] sm:$0xff]
        %v2041 = vld [vmem:[%s507 + $0x1df0] sm:$0xff]
        %v2042 = vld [vmem:[%s507 + $0x1df8] sm:$0xff]
        %v2043 = vld [vmem:[%s507 + $0x1e00] sm:$0xff]
        %v2044 = vld [vmem:[%s507 + $0x1e08] sm:$0xff]
        %v2045 = vld [vmem:[%s507 + $0x1e10] sm:$0xff]
        %v2046 = vld [vmem:[%s507 + $0x1e18] sm:$0xff]
        %v2047 = vld [vmem:[%s507 + $0x1e20] sm:$0xff]
        %v2048 = vld [vmem:[%s507 + $0x1e28] sm:$0xff]
        %v2049 = vld [vmem:[%s507 + $0x1e30] sm:$0xff]
        %v2050 = vld [vmem:[%s507 + $0x1e38] sm:$0xff]
        %v2051 = vld [vmem:[%s507 + $0x1e40] sm:$0xff]
        %v2052 = vld [vmem:[%s507 + $0x1e48] sm:$0xff]
        %v2053 = vld [vmem:[%s507 + $0x1e50] sm:$0xff]
        %v2054 = vld [vmem:[%s507 + $0x1e58] sm:$0xff]
        %v2055 = vld [vmem:[%s507 + $0x1e60] sm:$0xff]
        %v2056 = vld [vmem:[%s507 + $0x1e68] sm:$0xff]
        %v2057 = vld [vmem:[%s507 + $0x1e70] sm:$0xff]
        %v2058 = vld [vmem:[%s507 + $0x1e78] sm:$0xff]
        %v2059 = vld [vmem:[%s507 + $0x1e80] sm:$0xff]
        %v2060 = vld [vmem:[%s507 + $0x1e88] sm:$0xff]
        %v2061 = vld [vmem:[%s507 + $0x1e90] sm:$0xff]
        %v2062 = vld [vmem:[%s507 + $0x1e98] sm:$0xff]
        %v2063 = vld [vmem:[%s507 + $0x1ea0] sm:$0xff]
        %v2064 = vld [vmem:[%s507 + $0x1ea8] sm:$0xff]
        %v2065 = vld [vmem:[%s507 + $0x1eb0] sm:$0xff]
        %v2066 = vld [vmem:[%s507 + $0x1eb8] sm:$0xff]
        %v2067 = vld [vmem:[%s507 + $0x1ec0] sm:$0xff]
        %v2068 = vld [vmem:[%s507 + $0x1ec8] sm:$0xff]
        %v2069 = vld [vmem:[%s507 + $0x1ed0] sm:$0xff]
        %v2070 = vld [vmem:[%s507 + $0x1ed8] sm:$0xff]
        %v2071 = vld [vmem:[%s507 + $0x1ee0] sm:$0xff]
        %v2072 = vld [vmem:[%s507 + $0x1ee8] sm:$0xff]
        %v2073 = vld [vmem:[%s507 + $0x1ef0] sm:$0xff]
        %v2074 = vld [vmem:[%s507 + $0x1ef8] sm:$0xff]
        %v2075 = vld [vmem:[%s507 + $0x1f00] sm:$0xff]
        %v2076 = vld [vmem:[%s507 + $0x1f08] sm:$0xff]
        %v2077 = vld [vmem:[%s507 + $0x1f10] sm:$0xff]
        %v2078 = vld [vmem:[%s507 + $0x1f18] sm:$0xff]
        %v2079 = vld [vmem:[%s507 + $0x1f20] sm:$0xff]
        %v2080 = vld [vmem:[%s507 + $0x1f28] sm:$0xff]
        %v2081 = vld [vmem:[%s507 + $0x1f30] sm:$0xff]
        %v2082 = vld [vmem:[%s507 + $0x1f38] sm:$0xff]
        %v2083 = vld [vmem:[%s507 + $0x1f40] sm:$0xff]
        %v2084 = vld [vmem:[%s507 + $0x1f48] sm:$0xff]
        %v2085 = vld [vmem:[%s507 + $0x1f50] sm:$0xff]
        %v2086 = vld [vmem:[%s507 + $0x1f58] sm:$0xff]
        %v2087 = vld [vmem:[%s507 + $0x1f60] sm:$0xff]
        %v2088 = vld [vmem:[%s507 + $0x1f68] sm:$0xff]
        %v2089 = vld [vmem:[%s507 + $0x1f70] sm:$0xff]
        %v2090 = vld [vmem:[%s507 + $0x1f78] sm:$0xff]
        %v2091 = vld [vmem:[%s507 + $0x1f80] sm:$0xff]
        %v2092 = vld [vmem:[%s507 + $0x1f88] sm:$0xff]
        %v2093 = vld [vmem:[%s507 + $0x1f90] sm:$0xff]
        %v2094 = vld [vmem:[%s507 + $0x1f98] sm:$0xff]
        %v2095 = vld [vmem:[%s507 + $0x1fa0] sm:$0xff]
        %v2096 = vld [vmem:[%s507 + $0x1fa8] sm:$0xff]
        %v2097 = vld [vmem:[%s507 + $0x1fb0] sm:$0xff]
        %v2098 = vld [vmem:[%s507 + $0x1fb8] sm:$0xff]
        %v2099 = vld [vmem:[%s507 + $0x1fc0] sm:$0xff]
        %v2100 = vld [vmem:[%s507 + $0x1fc8] sm:$0xff]
        %v2101 = vld [vmem:[%s507 + $0x1fd0] sm:$0xff]
        %v2102 = vld [vmem:[%s507 + $0x1fd8] sm:$0xff]
        %v2103 = vld [vmem:[%s507 + $0x1fe0] sm:$0xff]
        %v2104 = vld [vmem:[%s507 + $0x1fe8] sm:$0xff]
        %v2105 = vld [vmem:[%s507 + $0x1ff0] sm:$0xff]
        %v2106 = vld [vmem:[%s507 + $0x1ff8] sm:$0xff]
        %v2107 = vld [vmem:[%s516] sm:$0xff]
        %v2109 = vlaneseq
        %v2110 = vshrl.u32 %v2109, 7
        %v2111 = vsub.s32 0, %v2110
        %v2112 = vrot.slane %v2107, %v2111
        %v2113 = vlaneseq
        %v2114 = vshrl.u32 %v2113, 7
        %v2115 = vsub.s32 1, %v2114
        %v2116 = vrot.slane %v2107, %v2115
        %v2117 = vlaneseq
        %v2118 = vshrl.u32 %v2117, 7
        %v2119 = vsub.s32 2, %v2118
        %v2120 = vrot.slane %v2107, %v2119
        %v2121 = vlaneseq
        %v2122 = vshrl.u32 %v2121, 7
        %v2123 = vsub.s32 3, %v2122
        %v2124 = vrot.slane %v2107, %v2123
        %v2125 = vlaneseq
        %v2126 = vshrl.u32 %v2125, 7
        %v2127 = vsub.s32 4, %v2126
        %v2128 = vrot.slane %v2107, %v2127
        %v2129 = vlaneseq
        %v2130 = vshrl.u32 %v2129, 7
        %v2131 = vsub.s32 5, %v2130
        %v2132 = vrot.slane %v2107, %v2131
        %v2133 = vlaneseq
        %v2134 = vshrl.u32 %v2133, 7
        %v2135 = vsub.s32 6, %v2134
        %v2136 = vrot.slane %v2107, %v2135
        %v2137 = vlaneseq
        %v2138 = vshrl.u32 %v2137, 7
        %v2139 = vsub.s32 7, %v2138
        %v2140 = vrot.slane %v2107, %v2139
        %2149 = vmatprep.subr.mxu0 %v1204
        %2150 = vmatpush1.msra.mxu0 %v1203
        %2151 = vmatprep.subr.mxu0 %v1196
        %2152 = vmatpush1.msra.mxu0 %v1195
        %2153 = vmatprep.subr.mxu0 %v1188
        %2154 = vmatpush1.msra.mxu0 %v1187
        %2155 = vmatprep.subr.mxu0 %v1180
        %2156 = vmatpush1.msra.mxu0 %v1179
        %2157 = vmatprep.subr.mxu0 %v1172
        %2158 = vmatpush1.msra.mxu0 %v1171
        %2159 = vmatprep.subr.mxu0 %v1164
        %2160 = vmatpush1.msra.mxu0 %v1163
        %2161 = vmatprep.subr.mxu0 %v1156
        %2162 = vmatpush1.msra.mxu0 %v1155
        %2163 = vmatprep.subr.mxu0 %v1148
        %2164 = vmatpush1.msra.mxu0 %v1147
        %2165 = vmatprep.subr.mxu0 %v1140
        %2166 = vmatpush1.msra.mxu0 %v1139
        %2167 = vmatprep.subr.mxu0 %v1132
        %2168 = vmatpush1.msra.mxu0 %v1131
        %2169 = vmatprep.subr.mxu0 %v1124
        %2170 = vmatpush1.msra.mxu0 %v1123
        %2171 = vmatprep.subr.mxu0 %v1116
        %2172 = vmatpush1.msra.mxu0 %v1115
        %2173 = vmatprep.subr.mxu0 %v1108
        %2174 = vmatpush1.msra.mxu0 %v1107
        %2175 = vmatprep.subr.mxu0 %v1100
        %2176 = vmatpush1.msra.mxu0 %v1099
        %2177 = vmatprep.subr.mxu0 %v1092
        %2178 = vmatpush1.msra.mxu0 %v1091
        %2179 = vmatprep.subr.mxu0 %v1084
        %2180 = vmatpush1.msra.mxu0 %v1083
        %2181 = vmatprep.subr.mxu0 %v1332
        %2182 = vmatpush2.msra.mxu0 %v1331
        %2183 = vmatprep.subr.mxu0 %v1324
        %2184 = vmatpush2.msra.mxu0 %v1323
        %2185 = vmatprep.subr.mxu0 %v1316
        %2186 = vmatpush2.msra.mxu0 %v1315
        %2187 = vmatprep.subr.mxu0 %v1308
        %2188 = vmatpush2.msra.mxu0 %v1307
        %2189 = vmatprep.subr.mxu0 %v1300
        %2190 = vmatpush2.msra.mxu0 %v1299
        %2191 = vmatprep.subr.mxu0 %v1292
        %2192 = vmatpush2.msra.mxu0 %v1291
        %2193 = vmatprep.subr.mxu0 %v1284
        %2194 = vmatpush2.msra.mxu0 %v1283
        %2195 = vmatprep.subr.mxu0 %v1276
        %2196 = vmatpush2.msra.mxu0 %v1275
        %2197 = vmatprep.subr.mxu0 %v1268
        %2198 = vmatpush2.msra.mxu0 %v1267
        %2199 = vmatprep.subr.mxu0 %v1260
        %2200 = vmatpush2.msra.mxu0 %v1259
        %2201 = vmatprep.subr.mxu0 %v1252
        %2202 = vmatpush2.msra.mxu0 %v1251
        %2203 = vmatprep.subr.mxu0 %v1244
        %2204 = vmatpush2.msra.mxu0 %v1243
        %2205 = vmatprep.subr.mxu0 %v1236
        %2206 = vmatpush2.msra.mxu0 %v1235
        %2207 = vmatprep.subr.mxu0 %v1228
        %2208 = vmatpush2.msra.mxu0 %v1227
        %2209 = vmatprep.subr.mxu0 %v1220
        %2210 = vmatpush2.msra.mxu0 %v1219
        %2211 = vmatprep.subr.mxu0 %v1212
        %2212 = vmatpush2.msra.mxu0 %v1211
        %2213 = vmatprep.mubr.f32.mxu0 %v1076
        %2214 = vmatmul.mubr.f32.gmra.mxu0 %v1075
        %v2215 = vpop.f32.mrf.mxu0
        %v2216 = vadd.f32 %v2112, %v2215
        %v2217 = vpop.f32.mrf.mxu0
        %v2218 = vadd.f32 %v2116, %v2217
        %2219 = vdwg.mxu0
        %2220 = vmatprep.subr.mxu0 %v1460
        %2221 = vmatpush1.msra.mxu0 %v1459
        %2222 = vmatprep.subr.mxu0 %v1452
        %2223 = vmatpush1.msra.mxu0 %v1451
        %2224 = vmatprep.subr.mxu0 %v1444
        %2225 = vmatpush1.msra.mxu0 %v1443
        %2226 = vmatprep.subr.mxu0 %v1436
        %2227 = vmatpush1.msra.mxu0 %v1435
        %2228 = vmatprep.subr.mxu0 %v1428
        %2229 = vmatpush1.msra.mxu0 %v1427
        %2230 = vmatprep.subr.mxu0 %v1420
        %2231 = vmatpush1.msra.mxu0 %v1419
        %2232 = vmatprep.subr.mxu0 %v1412
        %2233 = vmatpush1.msra.mxu0 %v1411
        %2234 = vmatprep.subr.mxu0 %v1404
        %2235 = vmatpush1.msra.mxu0 %v1403
        %2236 = vmatprep.subr.mxu0 %v1396
        %2237 = vmatpush1.msra.mxu0 %v1395
        %2238 = vmatprep.subr.mxu0 %v1388
        %2239 = vmatpush1.msra.mxu0 %v1387
        %2240 = vmatprep.subr.mxu0 %v1380
        %2241 = vmatpush1.msra.mxu0 %v1379
        %2242 = vmatprep.subr.mxu0 %v1372
        %2243 = vmatpush1.msra.mxu0 %v1371
        %2244 = vmatprep.subr.mxu0 %v1364
        %2245 = vmatpush1.msra.mxu0 %v1363
        %2246 = vmatprep.subr.mxu0 %v1356
        %2247 = vmatpush1.msra.mxu0 %v1355
        %2248 = vmatprep.subr.mxu0 %v1348
        %2249 = vmatpush1.msra.mxu0 %v1347
        %2250 = vmatprep.subr.mxu0 %v1340
        %2251 = vmatpush1.msra.mxu0 %v1339
        %2252 = vmatprep.subr.mxu0 %v1588
        %2253 = vmatpush2.msra.mxu0 %v1587
        %2254 = vmatprep.subr.mxu0 %v1580
        %2255 = vmatpush2.msra.mxu0 %v1579
        %2256 = vmatprep.subr.mxu0 %v1572
        %2257 = vmatpush2.msra.mxu0 %v1571
        %2258 = vmatprep.subr.mxu0 %v1564
        %2259 = vmatpush2.msra.mxu0 %v1563
        %2260 = vmatprep.subr.mxu0 %v1556
        %2261 = vmatpush2.msra.mxu0 %v1555
        %2262 = vmatprep.subr.mxu0 %v1548
        %2263 = vmatpush2.msra.mxu0 %v1547
        %2264 = vmatprep.subr.mxu0 %v1540
        %2265 = vmatpush2.msra.mxu0 %v1539
        %2266 = vmatprep.subr.mxu0 %v1532
        %2267 = vmatpush2.msra.mxu0 %v1531
        %2268 = vmatprep.subr.mxu0 %v1524
        %2269 = vmatpush2.msra.mxu0 %v1523
        %2270 = vmatprep.subr.mxu0 %v1516
        %2271 = vmatpush2.msra.mxu0 %v1515
        %2272 = vmatprep.subr.mxu0 %v1508
        %2273 = vmatpush2.msra.mxu0 %v1507
        %2274 = vmatprep.subr.mxu0 %v1500
        %2275 = vmatpush2.msra.mxu0 %v1499
        %2276 = vmatprep.subr.mxu0 %v1492
        %2277 = vmatpush2.msra.mxu0 %v1491
        %2278 = vmatprep.subr.mxu0 %v1484
        %2279 = vmatpush2.msra.mxu0 %v1483
        %2280 = vmatprep.subr.mxu0 %v1476
        %2281 = vmatpush2.msra.mxu0 %v1475
        %2282 = vmatprep.subr.mxu0 %v1468
        %2283 = vmatpush2.msra.mxu0 %v1467
        %2284 = vmatprep.mubr.f32.mxu0 %v1078
        %2285 = vmatmul.mubr.f32.gmra.mxu0 %v1077
        %v2286 = vpop.f32.mrf.mxu0
        %v2287 = vadd.f32 %v2216, %v2286
        %v2288 = vpop.f32.mrf.mxu0
        %v2289 = vadd.f32 %v2218, %v2288
        %2290 = vdwg.mxu0
        %2291 = vmatprep.subr.mxu0 %v1716
        %2292 = vmatpush1.msra.mxu0 %v1715
        %2293 = vmatprep.subr.mxu0 %v1708
        %2294 = vmatpush1.msra.mxu0 %v1707
        %2295 = vmatprep.subr.mxu0 %v1700
        %2296 = vmatpush1.msra.mxu0 %v1699
        %2297 = vmatprep.subr.mxu0 %v1692
        %2298 = vmatpush1.msra.mxu0 %v1691
        %2299 = vmatprep.subr.mxu0 %v1684
        %2300 = vmatpush1.msra.mxu0 %v1683
        %2301 = vmatprep.subr.mxu0 %v1676
        %2302 = vmatpush1.msra.mxu0 %v1675
        %2303 = vmatprep.subr.mxu0 %v1668
        %2304 = vmatpush1.msra.mxu0 %v1667
        %2305 = vmatprep.subr.mxu0 %v1660
        %2306 = vmatpush1.msra.mxu0 %v1659
        %2307 = vmatprep.subr.mxu0 %v1652
        %2308 = vmatpush1.msra.mxu0 %v1651
        %2309 = vmatprep.subr.mxu0 %v1644
        %2310 = vmatpush1.msra.mxu0 %v1643
        %2311 = vmatprep.subr.mxu0 %v1636
        %2312 = vmatpush1.msra.mxu0 %v1635
        %2313 = vmatprep.subr.mxu0 %v1628
        %2314 = vmatpush1.msra.mxu0 %v1627
        %2315 = vmatprep.subr.mxu0 %v1620
        %2316 = vmatpush1.msra.mxu0 %v1619
        %2317 = vmatprep.subr.mxu0 %v1612
        %2318 = vmatpush1.msra.mxu0 %v1611
        %2319 = vmatprep.subr.mxu0 %v1604
        %2320 = vmatpush1.msra.mxu0 %v1603
        %2321 = vmatprep.subr.mxu0 %v1596
        %2322 = vmatpush1.msra.mxu0 %v1595
        %2323 = vmatprep.subr.mxu0 %v1844
        %2324 = vmatpush2.msra.mxu0 %v1843
        %2325 = vmatprep.subr.mxu0 %v1836
        %2326 = vmatpush2.msra.mxu0 %v1835
        %2327 = vmatprep.subr.mxu0 %v1828
        %2328 = vmatpush2.msra.mxu0 %v1827
        %2329 = vmatprep.subr.mxu0 %v1820
        %2330 = vmatpush2.msra.mxu0 %v1819
        %2331 = vmatprep.subr.mxu0 %v1812
        %2332 = vmatpush2.msra.mxu0 %v1811
        %2333 = vmatprep.subr.mxu0 %v1804
        %2334 = vmatpush2.msra.mxu0 %v1803
        %2335 = vmatprep.subr.mxu0 %v1796
        %2336 = vmatpush2.msra.mxu0 %v1795
        %2337 = vmatprep.subr.mxu0 %v1788
        %2338 = vmatpush2.msra.mxu0 %v1787
        %2339 = vmatprep.subr.mxu0 %v1780
        %2340 = vmatpush2.msra.mxu0 %v1779
        %2341 = vmatprep.subr.mxu0 %v1772
        %2342 = vmatpush2.msra.mxu0 %v1771
        %2343 = vmatprep.subr.mxu0 %v1764
        %2344 = vmatpush2.msra.mxu0 %v1763
        %2345 = vmatprep.subr.mxu0 %v1756
        %2346 = vmatpush2.msra.mxu0 %v1755
        %2347 = vmatprep.subr.mxu0 %v1748
        %2348 = vmatpush2.msra.mxu0 %v1747
        %2349 = vmatprep.subr.mxu0 %v1740
        %2350 = vmatpush2.msra.mxu0 %v1739
        %2351 = vmatprep.subr.mxu0 %v1732
        %2352 = vmatpush2.msra.mxu0 %v1731
        %2353 = vmatprep.subr.mxu0 %v1724
        %2354 = vmatpush2.msra.mxu0 %v1723
        %2355 = vmatprep.mubr.f32.mxu0 %v1080
        %2356 = vmatmul.mubr.f32.gmra.mxu0 %v1079
        %v2357 = vpop.f32.mrf.mxu0
        %v2358 = vadd.f32 %v2287, %v2357
        %v2359 = vpop.f32.mrf.mxu0
        %v2360 = vadd.f32 %v2289, %v2359
        %2361 = vdwg.mxu0
        %2362 = vmatprep.subr.mxu0 %v1972
        %2363 = vmatpush1.msra.mxu0 %v1971
        %2364 = vmatprep.subr.mxu0 %v1964
        %2365 = vmatpush1.msra.mxu0 %v1963
        %2366 = vmatprep.subr.mxu0 %v1956
        %2367 = vmatpush1.msra.mxu0 %v1955
        %2368 = vmatprep.subr.mxu0 %v1948
        %2369 = vmatpush1.msra.mxu0 %v1947
        %2370 = vmatprep.subr.mxu0 %v1940
        %2371 = vmatpush1.msra.mxu0 %v1939
        %2372 = vmatprep.subr.mxu0 %v1932
        %2373 = vmatpush1.msra.mxu0 %v1931
        %2374 = vmatprep.subr.mxu0 %v1924
        %2375 = vmatpush1.msra.mxu0 %v1923
        %2376 = vmatprep.subr.mxu0 %v1916
        %2377 = vmatpush1.msra.mxu0 %v1915
        %2378 = vmatprep.subr.mxu0 %v1908
        %2379 = vmatpush1.msra.mxu0 %v1907
        %2380 = vmatprep.subr.mxu0 %v1900
        %2381 = vmatpush1.msra.mxu0 %v1899
        %2382 = vmatprep.subr.mxu0 %v1892
        %2383 = vmatpush1.msra.mxu0 %v1891
        %2384 = vmatprep.subr.mxu0 %v1884
        %2385 = vmatpush1.msra.mxu0 %v1883
        %2386 = vmatprep.subr.mxu0 %v1876
        %2387 = vmatpush1.msra.mxu0 %v1875
        %2388 = vmatprep.subr.mxu0 %v1868
        %2389 = vmatpush1.msra.mxu0 %v1867
        %2390 = vmatprep.subr.mxu0 %v1860
        %2391 = vmatpush1.msra.mxu0 %v1859
        %2392 = vmatprep.subr.mxu0 %v1852
        %2393 = vmatpush1.msra.mxu0 %v1851
        %2394 = vmatprep.subr.mxu0 %v2100
        %2395 = vmatpush2.msra.mxu0 %v2099
        %2396 = vmatprep.subr.mxu0 %v2092
        %2397 = vmatpush2.msra.mxu0 %v2091
        %2398 = vmatprep.subr.mxu0 %v2084
        %2399 = vmatpush2.msra.mxu0 %v2083
        %2400 = vmatprep.subr.mxu0 %v2076
        %2401 = vmatpush2.msra.mxu0 %v2075
        %2402 = vmatprep.subr.mxu0 %v2068
        %2403 = vmatpush2.msra.mxu0 %v2067
        %2404 = vmatprep.subr.mxu0 %v2060
        %2405 = vmatpush2.msra.mxu0 %v2059
        %2406 = vmatprep.subr.mxu0 %v2052
        %2407 = vmatpush2.msra.mxu0 %v2051
        %2408 = vmatprep.subr.mxu0 %v2044
        %2409 = vmatpush2.msra.mxu0 %v2043
        %2410 = vmatprep.subr.mxu0 %v2036
        %2411 = vmatpush2.msra.mxu0 %v2035
        %2412 = vmatprep.subr.mxu0 %v2028
        %2413 = vmatpush2.msra.mxu0 %v2027
        %2414 = vmatprep.subr.mxu0 %v2020
        %2415 = vmatpush2.msra.mxu0 %v2019
        %2416 = vmatprep.subr.mxu0 %v2012
        %2417 = vmatpush2.msra.mxu0 %v2011
        %2418 = vmatprep.subr.mxu0 %v2004
        %2419 = vmatpush2.msra.mxu0 %v2003
        %2420 = vmatprep.subr.mxu0 %v1996
        %2421 = vmatpush2.msra.mxu0 %v1995
        %2422 = vmatprep.subr.mxu0 %v1988
        %2423 = vmatpush2.msra.mxu0 %v1987
        %2424 = vmatprep.subr.mxu0 %v1980
        %2425 = vmatpush2.msra.mxu0 %v1979
        %2426 = vmatprep.mubr.f32.mxu0 %v1082
        %2427 = vmatmul.mubr.f32.gmra.mxu0 %v1081
        %v2428 = vpop.f32.mrf.mxu0
        %v2429 = vadd.f32 %v2358, %v2428
        %v2430 = vpop.f32.mrf.mxu0
        %v2431 = vadd.f32 %v2360, %v2430
        %2432 = vdwg.mxu0
        %2433 = vmatprep.subr.mxu0 %v1206
        %2434 = vmatpush1.msra.mxu0 %v1205
        %2435 = vmatprep.subr.mxu0 %v1198
        %2436 = vmatpush1.msra.mxu0 %v1197
        %2437 = vmatprep.subr.mxu0 %v1190
        %2438 = vmatpush1.msra.mxu0 %v1189
        %2439 = vmatprep.subr.mxu0 %v1182
        %2440 = vmatpush1.msra.mxu0 %v1181
        %2441 = vmatprep.subr.mxu0 %v1174
        %2442 = vmatpush1.msra.mxu0 %v1173
        %2443 = vmatprep.subr.mxu0 %v1166
        %2444 = vmatpush1.msra.mxu0 %v1165
        %2445 = vmatprep.subr.mxu0 %v1158
        %2446 = vmatpush1.msra.mxu0 %v1157
        %2447 = vmatprep.subr.mxu0 %v1150
        %2448 = vmatpush1.msra.mxu0 %v1149
        %2449 = vmatprep.subr.mxu0 %v1142
        %2450 = vmatpush1.msra.mxu0 %v1141
        %2451 = vmatprep.subr.mxu0 %v1134
        %2452 = vmatpush1.msra.mxu0 %v1133
        %2453 = vmatprep.subr.mxu0 %v1126
        %2454 = vmatpush1.msra.mxu0 %v1125
        %2455 = vmatprep.subr.mxu0 %v1118
        %2456 = vmatpush1.msra.mxu0 %v1117
        %2457 = vmatprep.subr.mxu0 %v1110
        %2458 = vmatpush1.msra.mxu0 %v1109
        %2459 = vmatprep.subr.mxu0 %v1102
        %2460 = vmatpush1.msra.mxu0 %v1101
        %2461 = vmatprep.subr.mxu0 %v1094
        %2462 = vmatpush1.msra.mxu0 %v1093
        %2463 = vmatprep.subr.mxu0 %v1086
        %2464 = vmatpush1.msra.mxu0 %v1085
        %2465 = vmatprep.subr.mxu0 %v1334
        %2466 = vmatpush2.msra.mxu0 %v1333
        %2467 = vmatprep.subr.mxu0 %v1326
        %2468 = vmatpush2.msra.mxu0 %v1325
        %2469 = vmatprep.subr.mxu0 %v1318
        %2470 = vmatpush2.msra.mxu0 %v1317
        %2471 = vmatprep.subr.mxu0 %v1310
        %2472 = vmatpush2.msra.mxu0 %v1309
        %2473 = vmatprep.subr.mxu0 %v1302
        %2474 = vmatpush2.msra.mxu0 %v1301
        %2475 = vmatprep.subr.mxu0 %v1294
        %2476 = vmatpush2.msra.mxu0 %v1293
        %2477 = vmatprep.subr.mxu0 %v1286
        %2478 = vmatpush2.msra.mxu0 %v1285
        %2479 = vmatprep.subr.mxu0 %v1278
        %2480 = vmatpush2.msra.mxu0 %v1277
        %2481 = vmatprep.subr.mxu0 %v1270
        %2482 = vmatpush2.msra.mxu0 %v1269
        %2483 = vmatprep.subr.mxu0 %v1262
        %2484 = vmatpush2.msra.mxu0 %v1261
        %2485 = vmatprep.subr.mxu0 %v1254
        %2486 = vmatpush2.msra.mxu0 %v1253
        %2487 = vmatprep.subr.mxu0 %v1246
        %2488 = vmatpush2.msra.mxu0 %v1245
        %2489 = vmatprep.subr.mxu0 %v1238
        %2490 = vmatpush2.msra.mxu0 %v1237
        %2491 = vmatprep.subr.mxu0 %v1230
        %2492 = vmatpush2.msra.mxu0 %v1229
        %2493 = vmatprep.subr.mxu0 %v1222
        %2494 = vmatpush2.msra.mxu0 %v1221
        %2495 = vmatprep.subr.mxu0 %v1214
        %2496 = vmatpush2.msra.mxu0 %v1213
        %2497 = vmatprep.mubr.f32.mxu0 %v1076
        %2498 = vmatmul.mubr.f32.gmra.mxu0 %v1075
        %v2499 = vpop.f32.mrf.mxu0
        %v2500 = vadd.f32 %v2120, %v2499
        %v2501 = vpop.f32.mrf.mxu0
        %v2502 = vadd.f32 %v2124, %v2501
        %2503 = vdwg.mxu0
        %2504 = vmatprep.subr.mxu0 %v1462
        %2505 = vmatpush1.msra.mxu0 %v1461
        %2506 = vmatprep.subr.mxu0 %v1454
        %2507 = vmatpush1.msra.mxu0 %v1453
        %2508 = vmatprep.subr.mxu0 %v1446
        %2509 = vmatpush1.msra.mxu0 %v1445
        %2510 = vmatprep.subr.mxu0 %v1438
        %2511 = vmatpush1.msra.mxu0 %v1437
        %2512 = vmatprep.subr.mxu0 %v1430
        %2513 = vmatpush1.msra.mxu0 %v1429
        %2514 = vmatprep.subr.mxu0 %v1422
        %2515 = vmatpush1.msra.mxu0 %v1421
        %2516 = vmatprep.subr.mxu0 %v1414
        %2517 = vmatpush1.msra.mxu0 %v1413
        %2518 = vmatprep.subr.mxu0 %v1406
        %2519 = vmatpush1.msra.mxu0 %v1405
        %2520 = vmatprep.subr.mxu0 %v1398
        %2521 = vmatpush1.msra.mxu0 %v1397
        %2522 = vmatprep.subr.mxu0 %v1390
        %2523 = vmatpush1.msra.mxu0 %v1389
        %2524 = vmatprep.subr.mxu0 %v1382
        %2525 = vmatpush1.msra.mxu0 %v1381
        %2526 = vmatprep.subr.mxu0 %v1374
        %2527 = vmatpush1.msra.mxu0 %v1373
        %2528 = vmatprep.subr.mxu0 %v1366
        %2529 = vmatpush1.msra.mxu0 %v1365
        %2530 = vmatprep.subr.mxu0 %v1358
        %2531 = vmatpush1.msra.mxu0 %v1357
        %2532 = vmatprep.subr.mxu0 %v1350
        %2533 = vmatpush1.msra.mxu0 %v1349
        %2534 = vmatprep.subr.mxu0 %v1342
        %2535 = vmatpush1.msra.mxu0 %v1341
        %2536 = vmatprep.subr.mxu0 %v1590
        %2537 = vmatpush2.msra.mxu0 %v1589
        %2538 = vmatprep.subr.mxu0 %v1582
        %2539 = vmatpush2.msra.mxu0 %v1581
        %2540 = vmatprep.subr.mxu0 %v1574
        %2541 = vmatpush2.msra.mxu0 %v1573
        %2542 = vmatprep.subr.mxu0 %v1566
        %2543 = vmatpush2.msra.mxu0 %v1565
        %2544 = vmatprep.subr.mxu0 %v1558
        %2545 = vmatpush2.msra.mxu0 %v1557
        %2546 = vmatprep.subr.mxu0 %v1550
        %2547 = vmatpush2.msra.mxu0 %v1549
        %2548 = vmatprep.subr.mxu0 %v1542
        %2549 = vmatpush2.msra.mxu0 %v1541
        %2550 = vmatprep.subr.mxu0 %v1534
        %2551 = vmatpush2.msra.mxu0 %v1533
        %2552 = vmatprep.subr.mxu0 %v1526
        %2553 = vmatpush2.msra.mxu0 %v1525
        %2554 = vmatprep.subr.mxu0 %v1518
        %2555 = vmatpush2.msra.mxu0 %v1517
        %2556 = vmatprep.subr.mxu0 %v1510
        %2557 = vmatpush2.msra.mxu0 %v1509
        %2558 = vmatprep.subr.mxu0 %v1502
        %2559 = vmatpush2.msra.mxu0 %v1501
        %2560 = vmatprep.subr.mxu0 %v1494
        %2561 = vmatpush2.msra.mxu0 %v1493
        %2562 = vmatprep.subr.mxu0 %v1486
        %2563 = vmatpush2.msra.mxu0 %v1485
        %2564 = vmatprep.subr.mxu0 %v1478
        %2565 = vmatpush2.msra.mxu0 %v1477
        %2566 = vmatprep.subr.mxu0 %v1470
        %2567 = vmatpush2.msra.mxu0 %v1469
        %2568 = vmatprep.mubr.f32.mxu0 %v1078
        %2569 = vmatmul.mubr.f32.gmra.mxu0 %v1077
        %v2570 = vpop.f32.mrf.mxu0
        %v2571 = vadd.f32 %v2500, %v2570
        %v2572 = vpop.f32.mrf.mxu0
        %v2573 = vadd.f32 %v2502, %v2572
        %2574 = vdwg.mxu0
        %2575 = vmatprep.subr.mxu0 %v1718
        %2576 = vmatpush1.msra.mxu0 %v1717
        %2577 = vmatprep.subr.mxu0 %v1710
        %2578 = vmatpush1.msra.mxu0 %v1709
        %2579 = vmatprep.subr.mxu0 %v1702
        %2580 = vmatpush1.msra.mxu0 %v1701
        %2581 = vmatprep.subr.mxu0 %v1694
        %2582 = vmatpush1.msra.mxu0 %v1693
        %2583 = vmatprep.subr.mxu0 %v1686
        %2584 = vmatpush1.msra.mxu0 %v1685
        %2585 = vmatprep.subr.mxu0 %v1678
        %2586 = vmatpush1.msra.mxu0 %v1677
        %2587 = vmatprep.subr.mxu0 %v1670
        %2588 = vmatpush1.msra.mxu0 %v1669
        %2589 = vmatprep.subr.mxu0 %v1662
        %2590 = vmatpush1.msra.mxu0 %v1661
        %2591 = vmatprep.subr.mxu0 %v1654
        %2592 = vmatpush1.msra.mxu0 %v1653
        %2593 = vmatprep.subr.mxu0 %v1646
        %2594 = vmatpush1.msra.mxu0 %v1645
        %2595 = vmatprep.subr.mxu0 %v1638
        %2596 = vmatpush1.msra.mxu0 %v1637
        %2597 = vmatprep.subr.mxu0 %v1630
        %2598 = vmatpush1.msra.mxu0 %v1629
        %2599 = vmatprep.subr.mxu0 %v1622
        %2600 = vmatpush1.msra.mxu0 %v1621
        %2601 = vmatprep.subr.mxu0 %v1614
        %2602 = vmatpush1.msra.mxu0 %v1613
        %2603 = vmatprep.subr.mxu0 %v1606
        %2604 = vmatpush1.msra.mxu0 %v1605
        %2605 = vmatprep.subr.mxu0 %v1598
        %2606 = vmatpush1.msra.mxu0 %v1597
        %2607 = vmatprep.subr.mxu0 %v1846
        %2608 = vmatpush2.msra.mxu0 %v1845
        %2609 = vmatprep.subr.mxu0 %v1838
        %2610 = vmatpush2.msra.mxu0 %v1837
        %2611 = vmatprep.subr.mxu0 %v1830
        %2612 = vmatpush2.msra.mxu0 %v1829
        %2613 = vmatprep.subr.mxu0 %v1822
        %2614 = vmatpush2.msra.mxu0 %v1821
        %2615 = vmatprep.subr.mxu0 %v1814
        %2616 = vmatpush2.msra.mxu0 %v1813
        %2617 = vmatprep.subr.mxu0 %v1806
        %2618 = vmatpush2.msra.mxu0 %v1805
        %2619 = vmatprep.subr.mxu0 %v1798
        %2620 = vmatpush2.msra.mxu0 %v1797
        %2621 = vmatprep.subr.mxu0 %v1790
        %2622 = vmatpush2.msra.mxu0 %v1789
        %2623 = vmatprep.subr.mxu0 %v1782
        %2624 = vmatpush2.msra.mxu0 %v1781
        %2625 = vmatprep.subr.mxu0 %v1774
        %2626 = vmatpush2.msra.mxu0 %v1773
        %2627 = vmatprep.subr.mxu0 %v1766
        %2628 = vmatpush2.msra.mxu0 %v1765
        %2629 = vmatprep.subr.mxu0 %v1758
        %2630 = vmatpush2.msra.mxu0 %v1757
        %2631 = vmatprep.subr.mxu0 %v1750
        %2632 = vmatpush2.msra.mxu0 %v1749
        %2633 = vmatprep.subr.mxu0 %v1742
        %2634 = vmatpush2.msra.mxu0 %v1741
        %2635 = vmatprep.subr.mxu0 %v1734
        %2636 = vmatpush2.msra.mxu0 %v1733
        %2637 = vmatprep.subr.mxu0 %v1726
        %2638 = vmatpush2.msra.mxu0 %v1725
        %2639 = vmatprep.mubr.f32.mxu0 %v1080
        %2640 = vmatmul.mubr.f32.gmra.mxu0 %v1079
        %v2641 = vpop.f32.mrf.mxu0
        %v2642 = vadd.f32 %v2571, %v2641
        %v2643 = vpop.f32.mrf.mxu0
        %v2644 = vadd.f32 %v2573, %v2643
        %2645 = vdwg.mxu0
        %2646 = vmatprep.subr.mxu0 %v1974
        %2647 = vmatpush1.msra.mxu0 %v1973
        %2648 = vmatprep.subr.mxu0 %v1966
        %2649 = vmatpush1.msra.mxu0 %v1965
        %2650 = vmatprep.subr.mxu0 %v1958
        %2651 = vmatpush1.msra.mxu0 %v1957
        %2652 = vmatprep.subr.mxu0 %v1950
        %2653 = vmatpush1.msra.mxu0 %v1949
        %2654 = vmatprep.subr.mxu0 %v1942
        %2655 = vmatpush1.msra.mxu0 %v1941
        %2656 = vmatprep.subr.mxu0 %v1934
        %2657 = vmatpush1.msra.mxu0 %v1933
        %2658 = vmatprep.subr.mxu0 %v1926
        %2659 = vmatpush1.msra.mxu0 %v1925
        %2660 = vmatprep.subr.mxu0 %v1918
        %2661 = vmatpush1.msra.mxu0 %v1917
        %2662 = vmatprep.subr.mxu0 %v1910
        %2663 = vmatpush1.msra.mxu0 %v1909
        %2664 = vmatprep.subr.mxu0 %v1902
        %2665 = vmatpush1.msra.mxu0 %v1901
        %2666 = vmatprep.subr.mxu0 %v1894
        %2667 = vmatpush1.msra.mxu0 %v1893
        %2668 = vmatprep.subr.mxu0 %v1886
        %2669 = vmatpush1.msra.mxu0 %v1885
        %2670 = vmatprep.subr.mxu0 %v1878
        %2671 = vmatpush1.msra.mxu0 %v1877
        %2672 = vmatprep.subr.mxu0 %v1870
        %2673 = vmatpush1.msra.mxu0 %v1869
        %2674 = vmatprep.subr.mxu0 %v1862
        %2675 = vmatpush1.msra.mxu0 %v1861
        %2676 = vmatprep.subr.mxu0 %v1854
        %2677 = vmatpush1.msra.mxu0 %v1853
        %2678 = vmatprep.subr.mxu0 %v2102
        %2679 = vmatpush2.msra.mxu0 %v2101
        %2680 = vmatprep.subr.mxu0 %v2094
        %2681 = vmatpush2.msra.mxu0 %v2093
        %2682 = vmatprep.subr.mxu0 %v2086
        %2683 = vmatpush2.msra.mxu0 %v2085
        %2684 = vmatprep.subr.mxu0 %v2078
        %2685 = vmatpush2.msra.mxu0 %v2077
        %2686 = vmatprep.subr.mxu0 %v2070
        %2687 = vmatpush2.msra.mxu0 %v2069
        %2688 = vmatprep.subr.mxu0 %v2062
        %2689 = vmatpush2.msra.mxu0 %v2061
        %2690 = vmatprep.subr.mxu0 %v2054
        %2691 = vmatpush2.msra.mxu0 %v2053
        %2692 = vmatprep.subr.mxu0 %v2046
        %2693 = vmatpush2.msra.mxu0 %v2045
        %2694 = vmatprep.subr.mxu0 %v2038
        %2695 = vmatpush2.msra.mxu0 %v2037
        %2696 = vmatprep.subr.mxu0 %v2030
        %2697 = vmatpush2.msra.mxu0 %v2029
        %2698 = vmatprep.subr.mxu0 %v2022
        %2699 = vmatpush2.msra.mxu0 %v2021
        %2700 = vmatprep.subr.mxu0 %v2014
        %2701 = vmatpush2.msra.mxu0 %v2013
        %2702 = vmatprep.subr.mxu0 %v2006
        %2703 = vmatpush2.msra.mxu0 %v2005
        %2704 = vmatprep.subr.mxu0 %v1998
        %2705 = vmatpush2.msra.mxu0 %v1997
        %2706 = vmatprep.subr.mxu0 %v1990
        %2707 = vmatpush2.msra.mxu0 %v1989
        %2708 = vmatprep.subr.mxu0 %v1982
        %2709 = vmatpush2.msra.mxu0 %v1981
        %2710 = vmatprep.mubr.f32.mxu0 %v1082
        %2711 = vmatmul.mubr.f32.gmra.mxu0 %v1081
        %v2712 = vpop.f32.mrf.mxu0
        %v2713 = vadd.f32 %v2642, %v2712
        %v2714 = vpop.f32.mrf.mxu0
        %v2715 = vadd.f32 %v2644, %v2714
        %2716 = vdwg.mxu0
        %2717 = vmatprep.subr.mxu0 %v1208
        %2718 = vmatpush1.msra.mxu0 %v1207
        %2719 = vmatprep.subr.mxu0 %v1200
        %2720 = vmatpush1.msra.mxu0 %v1199
        %2721 = vmatprep.subr.mxu0 %v1192
        %2722 = vmatpush1.msra.mxu0 %v1191
        %2723 = vmatprep.subr.mxu0 %v1184
        %2724 = vmatpush1.msra.mxu0 %v1183
        %2725 = vmatprep.subr.mxu0 %v1176
        %2726 = vmatpush1.msra.mxu0 %v1175
        %2727 = vmatprep.subr.mxu0 %v1168
        %2728 = vmatpush1.msra.mxu0 %v1167
        %2729 = vmatprep.subr.mxu0 %v1160
        %2730 = vmatpush1.msra.mxu0 %v1159
        %2731 = vmatprep.subr.mxu0 %v1152
        %2732 = vmatpush1.msra.mxu0 %v1151
        %2733 = vmatprep.subr.mxu0 %v1144
        %2734 = vmatpush1.msra.mxu0 %v1143
        %2735 = vmatprep.subr.mxu0 %v1136
        %2736 = vmatpush1.msra.mxu0 %v1135
        %2737 = vmatprep.subr.mxu0 %v1128
        %2738 = vmatpush1.msra.mxu0 %v1127
        %2739 = vmatprep.subr.mxu0 %v1120
        %2740 = vmatpush1.msra.mxu0 %v1119
        %2741 = vmatprep.subr.mxu0 %v1112
        %2742 = vmatpush1.msra.mxu0 %v1111
        %2743 = vmatprep.subr.mxu0 %v1104
        %2744 = vmatpush1.msra.mxu0 %v1103
        %2745 = vmatprep.subr.mxu0 %v1096
        %2746 = vmatpush1.msra.mxu0 %v1095
        %2747 = vmatprep.subr.mxu0 %v1088
        %2748 = vmatpush1.msra.mxu0 %v1087
        %2749 = vmatprep.subr.mxu0 %v1336
        %2750 = vmatpush2.msra.mxu0 %v1335
        %2751 = vmatprep.subr.mxu0 %v1328
        %2752 = vmatpush2.msra.mxu0 %v1327
        %2753 = vmatprep.subr.mxu0 %v1320
        %2754 = vmatpush2.msra.mxu0 %v1319
        %2755 = vmatprep.subr.mxu0 %v1312
        %2756 = vmatpush2.msra.mxu0 %v1311
        %2757 = vmatprep.subr.mxu0 %v1304
        %2758 = vmatpush2.msra.mxu0 %v1303
        %2759 = vmatprep.subr.mxu0 %v1296
        %2760 = vmatpush2.msra.mxu0 %v1295
        %2761 = vmatprep.subr.mxu0 %v1288
        %2762 = vmatpush2.msra.mxu0 %v1287
        %2763 = vmatprep.subr.mxu0 %v1280
        %2764 = vmatpush2.msra.mxu0 %v1279
        %2765 = vmatprep.subr.mxu0 %v1272
        %2766 = vmatpush2.msra.mxu0 %v1271
        %2767 = vmatprep.subr.mxu0 %v1264
        %2768 = vmatpush2.msra.mxu0 %v1263
        %2769 = vmatprep.subr.mxu0 %v1256
        %2770 = vmatpush2.msra.mxu0 %v1255
        %2771 = vmatprep.subr.mxu0 %v1248
        %2772 = vmatpush2.msra.mxu0 %v1247
        %2773 = vmatprep.subr.mxu0 %v1240
        %2774 = vmatpush2.msra.mxu0 %v1239
        %2775 = vmatprep.subr.mxu0 %v1232
        %2776 = vmatpush2.msra.mxu0 %v1231
        %2777 = vmatprep.subr.mxu0 %v1224
        %2778 = vmatpush2.msra.mxu0 %v1223
        %2779 = vmatprep.subr.mxu0 %v1216
        %2780 = vmatpush2.msra.mxu0 %v1215
        %2781 = vmatprep.mubr.f32.mxu0 %v1076
        %2782 = vmatmul.mubr.f32.gmra.mxu0 %v1075
        %v2783 = vpop.f32.mrf.mxu0
        %v2784 = vadd.f32 %v2128, %v2783
        %v2785 = vpop.f32.mrf.mxu0
        %v2786 = vadd.f32 %v2132, %v2785
        %2787 = vdwg.mxu0
        %2788 = vmatprep.subr.mxu0 %v1464
        %2789 = vmatpush1.msra.mxu0 %v1463
        %2790 = vmatprep.subr.mxu0 %v1456
        %2791 = vmatpush1.msra.mxu0 %v1455
        %2792 = vmatprep.subr.mxu0 %v1448
        %2793 = vmatpush1.msra.mxu0 %v1447
        %2794 = vmatprep.subr.mxu0 %v1440
        %2795 = vmatpush1.msra.mxu0 %v1439
        %2796 = vmatprep.subr.mxu0 %v1432
        %2797 = vmatpush1.msra.mxu0 %v1431
        %2798 = vmatprep.subr.mxu0 %v1424
        %2799 = vmatpush1.msra.mxu0 %v1423
        %2800 = vmatprep.subr.mxu0 %v1416
        %2801 = vmatpush1.msra.mxu0 %v1415
        %2802 = vmatprep.subr.mxu0 %v1408
        %2803 = vmatpush1.msra.mxu0 %v1407
        %2804 = vmatprep.subr.mxu0 %v1400
        %2805 = vmatpush1.msra.mxu0 %v1399
        %2806 = vmatprep.subr.mxu0 %v1392
        %2807 = vmatpush1.msra.mxu0 %v1391
        %2808 = vmatprep.subr.mxu0 %v1384
        %2809 = vmatpush1.msra.mxu0 %v1383
        %2810 = vmatprep.subr.mxu0 %v1376
        %2811 = vmatpush1.msra.mxu0 %v1375
        %2812 = vmatprep.subr.mxu0 %v1368
        %2813 = vmatpush1.msra.mxu0 %v1367
        %2814 = vmatprep.subr.mxu0 %v1360
        %2815 = vmatpush1.msra.mxu0 %v1359
        %2816 = vmatprep.subr.mxu0 %v1352
        %2817 = vmatpush1.msra.mxu0 %v1351
        %2818 = vmatprep.subr.mxu0 %v1344
        %2819 = vmatpush1.msra.mxu0 %v1343
        %2820 = vmatprep.subr.mxu0 %v1592
        %2821 = vmatpush2.msra.mxu0 %v1591
        %2822 = vmatprep.subr.mxu0 %v1584
        %2823 = vmatpush2.msra.mxu0 %v1583
        %2824 = vmatprep.subr.mxu0 %v1576
        %2825 = vmatpush2.msra.mxu0 %v1575
        %2826 = vmatprep.subr.mxu0 %v1568
        %2827 = vmatpush2.msra.mxu0 %v1567
        %2828 = vmatprep.subr.mxu0 %v1560
        %2829 = vmatpush2.msra.mxu0 %v1559
        %2830 = vmatprep.subr.mxu0 %v1552
        %2831 = vmatpush2.msra.mxu0 %v1551
        %2832 = vmatprep.subr.mxu0 %v1544
        %2833 = vmatpush2.msra.mxu0 %v1543
        %2834 = vmatprep.subr.mxu0 %v1536
        %2835 = vmatpush2.msra.mxu0 %v1535
        %2836 = vmatprep.subr.mxu0 %v1528
        %2837 = vmatpush2.msra.mxu0 %v1527
        %2838 = vmatprep.subr.mxu0 %v1520
        %2839 = vmatpush2.msra.mxu0 %v1519
        %2840 = vmatprep.subr.mxu0 %v1512
        %2841 = vmatpush2.msra.mxu0 %v1511
        %2842 = vmatprep.subr.mxu0 %v1504
        %2843 = vmatpush2.msra.mxu0 %v1503
        %2844 = vmatprep.subr.mxu0 %v1496
        %2845 = vmatpush2.msra.mxu0 %v1495
        %2846 = vmatprep.subr.mxu0 %v1488
        %2847 = vmatpush2.msra.mxu0 %v1487
        %2848 = vmatprep.subr.mxu0 %v1480
        %2849 = vmatpush2.msra.mxu0 %v1479
        %2850 = vmatprep.subr.mxu0 %v1472
        %2851 = vmatpush2.msra.mxu0 %v1471
        %2852 = vmatprep.mubr.f32.mxu0 %v1078
        %2853 = vmatmul.mubr.f32.gmra.mxu0 %v1077
        %v2854 = vpop.f32.mrf.mxu0
        %v2855 = vadd.f32 %v2784, %v2854
        %v2856 = vpop.f32.mrf.mxu0
        %v2857 = vadd.f32 %v2786, %v2856
        %2858 = vdwg.mxu0
        %2859 = vmatprep.subr.mxu0 %v1720
        %2860 = vmatpush1.msra.mxu0 %v1719
        %2861 = vmatprep.subr.mxu0 %v1712
        %2862 = vmatpush1.msra.mxu0 %v1711
        %2863 = vmatprep.subr.mxu0 %v1704
        %2864 = vmatpush1.msra.mxu0 %v1703
        %2865 = vmatprep.subr.mxu0 %v1696
        %2866 = vmatpush1.msra.mxu0 %v1695
        %2867 = vmatprep.subr.mxu0 %v1688
        %2868 = vmatpush1.msra.mxu0 %v1687
        %2869 = vmatprep.subr.mxu0 %v1680
        %2870 = vmatpush1.msra.mxu0 %v1679
        %2871 = vmatprep.subr.mxu0 %v1672
        %2872 = vmatpush1.msra.mxu0 %v1671
        %2873 = vmatprep.subr.mxu0 %v1664
        %2874 = vmatpush1.msra.mxu0 %v1663
        %2875 = vmatprep.subr.mxu0 %v1656
        %2876 = vmatpush1.msra.mxu0 %v1655
        %2877 = vmatprep.subr.mxu0 %v1648
        %2878 = vmatpush1.msra.mxu0 %v1647
        %2879 = vmatprep.subr.mxu0 %v1640
        %2880 = vmatpush1.msra.mxu0 %v1639
        %2881 = vmatprep.subr.mxu0 %v1632
        %2882 = vmatpush1.msra.mxu0 %v1631
        %2883 = vmatprep.subr.mxu0 %v1624
        %2884 = vmatpush1.msra.mxu0 %v1623
        %2885 = vmatprep.subr.mxu0 %v1616
        %2886 = vmatpush1.msra.mxu0 %v1615
        %2887 = vmatprep.subr.mxu0 %v1608
        %2888 = vmatpush1.msra.mxu0 %v1607
        %2889 = vmatprep.subr.mxu0 %v1600
        %2890 = vmatpush1.msra.mxu0 %v1599
        %2891 = vmatprep.subr.mxu0 %v1848
        %2892 = vmatpush2.msra.mxu0 %v1847
        %2893 = vmatprep.subr.mxu0 %v1840
        %2894 = vmatpush2.msra.mxu0 %v1839
        %2895 = vmatprep.subr.mxu0 %v1832
        %2896 = vmatpush2.msra.mxu0 %v1831
        %2897 = vmatprep.subr.mxu0 %v1824
        %2898 = vmatpush2.msra.mxu0 %v1823
        %2899 = vmatprep.subr.mxu0 %v1816
        %2900 = vmatpush2.msra.mxu0 %v1815
        %2901 = vmatprep.subr.mxu0 %v1808
        %2902 = vmatpush2.msra.mxu0 %v1807
        %2903 = vmatprep.subr.mxu0 %v1800
        %2904 = vmatpush2.msra.mxu0 %v1799
        %2905 = vmatprep.subr.mxu0 %v1792
        %2906 = vmatpush2.msra.mxu0 %v1791
        %2907 = vmatprep.subr.mxu0 %v1784
        %2908 = vmatpush2.msra.mxu0 %v1783
        %2909 = vmatprep.subr.mxu0 %v1776
        %2910 = vmatpush2.msra.mxu0 %v1775
        %2911 = vmatprep.subr.mxu0 %v1768
        %2912 = vmatpush2.msra.mxu0 %v1767
        %2913 = vmatprep.subr.mxu0 %v1760
        %2914 = vmatpush2.msra.mxu0 %v1759
        %2915 = vmatprep.subr.mxu0 %v1752
        %2916 = vmatpush2.msra.mxu0 %v1751
        %2917 = vmatprep.subr.mxu0 %v1744
        %2918 = vmatpush2.msra.mxu0 %v1743
        %2919 = vmatprep.subr.mxu0 %v1736
        %2920 = vmatpush2.msra.mxu0 %v1735
        %2921 = vmatprep.subr.mxu0 %v1728
        %2922 = vmatpush2.msra.mxu0 %v1727
        %2923 = vmatprep.mubr.f32.mxu0 %v1080
        %2924 = vmatmul.mubr.f32.gmra.mxu0 %v1079
        %v2925 = vpop.f32.mrf.mxu0
        %v2926 = vadd.f32 %v2855, %v2925
        %v2927 = vpop.f32.mrf.mxu0
        %v2928 = vadd.f32 %v2857, %v2927
        %2929 = vdwg.mxu0
        %2930 = vmatprep.subr.mxu0 %v1976
        %2931 = vmatpush1.msra.mxu0 %v1975
        %2932 = vmatprep.subr.mxu0 %v1968
        %2933 = vmatpush1.msra.mxu0 %v1967
        %2934 = vmatprep.subr.mxu0 %v1960
        %2935 = vmatpush1.msra.mxu0 %v1959
        %2936 = vmatprep.subr.mxu0 %v1952
        %2937 = vmatpush1.msra.mxu0 %v1951
        %2938 = vmatprep.subr.mxu0 %v1944
        %2939 = vmatpush1.msra.mxu0 %v1943
        %2940 = vmatprep.subr.mxu0 %v1936
        %2941 = vmatpush1.msra.mxu0 %v1935
        %2942 = vmatprep.subr.mxu0 %v1928
        %2943 = vmatpush1.msra.mxu0 %v1927
        %2944 = vmatprep.subr.mxu0 %v1920
        %2945 = vmatpush1.msra.mxu0 %v1919
        %2946 = vmatprep.subr.mxu0 %v1912
        %2947 = vmatpush1.msra.mxu0 %v1911
        %2948 = vmatprep.subr.mxu0 %v1904
        %2949 = vmatpush1.msra.mxu0 %v1903
        %2950 = vmatprep.subr.mxu0 %v1896
        %2951 = vmatpush1.msra.mxu0 %v1895
        %2952 = vmatprep.subr.mxu0 %v1888
        %2953 = vmatpush1.msra.mxu0 %v1887
        %2954 = vmatprep.subr.mxu0 %v1880
        %2955 = vmatpush1.msra.mxu0 %v1879
        %2956 = vmatprep.subr.mxu0 %v1872
        %2957 = vmatpush1.msra.mxu0 %v1871
        %2958 = vmatprep.subr.mxu0 %v1864
        %2959 = vmatpush1.msra.mxu0 %v1863
        %2960 = vmatprep.subr.mxu0 %v1856
        %2961 = vmatpush1.msra.mxu0 %v1855
        %2962 = vmatprep.subr.mxu0 %v2104
        %2963 = vmatpush2.msra.mxu0 %v2103
        %2964 = vmatprep.subr.mxu0 %v2096
        %2965 = vmatpush2.msra.mxu0 %v2095
        %2966 = vmatprep.subr.mxu0 %v2088
        %2967 = vmatpush2.msra.mxu0 %v2087
        %2968 = vmatprep.subr.mxu0 %v2080
        %2969 = vmatpush2.msra.mxu0 %v2079
        %2970 = vmatprep.subr.mxu0 %v2072
        %2971 = vmatpush2.msra.mxu0 %v2071
        %2972 = vmatprep.subr.mxu0 %v2064
        %2973 = vmatpush2.msra.mxu0 %v2063
        %2974 = vmatprep.subr.mxu0 %v2056
        %2975 = vmatpush2.msra.mxu0 %v2055
        %2976 = vmatprep.subr.mxu0 %v2048
        %2977 = vmatpush2.msra.mxu0 %v2047
        %2978 = vmatprep.subr.mxu0 %v2040
        %2979 = vmatpush2.msra.mxu0 %v2039
        %2980 = vmatprep.subr.mxu0 %v2032
        %2981 = vmatpush2.msra.mxu0 %v2031
        %2982 = vmatprep.subr.mxu0 %v2024
        %2983 = vmatpush2.msra.mxu0 %v2023
        %2984 = vmatprep.subr.mxu0 %v2016
        %2985 = vmatpush2.msra.mxu0 %v2015
        %2986 = vmatprep.subr.mxu0 %v2008
        %2987 = vmatpush2.msra.mxu0 %v2007
        %2988 = vmatprep.subr.mxu0 %v2000
        %2989 = vmatpush2.msra.mxu0 %v1999
        %2990 = vmatprep.subr.mxu0 %v1992
        %2991 = vmatpush2.msra.mxu0 %v1991
        %2992 = vmatprep.subr.mxu0 %v1984
        %2993 = vmatpush2.msra.mxu0 %v1983
        %2994 = vmatprep.mubr.f32.mxu0 %v1082
        %2995 = vmatmul.mubr.f32.gmra.mxu0 %v1081
        %v2996 = vpop.f32.mrf.mxu0
        %v2997 = vadd.f32 %v2926, %v2996
        %v2998 = vpop.f32.mrf.mxu0
        %v2999 = vadd.f32 %v2928, %v2998
        %3000 = vdwg.mxu0
        %3001 = vmatprep.subr.mxu0 %v1210
        %3002 = vmatpush1.msra.mxu0 %v1209
        %3003 = vmatprep.subr.mxu0 %v1202
        %3004 = vmatpush1.msra.mxu0 %v1201
        %3005 = vmatprep.subr.mxu0 %v1194
        %3006 = vmatpush1.msra.mxu0 %v1193
        %3007 = vmatprep.subr.mxu0 %v1186
        %3008 = vmatpush1.msra.mxu0 %v1185
        %3009 = vmatprep.subr.mxu0 %v1178
        %3010 = vmatpush1.msra.mxu0 %v1177
        %3011 = vmatprep.subr.mxu0 %v1170
        %3012 = vmatpush1.msra.mxu0 %v1169
        %3013 = vmatprep.subr.mxu0 %v1162
        %3014 = vmatpush1.msra.mxu0 %v1161
        %3015 = vmatprep.subr.mxu0 %v1154
        %3016 = vmatpush1.msra.mxu0 %v1153
        %3017 = vmatprep.subr.mxu0 %v1146
        %3018 = vmatpush1.msra.mxu0 %v1145
        %3019 = vmatprep.subr.mxu0 %v1138
        %3020 = vmatpush1.msra.mxu0 %v1137
        %3021 = vmatprep.subr.mxu0 %v1130
        %3022 = vmatpush1.msra.mxu0 %v1129
        %3023 = vmatprep.subr.mxu0 %v1122
        %3024 = vmatpush1.msra.mxu0 %v1121
        %3025 = vmatprep.subr.mxu0 %v1114
        %3026 = vmatpush1.msra.mxu0 %v1113
        %3027 = vmatprep.subr.mxu0 %v1106
        %3028 = vmatpush1.msra.mxu0 %v1105
        %3029 = vmatprep.subr.mxu0 %v1098
        %3030 = vmatpush1.msra.mxu0 %v1097
        %3031 = vmatprep.subr.mxu0 %v1090
        %3032 = vmatpush1.msra.mxu0 %v1089
        %3033 = vmatprep.subr.mxu0 %v1338
        %3034 = vmatpush2.msra.mxu0 %v1337
        %3035 = vmatprep.subr.mxu0 %v1330
        %3036 = vmatpush2.msra.mxu0 %v1329
        %3037 = vmatprep.subr.mxu0 %v1322
        %3038 = vmatpush2.msra.mxu0 %v1321
        %3039 = vmatprep.subr.mxu0 %v1314
        %3040 = vmatpush2.msra.mxu0 %v1313
        %3041 = vmatprep.subr.mxu0 %v1306
        %3042 = vmatpush2.msra.mxu0 %v1305
        %3043 = vmatprep.subr.mxu0 %v1298
        %3044 = vmatpush2.msra.mxu0 %v1297
        %3045 = vmatprep.subr.mxu0 %v1290
        %3046 = vmatpush2.msra.mxu0 %v1289
        %3047 = vmatprep.subr.mxu0 %v1282
        %3048 = vmatpush2.msra.mxu0 %v1281
        %3049 = vmatprep.subr.mxu0 %v1274
        %3050 = vmatpush2.msra.mxu0 %v1273
        %3051 = vmatprep.subr.mxu0 %v1266
        %3052 = vmatpush2.msra.mxu0 %v1265
        %3053 = vmatprep.subr.mxu0 %v1258
        %3054 = vmatpush2.msra.mxu0 %v1257
        %3055 = vmatprep.subr.mxu0 %v1250
        %3056 = vmatpush2.msra.mxu0 %v1249
        %3057 = vmatprep.subr.mxu0 %v1242
        %3058 = vmatpush2.msra.mxu0 %v1241
        %3059 = vmatprep.subr.mxu0 %v1234
        %3060 = vmatpush2.msra.mxu0 %v1233
        %3061 = vmatprep.subr.mxu0 %v1226
        %3062 = vmatpush2.msra.mxu0 %v1225
        %3063 = vmatprep.subr.mxu0 %v1218
        %3064 = vmatpush2.msra.mxu0 %v1217
        %3065 = vmatprep.mubr.f32.mxu0 %v1076
        %3066 = vmatmul.mubr.f32.gmra.mxu0 %v1075
        %v3067 = vpop.f32.mrf.mxu0
        %v3068 = vadd.f32 %v2136, %v3067
        %v3069 = vpop.f32.mrf.mxu0
        %v3070 = vadd.f32 %v2140, %v3069
        %3071 = vdwg.mxu0
        %3072 = vmatprep.subr.mxu0 %v1466
        %3073 = vmatpush1.msra.mxu0 %v1465
        %3074 = vmatprep.subr.mxu0 %v1458
        %3075 = vmatpush1.msra.mxu0 %v1457
        %3076 = vmatprep.subr.mxu0 %v1450
        %3077 = vmatpush1.msra.mxu0 %v1449
        %3078 = vmatprep.subr.mxu0 %v1442
        %3079 = vmatpush1.msra.mxu0 %v1441
        %3080 = vmatprep.subr.mxu0 %v1434
        %3081 = vmatpush1.msra.mxu0 %v1433
        %3082 = vmatprep.subr.mxu0 %v1426
        %3083 = vmatpush1.msra.mxu0 %v1425
        %3084 = vmatprep.subr.mxu0 %v1418
        %3085 = vmatpush1.msra.mxu0 %v1417
        %3086 = vmatprep.subr.mxu0 %v1410
        %3087 = vmatpush1.msra.mxu0 %v1409
        %3088 = vmatprep.subr.mxu0 %v1402
        %3089 = vmatpush1.msra.mxu0 %v1401
        %3090 = vmatprep.subr.mxu0 %v1394
        %3091 = vmatpush1.msra.mxu0 %v1393
        %3092 = vmatprep.subr.mxu0 %v1386
        %3093 = vmatpush1.msra.mxu0 %v1385
        %3094 = vmatprep.subr.mxu0 %v1378
        %3095 = vmatpush1.msra.mxu0 %v1377
        %3096 = vmatprep.subr.mxu0 %v1370
        %3097 = vmatpush1.msra.mxu0 %v1369
        %3098 = vmatprep.subr.mxu0 %v1362
        %3099 = vmatpush1.msra.mxu0 %v1361
        %3100 = vmatprep.subr.mxu0 %v1354
        %3101 = vmatpush1.msra.mxu0 %v1353
        %3102 = vmatprep.subr.mxu0 %v1346
        %3103 = vmatpush1.msra.mxu0 %v1345
        %3104 = vmatprep.subr.mxu0 %v1594
        %3105 = vmatpush2.msra.mxu0 %v1593
        %3106 = vmatprep.subr.mxu0 %v1586
        %3107 = vmatpush2.msra.mxu0 %v1585
        %3108 = vmatprep.subr.mxu0 %v1578
        %3109 = vmatpush2.msra.mxu0 %v1577
        %3110 = vmatprep.subr.mxu0 %v1570
        %3111 = vmatpush2.msra.mxu0 %v1569
        %3112 = vmatprep.subr.mxu0 %v1562
        %3113 = vmatpush2.msra.mxu0 %v1561
        %3114 = vmatprep.subr.mxu0 %v1554
        %3115 = vmatpush2.msra.mxu0 %v1553
        %3116 = vmatprep.subr.mxu0 %v1546
        %3117 = vmatpush2.msra.mxu0 %v1545
        %3118 = vmatprep.subr.mxu0 %v1538
        %3119 = vmatpush2.msra.mxu0 %v1537
        %3120 = vmatprep.subr.mxu0 %v1530
        %3121 = vmatpush2.msra.mxu0 %v1529
        %3122 = vmatprep.subr.mxu0 %v1522
        %3123 = vmatpush2.msra.mxu0 %v1521
        %3124 = vmatprep.subr.mxu0 %v1514
        %3125 = vmatpush2.msra.mxu0 %v1513
        %3126 = vmatprep.subr.mxu0 %v1506
        %3127 = vmatpush2.msra.mxu0 %v1505
        %3128 = vmatprep.subr.mxu0 %v1498
        %3129 = vmatpush2.msra.mxu0 %v1497
        %3130 = vmatprep.subr.mxu0 %v1490
        %3131 = vmatpush2.msra.mxu0 %v1489
        %3132 = vmatprep.subr.mxu0 %v1482
        %3133 = vmatpush2.msra.mxu0 %v1481
        %3134 = vmatprep.subr.mxu0 %v1474
        %3135 = vmatpush2.msra.mxu0 %v1473
        %3136 = vmatprep.mubr.f32.mxu0 %v1078
        %3137 = vmatmul.mubr.f32.gmra.mxu0 %v1077
        %v3138 = vpop.f32.mrf.mxu0
        %v3139 = vadd.f32 %v3068, %v3138
        %v3140 = vpop.f32.mrf.mxu0
        %v3141 = vadd.f32 %v3070, %v3140
        %3142 = vdwg.mxu0
        %3143 = vmatprep.subr.mxu0 %v1722
        %3144 = vmatpush1.msra.mxu0 %v1721
        %3145 = vmatprep.subr.mxu0 %v1714
        %3146 = vmatpush1.msra.mxu0 %v1713
        %3147 = vmatprep.subr.mxu0 %v1706
        %3148 = vmatpush1.msra.mxu0 %v1705
        %3149 = vmatprep.subr.mxu0 %v1698
        %3150 = vmatpush1.msra.mxu0 %v1697
        %3151 = vmatprep.subr.mxu0 %v1690
        %3152 = vmatpush1.msra.mxu0 %v1689
        %3153 = vmatprep.subr.mxu0 %v1682
        %3154 = vmatpush1.msra.mxu0 %v1681
        %3155 = vmatprep.subr.mxu0 %v1674
        %3156 = vmatpush1.msra.mxu0 %v1673
        %3157 = vmatprep.subr.mxu0 %v1666
        %3158 = vmatpush1.msra.mxu0 %v1665
        %3159 = vmatprep.subr.mxu0 %v1658
        %3160 = vmatpush1.msra.mxu0 %v1657
        %3161 = vmatprep.subr.mxu0 %v1650
        %3162 = vmatpush1.msra.mxu0 %v1649
        %3163 = vmatprep.subr.mxu0 %v1642
        %3164 = vmatpush1.msra.mxu0 %v1641
        %3165 = vmatprep.subr.mxu0 %v1634
        %3166 = vmatpush1.msra.mxu0 %v1633
        %3167 = vmatprep.subr.mxu0 %v1626
        %3168 = vmatpush1.msra.mxu0 %v1625
        %3169 = vmatprep.subr.mxu0 %v1618
        %3170 = vmatpush1.msra.mxu0 %v1617
        %3171 = vmatprep.subr.mxu0 %v1610
        %3172 = vmatpush1.msra.mxu0 %v1609
        %3173 = vmatprep.subr.mxu0 %v1602
        %3174 = vmatpush1.msra.mxu0 %v1601
        %3175 = vmatprep.subr.mxu0 %v1850
        %3176 = vmatpush2.msra.mxu0 %v1849
        %3177 = vmatprep.subr.mxu0 %v1842
        %3178 = vmatpush2.msra.mxu0 %v1841
        %3179 = vmatprep.subr.mxu0 %v1834
        %3180 = vmatpush2.msra.mxu0 %v1833
        %3181 = vmatprep.subr.mxu0 %v1826
        %3182 = vmatpush2.msra.mxu0 %v1825
        %3183 = vmatprep.subr.mxu0 %v1818
        %3184 = vmatpush2.msra.mxu0 %v1817
        %3185 = vmatprep.subr.mxu0 %v1810
        %3186 = vmatpush2.msra.mxu0 %v1809
        %3187 = vmatprep.subr.mxu0 %v1802
        %3188 = vmatpush2.msra.mxu0 %v1801
        %3189 = vmatprep.subr.mxu0 %v1794
        %3190 = vmatpush2.msra.mxu0 %v1793
        %3191 = vmatprep.subr.mxu0 %v1786
        %3192 = vmatpush2.msra.mxu0 %v1785
        %3193 = vmatprep.subr.mxu0 %v1778
        %3194 = vmatpush2.msra.mxu0 %v1777
        %3195 = vmatprep.subr.mxu0 %v1770
        %3196 = vmatpush2.msra.mxu0 %v1769
        %3197 = vmatprep.subr.mxu0 %v1762
        %3198 = vmatpush2.msra.mxu0 %v1761
        %3199 = vmatprep.subr.mxu0 %v1754
        %3200 = vmatpush2.msra.mxu0 %v1753
        %3201 = vmatprep.subr.mxu0 %v1746
        %3202 = vmatpush2.msra.mxu0 %v1745
        %3203 = vmatprep.subr.mxu0 %v1738
        %3204 = vmatpush2.msra.mxu0 %v1737
        %3205 = vmatprep.subr.mxu0 %v1730
        %3206 = vmatpush2.msra.mxu0 %v1729
        %3207 = vmatprep.mubr.f32.mxu0 %v1080
        %3208 = vmatmul.mubr.f32.gmra.mxu0 %v1079
        %v3209 = vpop.f32.mrf.mxu0
        %v3210 = vadd.f32 %v3139, %v3209
        %v3211 = vpop.f32.mrf.mxu0
        %v3212 = vadd.f32 %v3141, %v3211
        %3213 = vdwg.mxu0
        %3214 = vmatprep.subr.mxu0 %v1978
        %3215 = vmatpush1.msra.mxu0 %v1977
        %3216 = vmatprep.subr.mxu0 %v1970
        %3217 = vmatpush1.msra.mxu0 %v1969
        %3218 = vmatprep.subr.mxu0 %v1962
        %3219 = vmatpush1.msra.mxu0 %v1961
        %3220 = vmatprep.subr.mxu0 %v1954
        %3221 = vmatpush1.msra.mxu0 %v1953
        %3222 = vmatprep.subr.mxu0 %v1946
        %3223 = vmatpush1.msra.mxu0 %v1945
        %3224 = vmatprep.subr.mxu0 %v1938
        %3225 = vmatpush1.msra.mxu0 %v1937
        %3226 = vmatprep.subr.mxu0 %v1930
        %3227 = vmatpush1.msra.mxu0 %v1929
        %3228 = vmatprep.subr.mxu0 %v1922
        %3229 = vmatpush1.msra.mxu0 %v1921
        %3230 = vmatprep.subr.mxu0 %v1914
        %3231 = vmatpush1.msra.mxu0 %v1913
        %3232 = vmatprep.subr.mxu0 %v1906
        %3233 = vmatpush1.msra.mxu0 %v1905
        %3234 = vmatprep.subr.mxu0 %v1898
        %3235 = vmatpush1.msra.mxu0 %v1897
        %3236 = vmatprep.subr.mxu0 %v1890
        %3237 = vmatpush1.msra.mxu0 %v1889
        %3238 = vmatprep.subr.mxu0 %v1882
        %3239 = vmatpush1.msra.mxu0 %v1881
        %3240 = vmatprep.subr.mxu0 %v1874
        %3241 = vmatpush1.msra.mxu0 %v1873
        %3242 = vmatprep.subr.mxu0 %v1866
        %3243 = vmatpush1.msra.mxu0 %v1865
        %3244 = vmatprep.subr.mxu0 %v1858
        %3245 = vmatpush1.msra.mxu0 %v1857
        %3246 = vmatprep.subr.mxu0 %v2106
        %3247 = vmatpush2.msra.mxu0 %v2105
        %3248 = vmatprep.subr.mxu0 %v2098
        %3249 = vmatpush2.msra.mxu0 %v2097
        %3250 = vmatprep.subr.mxu0 %v2090
        %3251 = vmatpush2.msra.mxu0 %v2089
        %3252 = vmatprep.subr.mxu0 %v2082
        %3253 = vmatpush2.msra.mxu0 %v2081
        %3254 = vmatprep.subr.mxu0 %v2074
        %3255 = vmatpush2.msra.mxu0 %v2073
        %3256 = vmatprep.subr.mxu0 %v2066
        %3257 = vmatpush2.msra.mxu0 %v2065
        %3258 = vmatprep.subr.mxu0 %v2058
        %3259 = vmatpush2.msra.mxu0 %v2057
        %3260 = vmatprep.subr.mxu0 %v2050
        %3261 = vmatpush2.msra.mxu0 %v2049
        %3262 = vmatprep.subr.mxu0 %v2042
        %3263 = vmatpush2.msra.mxu0 %v2041
        %3264 = vmatprep.subr.mxu0 %v2034
        %3265 = vmatpush2.msra.mxu0 %v2033
        %3266 = vmatprep.subr.mxu0 %v2026
        %3267 = vmatpush2.msra.mxu0 %v2025
        %3268 = vmatprep.subr.mxu0 %v2018
        %3269 = vmatpush2.msra.mxu0 %v2017
        %3270 = vmatprep.subr.mxu0 %v2010
        %3271 = vmatpush2.msra.mxu0 %v2009
        %3272 = vmatprep.subr.mxu0 %v2002
        %3273 = vmatpush2.msra.mxu0 %v2001
        %3274 = vmatprep.subr.mxu0 %v1994
        %3275 = vmatpush2.msra.mxu0 %v1993
        %3276 = vmatprep.subr.mxu0 %v1986
        %3277 = vmatpush2.msra.mxu0 %v1985
        %3278 = vmatprep.mubr.f32.mxu0 %v1082
        %3279 = vmatmul.mubr.f32.gmra.mxu0 %v1081
        %v3280 = vpop.f32.mrf.mxu0
        %v3281 = vadd.f32 %v3210, %v3280
        %v3282 = vpop.f32.mrf.mxu0
        %v3283 = vadd.f32 %v3212, %v3282
        %3284 = vdwg.mxu0
        %v3285 = vmax.f32 %v2429, 0.0
        %v3286 = vmax.f32 %v2431, 0.0
        %v3287 = vmax.f32 %v2713, 0.0
        %v3288 = vmax.f32 %v2715, 0.0
        %v3289 = vmax.f32 %v2997, 0.0
        %v3290 = vmax.f32 %v2999, 0.0
        %v3291 = vmax.f32 %v3281, 0.0
        %v3292 = vmax.f32 %v3283, 0.0
        %v3293 = vld [vmem:[%s525] sm:$0xff]
        %v3294 = vld [vmem:[%s525 + $0x8] sm:$0xff]
        %v3295 = vld [vmem:[%s525 + $0x10] sm:$0xff]
        %v3296 = vld [vmem:[%s525 + $0x18] sm:$0xff]
        %v3297 = vld [vmem:[%s525 + $0x20] sm:$0xff]
        %v3298 = vld [vmem:[%s525 + $0x28] sm:$0xff]
        %v3299 = vld [vmem:[%s525 + $0x30] sm:$0xff]
        %v3300 = vld [vmem:[%s525 + $0x38] sm:$0xff]
        %v3301 = vld [vmem:[%s525 + $0x40] sm:$0xff]
        %v3302 = vld [vmem:[%s525 + $0x48] sm:$0xff]
        %v3303 = vld [vmem:[%s525 + $0x50] sm:$0xff]
        %v3304 = vld [vmem:[%s525 + $0x58] sm:$0xff]
        %v3305 = vld [vmem:[%s525 + $0x60] sm:$0xff]
        %v3306 = vld [vmem:[%s525 + $0x68] sm:$0xff]
        %v3307 = vld [vmem:[%s525 + $0x70] sm:$0xff]
        %v3308 = vld [vmem:[%s525 + $0x78] sm:$0xff]
        %v3309 = vld [vmem:[%s525 + $0x80] sm:$0xff]
        %v3310 = vld [vmem:[%s525 + $0x88] sm:$0xff]
        %v3311 = vld [vmem:[%s525 + $0x90] sm:$0xff]
        %v3312 = vld [vmem:[%s525 + $0x98] sm:$0xff]
        %v3313 = vld [vmem:[%s525 + $0xa0] sm:$0xff]
        %v3314 = vld [vmem:[%s525 + $0xa8] sm:$0xff]
        %v3315 = vld [vmem:[%s525 + $0xb0] sm:$0xff]
        %v3316 = vld [vmem:[%s525 + $0xb8] sm:$0xff]
        %v3317 = vld [vmem:[%s525 + $0xc0] sm:$0xff]
        %v3318 = vld [vmem:[%s525 + $0xc8] sm:$0xff]
        %v3319 = vld [vmem:[%s525 + $0xd0] sm:$0xff]
        %v3320 = vld [vmem:[%s525 + $0xd8] sm:$0xff]
        %v3321 = vld [vmem:[%s525 + $0xe0] sm:$0xff]
        %v3322 = vld [vmem:[%s525 + $0xe8] sm:$0xff]
        %v3323 = vld [vmem:[%s525 + $0xf0] sm:$0xff]
        %v3324 = vld [vmem:[%s525 + $0xf8] sm:$0xff]
        %v3325 = vld [vmem:[%s525 + $0x100] sm:$0xff]
        %v3326 = vld [vmem:[%s525 + $0x108] sm:$0xff]
        %v3327 = vld [vmem:[%s525 + $0x110] sm:$0xff]
        %v3328 = vld [vmem:[%s525 + $0x118] sm:$0xff]
        %v3329 = vld [vmem:[%s525 + $0x120] sm:$0xff]
        %v3330 = vld [vmem:[%s525 + $0x128] sm:$0xff]
        %v3331 = vld [vmem:[%s525 + $0x130] sm:$0xff]
        %v3332 = vld [vmem:[%s525 + $0x138] sm:$0xff]
        %v3333 = vld [vmem:[%s525 + $0x140] sm:$0xff]
        %v3334 = vld [vmem:[%s525 + $0x148] sm:$0xff]
        %v3335 = vld [vmem:[%s525 + $0x150] sm:$0xff]
        %v3336 = vld [vmem:[%s525 + $0x158] sm:$0xff]
        %v3337 = vld [vmem:[%s525 + $0x160] sm:$0xff]
        %v3338 = vld [vmem:[%s525 + $0x168] sm:$0xff]
        %v3339 = vld [vmem:[%s525 + $0x170] sm:$0xff]
        %v3340 = vld [vmem:[%s525 + $0x178] sm:$0xff]
        %v3341 = vld [vmem:[%s525 + $0x180] sm:$0xff]
        %v3342 = vld [vmem:[%s525 + $0x188] sm:$0xff]
        %v3343 = vld [vmem:[%s525 + $0x190] sm:$0xff]
        %v3344 = vld [vmem:[%s525 + $0x198] sm:$0xff]
        %v3345 = vld [vmem:[%s525 + $0x1a0] sm:$0xff]
        %v3346 = vld [vmem:[%s525 + $0x1a8] sm:$0xff]
        %v3347 = vld [vmem:[%s525 + $0x1b0] sm:$0xff]
        %v3348 = vld [vmem:[%s525 + $0x1b8] sm:$0xff]
        %v3349 = vld [vmem:[%s525 + $0x1c0] sm:$0xff]
        %v3350 = vld [vmem:[%s525 + $0x1c8] sm:$0xff]
        %v3351 = vld [vmem:[%s525 + $0x1d0] sm:$0xff]
        %v3352 = vld [vmem:[%s525 + $0x1d8] sm:$0xff]
        %v3353 = vld [vmem:[%s525 + $0x1e0] sm:$0xff]
        %v3354 = vld [vmem:[%s525 + $0x1e8] sm:$0xff]
        %v3355 = vld [vmem:[%s525 + $0x1f0] sm:$0xff]
        %v3356 = vld [vmem:[%s525 + $0x1f8] sm:$0xff]
        %v3357 = vld [vmem:[%s525 + $0x200] sm:$0xff]
        %v3358 = vld [vmem:[%s525 + $0x208] sm:$0xff]
        %v3359 = vld [vmem:[%s525 + $0x210] sm:$0xff]
        %v3360 = vld [vmem:[%s525 + $0x218] sm:$0xff]
        %v3361 = vld [vmem:[%s525 + $0x220] sm:$0xff]
        %v3362 = vld [vmem:[%s525 + $0x228] sm:$0xff]
        %v3363 = vld [vmem:[%s525 + $0x230] sm:$0xff]
        %v3364 = vld [vmem:[%s525 + $0x238] sm:$0xff]
        %v3365 = vld [vmem:[%s525 + $0x240] sm:$0xff]
        %v3366 = vld [vmem:[%s525 + $0x248] sm:$0xff]
        %v3367 = vld [vmem:[%s525 + $0x250] sm:$0xff]
        %v3368 = vld [vmem:[%s525 + $0x258] sm:$0xff]
        %v3369 = vld [vmem:[%s525 + $0x260] sm:$0xff]
        %v3370 = vld [vmem:[%s525 + $0x268] sm:$0xff]
        %v3371 = vld [vmem:[%s525 + $0x270] sm:$0xff]
        %v3372 = vld [vmem:[%s525 + $0x278] sm:$0xff]
        %v3373 = vld [vmem:[%s525 + $0x280] sm:$0xff]
        %v3374 = vld [vmem:[%s525 + $0x288] sm:$0xff]
        %v3375 = vld [vmem:[%s525 + $0x290] sm:$0xff]
        %v3376 = vld [vmem:[%s525 + $0x298] sm:$0xff]
        %v3377 = vld [vmem:[%s525 + $0x2a0] sm:$0xff]
        %v3378 = vld [vmem:[%s525 + $0x2a8] sm:$0xff]
        %v3379 = vld [vmem:[%s525 + $0x2b0] sm:$0xff]
        %v3380 = vld [vmem:[%s525 + $0x2b8] sm:$0xff]
        %v3381 = vld [vmem:[%s525 + $0x2c0] sm:$0xff]
        %v3382 = vld [vmem:[%s525 + $0x2c8] sm:$0xff]
        %v3383 = vld [vmem:[%s525 + $0x2d0] sm:$0xff]
        %v3384 = vld [vmem:[%s525 + $0x2d8] sm:$0xff]
        %v3385 = vld [vmem:[%s525 + $0x2e0] sm:$0xff]
        %v3386 = vld [vmem:[%s525 + $0x2e8] sm:$0xff]
        %v3387 = vld [vmem:[%s525 + $0x2f0] sm:$0xff]
        %v3388 = vld [vmem:[%s525 + $0x2f8] sm:$0xff]
        %v3389 = vld [vmem:[%s525 + $0x300] sm:$0xff]
        %v3390 = vld [vmem:[%s525 + $0x308] sm:$0xff]
        %v3391 = vld [vmem:[%s525 + $0x310] sm:$0xff]
        %v3392 = vld [vmem:[%s525 + $0x318] sm:$0xff]
        %v3393 = vld [vmem:[%s525 + $0x320] sm:$0xff]
        %v3394 = vld [vmem:[%s525 + $0x328] sm:$0xff]
        %v3395 = vld [vmem:[%s525 + $0x330] sm:$0xff]
        %v3396 = vld [vmem:[%s525 + $0x338] sm:$0xff]
        %v3397 = vld [vmem:[%s525 + $0x340] sm:$0xff]
        %v3398 = vld [vmem:[%s525 + $0x348] sm:$0xff]
        %v3399 = vld [vmem:[%s525 + $0x350] sm:$0xff]
        %v3400 = vld [vmem:[%s525 + $0x358] sm:$0xff]
        %v3401 = vld [vmem:[%s525 + $0x360] sm:$0xff]
        %v3402 = vld [vmem:[%s525 + $0x368] sm:$0xff]
        %v3403 = vld [vmem:[%s525 + $0x370] sm:$0xff]
        %v3404 = vld [vmem:[%s525 + $0x378] sm:$0xff]
        %v3405 = vld [vmem:[%s525 + $0x380] sm:$0xff]
        %v3406 = vld [vmem:[%s525 + $0x388] sm:$0xff]
        %v3407 = vld [vmem:[%s525 + $0x390] sm:$0xff]
        %v3408 = vld [vmem:[%s525 + $0x398] sm:$0xff]
        %v3409 = vld [vmem:[%s525 + $0x3a0] sm:$0xff]
        %v3410 = vld [vmem:[%s525 + $0x3a8] sm:$0xff]
        %v3411 = vld [vmem:[%s525 + $0x3b0] sm:$0xff]
        %v3412 = vld [vmem:[%s525 + $0x3b8] sm:$0xff]
        %v3413 = vld [vmem:[%s525 + $0x3c0] sm:$0xff]
        %v3414 = vld [vmem:[%s525 + $0x3c8] sm:$0xff]
        %v3415 = vld [vmem:[%s525 + $0x3d0] sm:$0xff]
        %v3416 = vld [vmem:[%s525 + $0x3d8] sm:$0xff]
        %v3417 = vld [vmem:[%s525 + $0x3e0] sm:$0xff]
        %v3418 = vld [vmem:[%s525 + $0x3e8] sm:$0xff]
        %v3419 = vld [vmem:[%s525 + $0x3f0] sm:$0xff]
        %v3420 = vld [vmem:[%s525 + $0x3f8] sm:$0xff]
        %v3421 = vld [vmem:[%s525 + $0x400] sm:$0xff]
        %v3422 = vld [vmem:[%s525 + $0x408] sm:$0xff]
        %v3423 = vld [vmem:[%s525 + $0x410] sm:$0xff]
        %v3424 = vld [vmem:[%s525 + $0x418] sm:$0xff]
        %v3425 = vld [vmem:[%s525 + $0x420] sm:$0xff]
        %v3426 = vld [vmem:[%s525 + $0x428] sm:$0xff]
        %v3427 = vld [vmem:[%s525 + $0x430] sm:$0xff]
        %v3428 = vld [vmem:[%s525 + $0x438] sm:$0xff]
        %v3429 = vld [vmem:[%s525 + $0x440] sm:$0xff]
        %v3430 = vld [vmem:[%s525 + $0x448] sm:$0xff]
        %v3431 = vld [vmem:[%s525 + $0x450] sm:$0xff]
        %v3432 = vld [vmem:[%s525 + $0x458] sm:$0xff]
        %v3433 = vld [vmem:[%s525 + $0x460] sm:$0xff]
        %v3434 = vld [vmem:[%s525 + $0x468] sm:$0xff]
        %v3435 = vld [vmem:[%s525 + $0x470] sm:$0xff]
        %v3436 = vld [vmem:[%s525 + $0x478] sm:$0xff]
        %v3437 = vld [vmem:[%s525 + $0x480] sm:$0xff]
        %v3438 = vld [vmem:[%s525 + $0x488] sm:$0xff]
        %v3439 = vld [vmem:[%s525 + $0x490] sm:$0xff]
        %v3440 = vld [vmem:[%s525 + $0x498] sm:$0xff]
        %v3441 = vld [vmem:[%s525 + $0x4a0] sm:$0xff]
        %v3442 = vld [vmem:[%s525 + $0x4a8] sm:$0xff]
        %v3443 = vld [vmem:[%s525 + $0x4b0] sm:$0xff]
        %v3444 = vld [vmem:[%s525 + $0x4b8] sm:$0xff]
        %v3445 = vld [vmem:[%s525 + $0x4c0] sm:$0xff]
        %v3446 = vld [vmem:[%s525 + $0x4c8] sm:$0xff]
        %v3447 = vld [vmem:[%s525 + $0x4d0] sm:$0xff]
        %v3448 = vld [vmem:[%s525 + $0x4d8] sm:$0xff]
        %v3449 = vld [vmem:[%s525 + $0x4e0] sm:$0xff]
        %v3450 = vld [vmem:[%s525 + $0x4e8] sm:$0xff]
        %v3451 = vld [vmem:[%s525 + $0x4f0] sm:$0xff]
        %v3452 = vld [vmem:[%s525 + $0x4f8] sm:$0xff]
        %v3453 = vld [vmem:[%s525 + $0x500] sm:$0xff]
        %v3454 = vld [vmem:[%s525 + $0x508] sm:$0xff]
        %v3455 = vld [vmem:[%s525 + $0x510] sm:$0xff]
        %v3456 = vld [vmem:[%s525 + $0x518] sm:$0xff]
        %v3457 = vld [vmem:[%s525 + $0x520] sm:$0xff]
        %v3458 = vld [vmem:[%s525 + $0x528] sm:$0xff]
        %v3459 = vld [vmem:[%s525 + $0x530] sm:$0xff]
        %v3460 = vld [vmem:[%s525 + $0x538] sm:$0xff]
        %v3461 = vld [vmem:[%s525 + $0x540] sm:$0xff]
        %v3462 = vld [vmem:[%s525 + $0x548] sm:$0xff]
        %v3463 = vld [vmem:[%s525 + $0x550] sm:$0xff]
        %v3464 = vld [vmem:[%s525 + $0x558] sm:$0xff]
        %v3465 = vld [vmem:[%s525 + $0x560] sm:$0xff]
        %v3466 = vld [vmem:[%s525 + $0x568] sm:$0xff]
        %v3467 = vld [vmem:[%s525 + $0x570] sm:$0xff]
        %v3468 = vld [vmem:[%s525 + $0x578] sm:$0xff]
        %v3469 = vld [vmem:[%s525 + $0x580] sm:$0xff]
        %v3470 = vld [vmem:[%s525 + $0x588] sm:$0xff]
        %v3471 = vld [vmem:[%s525 + $0x590] sm:$0xff]
        %v3472 = vld [vmem:[%s525 + $0x598] sm:$0xff]
        %v3473 = vld [vmem:[%s525 + $0x5a0] sm:$0xff]
        %v3474 = vld [vmem:[%s525 + $0x5a8] sm:$0xff]
        %v3475 = vld [vmem:[%s525 + $0x5b0] sm:$0xff]
        %v3476 = vld [vmem:[%s525 + $0x5b8] sm:$0xff]
        %v3477 = vld [vmem:[%s525 + $0x5c0] sm:$0xff]
        %v3478 = vld [vmem:[%s525 + $0x5c8] sm:$0xff]
        %v3479 = vld [vmem:[%s525 + $0x5d0] sm:$0xff]
        %v3480 = vld [vmem:[%s525 + $0x5d8] sm:$0xff]
        %v3481 = vld [vmem:[%s525 + $0x5e0] sm:$0xff]
        %v3482 = vld [vmem:[%s525 + $0x5e8] sm:$0xff]
        %v3483 = vld [vmem:[%s525 + $0x5f0] sm:$0xff]
        %v3484 = vld [vmem:[%s525 + $0x5f8] sm:$0xff]
        %v3485 = vld [vmem:[%s525 + $0x600] sm:$0xff]
        %v3486 = vld [vmem:[%s525 + $0x608] sm:$0xff]
        %v3487 = vld [vmem:[%s525 + $0x610] sm:$0xff]
        %v3488 = vld [vmem:[%s525 + $0x618] sm:$0xff]
        %v3489 = vld [vmem:[%s525 + $0x620] sm:$0xff]
        %v3490 = vld [vmem:[%s525 + $0x628] sm:$0xff]
        %v3491 = vld [vmem:[%s525 + $0x630] sm:$0xff]
        %v3492 = vld [vmem:[%s525 + $0x638] sm:$0xff]
        %v3493 = vld [vmem:[%s525 + $0x640] sm:$0xff]
        %v3494 = vld [vmem:[%s525 + $0x648] sm:$0xff]
        %v3495 = vld [vmem:[%s525 + $0x650] sm:$0xff]
        %v3496 = vld [vmem:[%s525 + $0x658] sm:$0xff]
        %v3497 = vld [vmem:[%s525 + $0x660] sm:$0xff]
        %v3498 = vld [vmem:[%s525 + $0x668] sm:$0xff]
        %v3499 = vld [vmem:[%s525 + $0x670] sm:$0xff]
        %v3500 = vld [vmem:[%s525 + $0x678] sm:$0xff]
        %v3501 = vld [vmem:[%s525 + $0x680] sm:$0xff]
        %v3502 = vld [vmem:[%s525 + $0x688] sm:$0xff]
        %v3503 = vld [vmem:[%s525 + $0x690] sm:$0xff]
        %v3504 = vld [vmem:[%s525 + $0x698] sm:$0xff]
        %v3505 = vld [vmem:[%s525 + $0x6a0] sm:$0xff]
        %v3506 = vld [vmem:[%s525 + $0x6a8] sm:$0xff]
        %v3507 = vld [vmem:[%s525 + $0x6b0] sm:$0xff]
        %v3508 = vld [vmem:[%s525 + $0x6b8] sm:$0xff]
        %v3509 = vld [vmem:[%s525 + $0x6c0] sm:$0xff]
        %v3510 = vld [vmem:[%s525 + $0x6c8] sm:$0xff]
        %v3511 = vld [vmem:[%s525 + $0x6d0] sm:$0xff]
        %v3512 = vld [vmem:[%s525 + $0x6d8] sm:$0xff]
        %v3513 = vld [vmem:[%s525 + $0x6e0] sm:$0xff]
        %v3514 = vld [vmem:[%s525 + $0x6e8] sm:$0xff]
        %v3515 = vld [vmem:[%s525 + $0x6f0] sm:$0xff]
        %v3516 = vld [vmem:[%s525 + $0x6f8] sm:$0xff]
        %v3517 = vld [vmem:[%s525 + $0x700] sm:$0xff]
        %v3518 = vld [vmem:[%s525 + $0x708] sm:$0xff]
        %v3519 = vld [vmem:[%s525 + $0x710] sm:$0xff]
        %v3520 = vld [vmem:[%s525 + $0x718] sm:$0xff]
        %v3521 = vld [vmem:[%s525 + $0x720] sm:$0xff]
        %v3522 = vld [vmem:[%s525 + $0x728] sm:$0xff]
        %v3523 = vld [vmem:[%s525 + $0x730] sm:$0xff]
        %v3524 = vld [vmem:[%s525 + $0x738] sm:$0xff]
        %v3525 = vld [vmem:[%s525 + $0x740] sm:$0xff]
        %v3526 = vld [vmem:[%s525 + $0x748] sm:$0xff]
        %v3527 = vld [vmem:[%s525 + $0x750] sm:$0xff]
        %v3528 = vld [vmem:[%s525 + $0x758] sm:$0xff]
        %v3529 = vld [vmem:[%s525 + $0x760] sm:$0xff]
        %v3530 = vld [vmem:[%s525 + $0x768] sm:$0xff]
        %v3531 = vld [vmem:[%s525 + $0x770] sm:$0xff]
        %v3532 = vld [vmem:[%s525 + $0x778] sm:$0xff]
        %v3533 = vld [vmem:[%s525 + $0x780] sm:$0xff]
        %v3534 = vld [vmem:[%s525 + $0x788] sm:$0xff]
        %v3535 = vld [vmem:[%s525 + $0x790] sm:$0xff]
        %v3536 = vld [vmem:[%s525 + $0x798] sm:$0xff]
        %v3537 = vld [vmem:[%s525 + $0x7a0] sm:$0xff]
        %v3538 = vld [vmem:[%s525 + $0x7a8] sm:$0xff]
        %v3539 = vld [vmem:[%s525 + $0x7b0] sm:$0xff]
        %v3540 = vld [vmem:[%s525 + $0x7b8] sm:$0xff]
        %v3541 = vld [vmem:[%s525 + $0x7c0] sm:$0xff]
        %v3542 = vld [vmem:[%s525 + $0x7c8] sm:$0xff]
        %v3543 = vld [vmem:[%s525 + $0x7d0] sm:$0xff]
        %v3544 = vld [vmem:[%s525 + $0x7d8] sm:$0xff]
        %v3545 = vld [vmem:[%s525 + $0x7e0] sm:$0xff]
        %v3546 = vld [vmem:[%s525 + $0x7e8] sm:$0xff]
        %v3547 = vld [vmem:[%s525 + $0x7f0] sm:$0xff]
        %v3548 = vld [vmem:[%s525 + $0x7f8] sm:$0xff]
        %v3549 = vld [vmem:[%s525 + $0x800] sm:$0xff]
        %v3550 = vld [vmem:[%s525 + $0x808] sm:$0xff]
        %v3551 = vld [vmem:[%s525 + $0x810] sm:$0xff]
        %v3552 = vld [vmem:[%s525 + $0x818] sm:$0xff]
        %v3553 = vld [vmem:[%s525 + $0x820] sm:$0xff]
        %v3554 = vld [vmem:[%s525 + $0x828] sm:$0xff]
        %v3555 = vld [vmem:[%s525 + $0x830] sm:$0xff]
        %v3556 = vld [vmem:[%s525 + $0x838] sm:$0xff]
        %v3557 = vld [vmem:[%s525 + $0x840] sm:$0xff]
        %v3558 = vld [vmem:[%s525 + $0x848] sm:$0xff]
        %v3559 = vld [vmem:[%s525 + $0x850] sm:$0xff]
        %v3560 = vld [vmem:[%s525 + $0x858] sm:$0xff]
        %v3561 = vld [vmem:[%s525 + $0x860] sm:$0xff]
        %v3562 = vld [vmem:[%s525 + $0x868] sm:$0xff]
        %v3563 = vld [vmem:[%s525 + $0x870] sm:$0xff]
        %v3564 = vld [vmem:[%s525 + $0x878] sm:$0xff]
        %v3565 = vld [vmem:[%s525 + $0x880] sm:$0xff]
        %v3566 = vld [vmem:[%s525 + $0x888] sm:$0xff]
        %v3567 = vld [vmem:[%s525 + $0x890] sm:$0xff]
        %v3568 = vld [vmem:[%s525 + $0x898] sm:$0xff]
        %v3569 = vld [vmem:[%s525 + $0x8a0] sm:$0xff]
        %v3570 = vld [vmem:[%s525 + $0x8a8] sm:$0xff]
        %v3571 = vld [vmem:[%s525 + $0x8b0] sm:$0xff]
        %v3572 = vld [vmem:[%s525 + $0x8b8] sm:$0xff]
        %v3573 = vld [vmem:[%s525 + $0x8c0] sm:$0xff]
        %v3574 = vld [vmem:[%s525 + $0x8c8] sm:$0xff]
        %v3575 = vld [vmem:[%s525 + $0x8d0] sm:$0xff]
        %v3576 = vld [vmem:[%s525 + $0x8d8] sm:$0xff]
        %v3577 = vld [vmem:[%s525 + $0x8e0] sm:$0xff]
        %v3578 = vld [vmem:[%s525 + $0x8e8] sm:$0xff]
        %v3579 = vld [vmem:[%s525 + $0x8f0] sm:$0xff]
        %v3580 = vld [vmem:[%s525 + $0x8f8] sm:$0xff]
        %v3581 = vld [vmem:[%s525 + $0x900] sm:$0xff]
        %v3582 = vld [vmem:[%s525 + $0x908] sm:$0xff]
        %v3583 = vld [vmem:[%s525 + $0x910] sm:$0xff]
        %v3584 = vld [vmem:[%s525 + $0x918] sm:$0xff]
        %v3585 = vld [vmem:[%s525 + $0x920] sm:$0xff]
        %v3586 = vld [vmem:[%s525 + $0x928] sm:$0xff]
        %v3587 = vld [vmem:[%s525 + $0x930] sm:$0xff]
        %v3588 = vld [vmem:[%s525 + $0x938] sm:$0xff]
        %v3589 = vld [vmem:[%s525 + $0x940] sm:$0xff]
        %v3590 = vld [vmem:[%s525 + $0x948] sm:$0xff]
        %v3591 = vld [vmem:[%s525 + $0x950] sm:$0xff]
        %v3592 = vld [vmem:[%s525 + $0x958] sm:$0xff]
        %v3593 = vld [vmem:[%s525 + $0x960] sm:$0xff]
        %v3594 = vld [vmem:[%s525 + $0x968] sm:$0xff]
        %v3595 = vld [vmem:[%s525 + $0x970] sm:$0xff]
        %v3596 = vld [vmem:[%s525 + $0x978] sm:$0xff]
        %v3597 = vld [vmem:[%s525 + $0x980] sm:$0xff]
        %v3598 = vld [vmem:[%s525 + $0x988] sm:$0xff]
        %v3599 = vld [vmem:[%s525 + $0x990] sm:$0xff]
        %v3600 = vld [vmem:[%s525 + $0x998] sm:$0xff]
        %v3601 = vld [vmem:[%s525 + $0x9a0] sm:$0xff]
        %v3602 = vld [vmem:[%s525 + $0x9a8] sm:$0xff]
        %v3603 = vld [vmem:[%s525 + $0x9b0] sm:$0xff]
        %v3604 = vld [vmem:[%s525 + $0x9b8] sm:$0xff]
        %v3605 = vld [vmem:[%s525 + $0x9c0] sm:$0xff]
        %v3606 = vld [vmem:[%s525 + $0x9c8] sm:$0xff]
        %v3607 = vld [vmem:[%s525 + $0x9d0] sm:$0xff]
        %v3608 = vld [vmem:[%s525 + $0x9d8] sm:$0xff]
        %v3609 = vld [vmem:[%s525 + $0x9e0] sm:$0xff]
        %v3610 = vld [vmem:[%s525 + $0x9e8] sm:$0xff]
        %v3611 = vld [vmem:[%s525 + $0x9f0] sm:$0xff]
        %v3612 = vld [vmem:[%s525 + $0x9f8] sm:$0xff]
        %v3613 = vld [vmem:[%s525 + $0xa00] sm:$0xff]
        %v3614 = vld [vmem:[%s525 + $0xa08] sm:$0xff]
        %v3615 = vld [vmem:[%s525 + $0xa10] sm:$0xff]
        %v3616 = vld [vmem:[%s525 + $0xa18] sm:$0xff]
        %v3617 = vld [vmem:[%s525 + $0xa20] sm:$0xff]
        %v3618 = vld [vmem:[%s525 + $0xa28] sm:$0xff]
        %v3619 = vld [vmem:[%s525 + $0xa30] sm:$0xff]
        %v3620 = vld [vmem:[%s525 + $0xa38] sm:$0xff]
        %v3621 = vld [vmem:[%s525 + $0xa40] sm:$0xff]
        %v3622 = vld [vmem:[%s525 + $0xa48] sm:$0xff]
        %v3623 = vld [vmem:[%s525 + $0xa50] sm:$0xff]
        %v3624 = vld [vmem:[%s525 + $0xa58] sm:$0xff]
        %v3625 = vld [vmem:[%s525 + $0xa60] sm:$0xff]
        %v3626 = vld [vmem:[%s525 + $0xa68] sm:$0xff]
        %v3627 = vld [vmem:[%s525 + $0xa70] sm:$0xff]
        %v3628 = vld [vmem:[%s525 + $0xa78] sm:$0xff]
        %v3629 = vld [vmem:[%s525 + $0xa80] sm:$0xff]
        %v3630 = vld [vmem:[%s525 + $0xa88] sm:$0xff]
        %v3631 = vld [vmem:[%s525 + $0xa90] sm:$0xff]
        %v3632 = vld [vmem:[%s525 + $0xa98] sm:$0xff]
        %v3633 = vld [vmem:[%s525 + $0xaa0] sm:$0xff]
        %v3634 = vld [vmem:[%s525 + $0xaa8] sm:$0xff]
        %v3635 = vld [vmem:[%s525 + $0xab0] sm:$0xff]
        %v3636 = vld [vmem:[%s525 + $0xab8] sm:$0xff]
        %v3637 = vld [vmem:[%s525 + $0xac0] sm:$0xff]
        %v3638 = vld [vmem:[%s525 + $0xac8] sm:$0xff]
        %v3639 = vld [vmem:[%s525 + $0xad0] sm:$0xff]
        %v3640 = vld [vmem:[%s525 + $0xad8] sm:$0xff]
        %v3641 = vld [vmem:[%s525 + $0xae0] sm:$0xff]
        %v3642 = vld [vmem:[%s525 + $0xae8] sm:$0xff]
        %v3643 = vld [vmem:[%s525 + $0xaf0] sm:$0xff]
        %v3644 = vld [vmem:[%s525 + $0xaf8] sm:$0xff]
        %v3645 = vld [vmem:[%s525 + $0xb00] sm:$0xff]
        %v3646 = vld [vmem:[%s525 + $0xb08] sm:$0xff]
        %v3647 = vld [vmem:[%s525 + $0xb10] sm:$0xff]
        %v3648 = vld [vmem:[%s525 + $0xb18] sm:$0xff]
        %v3649 = vld [vmem:[%s525 + $0xb20] sm:$0xff]
        %v3650 = vld [vmem:[%s525 + $0xb28] sm:$0xff]
        %v3651 = vld [vmem:[%s525 + $0xb30] sm:$0xff]
        %v3652 = vld [vmem:[%s525 + $0xb38] sm:$0xff]
        %v3653 = vld [vmem:[%s525 + $0xb40] sm:$0xff]
        %v3654 = vld [vmem:[%s525 + $0xb48] sm:$0xff]
        %v3655 = vld [vmem:[%s525 + $0xb50] sm:$0xff]
        %v3656 = vld [vmem:[%s525 + $0xb58] sm:$0xff]
        %v3657 = vld [vmem:[%s525 + $0xb60] sm:$0xff]
        %v3658 = vld [vmem:[%s525 + $0xb68] sm:$0xff]
        %v3659 = vld [vmem:[%s525 + $0xb70] sm:$0xff]
        %v3660 = vld [vmem:[%s525 + $0xb78] sm:$0xff]
        %v3661 = vld [vmem:[%s525 + $0xb80] sm:$0xff]
        %v3662 = vld [vmem:[%s525 + $0xb88] sm:$0xff]
        %v3663 = vld [vmem:[%s525 + $0xb90] sm:$0xff]
        %v3664 = vld [vmem:[%s525 + $0xb98] sm:$0xff]
        %v3665 = vld [vmem:[%s525 + $0xba0] sm:$0xff]
        %v3666 = vld [vmem:[%s525 + $0xba8] sm:$0xff]
        %v3667 = vld [vmem:[%s525 + $0xbb0] sm:$0xff]
        %v3668 = vld [vmem:[%s525 + $0xbb8] sm:$0xff]
        %v3669 = vld [vmem:[%s525 + $0xbc0] sm:$0xff]
        %v3670 = vld [vmem:[%s525 + $0xbc8] sm:$0xff]
        %v3671 = vld [vmem:[%s525 + $0xbd0] sm:$0xff]
        %v3672 = vld [vmem:[%s525 + $0xbd8] sm:$0xff]
        %v3673 = vld [vmem:[%s525 + $0xbe0] sm:$0xff]
        %v3674 = vld [vmem:[%s525 + $0xbe8] sm:$0xff]
        %v3675 = vld [vmem:[%s525 + $0xbf0] sm:$0xff]
        %v3676 = vld [vmem:[%s525 + $0xbf8] sm:$0xff]
        %v3677 = vld [vmem:[%s525 + $0xc00] sm:$0xff]
        %v3678 = vld [vmem:[%s525 + $0xc08] sm:$0xff]
        %v3679 = vld [vmem:[%s525 + $0xc10] sm:$0xff]
        %v3680 = vld [vmem:[%s525 + $0xc18] sm:$0xff]
        %v3681 = vld [vmem:[%s525 + $0xc20] sm:$0xff]
        %v3682 = vld [vmem:[%s525 + $0xc28] sm:$0xff]
        %v3683 = vld [vmem:[%s525 + $0xc30] sm:$0xff]
        %v3684 = vld [vmem:[%s525 + $0xc38] sm:$0xff]
        %v3685 = vld [vmem:[%s525 + $0xc40] sm:$0xff]
        %v3686 = vld [vmem:[%s525 + $0xc48] sm:$0xff]
        %v3687 = vld [vmem:[%s525 + $0xc50] sm:$0xff]
        %v3688 = vld [vmem:[%s525 + $0xc58] sm:$0xff]
        %v3689 = vld [vmem:[%s525 + $0xc60] sm:$0xff]
        %v3690 = vld [vmem:[%s525 + $0xc68] sm:$0xff]
        %v3691 = vld [vmem:[%s525 + $0xc70] sm:$0xff]
        %v3692 = vld [vmem:[%s525 + $0xc78] sm:$0xff]
        %v3693 = vld [vmem:[%s525 + $0xc80] sm:$0xff]
        %v3694 = vld [vmem:[%s525 + $0xc88] sm:$0xff]
        %v3695 = vld [vmem:[%s525 + $0xc90] sm:$0xff]
        %v3696 = vld [vmem:[%s525 + $0xc98] sm:$0xff]
        %v3697 = vld [vmem:[%s525 + $0xca0] sm:$0xff]
        %v3698 = vld [vmem:[%s525 + $0xca8] sm:$0xff]
        %v3699 = vld [vmem:[%s525 + $0xcb0] sm:$0xff]
        %v3700 = vld [vmem:[%s525 + $0xcb8] sm:$0xff]
        %v3701 = vld [vmem:[%s525 + $0xcc0] sm:$0xff]
        %v3702 = vld [vmem:[%s525 + $0xcc8] sm:$0xff]
        %v3703 = vld [vmem:[%s525 + $0xcd0] sm:$0xff]
        %v3704 = vld [vmem:[%s525 + $0xcd8] sm:$0xff]
        %v3705 = vld [vmem:[%s525 + $0xce0] sm:$0xff]
        %v3706 = vld [vmem:[%s525 + $0xce8] sm:$0xff]
        %v3707 = vld [vmem:[%s525 + $0xcf0] sm:$0xff]
        %v3708 = vld [vmem:[%s525 + $0xcf8] sm:$0xff]
        %v3709 = vld [vmem:[%s525 + $0xd00] sm:$0xff]
        %v3710 = vld [vmem:[%s525 + $0xd08] sm:$0xff]
        %v3711 = vld [vmem:[%s525 + $0xd10] sm:$0xff]
        %v3712 = vld [vmem:[%s525 + $0xd18] sm:$0xff]
        %v3713 = vld [vmem:[%s525 + $0xd20] sm:$0xff]
        %v3714 = vld [vmem:[%s525 + $0xd28] sm:$0xff]
        %v3715 = vld [vmem:[%s525 + $0xd30] sm:$0xff]
        %v3716 = vld [vmem:[%s525 + $0xd38] sm:$0xff]
        %v3717 = vld [vmem:[%s525 + $0xd40] sm:$0xff]
        %v3718 = vld [vmem:[%s525 + $0xd48] sm:$0xff]
        %v3719 = vld [vmem:[%s525 + $0xd50] sm:$0xff]
        %v3720 = vld [vmem:[%s525 + $0xd58] sm:$0xff]
        %v3721 = vld [vmem:[%s525 + $0xd60] sm:$0xff]
        %v3722 = vld [vmem:[%s525 + $0xd68] sm:$0xff]
        %v3723 = vld [vmem:[%s525 + $0xd70] sm:$0xff]
        %v3724 = vld [vmem:[%s525 + $0xd78] sm:$0xff]
        %v3725 = vld [vmem:[%s525 + $0xd80] sm:$0xff]
        %v3726 = vld [vmem:[%s525 + $0xd88] sm:$0xff]
        %v3727 = vld [vmem:[%s525 + $0xd90] sm:$0xff]
        %v3728 = vld [vmem:[%s525 + $0xd98] sm:$0xff]
        %v3729 = vld [vmem:[%s525 + $0xda0] sm:$0xff]
        %v3730 = vld [vmem:[%s525 + $0xda8] sm:$0xff]
        %v3731 = vld [vmem:[%s525 + $0xdb0] sm:$0xff]
        %v3732 = vld [vmem:[%s525 + $0xdb8] sm:$0xff]
        %v3733 = vld [vmem:[%s525 + $0xdc0] sm:$0xff]
        %v3734 = vld [vmem:[%s525 + $0xdc8] sm:$0xff]
        %v3735 = vld [vmem:[%s525 + $0xdd0] sm:$0xff]
        %v3736 = vld [vmem:[%s525 + $0xdd8] sm:$0xff]
        %v3737 = vld [vmem:[%s525 + $0xde0] sm:$0xff]
        %v3738 = vld [vmem:[%s525 + $0xde8] sm:$0xff]
        %v3739 = vld [vmem:[%s525 + $0xdf0] sm:$0xff]
        %v3740 = vld [vmem:[%s525 + $0xdf8] sm:$0xff]
        %v3741 = vld [vmem:[%s525 + $0xe00] sm:$0xff]
        %v3742 = vld [vmem:[%s525 + $0xe08] sm:$0xff]
        %v3743 = vld [vmem:[%s525 + $0xe10] sm:$0xff]
        %v3744 = vld [vmem:[%s525 + $0xe18] sm:$0xff]
        %v3745 = vld [vmem:[%s525 + $0xe20] sm:$0xff]
        %v3746 = vld [vmem:[%s525 + $0xe28] sm:$0xff]
        %v3747 = vld [vmem:[%s525 + $0xe30] sm:$0xff]
        %v3748 = vld [vmem:[%s525 + $0xe38] sm:$0xff]
        %v3749 = vld [vmem:[%s525 + $0xe40] sm:$0xff]
        %v3750 = vld [vmem:[%s525 + $0xe48] sm:$0xff]
        %v3751 = vld [vmem:[%s525 + $0xe50] sm:$0xff]
        %v3752 = vld [vmem:[%s525 + $0xe58] sm:$0xff]
        %v3753 = vld [vmem:[%s525 + $0xe60] sm:$0xff]
        %v3754 = vld [vmem:[%s525 + $0xe68] sm:$0xff]
        %v3755 = vld [vmem:[%s525 + $0xe70] sm:$0xff]
        %v3756 = vld [vmem:[%s525 + $0xe78] sm:$0xff]
        %v3757 = vld [vmem:[%s525 + $0xe80] sm:$0xff]
        %v3758 = vld [vmem:[%s525 + $0xe88] sm:$0xff]
        %v3759 = vld [vmem:[%s525 + $0xe90] sm:$0xff]
        %v3760 = vld [vmem:[%s525 + $0xe98] sm:$0xff]
        %v3761 = vld [vmem:[%s525 + $0xea0] sm:$0xff]
        %v3762 = vld [vmem:[%s525 + $0xea8] sm:$0xff]
        %v3763 = vld [vmem:[%s525 + $0xeb0] sm:$0xff]
        %v3764 = vld [vmem:[%s525 + $0xeb8] sm:$0xff]
        %v3765 = vld [vmem:[%s525 + $0xec0] sm:$0xff]
        %v3766 = vld [vmem:[%s525 + $0xec8] sm:$0xff]
        %v3767 = vld [vmem:[%s525 + $0xed0] sm:$0xff]
        %v3768 = vld [vmem:[%s525 + $0xed8] sm:$0xff]
        %v3769 = vld [vmem:[%s525 + $0xee0] sm:$0xff]
        %v3770 = vld [vmem:[%s525 + $0xee8] sm:$0xff]
        %v3771 = vld [vmem:[%s525 + $0xef0] sm:$0xff]
        %v3772 = vld [vmem:[%s525 + $0xef8] sm:$0xff]
        %v3773 = vld [vmem:[%s525 + $0xf00] sm:$0xff]
        %v3774 = vld [vmem:[%s525 + $0xf08] sm:$0xff]
        %v3775 = vld [vmem:[%s525 + $0xf10] sm:$0xff]
        %v3776 = vld [vmem:[%s525 + $0xf18] sm:$0xff]
        %v3777 = vld [vmem:[%s525 + $0xf20] sm:$0xff]
        %v3778 = vld [vmem:[%s525 + $0xf28] sm:$0xff]
        %v3779 = vld [vmem:[%s525 + $0xf30] sm:$0xff]
        %v3780 = vld [vmem:[%s525 + $0xf38] sm:$0xff]
        %v3781 = vld [vmem:[%s525 + $0xf40] sm:$0xff]
        %v3782 = vld [vmem:[%s525 + $0xf48] sm:$0xff]
        %v3783 = vld [vmem:[%s525 + $0xf50] sm:$0xff]
        %v3784 = vld [vmem:[%s525 + $0xf58] sm:$0xff]
        %v3785 = vld [vmem:[%s525 + $0xf60] sm:$0xff]
        %v3786 = vld [vmem:[%s525 + $0xf68] sm:$0xff]
        %v3787 = vld [vmem:[%s525 + $0xf70] sm:$0xff]
        %v3788 = vld [vmem:[%s525 + $0xf78] sm:$0xff]
        %v3789 = vld [vmem:[%s525 + $0xf80] sm:$0xff]
        %v3790 = vld [vmem:[%s525 + $0xf88] sm:$0xff]
        %v3791 = vld [vmem:[%s525 + $0xf90] sm:$0xff]
        %v3792 = vld [vmem:[%s525 + $0xf98] sm:$0xff]
        %v3793 = vld [vmem:[%s525 + $0xfa0] sm:$0xff]
        %v3794 = vld [vmem:[%s525 + $0xfa8] sm:$0xff]
        %v3795 = vld [vmem:[%s525 + $0xfb0] sm:$0xff]
        %v3796 = vld [vmem:[%s525 + $0xfb8] sm:$0xff]
        %v3797 = vld [vmem:[%s525 + $0xfc0] sm:$0xff]
        %v3798 = vld [vmem:[%s525 + $0xfc8] sm:$0xff]
        %v3799 = vld [vmem:[%s525 + $0xfd0] sm:$0xff]
        %v3800 = vld [vmem:[%s525 + $0xfd8] sm:$0xff]
        %v3801 = vld [vmem:[%s525 + $0xfe0] sm:$0xff]
        %v3802 = vld [vmem:[%s525 + $0xfe8] sm:$0xff]
        %v3803 = vld [vmem:[%s525 + $0xff0] sm:$0xff]
        %v3804 = vld [vmem:[%s525 + $0xff8] sm:$0xff]
        %v3805 = vld [vmem:[%s525 + $0x1000] sm:$0xff]
        %v3806 = vld [vmem:[%s525 + $0x1008] sm:$0xff]
        %v3807 = vld [vmem:[%s525 + $0x1010] sm:$0xff]
        %v3808 = vld [vmem:[%s525 + $0x1018] sm:$0xff]
        %v3809 = vld [vmem:[%s525 + $0x1020] sm:$0xff]
        %v3810 = vld [vmem:[%s525 + $0x1028] sm:$0xff]
        %v3811 = vld [vmem:[%s525 + $0x1030] sm:$0xff]
        %v3812 = vld [vmem:[%s525 + $0x1038] sm:$0xff]
        %v3813 = vld [vmem:[%s525 + $0x1040] sm:$0xff]
        %v3814 = vld [vmem:[%s525 + $0x1048] sm:$0xff]
        %v3815 = vld [vmem:[%s525 + $0x1050] sm:$0xff]
        %v3816 = vld [vmem:[%s525 + $0x1058] sm:$0xff]
        %v3817 = vld [vmem:[%s525 + $0x1060] sm:$0xff]
        %v3818 = vld [vmem:[%s525 + $0x1068] sm:$0xff]
        %v3819 = vld [vmem:[%s525 + $0x1070] sm:$0xff]
        %v3820 = vld [vmem:[%s525 + $0x1078] sm:$0xff]
        %v3821 = vld [vmem:[%s525 + $0x1080] sm:$0xff]
        %v3822 = vld [vmem:[%s525 + $0x1088] sm:$0xff]
        %v3823 = vld [vmem:[%s525 + $0x1090] sm:$0xff]
        %v3824 = vld [vmem:[%s525 + $0x1098] sm:$0xff]
        %v3825 = vld [vmem:[%s525 + $0x10a0] sm:$0xff]
        %v3826 = vld [vmem:[%s525 + $0x10a8] sm:$0xff]
        %v3827 = vld [vmem:[%s525 + $0x10b0] sm:$0xff]
        %v3828 = vld [vmem:[%s525 + $0x10b8] sm:$0xff]
        %v3829 = vld [vmem:[%s525 + $0x10c0] sm:$0xff]
        %v3830 = vld [vmem:[%s525 + $0x10c8] sm:$0xff]
        %v3831 = vld [vmem:[%s525 + $0x10d0] sm:$0xff]
        %v3832 = vld [vmem:[%s525 + $0x10d8] sm:$0xff]
        %v3833 = vld [vmem:[%s525 + $0x10e0] sm:$0xff]
        %v3834 = vld [vmem:[%s525 + $0x10e8] sm:$0xff]
        %v3835 = vld [vmem:[%s525 + $0x10f0] sm:$0xff]
        %v3836 = vld [vmem:[%s525 + $0x10f8] sm:$0xff]
        %v3837 = vld [vmem:[%s525 + $0x1100] sm:$0xff]
        %v3838 = vld [vmem:[%s525 + $0x1108] sm:$0xff]
        %v3839 = vld [vmem:[%s525 + $0x1110] sm:$0xff]
        %v3840 = vld [vmem:[%s525 + $0x1118] sm:$0xff]
        %v3841 = vld [vmem:[%s525 + $0x1120] sm:$0xff]
        %v3842 = vld [vmem:[%s525 + $0x1128] sm:$0xff]
        %v3843 = vld [vmem:[%s525 + $0x1130] sm:$0xff]
        %v3844 = vld [vmem:[%s525 + $0x1138] sm:$0xff]
        %v3845 = vld [vmem:[%s525 + $0x1140] sm:$0xff]
        %v3846 = vld [vmem:[%s525 + $0x1148] sm:$0xff]
        %v3847 = vld [vmem:[%s525 + $0x1150] sm:$0xff]
        %v3848 = vld [vmem:[%s525 + $0x1158] sm:$0xff]
        %v3849 = vld [vmem:[%s525 + $0x1160] sm:$0xff]
        %v3850 = vld [vmem:[%s525 + $0x1168] sm:$0xff]
        %v3851 = vld [vmem:[%s525 + $0x1170] sm:$0xff]
        %v3852 = vld [vmem:[%s525 + $0x1178] sm:$0xff]
        %v3853 = vld [vmem:[%s525 + $0x1180] sm:$0xff]
        %v3854 = vld [vmem:[%s525 + $0x1188] sm:$0xff]
        %v3855 = vld [vmem:[%s525 + $0x1190] sm:$0xff]
        %v3856 = vld [vmem:[%s525 + $0x1198] sm:$0xff]
        %v3857 = vld [vmem:[%s525 + $0x11a0] sm:$0xff]
        %v3858 = vld [vmem:[%s525 + $0x11a8] sm:$0xff]
        %v3859 = vld [vmem:[%s525 + $0x11b0] sm:$0xff]
        %v3860 = vld [vmem:[%s525 + $0x11b8] sm:$0xff]
        %v3861 = vld [vmem:[%s525 + $0x11c0] sm:$0xff]
        %v3862 = vld [vmem:[%s525 + $0x11c8] sm:$0xff]
        %v3863 = vld [vmem:[%s525 + $0x11d0] sm:$0xff]
        %v3864 = vld [vmem:[%s525 + $0x11d8] sm:$0xff]
        %v3865 = vld [vmem:[%s525 + $0x11e0] sm:$0xff]
        %v3866 = vld [vmem:[%s525 + $0x11e8] sm:$0xff]
        %v3867 = vld [vmem:[%s525 + $0x11f0] sm:$0xff]
        %v3868 = vld [vmem:[%s525 + $0x11f8] sm:$0xff]
        %v3869 = vld [vmem:[%s525 + $0x1200] sm:$0xff]
        %v3870 = vld [vmem:[%s525 + $0x1208] sm:$0xff]
        %v3871 = vld [vmem:[%s525 + $0x1210] sm:$0xff]
        %v3872 = vld [vmem:[%s525 + $0x1218] sm:$0xff]
        %v3873 = vld [vmem:[%s525 + $0x1220] sm:$0xff]
        %v3874 = vld [vmem:[%s525 + $0x1228] sm:$0xff]
        %v3875 = vld [vmem:[%s525 + $0x1230] sm:$0xff]
        %v3876 = vld [vmem:[%s525 + $0x1238] sm:$0xff]
        %v3877 = vld [vmem:[%s525 + $0x1240] sm:$0xff]
        %v3878 = vld [vmem:[%s525 + $0x1248] sm:$0xff]
        %v3879 = vld [vmem:[%s525 + $0x1250] sm:$0xff]
        %v3880 = vld [vmem:[%s525 + $0x1258] sm:$0xff]
        %v3881 = vld [vmem:[%s525 + $0x1260] sm:$0xff]
        %v3882 = vld [vmem:[%s525 + $0x1268] sm:$0xff]
        %v3883 = vld [vmem:[%s525 + $0x1270] sm:$0xff]
        %v3884 = vld [vmem:[%s525 + $0x1278] sm:$0xff]
        %v3885 = vld [vmem:[%s525 + $0x1280] sm:$0xff]
        %v3886 = vld [vmem:[%s525 + $0x1288] sm:$0xff]
        %v3887 = vld [vmem:[%s525 + $0x1290] sm:$0xff]
        %v3888 = vld [vmem:[%s525 + $0x1298] sm:$0xff]
        %v3889 = vld [vmem:[%s525 + $0x12a0] sm:$0xff]
        %v3890 = vld [vmem:[%s525 + $0x12a8] sm:$0xff]
        %v3891 = vld [vmem:[%s525 + $0x12b0] sm:$0xff]
        %v3892 = vld [vmem:[%s525 + $0x12b8] sm:$0xff]
        %v3893 = vld [vmem:[%s525 + $0x12c0] sm:$0xff]
        %v3894 = vld [vmem:[%s525 + $0x12c8] sm:$0xff]
        %v3895 = vld [vmem:[%s525 + $0x12d0] sm:$0xff]
        %v3896 = vld [vmem:[%s525 + $0x12d8] sm:$0xff]
        %v3897 = vld [vmem:[%s525 + $0x12e0] sm:$0xff]
        %v3898 = vld [vmem:[%s525 + $0x12e8] sm:$0xff]
        %v3899 = vld [vmem:[%s525 + $0x12f0] sm:$0xff]
        %v3900 = vld [vmem:[%s525 + $0x12f8] sm:$0xff]
        %v3901 = vld [vmem:[%s525 + $0x1300] sm:$0xff]
        %v3902 = vld [vmem:[%s525 + $0x1308] sm:$0xff]
        %v3903 = vld [vmem:[%s525 + $0x1310] sm:$0xff]
        %v3904 = vld [vmem:[%s525 + $0x1318] sm:$0xff]
        %v3905 = vld [vmem:[%s525 + $0x1320] sm:$0xff]
        %v3906 = vld [vmem:[%s525 + $0x1328] sm:$0xff]
        %v3907 = vld [vmem:[%s525 + $0x1330] sm:$0xff]
        %v3908 = vld [vmem:[%s525 + $0x1338] sm:$0xff]
        %v3909 = vld [vmem:[%s525 + $0x1340] sm:$0xff]
        %v3910 = vld [vmem:[%s525 + $0x1348] sm:$0xff]
        %v3911 = vld [vmem:[%s525 + $0x1350] sm:$0xff]
        %v3912 = vld [vmem:[%s525 + $0x1358] sm:$0xff]
        %v3913 = vld [vmem:[%s525 + $0x1360] sm:$0xff]
        %v3914 = vld [vmem:[%s525 + $0x1368] sm:$0xff]
        %v3915 = vld [vmem:[%s525 + $0x1370] sm:$0xff]
        %v3916 = vld [vmem:[%s525 + $0x1378] sm:$0xff]
        %v3917 = vld [vmem:[%s525 + $0x1380] sm:$0xff]
        %v3918 = vld [vmem:[%s525 + $0x1388] sm:$0xff]
        %v3919 = vld [vmem:[%s525 + $0x1390] sm:$0xff]
        %v3920 = vld [vmem:[%s525 + $0x1398] sm:$0xff]
        %v3921 = vld [vmem:[%s525 + $0x13a0] sm:$0xff]
        %v3922 = vld [vmem:[%s525 + $0x13a8] sm:$0xff]
        %v3923 = vld [vmem:[%s525 + $0x13b0] sm:$0xff]
        %v3924 = vld [vmem:[%s525 + $0x13b8] sm:$0xff]
        %v3925 = vld [vmem:[%s525 + $0x13c0] sm:$0xff]
        %v3926 = vld [vmem:[%s525 + $0x13c8] sm:$0xff]
        %v3927 = vld [vmem:[%s525 + $0x13d0] sm:$0xff]
        %v3928 = vld [vmem:[%s525 + $0x13d8] sm:$0xff]
        %v3929 = vld [vmem:[%s525 + $0x13e0] sm:$0xff]
        %v3930 = vld [vmem:[%s525 + $0x13e8] sm:$0xff]
        %v3931 = vld [vmem:[%s525 + $0x13f0] sm:$0xff]
        %v3932 = vld [vmem:[%s525 + $0x13f8] sm:$0xff]
        %v3933 = vld [vmem:[%s525 + $0x1400] sm:$0xff]
        %v3934 = vld [vmem:[%s525 + $0x1408] sm:$0xff]
        %v3935 = vld [vmem:[%s525 + $0x1410] sm:$0xff]
        %v3936 = vld [vmem:[%s525 + $0x1418] sm:$0xff]
        %v3937 = vld [vmem:[%s525 + $0x1420] sm:$0xff]
        %v3938 = vld [vmem:[%s525 + $0x1428] sm:$0xff]
        %v3939 = vld [vmem:[%s525 + $0x1430] sm:$0xff]
        %v3940 = vld [vmem:[%s525 + $0x1438] sm:$0xff]
        %v3941 = vld [vmem:[%s525 + $0x1440] sm:$0xff]
        %v3942 = vld [vmem:[%s525 + $0x1448] sm:$0xff]
        %v3943 = vld [vmem:[%s525 + $0x1450] sm:$0xff]
        %v3944 = vld [vmem:[%s525 + $0x1458] sm:$0xff]
        %v3945 = vld [vmem:[%s525 + $0x1460] sm:$0xff]
        %v3946 = vld [vmem:[%s525 + $0x1468] sm:$0xff]
        %v3947 = vld [vmem:[%s525 + $0x1470] sm:$0xff]
        %v3948 = vld [vmem:[%s525 + $0x1478] sm:$0xff]
        %v3949 = vld [vmem:[%s525 + $0x1480] sm:$0xff]
        %v3950 = vld [vmem:[%s525 + $0x1488] sm:$0xff]
        %v3951 = vld [vmem:[%s525 + $0x1490] sm:$0xff]
        %v3952 = vld [vmem:[%s525 + $0x1498] sm:$0xff]
        %v3953 = vld [vmem:[%s525 + $0x14a0] sm:$0xff]
        %v3954 = vld [vmem:[%s525 + $0x14a8] sm:$0xff]
        %v3955 = vld [vmem:[%s525 + $0x14b0] sm:$0xff]
        %v3956 = vld [vmem:[%s525 + $0x14b8] sm:$0xff]
        %v3957 = vld [vmem:[%s525 + $0x14c0] sm:$0xff]
        %v3958 = vld [vmem:[%s525 + $0x14c8] sm:$0xff]
        %v3959 = vld [vmem:[%s525 + $0x14d0] sm:$0xff]
        %v3960 = vld [vmem:[%s525 + $0x14d8] sm:$0xff]
        %v3961 = vld [vmem:[%s525 + $0x14e0] sm:$0xff]
        %v3962 = vld [vmem:[%s525 + $0x14e8] sm:$0xff]
        %v3963 = vld [vmem:[%s525 + $0x14f0] sm:$0xff]
        %v3964 = vld [vmem:[%s525 + $0x14f8] sm:$0xff]
        %v3965 = vld [vmem:[%s525 + $0x1500] sm:$0xff]
        %v3966 = vld [vmem:[%s525 + $0x1508] sm:$0xff]
        %v3967 = vld [vmem:[%s525 + $0x1510] sm:$0xff]
        %v3968 = vld [vmem:[%s525 + $0x1518] sm:$0xff]
        %v3969 = vld [vmem:[%s525 + $0x1520] sm:$0xff]
        %v3970 = vld [vmem:[%s525 + $0x1528] sm:$0xff]
        %v3971 = vld [vmem:[%s525 + $0x1530] sm:$0xff]
        %v3972 = vld [vmem:[%s525 + $0x1538] sm:$0xff]
        %v3973 = vld [vmem:[%s525 + $0x1540] sm:$0xff]
        %v3974 = vld [vmem:[%s525 + $0x1548] sm:$0xff]
        %v3975 = vld [vmem:[%s525 + $0x1550] sm:$0xff]
        %v3976 = vld [vmem:[%s525 + $0x1558] sm:$0xff]
        %v3977 = vld [vmem:[%s525 + $0x1560] sm:$0xff]
        %v3978 = vld [vmem:[%s525 + $0x1568] sm:$0xff]
        %v3979 = vld [vmem:[%s525 + $0x1570] sm:$0xff]
        %v3980 = vld [vmem:[%s525 + $0x1578] sm:$0xff]
        %v3981 = vld [vmem:[%s525 + $0x1580] sm:$0xff]
        %v3982 = vld [vmem:[%s525 + $0x1588] sm:$0xff]
        %v3983 = vld [vmem:[%s525 + $0x1590] sm:$0xff]
        %v3984 = vld [vmem:[%s525 + $0x1598] sm:$0xff]
        %v3985 = vld [vmem:[%s525 + $0x15a0] sm:$0xff]
        %v3986 = vld [vmem:[%s525 + $0x15a8] sm:$0xff]
        %v3987 = vld [vmem:[%s525 + $0x15b0] sm:$0xff]
        %v3988 = vld [vmem:[%s525 + $0x15b8] sm:$0xff]
        %v3989 = vld [vmem:[%s525 + $0x15c0] sm:$0xff]
        %v3990 = vld [vmem:[%s525 + $0x15c8] sm:$0xff]
        %v3991 = vld [vmem:[%s525 + $0x15d0] sm:$0xff]
        %v3992 = vld [vmem:[%s525 + $0x15d8] sm:$0xff]
        %v3993 = vld [vmem:[%s525 + $0x15e0] sm:$0xff]
        %v3994 = vld [vmem:[%s525 + $0x15e8] sm:$0xff]
        %v3995 = vld [vmem:[%s525 + $0x15f0] sm:$0xff]
        %v3996 = vld [vmem:[%s525 + $0x15f8] sm:$0xff]
        %v3997 = vld [vmem:[%s525 + $0x1600] sm:$0xff]
        %v3998 = vld [vmem:[%s525 + $0x1608] sm:$0xff]
        %v3999 = vld [vmem:[%s525 + $0x1610] sm:$0xff]
        %v4000 = vld [vmem:[%s525 + $0x1618] sm:$0xff]
        %v4001 = vld [vmem:[%s525 + $0x1620] sm:$0xff]
        %v4002 = vld [vmem:[%s525 + $0x1628] sm:$0xff]
        %v4003 = vld [vmem:[%s525 + $0x1630] sm:$0xff]
        %v4004 = vld [vmem:[%s525 + $0x1638] sm:$0xff]
        %v4005 = vld [vmem:[%s525 + $0x1640] sm:$0xff]
        %v4006 = vld [vmem:[%s525 + $0x1648] sm:$0xff]
        %v4007 = vld [vmem:[%s525 + $0x1650] sm:$0xff]
        %v4008 = vld [vmem:[%s525 + $0x1658] sm:$0xff]
        %v4009 = vld [vmem:[%s525 + $0x1660] sm:$0xff]
        %v4010 = vld [vmem:[%s525 + $0x1668] sm:$0xff]
        %v4011 = vld [vmem:[%s525 + $0x1670] sm:$0xff]
        %v4012 = vld [vmem:[%s525 + $0x1678] sm:$0xff]
        %v4013 = vld [vmem:[%s525 + $0x1680] sm:$0xff]
        %v4014 = vld [vmem:[%s525 + $0x1688] sm:$0xff]
        %v4015 = vld [vmem:[%s525 + $0x1690] sm:$0xff]
        %v4016 = vld [vmem:[%s525 + $0x1698] sm:$0xff]
        %v4017 = vld [vmem:[%s525 + $0x16a0] sm:$0xff]
        %v4018 = vld [vmem:[%s525 + $0x16a8] sm:$0xff]
        %v4019 = vld [vmem:[%s525 + $0x16b0] sm:$0xff]
        %v4020 = vld [vmem:[%s525 + $0x16b8] sm:$0xff]
        %v4021 = vld [vmem:[%s525 + $0x16c0] sm:$0xff]
        %v4022 = vld [vmem:[%s525 + $0x16c8] sm:$0xff]
        %v4023 = vld [vmem:[%s525 + $0x16d0] sm:$0xff]
        %v4024 = vld [vmem:[%s525 + $0x16d8] sm:$0xff]
        %v4025 = vld [vmem:[%s525 + $0x16e0] sm:$0xff]
        %v4026 = vld [vmem:[%s525 + $0x16e8] sm:$0xff]
        %v4027 = vld [vmem:[%s525 + $0x16f0] sm:$0xff]
        %v4028 = vld [vmem:[%s525 + $0x16f8] sm:$0xff]
        %v4029 = vld [vmem:[%s525 + $0x1700] sm:$0xff]
        %v4030 = vld [vmem:[%s525 + $0x1708] sm:$0xff]
        %v4031 = vld [vmem:[%s525 + $0x1710] sm:$0xff]
        %v4032 = vld [vmem:[%s525 + $0x1718] sm:$0xff]
        %v4033 = vld [vmem:[%s525 + $0x1720] sm:$0xff]
        %v4034 = vld [vmem:[%s525 + $0x1728] sm:$0xff]
        %v4035 = vld [vmem:[%s525 + $0x1730] sm:$0xff]
        %v4036 = vld [vmem:[%s525 + $0x1738] sm:$0xff]
        %v4037 = vld [vmem:[%s525 + $0x1740] sm:$0xff]
        %v4038 = vld [vmem:[%s525 + $0x1748] sm:$0xff]
        %v4039 = vld [vmem:[%s525 + $0x1750] sm:$0xff]
        %v4040 = vld [vmem:[%s525 + $0x1758] sm:$0xff]
        %v4041 = vld [vmem:[%s525 + $0x1760] sm:$0xff]
        %v4042 = vld [vmem:[%s525 + $0x1768] sm:$0xff]
        %v4043 = vld [vmem:[%s525 + $0x1770] sm:$0xff]
        %v4044 = vld [vmem:[%s525 + $0x1778] sm:$0xff]
        %v4045 = vld [vmem:[%s525 + $0x1780] sm:$0xff]
        %v4046 = vld [vmem:[%s525 + $0x1788] sm:$0xff]
        %v4047 = vld [vmem:[%s525 + $0x1790] sm:$0xff]
        %v4048 = vld [vmem:[%s525 + $0x1798] sm:$0xff]
        %v4049 = vld [vmem:[%s525 + $0x17a0] sm:$0xff]
        %v4050 = vld [vmem:[%s525 + $0x17a8] sm:$0xff]
        %v4051 = vld [vmem:[%s525 + $0x17b0] sm:$0xff]
        %v4052 = vld [vmem:[%s525 + $0x17b8] sm:$0xff]
        %v4053 = vld [vmem:[%s525 + $0x17c0] sm:$0xff]
        %v4054 = vld [vmem:[%s525 + $0x17c8] sm:$0xff]
        %v4055 = vld [vmem:[%s525 + $0x17d0] sm:$0xff]
        %v4056 = vld [vmem:[%s525 + $0x17d8] sm:$0xff]
        %v4057 = vld [vmem:[%s525 + $0x17e0] sm:$0xff]
        %v4058 = vld [vmem:[%s525 + $0x17e8] sm:$0xff]
        %v4059 = vld [vmem:[%s525 + $0x17f0] sm:$0xff]
        %v4060 = vld [vmem:[%s525 + $0x17f8] sm:$0xff]
        %v4061 = vld [vmem:[%s525 + $0x1800] sm:$0xff]
        %v4062 = vld [vmem:[%s525 + $0x1808] sm:$0xff]
        %v4063 = vld [vmem:[%s525 + $0x1810] sm:$0xff]
        %v4064 = vld [vmem:[%s525 + $0x1818] sm:$0xff]
        %v4065 = vld [vmem:[%s525 + $0x1820] sm:$0xff]
        %v4066 = vld [vmem:[%s525 + $0x1828] sm:$0xff]
        %v4067 = vld [vmem:[%s525 + $0x1830] sm:$0xff]
        %v4068 = vld [vmem:[%s525 + $0x1838] sm:$0xff]
        %v4069 = vld [vmem:[%s525 + $0x1840] sm:$0xff]
        %v4070 = vld [vmem:[%s525 + $0x1848] sm:$0xff]
        %v4071 = vld [vmem:[%s525 + $0x1850] sm:$0xff]
        %v4072 = vld [vmem:[%s525 + $0x1858] sm:$0xff]
        %v4073 = vld [vmem:[%s525 + $0x1860] sm:$0xff]
        %v4074 = vld [vmem:[%s525 + $0x1868] sm:$0xff]
        %v4075 = vld [vmem:[%s525 + $0x1870] sm:$0xff]
        %v4076 = vld [vmem:[%s525 + $0x1878] sm:$0xff]
        %v4077 = vld [vmem:[%s525 + $0x1880] sm:$0xff]
        %v4078 = vld [vmem:[%s525 + $0x1888] sm:$0xff]
        %v4079 = vld [vmem:[%s525 + $0x1890] sm:$0xff]
        %v4080 = vld [vmem:[%s525 + $0x1898] sm:$0xff]
        %v4081 = vld [vmem:[%s525 + $0x18a0] sm:$0xff]
        %v4082 = vld [vmem:[%s525 + $0x18a8] sm:$0xff]
        %v4083 = vld [vmem:[%s525 + $0x18b0] sm:$0xff]
        %v4084 = vld [vmem:[%s525 + $0x18b8] sm:$0xff]
        %v4085 = vld [vmem:[%s525 + $0x18c0] sm:$0xff]
        %v4086 = vld [vmem:[%s525 + $0x18c8] sm:$0xff]
        %v4087 = vld [vmem:[%s525 + $0x18d0] sm:$0xff]
        %v4088 = vld [vmem:[%s525 + $0x18d8] sm:$0xff]
        %v4089 = vld [vmem:[%s525 + $0x18e0] sm:$0xff]
        %v4090 = vld [vmem:[%s525 + $0x18e8] sm:$0xff]
        %v4091 = vld [vmem:[%s525 + $0x18f0] sm:$0xff]
        %v4092 = vld [vmem:[%s525 + $0x18f8] sm:$0xff]
        %v4093 = vld [vmem:[%s525 + $0x1900] sm:$0xff]
        %v4094 = vld [vmem:[%s525 + $0x1908] sm:$0xff]
        %v4095 = vld [vmem:[%s525 + $0x1910] sm:$0xff]
        %v4096 = vld [vmem:[%s525 + $0x1918] sm:$0xff]
        %v4097 = vld [vmem:[%s525 + $0x1920] sm:$0xff]
        %v4098 = vld [vmem:[%s525 + $0x1928] sm:$0xff]
        %v4099 = vld [vmem:[%s525 + $0x1930] sm:$0xff]
        %v4100 = vld [vmem:[%s525 + $0x1938] sm:$0xff]
        %v4101 = vld [vmem:[%s525 + $0x1940] sm:$0xff]
        %v4102 = vld [vmem:[%s525 + $0x1948] sm:$0xff]
        %v4103 = vld [vmem:[%s525 + $0x1950] sm:$0xff]
        %v4104 = vld [vmem:[%s525 + $0x1958] sm:$0xff]
        %v4105 = vld [vmem:[%s525 + $0x1960] sm:$0xff]
        %v4106 = vld [vmem:[%s525 + $0x1968] sm:$0xff]
        %v4107 = vld [vmem:[%s525 + $0x1970] sm:$0xff]
        %v4108 = vld [vmem:[%s525 + $0x1978] sm:$0xff]
        %v4109 = vld [vmem:[%s525 + $0x1980] sm:$0xff]
        %v4110 = vld [vmem:[%s525 + $0x1988] sm:$0xff]
        %v4111 = vld [vmem:[%s525 + $0x1990] sm:$0xff]
        %v4112 = vld [vmem:[%s525 + $0x1998] sm:$0xff]
        %v4113 = vld [vmem:[%s525 + $0x19a0] sm:$0xff]
        %v4114 = vld [vmem:[%s525 + $0x19a8] sm:$0xff]
        %v4115 = vld [vmem:[%s525 + $0x19b0] sm:$0xff]
        %v4116 = vld [vmem:[%s525 + $0x19b8] sm:$0xff]
        %v4117 = vld [vmem:[%s525 + $0x19c0] sm:$0xff]
        %v4118 = vld [vmem:[%s525 + $0x19c8] sm:$0xff]
        %v4119 = vld [vmem:[%s525 + $0x19d0] sm:$0xff]
        %v4120 = vld [vmem:[%s525 + $0x19d8] sm:$0xff]
        %v4121 = vld [vmem:[%s525 + $0x19e0] sm:$0xff]
        %v4122 = vld [vmem:[%s525 + $0x19e8] sm:$0xff]
        %v4123 = vld [vmem:[%s525 + $0x19f0] sm:$0xff]
        %v4124 = vld [vmem:[%s525 + $0x19f8] sm:$0xff]
        %v4125 = vld [vmem:[%s525 + $0x1a00] sm:$0xff]
        %v4126 = vld [vmem:[%s525 + $0x1a08] sm:$0xff]
        %v4127 = vld [vmem:[%s525 + $0x1a10] sm:$0xff]
        %v4128 = vld [vmem:[%s525 + $0x1a18] sm:$0xff]
        %v4129 = vld [vmem:[%s525 + $0x1a20] sm:$0xff]
        %v4130 = vld [vmem:[%s525 + $0x1a28] sm:$0xff]
        %v4131 = vld [vmem:[%s525 + $0x1a30] sm:$0xff]
        %v4132 = vld [vmem:[%s525 + $0x1a38] sm:$0xff]
        %v4133 = vld [vmem:[%s525 + $0x1a40] sm:$0xff]
        %v4134 = vld [vmem:[%s525 + $0x1a48] sm:$0xff]
        %v4135 = vld [vmem:[%s525 + $0x1a50] sm:$0xff]
        %v4136 = vld [vmem:[%s525 + $0x1a58] sm:$0xff]
        %v4137 = vld [vmem:[%s525 + $0x1a60] sm:$0xff]
        %v4138 = vld [vmem:[%s525 + $0x1a68] sm:$0xff]
        %v4139 = vld [vmem:[%s525 + $0x1a70] sm:$0xff]
        %v4140 = vld [vmem:[%s525 + $0x1a78] sm:$0xff]
        %v4141 = vld [vmem:[%s525 + $0x1a80] sm:$0xff]
        %v4142 = vld [vmem:[%s525 + $0x1a88] sm:$0xff]
        %v4143 = vld [vmem:[%s525 + $0x1a90] sm:$0xff]
        %v4144 = vld [vmem:[%s525 + $0x1a98] sm:$0xff]
        %v4145 = vld [vmem:[%s525 + $0x1aa0] sm:$0xff]
        %v4146 = vld [vmem:[%s525 + $0x1aa8] sm:$0xff]
        %v4147 = vld [vmem:[%s525 + $0x1ab0] sm:$0xff]
        %v4148 = vld [vmem:[%s525 + $0x1ab8] sm:$0xff]
        %v4149 = vld [vmem:[%s525 + $0x1ac0] sm:$0xff]
        %v4150 = vld [vmem:[%s525 + $0x1ac8] sm:$0xff]
        %v4151 = vld [vmem:[%s525 + $0x1ad0] sm:$0xff]
        %v4152 = vld [vmem:[%s525 + $0x1ad8] sm:$0xff]
        %v4153 = vld [vmem:[%s525 + $0x1ae0] sm:$0xff]
        %v4154 = vld [vmem:[%s525 + $0x1ae8] sm:$0xff]
        %v4155 = vld [vmem:[%s525 + $0x1af0] sm:$0xff]
        %v4156 = vld [vmem:[%s525 + $0x1af8] sm:$0xff]
        %v4157 = vld [vmem:[%s525 + $0x1b00] sm:$0xff]
        %v4158 = vld [vmem:[%s525 + $0x1b08] sm:$0xff]
        %v4159 = vld [vmem:[%s525 + $0x1b10] sm:$0xff]
        %v4160 = vld [vmem:[%s525 + $0x1b18] sm:$0xff]
        %v4161 = vld [vmem:[%s525 + $0x1b20] sm:$0xff]
        %v4162 = vld [vmem:[%s525 + $0x1b28] sm:$0xff]
        %v4163 = vld [vmem:[%s525 + $0x1b30] sm:$0xff]
        %v4164 = vld [vmem:[%s525 + $0x1b38] sm:$0xff]
        %v4165 = vld [vmem:[%s525 + $0x1b40] sm:$0xff]
        %v4166 = vld [vmem:[%s525 + $0x1b48] sm:$0xff]
        %v4167 = vld [vmem:[%s525 + $0x1b50] sm:$0xff]
        %v4168 = vld [vmem:[%s525 + $0x1b58] sm:$0xff]
        %v4169 = vld [vmem:[%s525 + $0x1b60] sm:$0xff]
        %v4170 = vld [vmem:[%s525 + $0x1b68] sm:$0xff]
        %v4171 = vld [vmem:[%s525 + $0x1b70] sm:$0xff]
        %v4172 = vld [vmem:[%s525 + $0x1b78] sm:$0xff]
        %v4173 = vld [vmem:[%s525 + $0x1b80] sm:$0xff]
        %v4174 = vld [vmem:[%s525 + $0x1b88] sm:$0xff]
        %v4175 = vld [vmem:[%s525 + $0x1b90] sm:$0xff]
        %v4176 = vld [vmem:[%s525 + $0x1b98] sm:$0xff]
        %v4177 = vld [vmem:[%s525 + $0x1ba0] sm:$0xff]
        %v4178 = vld [vmem:[%s525 + $0x1ba8] sm:$0xff]
        %v4179 = vld [vmem:[%s525 + $0x1bb0] sm:$0xff]
        %v4180 = vld [vmem:[%s525 + $0x1bb8] sm:$0xff]
        %v4181 = vld [vmem:[%s525 + $0x1bc0] sm:$0xff]
        %v4182 = vld [vmem:[%s525 + $0x1bc8] sm:$0xff]
        %v4183 = vld [vmem:[%s525 + $0x1bd0] sm:$0xff]
        %v4184 = vld [vmem:[%s525 + $0x1bd8] sm:$0xff]
        %v4185 = vld [vmem:[%s525 + $0x1be0] sm:$0xff]
        %v4186 = vld [vmem:[%s525 + $0x1be8] sm:$0xff]
        %v4187 = vld [vmem:[%s525 + $0x1bf0] sm:$0xff]
        %v4188 = vld [vmem:[%s525 + $0x1bf8] sm:$0xff]
        %v4189 = vld [vmem:[%s525 + $0x1c00] sm:$0xff]
        %v4190 = vld [vmem:[%s525 + $0x1c08] sm:$0xff]
        %v4191 = vld [vmem:[%s525 + $0x1c10] sm:$0xff]
        %v4192 = vld [vmem:[%s525 + $0x1c18] sm:$0xff]
        %v4193 = vld [vmem:[%s525 + $0x1c20] sm:$0xff]
        %v4194 = vld [vmem:[%s525 + $0x1c28] sm:$0xff]
        %v4195 = vld [vmem:[%s525 + $0x1c30] sm:$0xff]
        %v4196 = vld [vmem:[%s525 + $0x1c38] sm:$0xff]
        %v4197 = vld [vmem:[%s525 + $0x1c40] sm:$0xff]
        %v4198 = vld [vmem:[%s525 + $0x1c48] sm:$0xff]
        %v4199 = vld [vmem:[%s525 + $0x1c50] sm:$0xff]
        %v4200 = vld [vmem:[%s525 + $0x1c58] sm:$0xff]
        %v4201 = vld [vmem:[%s525 + $0x1c60] sm:$0xff]
        %v4202 = vld [vmem:[%s525 + $0x1c68] sm:$0xff]
        %v4203 = vld [vmem:[%s525 + $0x1c70] sm:$0xff]
        %v4204 = vld [vmem:[%s525 + $0x1c78] sm:$0xff]
        %v4205 = vld [vmem:[%s525 + $0x1c80] sm:$0xff]
        %v4206 = vld [vmem:[%s525 + $0x1c88] sm:$0xff]
        %v4207 = vld [vmem:[%s525 + $0x1c90] sm:$0xff]
        %v4208 = vld [vmem:[%s525 + $0x1c98] sm:$0xff]
        %v4209 = vld [vmem:[%s525 + $0x1ca0] sm:$0xff]
        %v4210 = vld [vmem:[%s525 + $0x1ca8] sm:$0xff]
        %v4211 = vld [vmem:[%s525 + $0x1cb0] sm:$0xff]
        %v4212 = vld [vmem:[%s525 + $0x1cb8] sm:$0xff]
        %v4213 = vld [vmem:[%s525 + $0x1cc0] sm:$0xff]
        %v4214 = vld [vmem:[%s525 + $0x1cc8] sm:$0xff]
        %v4215 = vld [vmem:[%s525 + $0x1cd0] sm:$0xff]
        %v4216 = vld [vmem:[%s525 + $0x1cd8] sm:$0xff]
        %v4217 = vld [vmem:[%s525 + $0x1ce0] sm:$0xff]
        %v4218 = vld [vmem:[%s525 + $0x1ce8] sm:$0xff]
        %v4219 = vld [vmem:[%s525 + $0x1cf0] sm:$0xff]
        %v4220 = vld [vmem:[%s525 + $0x1cf8] sm:$0xff]
        %v4221 = vld [vmem:[%s525 + $0x1d00] sm:$0xff]
        %v4222 = vld [vmem:[%s525 + $0x1d08] sm:$0xff]
        %v4223 = vld [vmem:[%s525 + $0x1d10] sm:$0xff]
        %v4224 = vld [vmem:[%s525 + $0x1d18] sm:$0xff]
        %v4225 = vld [vmem:[%s525 + $0x1d20] sm:$0xff]
        %v4226 = vld [vmem:[%s525 + $0x1d28] sm:$0xff]
        %v4227 = vld [vmem:[%s525 + $0x1d30] sm:$0xff]
        %v4228 = vld [vmem:[%s525 + $0x1d38] sm:$0xff]
        %v4229 = vld [vmem:[%s525 + $0x1d40] sm:$0xff]
        %v4230 = vld [vmem:[%s525 + $0x1d48] sm:$0xff]
        %v4231 = vld [vmem:[%s525 + $0x1d50] sm:$0xff]
        %v4232 = vld [vmem:[%s525 + $0x1d58] sm:$0xff]
        %v4233 = vld [vmem:[%s525 + $0x1d60] sm:$0xff]
        %v4234 = vld [vmem:[%s525 + $0x1d68] sm:$0xff]
        %v4235 = vld [vmem:[%s525 + $0x1d70] sm:$0xff]
        %v4236 = vld [vmem:[%s525 + $0x1d78] sm:$0xff]
        %v4237 = vld [vmem:[%s525 + $0x1d80] sm:$0xff]
        %v4238 = vld [vmem:[%s525 + $0x1d88] sm:$0xff]
        %v4239 = vld [vmem:[%s525 + $0x1d90] sm:$0xff]
        %v4240 = vld [vmem:[%s525 + $0x1d98] sm:$0xff]
        %v4241 = vld [vmem:[%s525 + $0x1da0] sm:$0xff]
        %v4242 = vld [vmem:[%s525 + $0x1da8] sm:$0xff]
        %v4243 = vld [vmem:[%s525 + $0x1db0] sm:$0xff]
        %v4244 = vld [vmem:[%s525 + $0x1db8] sm:$0xff]
        %v4245 = vld [vmem:[%s525 + $0x1dc0] sm:$0xff]
        %v4246 = vld [vmem:[%s525 + $0x1dc8] sm:$0xff]
        %v4247 = vld [vmem:[%s525 + $0x1dd0] sm:$0xff]
        %v4248 = vld [vmem:[%s525 + $0x1dd8] sm:$0xff]
        %v4249 = vld [vmem:[%s525 + $0x1de0] sm:$0xff]
        %v4250 = vld [vmem:[%s525 + $0x1de8] sm:$0xff]
        %v4251 = vld [vmem:[%s525 + $0x1df0] sm:$0xff]
        %v4252 = vld [vmem:[%s525 + $0x1df8] sm:$0xff]
        %v4253 = vld [vmem:[%s525 + $0x1e00] sm:$0xff]
        %v4254 = vld [vmem:[%s525 + $0x1e08] sm:$0xff]
        %v4255 = vld [vmem:[%s525 + $0x1e10] sm:$0xff]
        %v4256 = vld [vmem:[%s525 + $0x1e18] sm:$0xff]
        %v4257 = vld [vmem:[%s525 + $0x1e20] sm:$0xff]
        %v4258 = vld [vmem:[%s525 + $0x1e28] sm:$0xff]
        %v4259 = vld [vmem:[%s525 + $0x1e30] sm:$0xff]
        %v4260 = vld [vmem:[%s525 + $0x1e38] sm:$0xff]
        %v4261 = vld [vmem:[%s525 + $0x1e40] sm:$0xff]
        %v4262 = vld [vmem:[%s525 + $0x1e48] sm:$0xff]
        %v4263 = vld [vmem:[%s525 + $0x1e50] sm:$0xff]
        %v4264 = vld [vmem:[%s525 + $0x1e58] sm:$0xff]
        %v4265 = vld [vmem:[%s525 + $0x1e60] sm:$0xff]
        %v4266 = vld [vmem:[%s525 + $0x1e68] sm:$0xff]
        %v4267 = vld [vmem:[%s525 + $0x1e70] sm:$0xff]
        %v4268 = vld [vmem:[%s525 + $0x1e78] sm:$0xff]
        %v4269 = vld [vmem:[%s525 + $0x1e80] sm:$0xff]
        %v4270 = vld [vmem:[%s525 + $0x1e88] sm:$0xff]
        %v4271 = vld [vmem:[%s525 + $0x1e90] sm:$0xff]
        %v4272 = vld [vmem:[%s525 + $0x1e98] sm:$0xff]
        %v4273 = vld [vmem:[%s525 + $0x1ea0] sm:$0xff]
        %v4274 = vld [vmem:[%s525 + $0x1ea8] sm:$0xff]
        %v4275 = vld [vmem:[%s525 + $0x1eb0] sm:$0xff]
        %v4276 = vld [vmem:[%s525 + $0x1eb8] sm:$0xff]
        %v4277 = vld [vmem:[%s525 + $0x1ec0] sm:$0xff]
        %v4278 = vld [vmem:[%s525 + $0x1ec8] sm:$0xff]
        %v4279 = vld [vmem:[%s525 + $0x1ed0] sm:$0xff]
        %v4280 = vld [vmem:[%s525 + $0x1ed8] sm:$0xff]
        %v4281 = vld [vmem:[%s525 + $0x1ee0] sm:$0xff]
        %v4282 = vld [vmem:[%s525 + $0x1ee8] sm:$0xff]
        %v4283 = vld [vmem:[%s525 + $0x1ef0] sm:$0xff]
        %v4284 = vld [vmem:[%s525 + $0x1ef8] sm:$0xff]
        %v4285 = vld [vmem:[%s525 + $0x1f00] sm:$0xff]
        %v4286 = vld [vmem:[%s525 + $0x1f08] sm:$0xff]
        %v4287 = vld [vmem:[%s525 + $0x1f10] sm:$0xff]
        %v4288 = vld [vmem:[%s525 + $0x1f18] sm:$0xff]
        %v4289 = vld [vmem:[%s525 + $0x1f20] sm:$0xff]
        %v4290 = vld [vmem:[%s525 + $0x1f28] sm:$0xff]
        %v4291 = vld [vmem:[%s525 + $0x1f30] sm:$0xff]
        %v4292 = vld [vmem:[%s525 + $0x1f38] sm:$0xff]
        %v4293 = vld [vmem:[%s525 + $0x1f40] sm:$0xff]
        %v4294 = vld [vmem:[%s525 + $0x1f48] sm:$0xff]
        %v4295 = vld [vmem:[%s525 + $0x1f50] sm:$0xff]
        %v4296 = vld [vmem:[%s525 + $0x1f58] sm:$0xff]
        %v4297 = vld [vmem:[%s525 + $0x1f60] sm:$0xff]
        %v4298 = vld [vmem:[%s525 + $0x1f68] sm:$0xff]
        %v4299 = vld [vmem:[%s525 + $0x1f70] sm:$0xff]
        %v4300 = vld [vmem:[%s525 + $0x1f78] sm:$0xff]
        %v4301 = vld [vmem:[%s525 + $0x1f80] sm:$0xff]
        %v4302 = vld [vmem:[%s525 + $0x1f88] sm:$0xff]
        %v4303 = vld [vmem:[%s525 + $0x1f90] sm:$0xff]
        %v4304 = vld [vmem:[%s525 + $0x1f98] sm:$0xff]
        %v4305 = vld [vmem:[%s525 + $0x1fa0] sm:$0xff]
        %v4306 = vld [vmem:[%s525 + $0x1fa8] sm:$0xff]
        %v4307 = vld [vmem:[%s525 + $0x1fb0] sm:$0xff]
        %v4308 = vld [vmem:[%s525 + $0x1fb8] sm:$0xff]
        %v4309 = vld [vmem:[%s525 + $0x1fc0] sm:$0xff]
        %v4310 = vld [vmem:[%s525 + $0x1fc8] sm:$0xff]
        %v4311 = vld [vmem:[%s525 + $0x1fd0] sm:$0xff]
        %v4312 = vld [vmem:[%s525 + $0x1fd8] sm:$0xff]
        %v4313 = vld [vmem:[%s525 + $0x1fe0] sm:$0xff]
        %v4314 = vld [vmem:[%s525 + $0x1fe8] sm:$0xff]
        %v4315 = vld [vmem:[%s525 + $0x1ff0] sm:$0xff]
        %v4316 = vld [vmem:[%s525 + $0x1ff8] sm:$0xff]
        %v4317 = vld [vmem:[%s534] sm:$0xff]
        %v4319 = vlaneseq
        %v4320 = vshrl.u32 %v4319, 7
        %v4321 = vsub.s32 0, %v4320
        %v4322 = vrot.slane %v4317, %v4321
        %v4323 = vlaneseq
        %v4324 = vshrl.u32 %v4323, 7
        %v4325 = vsub.s32 1, %v4324
        %v4326 = vrot.slane %v4317, %v4325
        %v4327 = vlaneseq
        %v4328 = vshrl.u32 %v4327, 7
        %v4329 = vsub.s32 2, %v4328
        %v4330 = vrot.slane %v4317, %v4329
        %v4331 = vlaneseq
        %v4332 = vshrl.u32 %v4331, 7
        %v4333 = vsub.s32 3, %v4332
        %v4334 = vrot.slane %v4317, %v4333
        %v4335 = vlaneseq
        %v4336 = vshrl.u32 %v4335, 7
        %v4337 = vsub.s32 4, %v4336
        %v4338 = vrot.slane %v4317, %v4337
        %v4339 = vlaneseq
        %v4340 = vshrl.u32 %v4339, 7
        %v4341 = vsub.s32 5, %v4340
        %v4342 = vrot.slane %v4317, %v4341
        %v4343 = vlaneseq
        %v4344 = vshrl.u32 %v4343, 7
        %v4345 = vsub.s32 6, %v4344
        %v4346 = vrot.slane %v4317, %v4345
        %v4347 = vlaneseq
        %v4348 = vshrl.u32 %v4347, 7
        %v4349 = vsub.s32 7, %v4348
        %v4350 = vrot.slane %v4317, %v4349
        %4359 = vmatprep.subr.mxu0 %v3414
        %4360 = vmatpush1.msra.mxu0 %v3413
        %4361 = vmatprep.subr.mxu0 %v3406
        %4362 = vmatpush1.msra.mxu0 %v3405
        %4363 = vmatprep.subr.mxu0 %v3398
        %4364 = vmatpush1.msra.mxu0 %v3397
        %4365 = vmatprep.subr.mxu0 %v3390
        %4366 = vmatpush1.msra.mxu0 %v3389
        %4367 = vmatprep.subr.mxu0 %v3382
        %4368 = vmatpush1.msra.mxu0 %v3381
        %4369 = vmatprep.subr.mxu0 %v3374
        %4370 = vmatpush1.msra.mxu0 %v3373
        %4371 = vmatprep.subr.mxu0 %v3366
        %4372 = vmatpush1.msra.mxu0 %v3365
        %4373 = vmatprep.subr.mxu0 %v3358
        %4374 = vmatpush1.msra.mxu0 %v3357
        %4375 = vmatprep.subr.mxu0 %v3350
        %4376 = vmatpush1.msra.mxu0 %v3349
        %4377 = vmatprep.subr.mxu0 %v3342
        %4378 = vmatpush1.msra.mxu0 %v3341
        %4379 = vmatprep.subr.mxu0 %v3334
        %4380 = vmatpush1.msra.mxu0 %v3333
        %4381 = vmatprep.subr.mxu0 %v3326
        %4382 = vmatpush1.msra.mxu0 %v3325
        %4383 = vmatprep.subr.mxu0 %v3318
        %4384 = vmatpush1.msra.mxu0 %v3317
        %4385 = vmatprep.subr.mxu0 %v3310
        %4386 = vmatpush1.msra.mxu0 %v3309
        %4387 = vmatprep.subr.mxu0 %v3302
        %4388 = vmatpush1.msra.mxu0 %v3301
        %4389 = vmatprep.subr.mxu0 %v3294
        %4390 = vmatpush1.msra.mxu0 %v3293
        %4391 = vmatprep.subr.mxu0 %v3542
        %4392 = vmatpush2.msra.mxu0 %v3541
        %4393 = vmatprep.subr.mxu0 %v3534
        %4394 = vmatpush2.msra.mxu0 %v3533
        %4395 = vmatprep.subr.mxu0 %v3526
        %4396 = vmatpush2.msra.mxu0 %v3525
        %4397 = vmatprep.subr.mxu0 %v3518
        %4398 = vmatpush2.msra.mxu0 %v3517
        %4399 = vmatprep.subr.mxu0 %v3510
        %4400 = vmatpush2.msra.mxu0 %v3509
        %4401 = vmatprep.subr.mxu0 %v3502
        %4402 = vmatpush2.msra.mxu0 %v3501
        %4403 = vmatprep.subr.mxu0 %v3494
        %4404 = vmatpush2.msra.mxu0 %v3493
        %4405 = vmatprep.subr.mxu0 %v3486
        %4406 = vmatpush2.msra.mxu0 %v3485
        %4407 = vmatprep.subr.mxu0 %v3478
        %4408 = vmatpush2.msra.mxu0 %v3477
        %4409 = vmatprep.subr.mxu0 %v3470
        %4410 = vmatpush2.msra.mxu0 %v3469
        %4411 = vmatprep.subr.mxu0 %v3462
        %4412 = vmatpush2.msra.mxu0 %v3461
        %4413 = vmatprep.subr.mxu0 %v3454
        %4414 = vmatpush2.msra.mxu0 %v3453
        %4415 = vmatprep.subr.mxu0 %v3446
        %4416 = vmatpush2.msra.mxu0 %v3445
        %4417 = vmatprep.subr.mxu0 %v3438
        %4418 = vmatpush2.msra.mxu0 %v3437
        %4419 = vmatprep.subr.mxu0 %v3430
        %4420 = vmatpush2.msra.mxu0 %v3429
        %4421 = vmatprep.subr.mxu0 %v3422
        %4422 = vmatpush2.msra.mxu0 %v3421
        %4423 = vmatprep.mubr.f32.mxu0 %v3286
        %4424 = vmatmul.mubr.f32.gmra.mxu0 %v3285
        %v4425 = vpop.f32.mrf.mxu0
        %v4426 = vadd.f32 %v4322, %v4425
        %v4427 = vpop.f32.mrf.mxu0
        %v4428 = vadd.f32 %v4326, %v4427
        %4429 = vdwg.mxu0
        %4430 = vmatprep.subr.mxu0 %v3670
        %4431 = vmatpush1.msra.mxu0 %v3669
        %4432 = vmatprep.subr.mxu0 %v3662
        %4433 = vmatpush1.msra.mxu0 %v3661
        %4434 = vmatprep.subr.mxu0 %v3654
        %4435 = vmatpush1.msra.mxu0 %v3653
        %4436 = vmatprep.subr.mxu0 %v3646
        %4437 = vmatpush1.msra.mxu0 %v3645
        %4438 = vmatprep.subr.mxu0 %v3638
        %4439 = vmatpush1.msra.mxu0 %v3637
        %4440 = vmatprep.subr.mxu0 %v3630
        %4441 = vmatpush1.msra.mxu0 %v3629
        %4442 = vmatprep.subr.mxu0 %v3622
        %4443 = vmatpush1.msra.mxu0 %v3621
        %4444 = vmatprep.subr.mxu0 %v3614
        %4445 = vmatpush1.msra.mxu0 %v3613
        %4446 = vmatprep.subr.mxu0 %v3606
        %4447 = vmatpush1.msra.mxu0 %v3605
        %4448 = vmatprep.subr.mxu0 %v3598
        %4449 = vmatpush1.msra.mxu0 %v3597
        %4450 = vmatprep.subr.mxu0 %v3590
        %4451 = vmatpush1.msra.mxu0 %v3589
        %4452 = vmatprep.subr.mxu0 %v3582
        %4453 = vmatpush1.msra.mxu0 %v3581
        %4454 = vmatprep.subr.mxu0 %v3574
        %4455 = vmatpush1.msra.mxu0 %v3573
        %4456 = vmatprep.subr.mxu0 %v3566
        %4457 = vmatpush1.msra.mxu0 %v3565
        %4458 = vmatprep.subr.mxu0 %v3558
        %4459 = vmatpush1.msra.mxu0 %v3557
        %4460 = vmatprep.subr.mxu0 %v3550
        %4461 = vmatpush1.msra.mxu0 %v3549
        %4462 = vmatprep.subr.mxu0 %v3798
        %4463 = vmatpush2.msra.mxu0 %v3797
        %4464 = vmatprep.subr.mxu0 %v3790
        %4465 = vmatpush2.msra.mxu0 %v3789
        %4466 = vmatprep.subr.mxu0 %v3782
        %4467 = vmatpush2.msra.mxu0 %v3781
        %4468 = vmatprep.subr.mxu0 %v3774
        %4469 = vmatpush2.msra.mxu0 %v3773
        %4470 = vmatprep.subr.mxu0 %v3766
        %4471 = vmatpush2.msra.mxu0 %v3765
        %4472 = vmatprep.subr.mxu0 %v3758
        %4473 = vmatpush2.msra.mxu0 %v3757
        %4474 = vmatprep.subr.mxu0 %v3750
        %4475 = vmatpush2.msra.mxu0 %v3749
        %4476 = vmatprep.subr.mxu0 %v3742
        %4477 = vmatpush2.msra.mxu0 %v3741
        %4478 = vmatprep.subr.mxu0 %v3734
        %4479 = vmatpush2.msra.mxu0 %v3733
        %4480 = vmatprep.subr.mxu0 %v3726
        %4481 = vmatpush2.msra.mxu0 %v3725
        %4482 = vmatprep.subr.mxu0 %v3718
        %4483 = vmatpush2.msra.mxu0 %v3717
        %4484 = vmatprep.subr.mxu0 %v3710
        %4485 = vmatpush2.msra.mxu0 %v3709
        %4486 = vmatprep.subr.mxu0 %v3702
        %4487 = vmatpush2.msra.mxu0 %v3701
        %4488 = vmatprep.subr.mxu0 %v3694
        %4489 = vmatpush2.msra.mxu0 %v3693
        %4490 = vmatprep.subr.mxu0 %v3686
        %4491 = vmatpush2.msra.mxu0 %v3685
        %4492 = vmatprep.subr.mxu0 %v3678
        %4493 = vmatpush2.msra.mxu0 %v3677
        %4494 = vmatprep.mubr.f32.mxu0 %v3288
        %4495 = vmatmul.mubr.f32.gmra.mxu0 %v3287
        %v4496 = vpop.f32.mrf.mxu0
        %v4497 = vadd.f32 %v4426, %v4496
        %v4498 = vpop.f32.mrf.mxu0
        %v4499 = vadd.f32 %v4428, %v4498
        %4500 = vdwg.mxu0
        %4501 = vmatprep.subr.mxu0 %v3926
        %4502 = vmatpush1.msra.mxu0 %v3925
        %4503 = vmatprep.subr.mxu0 %v3918
        %4504 = vmatpush1.msra.mxu0 %v3917
        %4505 = vmatprep.subr.mxu0 %v3910
        %4506 = vmatpush1.msra.mxu0 %v3909
        %4507 = vmatprep.subr.mxu0 %v3902
        %4508 = vmatpush1.msra.mxu0 %v3901
        %4509 = vmatprep.subr.mxu0 %v3894
        %4510 = vmatpush1.msra.mxu0 %v3893
        %4511 = vmatprep.subr.mxu0 %v3886
        %4512 = vmatpush1.msra.mxu0 %v3885
        %4513 = vmatprep.subr.mxu0 %v3878
        %4514 = vmatpush1.msra.mxu0 %v3877
        %4515 = vmatprep.subr.mxu0 %v3870
        %4516 = vmatpush1.msra.mxu0 %v3869
        %4517 = vmatprep.subr.mxu0 %v3862
        %4518 = vmatpush1.msra.mxu0 %v3861
        %4519 = vmatprep.subr.mxu0 %v3854
        %4520 = vmatpush1.msra.mxu0 %v3853
        %4521 = vmatprep.subr.mxu0 %v3846
        %4522 = vmatpush1.msra.mxu0 %v3845
        %4523 = vmatprep.subr.mxu0 %v3838
        %4524 = vmatpush1.msra.mxu0 %v3837
        %4525 = vmatprep.subr.mxu0 %v3830
        %4526 = vmatpush1.msra.mxu0 %v3829
        %4527 = vmatprep.subr.mxu0 %v3822
        %4528 = vmatpush1.msra.mxu0 %v3821
        %4529 = vmatprep.subr.mxu0 %v3814
        %4530 = vmatpush1.msra.mxu0 %v3813
        %4531 = vmatprep.subr.mxu0 %v3806
        %4532 = vmatpush1.msra.mxu0 %v3805
        %4533 = vmatprep.subr.mxu0 %v4054
        %4534 = vmatpush2.msra.mxu0 %v4053
        %4535 = vmatprep.subr.mxu0 %v4046
        %4536 = vmatpush2.msra.mxu0 %v4045
        %4537 = vmatprep.subr.mxu0 %v4038
        %4538 = vmatpush2.msra.mxu0 %v4037
        %4539 = vmatprep.subr.mxu0 %v4030
        %4540 = vmatpush2.msra.mxu0 %v4029
        %4541 = vmatprep.subr.mxu0 %v4022
        %4542 = vmatpush2.msra.mxu0 %v4021
        %4543 = vmatprep.subr.mxu0 %v4014
        %4544 = vmatpush2.msra.mxu0 %v4013
        %4545 = vmatprep.subr.mxu0 %v4006
        %4546 = vmatpush2.msra.mxu0 %v4005
        %4547 = vmatprep.subr.mxu0 %v3998
        %4548 = vmatpush2.msra.mxu0 %v3997
        %4549 = vmatprep.subr.mxu0 %v3990
        %4550 = vmatpush2.msra.mxu0 %v3989
        %4551 = vmatprep.subr.mxu0 %v3982
        %4552 = vmatpush2.msra.mxu0 %v3981
        %4553 = vmatprep.subr.mxu0 %v3974
        %4554 = vmatpush2.msra.mxu0 %v3973
        %4555 = vmatprep.subr.mxu0 %v3966
        %4556 = vmatpush2.msra.mxu0 %v3965
        %4557 = vmatprep.subr.mxu0 %v3958
        %4558 = vmatpush2.msra.mxu0 %v3957
        %4559 = vmatprep.subr.mxu0 %v3950
        %4560 = vmatpush2.msra.mxu0 %v3949
        %4561 = vmatprep.subr.mxu0 %v3942
        %4562 = vmatpush2.msra.mxu0 %v3941
        %4563 = vmatprep.subr.mxu0 %v3934
        %4564 = vmatpush2.msra.mxu0 %v3933
        %4565 = vmatprep.mubr.f32.mxu0 %v3290
        %4566 = vmatmul.mubr.f32.gmra.mxu0 %v3289
        %v4567 = vpop.f32.mrf.mxu0
        %v4568 = vadd.f32 %v4497, %v4567
        %v4569 = vpop.f32.mrf.mxu0
        %v4570 = vadd.f32 %v4499, %v4569
        %4571 = vdwg.mxu0
        %4572 = vmatprep.subr.mxu0 %v4182
        %4573 = vmatpush1.msra.mxu0 %v4181
        %4574 = vmatprep.subr.mxu0 %v4174
        %4575 = vmatpush1.msra.mxu0 %v4173
        %4576 = vmatprep.subr.mxu0 %v4166
        %4577 = vmatpush1.msra.mxu0 %v4165
        %4578 = vmatprep.subr.mxu0 %v4158
        %4579 = vmatpush1.msra.mxu0 %v4157
        %4580 = vmatprep.subr.mxu0 %v4150
        %4581 = vmatpush1.msra.mxu0 %v4149
        %4582 = vmatprep.subr.mxu0 %v4142
        %4583 = vmatpush1.msra.mxu0 %v4141
        %4584 = vmatprep.subr.mxu0 %v4134
        %4585 = vmatpush1.msra.mxu0 %v4133
        %4586 = vmatprep.subr.mxu0 %v4126
        %4587 = vmatpush1.msra.mxu0 %v4125
        %4588 = vmatprep.subr.mxu0 %v4118
        %4589 = vmatpush1.msra.mxu0 %v4117
        %4590 = vmatprep.subr.mxu0 %v4110
        %4591 = vmatpush1.msra.mxu0 %v4109
        %4592 = vmatprep.subr.mxu0 %v4102
        %4593 = vmatpush1.msra.mxu0 %v4101
        %4594 = vmatprep.subr.mxu0 %v4094
        %4595 = vmatpush1.msra.mxu0 %v4093
        %4596 = vmatprep.subr.mxu0 %v4086
        %4597 = vmatpush1.msra.mxu0 %v4085
        %4598 = vmatprep.subr.mxu0 %v4078
        %4599 = vmatpush1.msra.mxu0 %v4077
        %4600 = vmatprep.subr.mxu0 %v4070
        %4601 = vmatpush1.msra.mxu0 %v4069
        %4602 = vmatprep.subr.mxu0 %v4062
        %4603 = vmatpush1.msra.mxu0 %v4061
        %4604 = vmatprep.subr.mxu0 %v4310
        %4605 = vmatpush2.msra.mxu0 %v4309
        %4606 = vmatprep.subr.mxu0 %v4302
        %4607 = vmatpush2.msra.mxu0 %v4301
        %4608 = vmatprep.subr.mxu0 %v4294
        %4609 = vmatpush2.msra.mxu0 %v4293
        %4610 = vmatprep.subr.mxu0 %v4286
        %4611 = vmatpush2.msra.mxu0 %v4285
        %4612 = vmatprep.subr.mxu0 %v4278
        %4613 = vmatpush2.msra.mxu0 %v4277
        %4614 = vmatprep.subr.mxu0 %v4270
        %4615 = vmatpush2.msra.mxu0 %v4269
        %4616 = vmatprep.subr.mxu0 %v4262
        %4617 = vmatpush2.msra.mxu0 %v4261
        %4618 = vmatprep.subr.mxu0 %v4254
        %4619 = vmatpush2.msra.mxu0 %v4253
        %4620 = vmatprep.subr.mxu0 %v4246
        %4621 = vmatpush2.msra.mxu0 %v4245
        %4622 = vmatprep.subr.mxu0 %v4238
        %4623 = vmatpush2.msra.mxu0 %v4237
        %4624 = vmatprep.subr.mxu0 %v4230
        %4625 = vmatpush2.msra.mxu0 %v4229
        %4626 = vmatprep.subr.mxu0 %v4222
        %4627 = vmatpush2.msra.mxu0 %v4221
        %4628 = vmatprep.subr.mxu0 %v4214
        %4629 = vmatpush2.msra.mxu0 %v4213
        %4630 = vmatprep.subr.mxu0 %v4206
        %4631 = vmatpush2.msra.mxu0 %v4205
        %4632 = vmatprep.subr.mxu0 %v4198
        %4633 = vmatpush2.msra.mxu0 %v4197
        %4634 = vmatprep.subr.mxu0 %v4190
        %4635 = vmatpush2.msra.mxu0 %v4189
        %4636 = vmatprep.mubr.f32.mxu0 %v3292
        %4637 = vmatmul.mubr.f32.gmra.mxu0 %v3291
        %v4638 = vpop.f32.mrf.mxu0
        %v4639 = vadd.f32 %v4568, %v4638
        %v4640 = vpop.f32.mrf.mxu0
        %v4641 = vadd.f32 %v4570, %v4640
        %4642 = vdwg.mxu0
        %4643 = vmatprep.subr.mxu0 %v3416
        %4644 = vmatpush1.msra.mxu0 %v3415
        %4645 = vmatprep.subr.mxu0 %v3408
        %4646 = vmatpush1.msra.mxu0 %v3407
        %4647 = vmatprep.subr.mxu0 %v3400
        %4648 = vmatpush1.msra.mxu0 %v3399
        %4649 = vmatprep.subr.mxu0 %v3392
        %4650 = vmatpush1.msra.mxu0 %v3391
        %4651 = vmatprep.subr.mxu0 %v3384
        %4652 = vmatpush1.msra.mxu0 %v3383
        %4653 = vmatprep.subr.mxu0 %v3376
        %4654 = vmatpush1.msra.mxu0 %v3375
        %4655 = vmatprep.subr.mxu0 %v3368
        %4656 = vmatpush1.msra.mxu0 %v3367
        %4657 = vmatprep.subr.mxu0 %v3360
        %4658 = vmatpush1.msra.mxu0 %v3359
        %4659 = vmatprep.subr.mxu0 %v3352
        %4660 = vmatpush1.msra.mxu0 %v3351
        %4661 = vmatprep.subr.mxu0 %v3344
        %4662 = vmatpush1.msra.mxu0 %v3343
        %4663 = vmatprep.subr.mxu0 %v3336
        %4664 = vmatpush1.msra.mxu0 %v3335
        %4665 = vmatprep.subr.mxu0 %v3328
        %4666 = vmatpush1.msra.mxu0 %v3327
        %4667 = vmatprep.subr.mxu0 %v3320
        %4668 = vmatpush1.msra.mxu0 %v3319
        %4669 = vmatprep.subr.mxu0 %v3312
        %4670 = vmatpush1.msra.mxu0 %v3311
        %4671 = vmatprep.subr.mxu0 %v3304
        %4672 = vmatpush1.msra.mxu0 %v3303
        %4673 = vmatprep.subr.mxu0 %v3296
        %4674 = vmatpush1.msra.mxu0 %v3295
        %4675 = vmatprep.subr.mxu0 %v3544
        %4676 = vmatpush2.msra.mxu0 %v3543
        %4677 = vmatprep.subr.mxu0 %v3536
        %4678 = vmatpush2.msra.mxu0 %v3535
        %4679 = vmatprep.subr.mxu0 %v3528
        %4680 = vmatpush2.msra.mxu0 %v3527
        %4681 = vmatprep.subr.mxu0 %v3520
        %4682 = vmatpush2.msra.mxu0 %v3519
        %4683 = vmatprep.subr.mxu0 %v3512
        %4684 = vmatpush2.msra.mxu0 %v3511
        %4685 = vmatprep.subr.mxu0 %v3504
        %4686 = vmatpush2.msra.mxu0 %v3503
        %4687 = vmatprep.subr.mxu0 %v3496
        %4688 = vmatpush2.msra.mxu0 %v3495
        %4689 = vmatprep.subr.mxu0 %v3488
        %4690 = vmatpush2.msra.mxu0 %v3487
        %4691 = vmatprep.subr.mxu0 %v3480
        %4692 = vmatpush2.msra.mxu0 %v3479
        %4693 = vmatprep.subr.mxu0 %v3472
        %4694 = vmatpush2.msra.mxu0 %v3471
        %4695 = vmatprep.subr.mxu0 %v3464
        %4696 = vmatpush2.msra.mxu0 %v3463
        %4697 = vmatprep.subr.mxu0 %v3456
        %4698 = vmatpush2.msra.mxu0 %v3455
        %4699 = vmatprep.subr.mxu0 %v3448
        %4700 = vmatpush2.msra.mxu0 %v3447
        %4701 = vmatprep.subr.mxu0 %v3440
        %4702 = vmatpush2.msra.mxu0 %v3439
        %4703 = vmatprep.subr.mxu0 %v3432
        %4704 = vmatpush2.msra.mxu0 %v3431
        %4705 = vmatprep.subr.mxu0 %v3424
        %4706 = vmatpush2.msra.mxu0 %v3423
        %4707 = vmatprep.mubr.f32.mxu0 %v3286
        %4708 = vmatmul.mubr.f32.gmra.mxu0 %v3285
        %v4709 = vpop.f32.mrf.mxu0
        %v4710 = vadd.f32 %v4330, %v4709
        %v4711 = vpop.f32.mrf.mxu0
        %v4712 = vadd.f32 %v4334, %v4711
        %4713 = vdwg.mxu0
        %4714 = vmatprep.subr.mxu0 %v3672
        %4715 = vmatpush1.msra.mxu0 %v3671
        %4716 = vmatprep.subr.mxu0 %v3664
        %4717 = vmatpush1.msra.mxu0 %v3663
        %4718 = vmatprep.subr.mxu0 %v3656
        %4719 = vmatpush1.msra.mxu0 %v3655
        %4720 = vmatprep.subr.mxu0 %v3648
        %4721 = vmatpush1.msra.mxu0 %v3647
        %4722 = vmatprep.subr.mxu0 %v3640
        %4723 = vmatpush1.msra.mxu0 %v3639
        %4724 = vmatprep.subr.mxu0 %v3632
        %4725 = vmatpush1.msra.mxu0 %v3631
        %4726 = vmatprep.subr.mxu0 %v3624
        %4727 = vmatpush1.msra.mxu0 %v3623
        %4728 = vmatprep.subr.mxu0 %v3616
        %4729 = vmatpush1.msra.mxu0 %v3615
        %4730 = vmatprep.subr.mxu0 %v3608
        %4731 = vmatpush1.msra.mxu0 %v3607
        %4732 = vmatprep.subr.mxu0 %v3600
        %4733 = vmatpush1.msra.mxu0 %v3599
        %4734 = vmatprep.subr.mxu0 %v3592
        %4735 = vmatpush1.msra.mxu0 %v3591
        %4736 = vmatprep.subr.mxu0 %v3584
        %4737 = vmatpush1.msra.mxu0 %v3583
        %4738 = vmatprep.subr.mxu0 %v3576
        %4739 = vmatpush1.msra.mxu0 %v3575
        %4740 = vmatprep.subr.mxu0 %v3568
        %4741 = vmatpush1.msra.mxu0 %v3567
        %4742 = vmatprep.subr.mxu0 %v3560
        %4743 = vmatpush1.msra.mxu0 %v3559
        %4744 = vmatprep.subr.mxu0 %v3552
        %4745 = vmatpush1.msra.mxu0 %v3551
        %4746 = vmatprep.subr.mxu0 %v3800
        %4747 = vmatpush2.msra.mxu0 %v3799
        %4748 = vmatprep.subr.mxu0 %v3792
        %4749 = vmatpush2.msra.mxu0 %v3791
        %4750 = vmatprep.subr.mxu0 %v3784
        %4751 = vmatpush2.msra.mxu0 %v3783
        %4752 = vmatprep.subr.mxu0 %v3776
        %4753 = vmatpush2.msra.mxu0 %v3775
        %4754 = vmatprep.subr.mxu0 %v3768
        %4755 = vmatpush2.msra.mxu0 %v3767
        %4756 = vmatprep.subr.mxu0 %v3760
        %4757 = vmatpush2.msra.mxu0 %v3759
        %4758 = vmatprep.subr.mxu0 %v3752
        %4759 = vmatpush2.msra.mxu0 %v3751
        %4760 = vmatprep.subr.mxu0 %v3744
        %4761 = vmatpush2.msra.mxu0 %v3743
        %4762 = vmatprep.subr.mxu0 %v3736
        %4763 = vmatpush2.msra.mxu0 %v3735
        %4764 = vmatprep.subr.mxu0 %v3728
        %4765 = vmatpush2.msra.mxu0 %v3727
        %4766 = vmatprep.subr.mxu0 %v3720
        %4767 = vmatpush2.msra.mxu0 %v3719
        %4768 = vmatprep.subr.mxu0 %v3712
        %4769 = vmatpush2.msra.mxu0 %v3711
        %4770 = vmatprep.subr.mxu0 %v3704
        %4771 = vmatpush2.msra.mxu0 %v3703
        %4772 = vmatprep.subr.mxu0 %v3696
        %4773 = vmatpush2.msra.mxu0 %v3695
        %4774 = vmatprep.subr.mxu0 %v3688
        %4775 = vmatpush2.msra.mxu0 %v3687
        %4776 = vmatprep.subr.mxu0 %v3680
        %4777 = vmatpush2.msra.mxu0 %v3679
        %4778 = vmatprep.mubr.f32.mxu0 %v3288
        %4779 = vmatmul.mubr.f32.gmra.mxu0 %v3287
        %v4780 = vpop.f32.mrf.mxu0
        %v4781 = vadd.f32 %v4710, %v4780
        %v4782 = vpop.f32.mrf.mxu0
        %v4783 = vadd.f32 %v4712, %v4782
        %4784 = vdwg.mxu0
        %4785 = vmatprep.subr.mxu0 %v3928
        %4786 = vmatpush1.msra.mxu0 %v3927
        %4787 = vmatprep.subr.mxu0 %v3920
        %4788 = vmatpush1.msra.mxu0 %v3919
        %4789 = vmatprep.subr.mxu0 %v3912
        %4790 = vmatpush1.msra.mxu0 %v3911
        %4791 = vmatprep.subr.mxu0 %v3904
        %4792 = vmatpush1.msra.mxu0 %v3903
        %4793 = vmatprep.subr.mxu0 %v3896
        %4794 = vmatpush1.msra.mxu0 %v3895
        %4795 = vmatprep.subr.mxu0 %v3888
        %4796 = vmatpush1.msra.mxu0 %v3887
        %4797 = vmatprep.subr.mxu0 %v3880
        %4798 = vmatpush1.msra.mxu0 %v3879
        %4799 = vmatprep.subr.mxu0 %v3872
        %4800 = vmatpush1.msra.mxu0 %v3871
        %4801 = vmatprep.subr.mxu0 %v3864
        %4802 = vmatpush1.msra.mxu0 %v3863
        %4803 = vmatprep.subr.mxu0 %v3856
        %4804 = vmatpush1.msra.mxu0 %v3855
        %4805 = vmatprep.subr.mxu0 %v3848
        %4806 = vmatpush1.msra.mxu0 %v3847
        %4807 = vmatprep.subr.mxu0 %v3840
        %4808 = vmatpush1.msra.mxu0 %v3839
        %4809 = vmatprep.subr.mxu0 %v3832
        %4810 = vmatpush1.msra.mxu0 %v3831
        %4811 = vmatprep.subr.mxu0 %v3824
        %4812 = vmatpush1.msra.mxu0 %v3823
        %4813 = vmatprep.subr.mxu0 %v3816
        %4814 = vmatpush1.msra.mxu0 %v3815
        %4815 = vmatprep.subr.mxu0 %v3808
        %4816 = vmatpush1.msra.mxu0 %v3807
        %4817 = vmatprep.subr.mxu0 %v4056
        %4818 = vmatpush2.msra.mxu0 %v4055
        %4819 = vmatprep.subr.mxu0 %v4048
        %4820 = vmatpush2.msra.mxu0 %v4047
        %4821 = vmatprep.subr.mxu0 %v4040
        %4822 = vmatpush2.msra.mxu0 %v4039
        %4823 = vmatprep.subr.mxu0 %v4032
        %4824 = vmatpush2.msra.mxu0 %v4031
        %4825 = vmatprep.subr.mxu0 %v4024
        %4826 = vmatpush2.msra.mxu0 %v4023
        %4827 = vmatprep.subr.mxu0 %v4016
        %4828 = vmatpush2.msra.mxu0 %v4015
        %4829 = vmatprep.subr.mxu0 %v4008
        %4830 = vmatpush2.msra.mxu0 %v4007
        %4831 = vmatprep.subr.mxu0 %v4000
        %4832 = vmatpush2.msra.mxu0 %v3999
        %4833 = vmatprep.subr.mxu0 %v3992
        %4834 = vmatpush2.msra.mxu0 %v3991
        %4835 = vmatprep.subr.mxu0 %v3984
        %4836 = vmatpush2.msra.mxu0 %v3983
        %4837 = vmatprep.subr.mxu0 %v3976
        %4838 = vmatpush2.msra.mxu0 %v3975
        %4839 = vmatprep.subr.mxu0 %v3968
        %4840 = vmatpush2.msra.mxu0 %v3967
        %4841 = vmatprep.subr.mxu0 %v3960
        %4842 = vmatpush2.msra.mxu0 %v3959
        %4843 = vmatprep.subr.mxu0 %v3952
        %4844 = vmatpush2.msra.mxu0 %v3951
        %4845 = vmatprep.subr.mxu0 %v3944
        %4846 = vmatpush2.msra.mxu0 %v3943
        %4847 = vmatprep.subr.mxu0 %v3936
        %4848 = vmatpush2.msra.mxu0 %v3935
        %4849 = vmatprep.mubr.f32.mxu0 %v3290
        %4850 = vmatmul.mubr.f32.gmra.mxu0 %v3289
        %v4851 = vpop.f32.mrf.mxu0
        %v4852 = vadd.f32 %v4781, %v4851
        %v4853 = vpop.f32.mrf.mxu0
        %v4854 = vadd.f32 %v4783, %v4853
        %4855 = vdwg.mxu0
        %4856 = vmatprep.subr.mxu0 %v4184
        %4857 = vmatpush1.msra.mxu0 %v4183
        %4858 = vmatprep.subr.mxu0 %v4176
        %4859 = vmatpush1.msra.mxu0 %v4175
        %4860 = vmatprep.subr.mxu0 %v4168
        %4861 = vmatpush1.msra.mxu0 %v4167
        %4862 = vmatprep.subr.mxu0 %v4160
        %4863 = vmatpush1.msra.mxu0 %v4159
        %4864 = vmatprep.subr.mxu0 %v4152
        %4865 = vmatpush1.msra.mxu0 %v4151
        %4866 = vmatprep.subr.mxu0 %v4144
        %4867 = vmatpush1.msra.mxu0 %v4143
        %4868 = vmatprep.subr.mxu0 %v4136
        %4869 = vmatpush1.msra.mxu0 %v4135
        %4870 = vmatprep.subr.mxu0 %v4128
        %4871 = vmatpush1.msra.mxu0 %v4127
        %4872 = vmatprep.subr.mxu0 %v4120
        %4873 = vmatpush1.msra.mxu0 %v4119
        %4874 = vmatprep.subr.mxu0 %v4112
        %4875 = vmatpush1.msra.mxu0 %v4111
        %4876 = vmatprep.subr.mxu0 %v4104
        %4877 = vmatpush1.msra.mxu0 %v4103
        %4878 = vmatprep.subr.mxu0 %v4096
        %4879 = vmatpush1.msra.mxu0 %v4095
        %4880 = vmatprep.subr.mxu0 %v4088
        %4881 = vmatpush1.msra.mxu0 %v4087
        %4882 = vmatprep.subr.mxu0 %v4080
        %4883 = vmatpush1.msra.mxu0 %v4079
        %4884 = vmatprep.subr.mxu0 %v4072
        %4885 = vmatpush1.msra.mxu0 %v4071
        %4886 = vmatprep.subr.mxu0 %v4064
        %4887 = vmatpush1.msra.mxu0 %v4063
        %4888 = vmatprep.subr.mxu0 %v4312
        %4889 = vmatpush2.msra.mxu0 %v4311
        %4890 = vmatprep.subr.mxu0 %v4304
        %4891 = vmatpush2.msra.mxu0 %v4303
        %4892 = vmatprep.subr.mxu0 %v4296
        %4893 = vmatpush2.msra.mxu0 %v4295
        %4894 = vmatprep.subr.mxu0 %v4288
        %4895 = vmatpush2.msra.mxu0 %v4287
        %4896 = vmatprep.subr.mxu0 %v4280
        %4897 = vmatpush2.msra.mxu0 %v4279
        %4898 = vmatprep.subr.mxu0 %v4272
        %4899 = vmatpush2.msra.mxu0 %v4271
        %4900 = vmatprep.subr.mxu0 %v4264
        %4901 = vmatpush2.msra.mxu0 %v4263
        %4902 = vmatprep.subr.mxu0 %v4256
        %4903 = vmatpush2.msra.mxu0 %v4255
        %4904 = vmatprep.subr.mxu0 %v4248
        %4905 = vmatpush2.msra.mxu0 %v4247
        %4906 = vmatprep.subr.mxu0 %v4240
        %4907 = vmatpush2.msra.mxu0 %v4239
        %4908 = vmatprep.subr.mxu0 %v4232
        %4909 = vmatpush2.msra.mxu0 %v4231
        %4910 = vmatprep.subr.mxu0 %v4224
        %4911 = vmatpush2.msra.mxu0 %v4223
        %4912 = vmatprep.subr.mxu0 %v4216
        %4913 = vmatpush2.msra.mxu0 %v4215
        %4914 = vmatprep.subr.mxu0 %v4208
        %4915 = vmatpush2.msra.mxu0 %v4207
        %4916 = vmatprep.subr.mxu0 %v4200
        %4917 = vmatpush2.msra.mxu0 %v4199
        %4918 = vmatprep.subr.mxu0 %v4192
        %4919 = vmatpush2.msra.mxu0 %v4191
        %4920 = vmatprep.mubr.f32.mxu0 %v3292
        %4921 = vmatmul.mubr.f32.gmra.mxu0 %v3291
        %v4922 = vpop.f32.mrf.mxu0
        %v4923 = vadd.f32 %v4852, %v4922
        %v4924 = vpop.f32.mrf.mxu0
        %v4925 = vadd.f32 %v4854, %v4924
        %4926 = vdwg.mxu0
        %4927 = vmatprep.subr.mxu0 %v3418
        %4928 = vmatpush1.msra.mxu0 %v3417
        %4929 = vmatprep.subr.mxu0 %v3410
        %4930 = vmatpush1.msra.mxu0 %v3409
        %4931 = vmatprep.subr.mxu0 %v3402
        %4932 = vmatpush1.msra.mxu0 %v3401
        %4933 = vmatprep.subr.mxu0 %v3394
        %4934 = vmatpush1.msra.mxu0 %v3393
        %4935 = vmatprep.subr.mxu0 %v3386
        %4936 = vmatpush1.msra.mxu0 %v3385
        %4937 = vmatprep.subr.mxu0 %v3378
        %4938 = vmatpush1.msra.mxu0 %v3377
        %4939 = vmatprep.subr.mxu0 %v3370
        %4940 = vmatpush1.msra.mxu0 %v3369
        %4941 = vmatprep.subr.mxu0 %v3362
        %4942 = vmatpush1.msra.mxu0 %v3361
        %4943 = vmatprep.subr.mxu0 %v3354
        %4944 = vmatpush1.msra.mxu0 %v3353
        %4945 = vmatprep.subr.mxu0 %v3346
        %4946 = vmatpush1.msra.mxu0 %v3345
        %4947 = vmatprep.subr.mxu0 %v3338
        %4948 = vmatpush1.msra.mxu0 %v3337
        %4949 = vmatprep.subr.mxu0 %v3330
        %4950 = vmatpush1.msra.mxu0 %v3329
        %4951 = vmatprep.subr.mxu0 %v3322
        %4952 = vmatpush1.msra.mxu0 %v3321
        %4953 = vmatprep.subr.mxu0 %v3314
        %4954 = vmatpush1.msra.mxu0 %v3313
        %4955 = vmatprep.subr.mxu0 %v3306
        %4956 = vmatpush1.msra.mxu0 %v3305
        %4957 = vmatprep.subr.mxu0 %v3298
        %4958 = vmatpush1.msra.mxu0 %v3297
        %4959 = vmatprep.subr.mxu0 %v3546
        %4960 = vmatpush2.msra.mxu0 %v3545
        %4961 = vmatprep.subr.mxu0 %v3538
        %4962 = vmatpush2.msra.mxu0 %v3537
        %4963 = vmatprep.subr.mxu0 %v3530
        %4964 = vmatpush2.msra.mxu0 %v3529
        %4965 = vmatprep.subr.mxu0 %v3522
        %4966 = vmatpush2.msra.mxu0 %v3521
        %4967 = vmatprep.subr.mxu0 %v3514
        %4968 = vmatpush2.msra.mxu0 %v3513
        %4969 = vmatprep.subr.mxu0 %v3506
        %4970 = vmatpush2.msra.mxu0 %v3505
        %4971 = vmatprep.subr.mxu0 %v3498
        %4972 = vmatpush2.msra.mxu0 %v3497
        %4973 = vmatprep.subr.mxu0 %v3490
        %4974 = vmatpush2.msra.mxu0 %v3489
        %4975 = vmatprep.subr.mxu0 %v3482
        %4976 = vmatpush2.msra.mxu0 %v3481
        %4977 = vmatprep.subr.mxu0 %v3474
        %4978 = vmatpush2.msra.mxu0 %v3473
        %4979 = vmatprep.subr.mxu0 %v3466
        %4980 = vmatpush2.msra.mxu0 %v3465
        %4981 = vmatprep.subr.mxu0 %v3458
        %4982 = vmatpush2.msra.mxu0 %v3457
        %4983 = vmatprep.subr.mxu0 %v3450
        %4984 = vmatpush2.msra.mxu0 %v3449
        %4985 = vmatprep.subr.mxu0 %v3442
        %4986 = vmatpush2.msra.mxu0 %v3441
        %4987 = vmatprep.subr.mxu0 %v3434
        %4988 = vmatpush2.msra.mxu0 %v3433
        %4989 = vmatprep.subr.mxu0 %v3426
        %4990 = vmatpush2.msra.mxu0 %v3425
        %4991 = vmatprep.mubr.f32.mxu0 %v3286
        %4992 = vmatmul.mubr.f32.gmra.mxu0 %v3285
        %v4993 = vpop.f32.mrf.mxu0
        %v4994 = vadd.f32 %v4338, %v4993
        %v4995 = vpop.f32.mrf.mxu0
        %v4996 = vadd.f32 %v4342, %v4995
        %4997 = vdwg.mxu0
        %4998 = vmatprep.subr.mxu0 %v3674
        %4999 = vmatpush1.msra.mxu0 %v3673
        %5000 = vmatprep.subr.mxu0 %v3666
        %5001 = vmatpush1.msra.mxu0 %v3665
        %5002 = vmatprep.subr.mxu0 %v3658
        %5003 = vmatpush1.msra.mxu0 %v3657
        %5004 = vmatprep.subr.mxu0 %v3650
        %5005 = vmatpush1.msra.mxu0 %v3649
        %5006 = vmatprep.subr.mxu0 %v3642
        %5007 = vmatpush1.msra.mxu0 %v3641
        %5008 = vmatprep.subr.mxu0 %v3634
        %5009 = vmatpush1.msra.mxu0 %v3633
        %5010 = vmatprep.subr.mxu0 %v3626
        %5011 = vmatpush1.msra.mxu0 %v3625
        %5012 = vmatprep.subr.mxu0 %v3618
        %5013 = vmatpush1.msra.mxu0 %v3617
        %5014 = vmatprep.subr.mxu0 %v3610
        %5015 = vmatpush1.msra.mxu0 %v3609
        %5016 = vmatprep.subr.mxu0 %v3602
        %5017 = vmatpush1.msra.mxu0 %v3601
        %5018 = vmatprep.subr.mxu0 %v3594
        %5019 = vmatpush1.msra.mxu0 %v3593
        %5020 = vmatprep.subr.mxu0 %v3586
        %5021 = vmatpush1.msra.mxu0 %v3585
        %5022 = vmatprep.subr.mxu0 %v3578
        %5023 = vmatpush1.msra.mxu0 %v3577
        %5024 = vmatprep.subr.mxu0 %v3570
        %5025 = vmatpush1.msra.mxu0 %v3569
        %5026 = vmatprep.subr.mxu0 %v3562
        %5027 = vmatpush1.msra.mxu0 %v3561
        %5028 = vmatprep.subr.mxu0 %v3554
        %5029 = vmatpush1.msra.mxu0 %v3553
        %5030 = vmatprep.subr.mxu0 %v3802
        %5031 = vmatpush2.msra.mxu0 %v3801
        %5032 = vmatprep.subr.mxu0 %v3794
        %5033 = vmatpush2.msra.mxu0 %v3793
        %5034 = vmatprep.subr.mxu0 %v3786
        %5035 = vmatpush2.msra.mxu0 %v3785
        %5036 = vmatprep.subr.mxu0 %v3778
        %5037 = vmatpush2.msra.mxu0 %v3777
        %5038 = vmatprep.subr.mxu0 %v3770
        %5039 = vmatpush2.msra.mxu0 %v3769
        %5040 = vmatprep.subr.mxu0 %v3762
        %5041 = vmatpush2.msra.mxu0 %v3761
        %5042 = vmatprep.subr.mxu0 %v3754
        %5043 = vmatpush2.msra.mxu0 %v3753
        %5044 = vmatprep.subr.mxu0 %v3746
        %5045 = vmatpush2.msra.mxu0 %v3745
        %5046 = vmatprep.subr.mxu0 %v3738
        %5047 = vmatpush2.msra.mxu0 %v3737
        %5048 = vmatprep.subr.mxu0 %v3730
        %5049 = vmatpush2.msra.mxu0 %v3729
        %5050 = vmatprep.subr.mxu0 %v3722
        %5051 = vmatpush2.msra.mxu0 %v3721
        %5052 = vmatprep.subr.mxu0 %v3714
        %5053 = vmatpush2.msra.mxu0 %v3713
        %5054 = vmatprep.subr.mxu0 %v3706
        %5055 = vmatpush2.msra.mxu0 %v3705
        %5056 = vmatprep.subr.mxu0 %v3698
        %5057 = vmatpush2.msra.mxu0 %v3697
        %5058 = vmatprep.subr.mxu0 %v3690
        %5059 = vmatpush2.msra.mxu0 %v3689
        %5060 = vmatprep.subr.mxu0 %v3682
        %5061 = vmatpush2.msra.mxu0 %v3681
        %5062 = vmatprep.mubr.f32.mxu0 %v3288
        %5063 = vmatmul.mubr.f32.gmra.mxu0 %v3287
        %v5064 = vpop.f32.mrf.mxu0
        %v5065 = vadd.f32 %v4994, %v5064
        %v5066 = vpop.f32.mrf.mxu0
        %v5067 = vadd.f32 %v4996, %v5066
        %5068 = vdwg.mxu0
        %5069 = vmatprep.subr.mxu0 %v3930
        %5070 = vmatpush1.msra.mxu0 %v3929
        %5071 = vmatprep.subr.mxu0 %v3922
        %5072 = vmatpush1.msra.mxu0 %v3921
        %5073 = vmatprep.subr.mxu0 %v3914
        %5074 = vmatpush1.msra.mxu0 %v3913
        %5075 = vmatprep.subr.mxu0 %v3906
        %5076 = vmatpush1.msra.mxu0 %v3905
        %5077 = vmatprep.subr.mxu0 %v3898
        %5078 = vmatpush1.msra.mxu0 %v3897
        %5079 = vmatprep.subr.mxu0 %v3890
        %5080 = vmatpush1.msra.mxu0 %v3889
        %5081 = vmatprep.subr.mxu0 %v3882
        %5082 = vmatpush1.msra.mxu0 %v3881
        %5083 = vmatprep.subr.mxu0 %v3874
        %5084 = vmatpush1.msra.mxu0 %v3873
        %5085 = vmatprep.subr.mxu0 %v3866
        %5086 = vmatpush1.msra.mxu0 %v3865
        %5087 = vmatprep.subr.mxu0 %v3858
        %5088 = vmatpush1.msra.mxu0 %v3857
        %5089 = vmatprep.subr.mxu0 %v3850
        %5090 = vmatpush1.msra.mxu0 %v3849
        %5091 = vmatprep.subr.mxu0 %v3842
        %5092 = vmatpush1.msra.mxu0 %v3841
        %5093 = vmatprep.subr.mxu0 %v3834
        %5094 = vmatpush1.msra.mxu0 %v3833
        %5095 = vmatprep.subr.mxu0 %v3826
        %5096 = vmatpush1.msra.mxu0 %v3825
        %5097 = vmatprep.subr.mxu0 %v3818
        %5098 = vmatpush1.msra.mxu0 %v3817
        %5099 = vmatprep.subr.mxu0 %v3810
        %5100 = vmatpush1.msra.mxu0 %v3809
        %5101 = vmatprep.subr.mxu0 %v4058
        %5102 = vmatpush2.msra.mxu0 %v4057
        %5103 = vmatprep.subr.mxu0 %v4050
        %5104 = vmatpush2.msra.mxu0 %v4049
        %5105 = vmatprep.subr.mxu0 %v4042
        %5106 = vmatpush2.msra.mxu0 %v4041
        %5107 = vmatprep.subr.mxu0 %v4034
        %5108 = vmatpush2.msra.mxu0 %v4033
        %5109 = vmatprep.subr.mxu0 %v4026
        %5110 = vmatpush2.msra.mxu0 %v4025
        %5111 = vmatprep.subr.mxu0 %v4018
        %5112 = vmatpush2.msra.mxu0 %v4017
        %5113 = vmatprep.subr.mxu0 %v4010
        %5114 = vmatpush2.msra.mxu0 %v4009
        %5115 = vmatprep.subr.mxu0 %v4002
        %5116 = vmatpush2.msra.mxu0 %v4001
        %5117 = vmatprep.subr.mxu0 %v3994
        %5118 = vmatpush2.msra.mxu0 %v3993
        %5119 = vmatprep.subr.mxu0 %v3986
        %5120 = vmatpush2.msra.mxu0 %v3985
        %5121 = vmatprep.subr.mxu0 %v3978
        %5122 = vmatpush2.msra.mxu0 %v3977
        %5123 = vmatprep.subr.mxu0 %v3970
        %5124 = vmatpush2.msra.mxu0 %v3969
        %5125 = vmatprep.subr.mxu0 %v3962
        %5126 = vmatpush2.msra.mxu0 %v3961
        %5127 = vmatprep.subr.mxu0 %v3954
        %5128 = vmatpush2.msra.mxu0 %v3953
        %5129 = vmatprep.subr.mxu0 %v3946
        %5130 = vmatpush2.msra.mxu0 %v3945
        %5131 = vmatprep.subr.mxu0 %v3938
        %5132 = vmatpush2.msra.mxu0 %v3937
        %5133 = vmatprep.mubr.f32.mxu0 %v3290
        %5134 = vmatmul.mubr.f32.gmra.mxu0 %v3289
        %v5135 = vpop.f32.mrf.mxu0
        %v5136 = vadd.f32 %v5065, %v5135
        %v5137 = vpop.f32.mrf.mxu0
        %v5138 = vadd.f32 %v5067, %v5137
        %5139 = vdwg.mxu0
        %5140 = vmatprep.subr.mxu0 %v4186
        %5141 = vmatpush1.msra.mxu0 %v4185
        %5142 = vmatprep.subr.mxu0 %v4178
        %5143 = vmatpush1.msra.mxu0 %v4177
        %5144 = vmatprep.subr.mxu0 %v4170
        %5145 = vmatpush1.msra.mxu0 %v4169
        %5146 = vmatprep.subr.mxu0 %v4162
        %5147 = vmatpush1.msra.mxu0 %v4161
        %5148 = vmatprep.subr.mxu0 %v4154
        %5149 = vmatpush1.msra.mxu0 %v4153
        %5150 = vmatprep.subr.mxu0 %v4146
        %5151 = vmatpush1.msra.mxu0 %v4145
        %5152 = vmatprep.subr.mxu0 %v4138
        %5153 = vmatpush1.msra.mxu0 %v4137
        %5154 = vmatprep.subr.mxu0 %v4130
        %5155 = vmatpush1.msra.mxu0 %v4129
        %5156 = vmatprep.subr.mxu0 %v4122
        %5157 = vmatpush1.msra.mxu0 %v4121
        %5158 = vmatprep.subr.mxu0 %v4114
        %5159 = vmatpush1.msra.mxu0 %v4113
        %5160 = vmatprep.subr.mxu0 %v4106
        %5161 = vmatpush1.msra.mxu0 %v4105
        %5162 = vmatprep.subr.mxu0 %v4098
        %5163 = vmatpush1.msra.mxu0 %v4097
        %5164 = vmatprep.subr.mxu0 %v4090
        %5165 = vmatpush1.msra.mxu0 %v4089
        %5166 = vmatprep.subr.mxu0 %v4082
        %5167 = vmatpush1.msra.mxu0 %v4081
        %5168 = vmatprep.subr.mxu0 %v4074
        %5169 = vmatpush1.msra.mxu0 %v4073
        %5170 = vmatprep.subr.mxu0 %v4066
        %5171 = vmatpush1.msra.mxu0 %v4065
        %5172 = vmatprep.subr.mxu0 %v4314
        %5173 = vmatpush2.msra.mxu0 %v4313
        %5174 = vmatprep.subr.mxu0 %v4306
        %5175 = vmatpush2.msra.mxu0 %v4305
        %5176 = vmatprep.subr.mxu0 %v4298
        %5177 = vmatpush2.msra.mxu0 %v4297
        %5178 = vmatprep.subr.mxu0 %v4290
        %5179 = vmatpush2.msra.mxu0 %v4289
        %5180 = vmatprep.subr.mxu0 %v4282
        %5181 = vmatpush2.msra.mxu0 %v4281
        %5182 = vmatprep.subr.mxu0 %v4274
        %5183 = vmatpush2.msra.mxu0 %v4273
        %5184 = vmatprep.subr.mxu0 %v4266
        %5185 = vmatpush2.msra.mxu0 %v4265
        %5186 = vmatprep.subr.mxu0 %v4258
        %5187 = vmatpush2.msra.mxu0 %v4257
        %5188 = vmatprep.subr.mxu0 %v4250
        %5189 = vmatpush2.msra.mxu0 %v4249
        %5190 = vmatprep.subr.mxu0 %v4242
        %5191 = vmatpush2.msra.mxu0 %v4241
        %5192 = vmatprep.subr.mxu0 %v4234
        %5193 = vmatpush2.msra.mxu0 %v4233
        %5194 = vmatprep.subr.mxu0 %v4226
        %5195 = vmatpush2.msra.mxu0 %v4225
        %5196 = vmatprep.subr.mxu0 %v4218
        %5197 = vmatpush2.msra.mxu0 %v4217
        %5198 = vmatprep.subr.mxu0 %v4210
        %5199 = vmatpush2.msra.mxu0 %v4209
        %5200 = vmatprep.subr.mxu0 %v4202
        %5201 = vmatpush2.msra.mxu0 %v4201
        %5202 = vmatprep.subr.mxu0 %v4194
        %5203 = vmatpush2.msra.mxu0 %v4193
        %5204 = vmatprep.mubr.f32.mxu0 %v3292
        %5205 = vmatmul.mubr.f32.gmra.mxu0 %v3291
        %v5206 = vpop.f32.mrf.mxu0
        %v5207 = vadd.f32 %v5136, %v5206
        %v5208 = vpop.f32.mrf.mxu0
        %v5209 = vadd.f32 %v5138, %v5208
        %5210 = vdwg.mxu0
        %5211 = vmatprep.subr.mxu0 %v3420
        %5212 = vmatpush1.msra.mxu0 %v3419
        %5213 = vmatprep.subr.mxu0 %v3412
        %5214 = vmatpush1.msra.mxu0 %v3411
        %5215 = vmatprep.subr.mxu0 %v3404
        %5216 = vmatpush1.msra.mxu0 %v3403
        %5217 = vmatprep.subr.mxu0 %v3396
        %5218 = vmatpush1.msra.mxu0 %v3395
        %5219 = vmatprep.subr.mxu0 %v3388
        %5220 = vmatpush1.msra.mxu0 %v3387
        %5221 = vmatprep.subr.mxu0 %v3380
        %5222 = vmatpush1.msra.mxu0 %v3379
        %5223 = vmatprep.subr.mxu0 %v3372
        %5224 = vmatpush1.msra.mxu0 %v3371
        %5225 = vmatprep.subr.mxu0 %v3364
        %5226 = vmatpush1.msra.mxu0 %v3363
        %5227 = vmatprep.subr.mxu0 %v3356
        %5228 = vmatpush1.msra.mxu0 %v3355
        %5229 = vmatprep.subr.mxu0 %v3348
        %5230 = vmatpush1.msra.mxu0 %v3347
        %5231 = vmatprep.subr.mxu0 %v3340
        %5232 = vmatpush1.msra.mxu0 %v3339
        %5233 = vmatprep.subr.mxu0 %v3332
        %5234 = vmatpush1.msra.mxu0 %v3331
        %5235 = vmatprep.subr.mxu0 %v3324
        %5236 = vmatpush1.msra.mxu0 %v3323
        %5237 = vmatprep.subr.mxu0 %v3316
        %5238 = vmatpush1.msra.mxu0 %v3315
        %5239 = vmatprep.subr.mxu0 %v3308
        %5240 = vmatpush1.msra.mxu0 %v3307
        %5241 = vmatprep.subr.mxu0 %v3300
        %5242 = vmatpush1.msra.mxu0 %v3299
        %5243 = vmatprep.subr.mxu0 %v3548
        %5244 = vmatpush2.msra.mxu0 %v3547
        %5245 = vmatprep.subr.mxu0 %v3540
        %5246 = vmatpush2.msra.mxu0 %v3539
        %5247 = vmatprep.subr.mxu0 %v3532
        %5248 = vmatpush2.msra.mxu0 %v3531
        %5249 = vmatprep.subr.mxu0 %v3524
        %5250 = vmatpush2.msra.mxu0 %v3523
        %5251 = vmatprep.subr.mxu0 %v3516
        %5252 = vmatpush2.msra.mxu0 %v3515
        %5253 = vmatprep.subr.mxu0 %v3508
        %5254 = vmatpush2.msra.mxu0 %v3507
        %5255 = vmatprep.subr.mxu0 %v3500
        %5256 = vmatpush2.msra.mxu0 %v3499
        %5257 = vmatprep.subr.mxu0 %v3492
        %5258 = vmatpush2.msra.mxu0 %v3491
        %5259 = vmatprep.subr.mxu0 %v3484
        %5260 = vmatpush2.msra.mxu0 %v3483
        %5261 = vmatprep.subr.mxu0 %v3476
        %5262 = vmatpush2.msra.mxu0 %v3475
        %5263 = vmatprep.subr.mxu0 %v3468
        %5264 = vmatpush2.msra.mxu0 %v3467
        %5265 = vmatprep.subr.mxu0 %v3460
        %5266 = vmatpush2.msra.mxu0 %v3459
        %5267 = vmatprep.subr.mxu0 %v3452
        %5268 = vmatpush2.msra.mxu0 %v3451
        %5269 = vmatprep.subr.mxu0 %v3444
        %5270 = vmatpush2.msra.mxu0 %v3443
        %5271 = vmatprep.subr.mxu0 %v3436
        %5272 = vmatpush2.msra.mxu0 %v3435
        %5273 = vmatprep.subr.mxu0 %v3428
        %5274 = vmatpush2.msra.mxu0 %v3427
        %5275 = vmatprep.mubr.f32.mxu0 %v3286
        %5276 = vmatmul.mubr.f32.gmra.mxu0 %v3285
        %v5277 = vpop.f32.mrf.mxu0
        %v5278 = vadd.f32 %v4346, %v5277
        %v5279 = vpop.f32.mrf.mxu0
        %v5280 = vadd.f32 %v4350, %v5279
        %5281 = vdwg.mxu0
        %5282 = vmatprep.subr.mxu0 %v3676
        %5283 = vmatpush1.msra.mxu0 %v3675
        %5284 = vmatprep.subr.mxu0 %v3668
        %5285 = vmatpush1.msra.mxu0 %v3667
        %5286 = vmatprep.subr.mxu0 %v3660
        %5287 = vmatpush1.msra.mxu0 %v3659
        %5288 = vmatprep.subr.mxu0 %v3652
        %5289 = vmatpush1.msra.mxu0 %v3651
        %5290 = vmatprep.subr.mxu0 %v3644
        %5291 = vmatpush1.msra.mxu0 %v3643
        %5292 = vmatprep.subr.mxu0 %v3636
        %5293 = vmatpush1.msra.mxu0 %v3635
        %5294 = vmatprep.subr.mxu0 %v3628
        %5295 = vmatpush1.msra.mxu0 %v3627
        %5296 = vmatprep.subr.mxu0 %v3620
        %5297 = vmatpush1.msra.mxu0 %v3619
        %5298 = vmatprep.subr.mxu0 %v3612
        %5299 = vmatpush1.msra.mxu0 %v3611
        %5300 = vmatprep.subr.mxu0 %v3604
        %5301 = vmatpush1.msra.mxu0 %v3603
        %5302 = vmatprep.subr.mxu0 %v3596
        %5303 = vmatpush1.msra.mxu0 %v3595
        %5304 = vmatprep.subr.mxu0 %v3588
        %5305 = vmatpush1.msra.mxu0 %v3587
        %5306 = vmatprep.subr.mxu0 %v3580
        %5307 = vmatpush1.msra.mxu0 %v3579
        %5308 = vmatprep.subr.mxu0 %v3572
        %5309 = vmatpush1.msra.mxu0 %v3571
        %5310 = vmatprep.subr.mxu0 %v3564
        %5311 = vmatpush1.msra.mxu0 %v3563
        %5312 = vmatprep.subr.mxu0 %v3556
        %5313 = vmatpush1.msra.mxu0 %v3555
        %5314 = vmatprep.subr.mxu0 %v3804
        %5315 = vmatpush2.msra.mxu0 %v3803
        %5316 = vmatprep.subr.mxu0 %v3796
        %5317 = vmatpush2.msra.mxu0 %v3795
        %5318 = vmatprep.subr.mxu0 %v3788
        %5319 = vmatpush2.msra.mxu0 %v3787
        %5320 = vmatprep.subr.mxu0 %v3780
        %5321 = vmatpush2.msra.mxu0 %v3779
        %5322 = vmatprep.subr.mxu0 %v3772
        %5323 = vmatpush2.msra.mxu0 %v3771
        %5324 = vmatprep.subr.mxu0 %v3764
        %5325 = vmatpush2.msra.mxu0 %v3763
        %5326 = vmatprep.subr.mxu0 %v3756
        %5327 = vmatpush2.msra.mxu0 %v3755
        %5328 = vmatprep.subr.mxu0 %v3748
        %5329 = vmatpush2.msra.mxu0 %v3747
        %5330 = vmatprep.subr.mxu0 %v3740
        %5331 = vmatpush2.msra.mxu0 %v3739
        %5332 = vmatprep.subr.mxu0 %v3732
        %5333 = vmatpush2.msra.mxu0 %v3731
        %5334 = vmatprep.subr.mxu0 %v3724
        %5335 = vmatpush2.msra.mxu0 %v3723
        %5336 = vmatprep.subr.mxu0 %v3716
        %5337 = vmatpush2.msra.mxu0 %v3715
        %5338 = vmatprep.subr.mxu0 %v3708
        %5339 = vmatpush2.msra.mxu0 %v3707
        %5340 = vmatprep.subr.mxu0 %v3700
        %5341 = vmatpush2.msra.mxu0 %v3699
        %5342 = vmatprep.subr.mxu0 %v3692
        %5343 = vmatpush2.msra.mxu0 %v3691
        %5344 = vmatprep.subr.mxu0 %v3684
        %5345 = vmatpush2.msra.mxu0 %v3683
        %5346 = vmatprep.mubr.f32.mxu0 %v3288
        %5347 = vmatmul.mubr.f32.gmra.mxu0 %v3287
        %v5348 = vpop.f32.mrf.mxu0
        %v5349 = vadd.f32 %v5278, %v5348
        %v5350 = vpop.f32.mrf.mxu0
        %v5351 = vadd.f32 %v5280, %v5350
        %5352 = vdwg.mxu0
        %5353 = vmatprep.subr.mxu0 %v3932
        %5354 = vmatpush1.msra.mxu0 %v3931
        %5355 = vmatprep.subr.mxu0 %v3924
        %5356 = vmatpush1.msra.mxu0 %v3923
        %5357 = vmatprep.subr.mxu0 %v3916
        %5358 = vmatpush1.msra.mxu0 %v3915
        %5359 = vmatprep.subr.mxu0 %v3908
        %5360 = vmatpush1.msra.mxu0 %v3907
        %5361 = vmatprep.subr.mxu0 %v3900
        %5362 = vmatpush1.msra.mxu0 %v3899
        %5363 = vmatprep.subr.mxu0 %v3892
        %5364 = vmatpush1.msra.mxu0 %v3891
        %5365 = vmatprep.subr.mxu0 %v3884
        %5366 = vmatpush1.msra.mxu0 %v3883
        %5367 = vmatprep.subr.mxu0 %v3876
        %5368 = vmatpush1.msra.mxu0 %v3875
        %5369 = vmatprep.subr.mxu0 %v3868
        %5370 = vmatpush1.msra.mxu0 %v3867
        %5371 = vmatprep.subr.mxu0 %v3860
        %5372 = vmatpush1.msra.mxu0 %v3859
        %5373 = vmatprep.subr.mxu0 %v3852
        %5374 = vmatpush1.msra.mxu0 %v3851
        %5375 = vmatprep.subr.mxu0 %v3844
        %5376 = vmatpush1.msra.mxu0 %v3843
        %5377 = vmatprep.subr.mxu0 %v3836
        %5378 = vmatpush1.msra.mxu0 %v3835
        %5379 = vmatprep.subr.mxu0 %v3828
        %5380 = vmatpush1.msra.mxu0 %v3827
        %5381 = vmatprep.subr.mxu0 %v3820
        %5382 = vmatpush1.msra.mxu0 %v3819
        %5383 = vmatprep.subr.mxu0 %v3812
        %5384 = vmatpush1.msra.mxu0 %v3811
        %5385 = vmatprep.subr.mxu0 %v4060
        %5386 = vmatpush2.msra.mxu0 %v4059
        %5387 = vmatprep.subr.mxu0 %v4052
        %5388 = vmatpush2.msra.mxu0 %v4051
        %5389 = vmatprep.subr.mxu0 %v4044
        %5390 = vmatpush2.msra.mxu0 %v4043
        %5391 = vmatprep.subr.mxu0 %v4036
        %5392 = vmatpush2.msra.mxu0 %v4035
        %5393 = vmatprep.subr.mxu0 %v4028
        %5394 = vmatpush2.msra.mxu0 %v4027
        %5395 = vmatprep.subr.mxu0 %v4020
        %5396 = vmatpush2.msra.mxu0 %v4019
        %5397 = vmatprep.subr.mxu0 %v4012
        %5398 = vmatpush2.msra.mxu0 %v4011
        %5399 = vmatprep.subr.mxu0 %v4004
        %5400 = vmatpush2.msra.mxu0 %v4003
        %5401 = vmatprep.subr.mxu0 %v3996
        %5402 = vmatpush2.msra.mxu0 %v3995
        %5403 = vmatprep.subr.mxu0 %v3988
        %5404 = vmatpush2.msra.mxu0 %v3987
        %5405 = vmatprep.subr.mxu0 %v3980
        %5406 = vmatpush2.msra.mxu0 %v3979
        %5407 = vmatprep.subr.mxu0 %v3972
        %5408 = vmatpush2.msra.mxu0 %v3971
        %5409 = vmatprep.subr.mxu0 %v3964
        %5410 = vmatpush2.msra.mxu0 %v3963
        %5411 = vmatprep.subr.mxu0 %v3956
        %5412 = vmatpush2.msra.mxu0 %v3955
        %5413 = vmatprep.subr.mxu0 %v3948
        %5414 = vmatpush2.msra.mxu0 %v3947
        %5415 = vmatprep.subr.mxu0 %v3940
        %5416 = vmatpush2.msra.mxu0 %v3939
        %5417 = vmatprep.mubr.f32.mxu0 %v3290
        %5418 = vmatmul.mubr.f32.gmra.mxu0 %v3289
        %v5419 = vpop.f32.mrf.mxu0
        %v5420 = vadd.f32 %v5349, %v5419
        %v5421 = vpop.f32.mrf.mxu0
        %v5422 = vadd.f32 %v5351, %v5421
        %5423 = vdwg.mxu0
        %5424 = vmatprep.subr.mxu0 %v4188
        %5425 = vmatpush1.msra.mxu0 %v4187
        %5426 = vmatprep.subr.mxu0 %v4180
        %5427 = vmatpush1.msra.mxu0 %v4179
        %5428 = vmatprep.subr.mxu0 %v4172
        %5429 = vmatpush1.msra.mxu0 %v4171
        %5430 = vmatprep.subr.mxu0 %v4164
        %5431 = vmatpush1.msra.mxu0 %v4163
        %5432 = vmatprep.subr.mxu0 %v4156
        %5433 = vmatpush1.msra.mxu0 %v4155
        %5434 = vmatprep.subr.mxu0 %v4148
        %5435 = vmatpush1.msra.mxu0 %v4147
        %5436 = vmatprep.subr.mxu0 %v4140
        %5437 = vmatpush1.msra.mxu0 %v4139
        %5438 = vmatprep.subr.mxu0 %v4132
        %5439 = vmatpush1.msra.mxu0 %v4131
        %5440 = vmatprep.subr.mxu0 %v4124
        %5441 = vmatpush1.msra.mxu0 %v4123
        %5442 = vmatprep.subr.mxu0 %v4116
        %5443 = vmatpush1.msra.mxu0 %v4115
        %5444 = vmatprep.subr.mxu0 %v4108
        %5445 = vmatpush1.msra.mxu0 %v4107
        %5446 = vmatprep.subr.mxu0 %v4100
        %5447 = vmatpush1.msra.mxu0 %v4099
        %5448 = vmatprep.subr.mxu0 %v4092
        %5449 = vmatpush1.msra.mxu0 %v4091
        %5450 = vmatprep.subr.mxu0 %v4084
        %5451 = vmatpush1.msra.mxu0 %v4083
        %5452 = vmatprep.subr.mxu0 %v4076
        %5453 = vmatpush1.msra.mxu0 %v4075
        %5454 = vmatprep.subr.mxu0 %v4068
        %5455 = vmatpush1.msra.mxu0 %v4067
        %5456 = vmatprep.subr.mxu0 %v4316
        %5457 = vmatpush2.msra.mxu0 %v4315
        %5458 = vmatprep.subr.mxu0 %v4308
        %5459 = vmatpush2.msra.mxu0 %v4307
        %5460 = vmatprep.subr.mxu0 %v4300
        %5461 = vmatpush2.msra.mxu0 %v4299
        %5462 = vmatprep.subr.mxu0 %v4292
        %5463 = vmatpush2.msra.mxu0 %v4291
        %5464 = vmatprep.subr.mxu0 %v4284
        %5465 = vmatpush2.msra.mxu0 %v4283
        %5466 = vmatprep.subr.mxu0 %v4276
        %5467 = vmatpush2.msra.mxu0 %v4275
        %5468 = vmatprep.subr.mxu0 %v4268
        %5469 = vmatpush2.msra.mxu0 %v4267
        %5470 = vmatprep.subr.mxu0 %v4260
        %5471 = vmatpush2.msra.mxu0 %v4259
        %5472 = vmatprep.subr.mxu0 %v4252
        %5473 = vmatpush2.msra.mxu0 %v4251
        %5474 = vmatprep.subr.mxu0 %v4244
        %5475 = vmatpush2.msra.mxu0 %v4243
        %5476 = vmatprep.subr.mxu0 %v4236
        %5477 = vmatpush2.msra.mxu0 %v4235
        %5478 = vmatprep.subr.mxu0 %v4228
        %5479 = vmatpush2.msra.mxu0 %v4227
        %5480 = vmatprep.subr.mxu0 %v4220
        %5481 = vmatpush2.msra.mxu0 %v4219
        %5482 = vmatprep.subr.mxu0 %v4212
        %5483 = vmatpush2.msra.mxu0 %v4211
        %5484 = vmatprep.subr.mxu0 %v4204
        %5485 = vmatpush2.msra.mxu0 %v4203
        %5486 = vmatprep.subr.mxu0 %v4196
        %5487 = vmatpush2.msra.mxu0 %v4195
        %5488 = vmatprep.mubr.f32.mxu0 %v3292
        %5489 = vmatmul.mubr.f32.gmra.mxu0 %v3291
        %v5490 = vpop.f32.mrf.mxu0
        %v5491 = vadd.f32 %v5420, %v5490
        %v5492 = vpop.f32.mrf.mxu0
        %v5493 = vadd.f32 %v5422, %v5492
        %5494 = vdwg.mxu0
        %v5495 = vmax.f32 %v4639, 0.0
        %v5496 = vmax.f32 %v4641, 0.0
        %v5497 = vmax.f32 %v4923, 0.0
        %v5498 = vmax.f32 %v4925, 0.0
        %v5499 = vmax.f32 %v5207, 0.0
        %v5500 = vmax.f32 %v5209, 0.0
        %v5501 = vmax.f32 %v5491, 0.0
        %v5502 = vmax.f32 %v5493, 0.0
        %v5503 = vld [vmem:[%s543] sm:$0xff]
        %v5504 = vld [vmem:[%s543 + $0x8] sm:$0xff]
        %v5505 = vld [vmem:[%s543 + $0x10] sm:$0xff]
        %v5506 = vld [vmem:[%s543 + $0x18] sm:$0xff]
        %v5507 = vld [vmem:[%s543 + $0x20] sm:$0xff]
        %v5508 = vld [vmem:[%s543 + $0x28] sm:$0xff]
        %v5509 = vld [vmem:[%s543 + $0x30] sm:$0xff]
        %v5510 = vld [vmem:[%s543 + $0x38] sm:$0xff]
        %v5511 = vld [vmem:[%s543 + $0x40] sm:$0xff]
        %v5512 = vld [vmem:[%s543 + $0x48] sm:$0xff]
        %v5513 = vld [vmem:[%s543 + $0x50] sm:$0xff]
        %v5514 = vld [vmem:[%s543 + $0x58] sm:$0xff]
        %v5515 = vld [vmem:[%s543 + $0x60] sm:$0xff]
        %v5516 = vld [vmem:[%s543 + $0x68] sm:$0xff]
        %v5517 = vld [vmem:[%s543 + $0x70] sm:$0xff]
        %v5518 = vld [vmem:[%s543 + $0x78] sm:$0xff]
        %v5519 = vld [vmem:[%s543 + $0x80] sm:$0xff]
        %v5520 = vld [vmem:[%s543 + $0x88] sm:$0xff]
        %v5521 = vld [vmem:[%s543 + $0x90] sm:$0xff]
        %v5522 = vld [vmem:[%s543 + $0x98] sm:$0xff]
        %v5523 = vld [vmem:[%s543 + $0xa0] sm:$0xff]
        %v5524 = vld [vmem:[%s543 + $0xa8] sm:$0xff]
        %v5525 = vld [vmem:[%s543 + $0xb0] sm:$0xff]
        %v5526 = vld [vmem:[%s543 + $0xb8] sm:$0xff]
        %v5527 = vld [vmem:[%s543 + $0xc0] sm:$0xff]
        %v5528 = vld [vmem:[%s543 + $0xc8] sm:$0xff]
        %v5529 = vld [vmem:[%s543 + $0xd0] sm:$0xff]
        %v5530 = vld [vmem:[%s543 + $0xd8] sm:$0xff]
        %v5531 = vld [vmem:[%s543 + $0xe0] sm:$0xff]
        %v5532 = vld [vmem:[%s543 + $0xe8] sm:$0xff]
        %v5533 = vld [vmem:[%s543 + $0xf0] sm:$0xff]
        %v5534 = vld [vmem:[%s543 + $0xf8] sm:$0xff]
        %v5535 = vld [vmem:[%s543 + $0x100] sm:$0xff]
        %v5536 = vld [vmem:[%s543 + $0x108] sm:$0xff]
        %v5537 = vld [vmem:[%s543 + $0x110] sm:$0xff]
        %v5538 = vld [vmem:[%s543 + $0x118] sm:$0xff]
        %v5539 = vld [vmem:[%s543 + $0x120] sm:$0xff]
        %v5540 = vld [vmem:[%s543 + $0x128] sm:$0xff]
        %v5541 = vld [vmem:[%s543 + $0x130] sm:$0xff]
        %v5542 = vld [vmem:[%s543 + $0x138] sm:$0xff]
        %v5543 = vld [vmem:[%s543 + $0x140] sm:$0xff]
        %v5544 = vld [vmem:[%s543 + $0x148] sm:$0xff]
        %v5545 = vld [vmem:[%s543 + $0x150] sm:$0xff]
        %v5546 = vld [vmem:[%s543 + $0x158] sm:$0xff]
        %v5547 = vld [vmem:[%s543 + $0x160] sm:$0xff]
        %v5548 = vld [vmem:[%s543 + $0x168] sm:$0xff]
        %v5549 = vld [vmem:[%s543 + $0x170] sm:$0xff]
        %v5550 = vld [vmem:[%s543 + $0x178] sm:$0xff]
        %v5551 = vld [vmem:[%s543 + $0x180] sm:$0xff]
        %v5552 = vld [vmem:[%s543 + $0x188] sm:$0xff]
        %v5553 = vld [vmem:[%s543 + $0x190] sm:$0xff]
        %v5554 = vld [vmem:[%s543 + $0x198] sm:$0xff]
        %v5555 = vld [vmem:[%s543 + $0x1a0] sm:$0xff]
        %v5556 = vld [vmem:[%s543 + $0x1a8] sm:$0xff]
        %v5557 = vld [vmem:[%s543 + $0x1b0] sm:$0xff]
        %v5558 = vld [vmem:[%s543 + $0x1b8] sm:$0xff]
        %v5559 = vld [vmem:[%s543 + $0x1c0] sm:$0xff]
        %v5560 = vld [vmem:[%s543 + $0x1c8] sm:$0xff]
        %v5561 = vld [vmem:[%s543 + $0x1d0] sm:$0xff]
        %v5562 = vld [vmem:[%s543 + $0x1d8] sm:$0xff]
        %v5563 = vld [vmem:[%s543 + $0x1e0] sm:$0xff]
        %v5564 = vld [vmem:[%s543 + $0x1e8] sm:$0xff]
        %v5565 = vld [vmem:[%s543 + $0x1f0] sm:$0xff]
        %v5566 = vld [vmem:[%s543 + $0x1f8] sm:$0xff]
        %v5567 = vld [vmem:[%s543 + $0x200] sm:$0xff]
        %v5568 = vld [vmem:[%s543 + $0x208] sm:$0xff]
        %v5569 = vld [vmem:[%s543 + $0x210] sm:$0xff]
        %v5570 = vld [vmem:[%s543 + $0x218] sm:$0xff]
        %v5571 = vld [vmem:[%s543 + $0x220] sm:$0xff]
        %v5572 = vld [vmem:[%s543 + $0x228] sm:$0xff]
        %v5573 = vld [vmem:[%s543 + $0x230] sm:$0xff]
        %v5574 = vld [vmem:[%s543 + $0x238] sm:$0xff]
        %v5575 = vld [vmem:[%s543 + $0x240] sm:$0xff]
        %v5576 = vld [vmem:[%s543 + $0x248] sm:$0xff]
        %v5577 = vld [vmem:[%s543 + $0x250] sm:$0xff]
        %v5578 = vld [vmem:[%s543 + $0x258] sm:$0xff]
        %v5579 = vld [vmem:[%s543 + $0x260] sm:$0xff]
        %v5580 = vld [vmem:[%s543 + $0x268] sm:$0xff]
        %v5581 = vld [vmem:[%s543 + $0x270] sm:$0xff]
        %v5582 = vld [vmem:[%s543 + $0x278] sm:$0xff]
        %v5583 = vld [vmem:[%s543 + $0x280] sm:$0xff]
        %v5584 = vld [vmem:[%s543 + $0x288] sm:$0xff]
        %v5585 = vld [vmem:[%s543 + $0x290] sm:$0xff]
        %v5586 = vld [vmem:[%s543 + $0x298] sm:$0xff]
        %v5587 = vld [vmem:[%s543 + $0x2a0] sm:$0xff]
        %v5588 = vld [vmem:[%s543 + $0x2a8] sm:$0xff]
        %v5589 = vld [vmem:[%s543 + $0x2b0] sm:$0xff]
        %v5590 = vld [vmem:[%s543 + $0x2b8] sm:$0xff]
        %v5591 = vld [vmem:[%s543 + $0x2c0] sm:$0xff]
        %v5592 = vld [vmem:[%s543 + $0x2c8] sm:$0xff]
        %v5593 = vld [vmem:[%s543 + $0x2d0] sm:$0xff]
        %v5594 = vld [vmem:[%s543 + $0x2d8] sm:$0xff]
        %v5595 = vld [vmem:[%s543 + $0x2e0] sm:$0xff]
        %v5596 = vld [vmem:[%s543 + $0x2e8] sm:$0xff]
        %v5597 = vld [vmem:[%s543 + $0x2f0] sm:$0xff]
        %v5598 = vld [vmem:[%s543 + $0x2f8] sm:$0xff]
        %v5599 = vld [vmem:[%s543 + $0x300] sm:$0xff]
        %v5600 = vld [vmem:[%s543 + $0x308] sm:$0xff]
        %v5601 = vld [vmem:[%s543 + $0x310] sm:$0xff]
        %v5602 = vld [vmem:[%s543 + $0x318] sm:$0xff]
        %v5603 = vld [vmem:[%s543 + $0x320] sm:$0xff]
        %v5604 = vld [vmem:[%s543 + $0x328] sm:$0xff]
        %v5605 = vld [vmem:[%s543 + $0x330] sm:$0xff]
        %v5606 = vld [vmem:[%s543 + $0x338] sm:$0xff]
        %v5607 = vld [vmem:[%s543 + $0x340] sm:$0xff]
        %v5608 = vld [vmem:[%s543 + $0x348] sm:$0xff]
        %v5609 = vld [vmem:[%s543 + $0x350] sm:$0xff]
        %v5610 = vld [vmem:[%s543 + $0x358] sm:$0xff]
        %v5611 = vld [vmem:[%s543 + $0x360] sm:$0xff]
        %v5612 = vld [vmem:[%s543 + $0x368] sm:$0xff]
        %v5613 = vld [vmem:[%s543 + $0x370] sm:$0xff]
        %v5614 = vld [vmem:[%s543 + $0x378] sm:$0xff]
        %v5615 = vld [vmem:[%s543 + $0x380] sm:$0xff]
        %v5616 = vld [vmem:[%s543 + $0x388] sm:$0xff]
        %v5617 = vld [vmem:[%s543 + $0x390] sm:$0xff]
        %v5618 = vld [vmem:[%s543 + $0x398] sm:$0xff]
        %v5619 = vld [vmem:[%s543 + $0x3a0] sm:$0xff]
        %v5620 = vld [vmem:[%s543 + $0x3a8] sm:$0xff]
        %v5621 = vld [vmem:[%s543 + $0x3b0] sm:$0xff]
        %v5622 = vld [vmem:[%s543 + $0x3b8] sm:$0xff]
        %v5623 = vld [vmem:[%s543 + $0x3c0] sm:$0xff]
        %v5624 = vld [vmem:[%s543 + $0x3c8] sm:$0xff]
        %v5625 = vld [vmem:[%s543 + $0x3d0] sm:$0xff]
        %v5626 = vld [vmem:[%s543 + $0x3d8] sm:$0xff]
        %v5627 = vld [vmem:[%s543 + $0x3e0] sm:$0xff]
        %v5628 = vld [vmem:[%s543 + $0x3e8] sm:$0xff]
        %v5629 = vld [vmem:[%s543 + $0x3f0] sm:$0xff]
        %v5630 = vld [vmem:[%s543 + $0x3f8] sm:$0xff]
        %v5631 = vld [vmem:[%s551] sm:$0x1]
        %v5633 = vlaneseq
        %v5634 = vshrl.u32 %v5633, 7
        %v5635 = vsub.s32 0, %v5634
        %v5636 = vrot.slane %v5631, %v5635
        %5638 = vmatprep.subr.mxu0 0.0
        %5639 = vmatpush1.msra.mxu0 %v5518
        %5640 = vmatprep.subr.mxu0 0.0
        %5641 = vmatpush1.msra.mxu0 %v5517
        %5642 = vmatprep.subr.mxu0 0.0
        %5643 = vmatpush1.msra.mxu0 %v5516
        %5644 = vmatprep.subr.mxu0 0.0
        %5645 = vmatpush1.msra.mxu0 %v5515
        %5646 = vmatprep.subr.mxu0 0.0
        %5647 = vmatpush1.msra.mxu0 %v5514
        %5648 = vmatprep.subr.mxu0 0.0
        %5649 = vmatpush1.msra.mxu0 %v5513
        %5650 = vmatprep.subr.mxu0 0.0
        %5651 = vmatpush1.msra.mxu0 %v5512
        %5652 = vmatprep.subr.mxu0 0.0
        %5653 = vmatpush1.msra.mxu0 %v5511
        %5654 = vmatprep.subr.mxu0 0.0
        %5655 = vmatpush1.msra.mxu0 %v5510
        %5656 = vmatprep.subr.mxu0 0.0
        %5657 = vmatpush1.msra.mxu0 %v5509
        %5658 = vmatprep.subr.mxu0 0.0
        %5659 = vmatpush1.msra.mxu0 %v5508
        %5660 = vmatprep.subr.mxu0 0.0
        %5661 = vmatpush1.msra.mxu0 %v5507
        %5662 = vmatprep.subr.mxu0 0.0
        %5663 = vmatpush1.msra.mxu0 %v5506
        %5664 = vmatprep.subr.mxu0 0.0
        %5665 = vmatpush1.msra.mxu0 %v5505
        %5666 = vmatprep.subr.mxu0 0.0
        %5667 = vmatpush1.msra.mxu0 %v5504
        %5668 = vmatprep.subr.mxu0 0.0
        %5669 = vmatpush1.msra.mxu0 %v5503
        %5670 = vmatprep.subr.mxu0 0.0
        %5671 = vmatpush2.msra.mxu0 %v5534
        %5672 = vmatprep.subr.mxu0 0.0
        %5673 = vmatpush2.msra.mxu0 %v5533
        %5674 = vmatprep.subr.mxu0 0.0
        %5675 = vmatpush2.msra.mxu0 %v5532
        %5676 = vmatprep.subr.mxu0 0.0
        %5677 = vmatpush2.msra.mxu0 %v5531
        %5678 = vmatprep.subr.mxu0 0.0
        %5679 = vmatpush2.msra.mxu0 %v5530
        %5680 = vmatprep.subr.mxu0 0.0
        %5681 = vmatpush2.msra.mxu0 %v5529
        %5682 = vmatprep.subr.mxu0 0.0
        %5683 = vmatpush2.msra.mxu0 %v5528
        %5684 = vmatprep.subr.mxu0 0.0
        %5685 = vmatpush2.msra.mxu0 %v5527
        %5686 = vmatprep.subr.mxu0 0.0
        %5687 = vmatpush2.msra.mxu0 %v5526
        %5688 = vmatprep.subr.mxu0 0.0
        %5689 = vmatpush2.msra.mxu0 %v5525
        %5690 = vmatprep.subr.mxu0 0.0
        %5691 = vmatpush2.msra.mxu0 %v5524
        %5692 = vmatprep.subr.mxu0 0.0
        %5693 = vmatpush2.msra.mxu0 %v5523
        %5694 = vmatprep.subr.mxu0 0.0
        %5695 = vmatpush2.msra.mxu0 %v5522
        %5696 = vmatprep.subr.mxu0 0.0
        %5697 = vmatpush2.msra.mxu0 %v5521
        %5698 = vmatprep.subr.mxu0 0.0
        %5699 = vmatpush2.msra.mxu0 %v5520
        %5700 = vmatprep.subr.mxu0 0.0
        %5701 = vmatpush2.msra.mxu0 %v5519
        %5702 = vmatprep.mubr.f32.mxu0 %v5496
        %5703 = vmatmul.mubr.f32.gmra.mxu0 %v5495
        %v5704 = vpop.f32.mrf.mxu0
        %v5705 = vadd.f32 %v5636, %v5704
        %v5706 = vpop.f32.mrf.mxu0
        %5707 = vdwg.mxu0
        %5708 = vmatprep.subr.mxu0 0.0
        %5709 = vmatpush1.msra.mxu0 %v5550
        %5710 = vmatprep.subr.mxu0 0.0
        %5711 = vmatpush1.msra.mxu0 %v5549
        %5712 = vmatprep.subr.mxu0 0.0
        %5713 = vmatpush1.msra.mxu0 %v5548
        %5714 = vmatprep.subr.mxu0 0.0
        %5715 = vmatpush1.msra.mxu0 %v5547
        %5716 = vmatprep.subr.mxu0 0.0
        %5717 = vmatpush1.msra.mxu0 %v5546
        %5718 = vmatprep.subr.mxu0 0.0
        %5719 = vmatpush1.msra.mxu0 %v5545
        %5720 = vmatprep.subr.mxu0 0.0
        %5721 = vmatpush1.msra.mxu0 %v5544
        %5722 = vmatprep.subr.mxu0 0.0
        %5723 = vmatpush1.msra.mxu0 %v5543
        %5724 = vmatprep.subr.mxu0 0.0
        %5725 = vmatpush1.msra.mxu0 %v5542
        %5726 = vmatprep.subr.mxu0 0.0
        %5727 = vmatpush1.msra.mxu0 %v5541
        %5728 = vmatprep.subr.mxu0 0.0
        %5729 = vmatpush1.msra.mxu0 %v5540
        %5730 = vmatprep.subr.mxu0 0.0
        %5731 = vmatpush1.msra.mxu0 %v5539
        %5732 = vmatprep.subr.mxu0 0.0
        %5733 = vmatpush1.msra.mxu0 %v5538
        %5734 = vmatprep.subr.mxu0 0.0
        %5735 = vmatpush1.msra.mxu0 %v5537
        %5736 = vmatprep.subr.mxu0 0.0
        %5737 = vmatpush1.msra.mxu0 %v5536
        %5738 = vmatprep.subr.mxu0 0.0
        %5739 = vmatpush1.msra.mxu0 %v5535
        %5740 = vmatprep.subr.mxu0 0.0
        %5741 = vmatpush2.msra.mxu0 %v5566
        %5742 = vmatprep.subr.mxu0 0.0
        %5743 = vmatpush2.msra.mxu0 %v5565
        %5744 = vmatprep.subr.mxu0 0.0
        %5745 = vmatpush2.msra.mxu0 %v5564
        %5746 = vmatprep.subr.mxu0 0.0
        %5747 = vmatpush2.msra.mxu0 %v5563
        %5748 = vmatprep.subr.mxu0 0.0
        %5749 = vmatpush2.msra.mxu0 %v5562
        %5750 = vmatprep.subr.mxu0 0.0
        %5751 = vmatpush2.msra.mxu0 %v5561
        %5752 = vmatprep.subr.mxu0 0.0
        %5753 = vmatpush2.msra.mxu0 %v5560
        %5754 = vmatprep.subr.mxu0 0.0
        %5755 = vmatpush2.msra.mxu0 %v5559
        %5756 = vmatprep.subr.mxu0 0.0
        %5757 = vmatpush2.msra.mxu0 %v5558
        %5758 = vmatprep.subr.mxu0 0.0
        %5759 = vmatpush2.msra.mxu0 %v5557
        %5760 = vmatprep.subr.mxu0 0.0
        %5761 = vmatpush2.msra.mxu0 %v5556
        %5762 = vmatprep.subr.mxu0 0.0
        %5763 = vmatpush2.msra.mxu0 %v5555
        %5764 = vmatprep.subr.mxu0 0.0
        %5765 = vmatpush2.msra.mxu0 %v5554
        %5766 = vmatprep.subr.mxu0 0.0
        %5767 = vmatpush2.msra.mxu0 %v5553
        %5768 = vmatprep.subr.mxu0 0.0
        %5769 = vmatpush2.msra.mxu0 %v5552
        %5770 = vmatprep.subr.mxu0 0.0
        %5771 = vmatpush2.msra.mxu0 %v5551
        %5772 = vmatprep.mubr.f32.mxu0 %v5498
        %5773 = vmatmul.mubr.f32.gmra.mxu0 %v5497
        %v5774 = vpop.f32.mrf.mxu0
        %v5775 = vadd.f32 %v5705, %v5774
        %v5776 = vpop.f32.mrf.mxu0
        %5777 = vdwg.mxu0
        %5778 = vmatprep.subr.mxu0 0.0
        %5779 = vmatpush1.msra.mxu0 %v5582
        %5780 = vmatprep.subr.mxu0 0.0
        %5781 = vmatpush1.msra.mxu0 %v5581
        %5782 = vmatprep.subr.mxu0 0.0
        %5783 = vmatpush1.msra.mxu0 %v5580
        %5784 = vmatprep.subr.mxu0 0.0
        %5785 = vmatpush1.msra.mxu0 %v5579
        %5786 = vmatprep.subr.mxu0 0.0
        %5787 = vmatpush1.msra.mxu0 %v5578
        %5788 = vmatprep.subr.mxu0 0.0
        %5789 = vmatpush1.msra.mxu0 %v5577
        %5790 = vmatprep.subr.mxu0 0.0
        %5791 = vmatpush1.msra.mxu0 %v5576
        %5792 = vmatprep.subr.mxu0 0.0
        %5793 = vmatpush1.msra.mxu0 %v5575
        %5794 = vmatprep.subr.mxu0 0.0
        %5795 = vmatpush1.msra.mxu0 %v5574
        %5796 = vmatprep.subr.mxu0 0.0
        %5797 = vmatpush1.msra.mxu0 %v5573
        %5798 = vmatprep.subr.mxu0 0.0
        %5799 = vmatpush1.msra.mxu0 %v5572
        %5800 = vmatprep.subr.mxu0 0.0
        %5801 = vmatpush1.msra.mxu0 %v5571
        %5802 = vmatprep.subr.mxu0 0.0
        %5803 = vmatpush1.msra.mxu0 %v5570
        %5804 = vmatprep.subr.mxu0 0.0
        %5805 = vmatpush1.msra.mxu0 %v5569
        %5806 = vmatprep.subr.mxu0 0.0
        %5807 = vmatpush1.msra.mxu0 %v5568
        %5808 = vmatprep.subr.mxu0 0.0
        %5809 = vmatpush1.msra.mxu0 %v5567
        %5810 = vmatprep.subr.mxu0 0.0
        %5811 = vmatpush2.msra.mxu0 %v5598
        %5812 = vmatprep.subr.mxu0 0.0
        %5813 = vmatpush2.msra.mxu0 %v5597
        %5814 = vmatprep.subr.mxu0 0.0
        %5815 = vmatpush2.msra.mxu0 %v5596
        %5816 = vmatprep.subr.mxu0 0.0
        %5817 = vmatpush2.msra.mxu0 %v5595
        %5818 = vmatprep.subr.mxu0 0.0
        %5819 = vmatpush2.msra.mxu0 %v5594
        %5820 = vmatprep.subr.mxu0 0.0
        %5821 = vmatpush2.msra.mxu0 %v5593
        %5822 = vmatprep.subr.mxu0 0.0
        %5823 = vmatpush2.msra.mxu0 %v5592
        %5824 = vmatprep.subr.mxu0 0.0
        %5825 = vmatpush2.msra.mxu0 %v5591
        %5826 = vmatprep.subr.mxu0 0.0
        %5827 = vmatpush2.msra.mxu0 %v5590
        %5828 = vmatprep.subr.mxu0 0.0
        %5829 = vmatpush2.msra.mxu0 %v5589
        %5830 = vmatprep.subr.mxu0 0.0
        %5831 = vmatpush2.msra.mxu0 %v5588
        %5832 = vmatprep.subr.mxu0 0.0
        %5833 = vmatpush2.msra.mxu0 %v5587
        %5834 = vmatprep.subr.mxu0 0.0
        %5835 = vmatpush2.msra.mxu0 %v5586
        %5836 = vmatprep.subr.mxu0 0.0
        %5837 = vmatpush2.msra.mxu0 %v5585
        %5838 = vmatprep.subr.mxu0 0.0
        %5839 = vmatpush2.msra.mxu0 %v5584
        %5840 = vmatprep.subr.mxu0 0.0
        %5841 = vmatpush2.msra.mxu0 %v5583
        %5842 = vmatprep.mubr.f32.mxu0 %v5500
        %5843 = vmatmul.mubr.f32.gmra.mxu0 %v5499
        %v5844 = vpop.f32.mrf.mxu0
        %v5845 = vadd.f32 %v5775, %v5844
        %v5846 = vpop.f32.mrf.mxu0
        %5847 = vdwg.mxu0
        %5848 = vmatprep.subr.mxu0 0.0
        %5849 = vmatpush1.msra.mxu0 %v5614
        %5850 = vmatprep.subr.mxu0 0.0
        %5851 = vmatpush1.msra.mxu0 %v5613
        %5852 = vmatprep.subr.mxu0 0.0
        %5853 = vmatpush1.msra.mxu0 %v5612
        %5854 = vmatprep.subr.mxu0 0.0
        %5855 = vmatpush1.msra.mxu0 %v5611
        %5856 = vmatprep.subr.mxu0 0.0
        %5857 = vmatpush1.msra.mxu0 %v5610
        %5858 = vmatprep.subr.mxu0 0.0
        %5859 = vmatpush1.msra.mxu0 %v5609
        %5860 = vmatprep.subr.mxu0 0.0
        %5861 = vmatpush1.msra.mxu0 %v5608
        %5862 = vmatprep.subr.mxu0 0.0
        %5863 = vmatpush1.msra.mxu0 %v5607
        %5864 = vmatprep.subr.mxu0 0.0
        %5865 = vmatpush1.msra.mxu0 %v5606
        %5866 = vmatprep.subr.mxu0 0.0
        %5867 = vmatpush1.msra.mxu0 %v5605
        %5868 = vmatprep.subr.mxu0 0.0
        %5869 = vmatpush1.msra.mxu0 %v5604
        %5870 = vmatprep.subr.mxu0 0.0
        %5871 = vmatpush1.msra.mxu0 %v5603
        %5872 = vmatprep.subr.mxu0 0.0
        %5873 = vmatpush1.msra.mxu0 %v5602
        %5874 = vmatprep.subr.mxu0 0.0
        %5875 = vmatpush1.msra.mxu0 %v5601
        %5876 = vmatprep.subr.mxu0 0.0
        %5877 = vmatpush1.msra.mxu0 %v5600
        %5878 = vmatprep.subr.mxu0 0.0
        %5879 = vmatpush1.msra.mxu0 %v5599
        %5880 = vmatprep.subr.mxu0 0.0
        %5881 = vmatpush2.msra.mxu0 %v5630
        %5882 = vmatprep.subr.mxu0 0.0
        %5883 = vmatpush2.msra.mxu0 %v5629
        %5884 = vmatprep.subr.mxu0 0.0
        %5885 = vmatpush2.msra.mxu0 %v5628
        %5886 = vmatprep.subr.mxu0 0.0
        %5887 = vmatpush2.msra.mxu0 %v5627
        %5888 = vmatprep.subr.mxu0 0.0
        %5889 = vmatpush2.msra.mxu0 %v5626
        %5890 = vmatprep.subr.mxu0 0.0
        %5891 = vmatpush2.msra.mxu0 %v5625
        %5892 = vmatprep.subr.mxu0 0.0
        %5893 = vmatpush2.msra.mxu0 %v5624
        %5894 = vmatprep.subr.mxu0 0.0
        %5895 = vmatpush2.msra.mxu0 %v5623
        %5896 = vmatprep.subr.mxu0 0.0
        %5897 = vmatpush2.msra.mxu0 %v5622
        %5898 = vmatprep.subr.mxu0 0.0
        %5899 = vmatpush2.msra.mxu0 %v5621
        %5900 = vmatprep.subr.mxu0 0.0
        %5901 = vmatpush2.msra.mxu0 %v5620
        %5902 = vmatprep.subr.mxu0 0.0
        %5903 = vmatpush2.msra.mxu0 %v5619
        %5904 = vmatprep.subr.mxu0 0.0
        %5905 = vmatpush2.msra.mxu0 %v5618
        %5906 = vmatprep.subr.mxu0 0.0
        %5907 = vmatpush2.msra.mxu0 %v5617
        %5908 = vmatprep.subr.mxu0 0.0
        %5909 = vmatpush2.msra.mxu0 %v5616
        %5910 = vmatprep.subr.mxu0 0.0
        %5911 = vmatpush2.msra.mxu0 %v5615
        %5912 = vmatprep.mubr.f32.mxu0 %v5502
        %5913 = vmatmul.mubr.f32.gmra.mxu0 %v5501
        %v5914 = vpop.f32.mrf.mxu0
        %v5915 = vadd.f32 %v5845, %v5914
        %v5916 = vpop.f32.mrf.mxu0
        %5917 = vdwg.mxu0
        %5918 = vst [vmem:[%s619] sm:$0xff] %v5915
        %s5919 = sand.u32 %s273, 1
        %s5920 = scalar_lea.sflag [#allocation4], %s5919
        %s5921 = sand.u32 %s273, 1
        %s5922 = smul.addr %s5921, 8
        %s5923 = scalar_lea.vmem [#allocation17], %s5922
        // Predicated region
        $region93: #{tpu_custom_call.1} parent=55 // pred_check
          %p5924 = pneg %p283
        $region94: #{tpu_custom_call.1} parent=55 // pred_check_branch
          %5926 = sbr.rel (%p5924) target = $region96
        $region95: #{tpu_custom_call.1} parent=55 // pred_region
          %s5928 = ssub.s32 128, 128
          %5929 = vsyncadd %s5920, %s5928
          %s5930 = smul.addr %s36, 128
          %s5931 = scalar_lea.hbm %s9, %s5930
          %s5933 = sshll.u32 %s5923, 4
          %s5934 = int_to_ptr.vmem [resolvable:$true] %s5933
          %5936 = dma.vmem_to_hbm [thread:$0]  %s5934, 128, %s5931, %s5920
        $region96: #{tpu_custom_call.1} parent=55 // pred_fallthru
          _
      $region56: #{tpu_custom_call.1} parent=5 // pred_fallthru
        _
      %p5937 = scmp.le.s32.totalorder 2, %s31
      // Predicated region
      $region97: #{tpu_custom_call.1} parent=5 // pred_check
        %p5938 = pneg %p5937
      $region98: #{tpu_custom_call.1} parent=5 // pred_check_branch
        %5940 = sbr.rel (%p5938) target = $region100
      $region99: #{tpu_custom_call.1} parent=5 // pred_region
        %s5941 = ssub.s32 %s31, 2
        // Predicated region
        $region101: #{tpu_custom_call.1} parent=99 // pred_check
          %p5942 = pneg %p289
        $region102: #{tpu_custom_call.1} parent=99 // pred_check_branch
          %5944 = sbr.rel (%p5942) target = $region104
        $region103: #{tpu_custom_call.1} parent=99 // pred_region
          %s5945 = sand.u32 %s274, 1
          %s5946 = scalar_lea.sflag [#allocation4], %s5945
          %s5947 = sand.u32 %s274, 1
          %s5948 = smul.addr %s5947, 8
          %s5949 = scalar_lea.vmem [#allocation17], %s5948
          %5950 = dma.done %s5946, 128
        $region104: #{tpu_custom_call.1} parent=99 // pred_fallthru
          _
      $region100: #{tpu_custom_call.1} parent=5 // pred_fallthru
        _
    $region6: #{tpu_custom_call.1} parent=1 // loop_footer
      %s35 = sadd.s32 1, %s31
    $region7: #{tpu_custom_call.1} parent=1 // loop_footer_branch
      %30 = sbr.rel target = $region3
    $region8: #{tpu_custom_call.1} parent=1 // loop_exit
      _
    %5951 = vsyncpa [#allocation3], 1
    %s5952 = scalar_lea.sflag [#allocation3], 1
    %5953 = vsyncpa %s5952, 1
    %5954 = vsyncpa [#allocation6], 1
    %s5955 = scalar_lea.sflag [#allocation6], 1
    %5956 = vsyncpa %s5955, 1
    %5957 = vsyncpa [#allocation9], 1
    %s5958 = scalar_lea.sflag [#allocation9], 1
    %5959 = vsyncpa %s5958, 1
    %5960 = vsyncpa [#allocation12], 1
    %s5961 = scalar_lea.sflag [#allocation12], 1
    %5962 = vsyncpa %s5961, 1
    %5963 = vsyncpa [#allocation15], 1
    %s5964 = scalar_lea.sflag [#allocation15], 1
    %5965 = vsyncpa %s5964, 1
    %5966 = vsyncpa [#allocation4], 1
    %s5967 = scalar_lea.sflag [#allocation4], 1
    %5968 = vsyncpa %s5967, 1

</llo_original>
